<compile_context>
chip_gen: v7x
topology: tpu7x:2x2x1
jax: 0.10.0
libtpu: 0.0.40
codegen_flags: <defaults>
</compile_context>

<pallas_src>
import functools
from math import sqrt

import jax
import jax.numpy as jnp
from jax.experimental import pallas as pl
from jax.experimental.pallas import tpu as pltpu

HIDDEN = 50        # torch hidden_size
H_PAD = 128        # hidden padded to one lane tile
B_PAD = 8          # batch padded to one sublane tile
F_PAD = 128        # input-feature padding
G_PAD = 4 * H_PAD  # 512: 4 gate slots, each 128-lane aligned (PyTorch order i,f,g,o)


# ------------------------------ Fused kernel --------------------------------

def _bilstm_kernel(x_ref, wih0_ref, whh0_ref, b0_ref,
                   wih1_ref, whh1_ref, b1_ref,
                   wout_ref, bout_ref,
                   out_ref,
                   l1_sc, gx_sc):
    """Whole BiLSTMNet forward in VMEM.

    x_ref    : (T, B_PAD, F_PAD)
    wih0_ref : (2, F_PAD, G_PAD)     layer-0 input weights   [0]=fwd [1]=bwd
    whh0_ref : (2, H_PAD, G_PAD)     layer-0 hidden weights
    b0_ref   : (2, 1, G_PAD)         layer-0 combined biases (b_ih + b_hh)
    wih1_ref : (2, 2*H_PAD, G_PAD)   layer-1 input weights (fwd rows 0..49, bwd rows 128..177)
    whh1_ref : (2, H_PAD, G_PAD)
    b1_ref   : (2, 1, G_PAD)
    wout_ref : (2*H_PAD, F_PAD)      head weight (column 0 valid)
    bout_ref : (1, F_PAD)
    out_ref  : (B_PAD, F_PAD)
    scratch  : l1_sc (T, B_PAD, 2*H_PAD)  layer-1 output sequence (fwd|bwd lane slots)
               gx_sc (T, B_PAD, G_PAD)    hoisted input-projection buffer (reused)
    """
    T, Bp, _ = x_ref.shape

    def lstm_gates(gates, c_prev):
        i = jax.nn.sigmoid(gates[:, 0 * H_PAD:1 * H_PAD])
        f = jax.nn.sigmoid(gates[:, 1 * H_PAD:2 * H_PAD])
        g = jnp.tanh(gates[:, 2 * H_PAD:3 * H_PAD])
        o = jax.nn.sigmoid(gates[:, 3 * H_PAD:4 * H_PAD])
        c = f * c_prev + i * g
        h = o * jnp.tanh(c)
        return h, c

    def run_direction(in_flat, wih, whh, b, reverse, store_lane):
        # Hoisted input projection for all timesteps: one big MXU op outside
        # the serial recurrence. in_flat: (T*Bp, In); wih: (In, G_PAD).
        gx = jnp.dot(in_flat, wih, preferred_element_type=jnp.float32) + b
        gx_sc[...] = gx.reshape(T, Bp, G_PAD)
        h = jnp.zeros((Bp, H_PAD), jnp.float32)
        c = jnp.zeros((Bp, H_PAD), jnp.float32)
        for t in range(T):                      # fully unrolled, static indices
            tt = (T - 1 - t) if reverse else t
            gates = gx_sc[tt] + jnp.dot(h, whh, preferred_element_type=jnp.float32)
            h, c = lstm_gates(gates, c)
            if store_lane is not None:
                l1_sc[tt, :, store_lane:store_lane + H_PAD] = h
        return h

    # ---------------- layer 1 (both directions, full sequence) ----------------
    x_flat = x_ref[...].reshape(T * Bp, F_PAD)
    run_direction(x_flat, wih0_ref[0], whh0_ref[0], b0_ref[0],
                  reverse=False, store_lane=0)
    run_direction(x_flat, wih0_ref[1], whh0_ref[1], b0_ref[1],
                  reverse=True, store_lane=H_PAD)

    # ---------------- layer 2 forward (only the final hidden is needed) -------
    l1_flat = l1_sc[...].reshape(T * Bp, 2 * H_PAD)
    h2_fwd = run_direction(l1_flat, wih1_ref[0], whh1_ref[0], b1_ref[0],
                           reverse=False, store_lane=None)

    # ---------------- layer 2 backward: only its FIRST step feeds the head ----
    # (h0 = c0 = 0, so the h @ W_hh and f-gate contributions vanish exactly.)
    gates_b = (jnp.dot(l1_sc[T - 1], wih1_ref[1], preferred_element_type=jnp.float32)
               + b1_ref[1])
    i_b = jax.nn.sigmoid(gates_b[:, 0 * H_PAD:1 * H_PAD])
    g_b = jnp.tanh(gates_b[:, 2 * H_PAD:3 * H_PAD])
    o_b = jax.nn.sigmoid(gates_b[:, 3 * H_PAD:4 * H_PAD])
    h2_bwd = o_b * jnp.tanh(i_b * g_b)

    # ---------------- output Linear (lane-aligned split instead of concat) ----
    out_ref[...] = (
        jnp.dot(h2_fwd, wout_ref[0:H_PAD, :], preferred_element_type=jnp.float32)
        + jnp.dot(h2_bwd, wout_ref[H_PAD:2 * H_PAD, :], preferred_element_type=jnp.float32)
        + bout_ref[...])


def _run_fused(x_pad, pp):
    T = x_pad.shape[0]
    vmem = pl.BlockSpec(memory_space=pltpu.MemorySpace.VMEM)
    return pl.pallas_call(
        _bilstm_kernel,
        out_shape=jax.ShapeDtypeStruct((B_PAD, F_PAD), jnp.float32),
        in_specs=[vmem] * 9,
        out_specs=vmem,
        scratch_shapes=[
            pltpu.VMEM((T, B_PAD, 2 * H_PAD), jnp.float32),  # layer-1 output seq
            pltpu.VMEM((T, B_PAD, G_PAD), jnp.float32),      # hoisted gate pre-acts
        ],
    )(x_pad, pp["wih0"], pp["whh0"], pp["b0"],
      pp["wih1"], pp["whh1"], pp["b1"], pp["w_out"], pp["b_out"])


# ----------------------------- Params & padding -----------------------------

def _uniform(key, shape, k):
    return jax.random.uniform(key, shape, jnp.float32, -k, k)


def init_params(key, input_size):
    """Same shapes & default U(-1/sqrt(H), 1/sqrt(H)) init as torch nn.LSTM / nn.Linear."""
    k = 1.0 / sqrt(HIDDEN)
    keys = iter(jax.random.split(key, 32))
    p = {}
    for layer in range(2):
        in_feat = input_size if layer == 0 else 2 * HIDDEN
        for d in ("fwd", "bwd"):
            p[f"w_ih_l{layer}_{d}"] = _uniform(next(keys), (4 * HIDDEN, in_feat), k)
            p[f"w_hh_l{layer}_{d}"] = _uniform(next(keys), (4 * HIDDEN, HIDDEN), k)
            p[f"b_ih_l{layer}_{d}"] = _uniform(next(keys), (4 * HIDDEN,), k)
            p[f"b_hh_l{layer}_{d}"] = _uniform(next(keys), (4 * HIDDEN,), k)
    klin = 1.0 / sqrt(2 * HIDDEN)
    p["out_w"] = _uniform(next(keys), (1, 2 * HIDDEN), klin)
    p["out_b"] = _uniform(next(keys), (1,), klin)
    return p


def _pad_gate_matrix(w, in_pad):
    """torch (4H, In) -> (in_pad, G_PAD); each gate in its own 128-lane slot."""
    wT = w.T
    In = wT.shape[0]
    out = jnp.zeros((in_pad, G_PAD), jnp.float32)
    for g in range(4):
        out = out.at[:In, g * H_PAD:g * H_PAD + HIDDEN].set(
            wT[:, g * HIDDEN:(g + 1) * HIDDEN])
    return out


def _pad_gate_matrix_l1(w):
    """torch (4H, 2H) -> (2*H_PAD, G_PAD); fwd-hidden rows at 0..49, bwd at 128..177."""
    wT = w.T                                  # (100, 200)
    out = jnp.zeros((2 * H_PAD, G_PAD), jnp.float32)
    for g in range(4):
        blk = wT[:, g * HIDDEN:(g + 1) * HIDDEN]
        out = out.at[:HIDDEN, g * H_PAD:g * H_PAD + HIDDEN].set(blk[:HIDDEN])
        out = out.at[H_PAD:H_PAD + HIDDEN, g * H_PAD:g * H_PAD + HIDDEN].set(blk[HIDDEN:])
    return out


def _pad_gate_bias(b):
    out = jnp.zeros((1, G_PAD), jnp.float32)
    for g in range(4):
        out = out.at[0, g * H_PAD:g * H_PAD + HIDDEN].set(b[g * HIDDEN:(g + 1) * HIDDEN])
    return out


def prepare_padded_params(p):
    """Pad / re-layout weights ONCE (outside the jitted forward)."""
    pp = {}
    pp["wih0"] = jnp.stack([_pad_gate_matrix(p[f"w_ih_l0_{d}"], F_PAD) for d in ("fwd", "bwd")])
    pp["whh0"] = jnp.stack([_pad_gate_matrix(p[f"w_hh_l0_{d}"], H_PAD) for d in ("fwd", "bwd")])
    pp["b0"] = jnp.stack([_pad_gate_bias(p[f"b_ih_l0_{d}"] + p[f"b_hh_l0_{d}"]) for d in ("fwd", "bwd")])
    pp["wih1"] = jnp.stack([_pad_gate_matrix_l1(p[f"w_ih_l1_{d}"]) for d in ("fwd", "bwd")])
    pp["whh1"] = jnp.stack([_pad_gate_matrix(p[f"w_hh_l1_{d}"], H_PAD) for d in ("fwd", "bwd")])
    pp["b1"] = jnp.stack([_pad_gate_bias(p[f"b_ih_l1_{d}"] + p[f"b_hh_l1_{d}"]) for d in ("fwd", "bwd")])
    w_out = jnp.zeros((2 * H_PAD, F_PAD), jnp.float32)
    w_out = w_out.at[:HIDDEN, 0].set(p["out_w"][0, :HIDDEN])
    w_out = w_out.at[H_PAD:H_PAD + HIDDEN, 0].set(p["out_w"][0, HIDDEN:])
    pp["w_out"] = w_out
    pp["b_out"] = jnp.zeros((1, F_PAD), jnp.float32).at[0, 0].set(p["out_b"][0])
    return pp


# ------------------------------- Forward pass -------------------------------

def bilstm_forward(padded_params, x):
    """x: (B, T, input_size), batch_first like torch. Returns (B, 1)."""
    B, T, F = x.shape
    x_pad = jnp.zeros((T, B_PAD, F_PAD), jnp.float32).at[:, :B, :F].set(
        jnp.transpose(x, (1, 0, 2)))
    out = _run_fused(x_pad, padded_params)
    return out[:B, :1]


# ------------------------- Pure-JAX reference (check) ------------------------

def _lstm_cell_ref(x_t, h, c, w_ih, w_hh, b):
    gates = x_t @ w_ih.T + h @ w_hh.T + b
    i, f, g, o = jnp.split(gates, 4, axis=-1)
    c = jax.nn.sigmoid(f) * c + jax.nn.sigmoid(i) * jnp.tanh(g)
    h = jax.nn.sigmoid(o) * jnp.tanh(c)
    return h, c


def reference_forward(params, x):
    B, T, _ = x.shape
    layer_in = x
    for layer in range(2):
        outs = []
        for d, rev in (("fwd", False), ("bwd", True)):
            w_ih = params[f"w_ih_l{layer}_{d}"]
            w_hh = params[f"w_hh_l{layer}_{d}"]
            b = params[f"b_ih_l{layer}_{d}"] + params[f"b_hh_l{layer}_{d}"]
            h = jnp.zeros((B, HIDDEN), jnp.float32)
            c = jnp.zeros((B, HIDDEN), jnp.float32)
            seq = [None] * T
            ts = range(T - 1, -1, -1) if rev else range(T)
            for t in ts:
                h, c = _lstm_cell_ref(layer_in[:, t], h, c, w_ih, w_hh, b)
                seq[t] = h
            outs.append(jnp.stack(seq, axis=1))
        layer_in = jnp.concatenate(outs, axis=-1)
    return layer_in[:, -1] @ params["out_w"].T + params["out_b"]


if __name__ == "__main__":
    key = jax.random.PRNGKey(0)
    pkey, xkey = jax.random.split(key)
    params = init_params(pkey, input_size=2)
    padded = prepare_padded_params(params)   # pad once, outside jit

    B, T = 2, 8
    x = jax.random.normal(xkey, (B, T, 2), jnp.float32)

    fwd = jax.jit(functools.partial(bilstm_forward, padded))
    out = jax.block_until_ready(fwd(x))
    assert out.shape == (B, 1), out.shape
    assert bool(jnp.all(jnp.isfinite(out)))

    ref = reference_forward(params, x)
    assert bool(jnp.allclose(out, ref, rtol=1e-3, atol=1e-3)), (out, ref)
    print("KERNEL_OK")
</pallas_src>

<mosaic_0001>
module attributes {stable_mosaic.version = 11 : i64} {
  func.func @_bilstm_kernel(%arg0: memref<8x8x128xf32, #tpu.memory_space<vmem>>, %arg1: memref<2x128x512xf32, #tpu.memory_space<vmem>>, %arg2: memref<2x128x512xf32, #tpu.memory_space<vmem>>, %arg3: memref<2x1x512xf32, #tpu.memory_space<vmem>>, %arg4: memref<2x256x512xf32, #tpu.memory_space<vmem>>, %arg5: memref<2x128x512xf32, #tpu.memory_space<vmem>>, %arg6: memref<2x1x512xf32, #tpu.memory_space<vmem>>, %arg7: memref<256x128xf32, #tpu.memory_space<vmem>>, %arg8: memref<1x128xf32, #tpu.memory_space<vmem>>, %arg9: memref<8x128xf32, #tpu.memory_space<vmem>>, %arg10: memref<8x8x256xf32, #tpu.memory_space<vmem>>, %arg11: memref<8x8x512xf32, #tpu.memory_space<vmem>>) attributes {dimension_semantics = [], scalar_prefetch = 0 : i64, scratch_operands = 2 : i64, tpu.core_type = #tpu.core_type<tc>} {
    %c0 = arith.constant 0 : index
    %c0_0 = arith.constant 0 : index
    %c0_1 = arith.constant 0 : index
    %0 = vector.load %arg0[%c0, %c0_0, %c0_1] : memref<8x8x128xf32, #tpu.memory_space<vmem>>, vector<8x8x128xf32>
    %1 = vector.shape_cast %0 : vector<8x8x128xf32> to vector<64x128xf32>
    %c0_2 = arith.constant 0 : index
    %c0_3 = arith.constant 0 : index
    %c0_4 = arith.constant 0 : index
    %2 = vector.load %arg1[%c0_2, %c0_3, %c0_4] : memref<2x128x512xf32, #tpu.memory_space<vmem>>, vector<1x128x512xf32>
    %3 = vector.shape_cast %2 : vector<1x128x512xf32> to vector<128x512xf32>
    %c0_5 = arith.constant 0 : index
    %c0_6 = arith.constant 0 : index
    %c0_7 = arith.constant 0 : index
    %4 = vector.load %arg2[%c0_5, %c0_6, %c0_7] : memref<2x128x512xf32, #tpu.memory_space<vmem>>, vector<1x128x512xf32>
    %5 = vector.shape_cast %4 : vector<1x128x512xf32> to vector<128x512xf32>
    %c0_8 = arith.constant 0 : index
    %c0_9 = arith.constant 0 : index
    %c0_10 = arith.constant 0 : index
    %6 = vector.load %arg3[%c0_8, %c0_9, %c0_10] : memref<2x1x512xf32, #tpu.memory_space<vmem>>, vector<1x1x512xf32>
    %7 = vector.shape_cast %6 : vector<1x1x512xf32> to vector<1x512xf32>
    %cst = arith.constant dense<0.000000e+00> : vector<64x512xf32>
    %8 = tpu.matmul %1, %3, %cst {dimension_numbers = #tpu.dot_dimension_numbers<[1], [0], [0], [1], [0, 0, 1, 1], [], []>} : vector<64x128xf32>, vector<128x512xf32>, vector<64x512xf32> -> vector<64x512xf32>
    %9 = vector.broadcast %7 : vector<1x512xf32> to vector<64x512xf32>
    %10 = arith.addf %8, %9 : vector<64x512xf32>
    %11 = vector.shape_cast %10 : vector<64x512xf32> to vector<8x8x512xf32>
    %c0_11 = arith.constant 0 : index
    %c0_12 = arith.constant 0 : index
    %c0_13 = arith.constant 0 : index
    %12 = vector.load %arg11[%c0_11, %c0_12, %c0_13] : memref<8x8x512xf32, #tpu.memory_space<vmem>>, vector<8x8x512xf32>
    tpu.vector_store %arg11[%c0_11, %c0_12, %c0_13], %11 {strides = array<i32>} : memref<8x8x512xf32, #tpu.memory_space<vmem>>, vector<8x8x512xf32>,
    %cst_14 = arith.constant 0.000000e+00 : f32
    %13 = vector.broadcast %cst_14 : f32 to vector<8x128xf32>
    %cst_15 = arith.constant 0.000000e+00 : f32
    %14 = vector.broadcast %cst_15 : f32 to vector<8x128xf32>
    %c0_16 = arith.constant 0 : index
    %c0_17 = arith.constant 0 : index
    %c0_18 = arith.constant 0 : index
    %15 = vector.load %arg11[%c0_16, %c0_17, %c0_18] : memref<8x8x512xf32, #tpu.memory_space<vmem>>, vector<1x8x512xf32>
    %16 = vector.shape_cast %15 : vector<1x8x512xf32> to vector<8x512xf32>
    %cst_19 = arith.constant dense<0.000000e+00> : vector<8x512xf32>
    %17 = tpu.matmul %13, %5, %cst_19 {dimension_numbers = #tpu.dot_dimension_numbers<[1], [0], [0], [1], [0, 0, 1, 1], [], []>} : vector<8x128xf32>, vector<128x512xf32>, vector<8x512xf32> -> vector<8x512xf32>
    %18 = arith.addf %16, %17 : vector<8x512xf32>
    %19 = vector.extract_strided_slice %18 {offsets = [0, 0], sizes = [8, 128], strides = [1, 1]} : vector<8x512xf32> to vector<8x128xf32>
    %20 = arith.negf %19 : vector<8x128xf32>
    %21 = math.exp %20 : vector<8x128xf32>
    %cst_20 = arith.constant 1.000000e+00 : f32
    %22 = vector.broadcast %cst_20 : f32 to vector<8x128xf32>
    %23 = arith.addf %22, %21 : vector<8x128xf32>
    %24 = arith.divf %22, %23 : vector<8x128xf32>
    %25 = vector.extract_strided_slice %18 {offsets = [0, 128], sizes = [8, 128], strides = [1, 1]} : vector<8x512xf32> to vector<8x128xf32>
    %26 = arith.negf %25 : vector<8x128xf32>
    %27 = math.exp %26 : vector<8x128xf32>
    %cst_21 = arith.constant 1.000000e+00 : f32
    %28 = vector.broadcast %cst_21 : f32 to vector<8x128xf32>
    %29 = arith.addf %28, %27 : vector<8x128xf32>
    %30 = arith.divf %28, %29 : vector<8x128xf32>
    %31 = vector.extract_strided_slice %18 {offsets = [0, 256], sizes = [8, 128], strides = [1, 1]} : vector<8x512xf32> to vector<8x128xf32>
    %32 = math.tanh %31 : vector<8x128xf32>
    %33 = vector.extract_strided_slice %18 {offsets = [0, 384], sizes = [8, 128], strides = [1, 1]} : vector<8x512xf32> to vector<8x128xf32>
    %34 = arith.negf %33 : vector<8x128xf32>
    %35 = math.exp %34 : vector<8x128xf32>
    %cst_22 = arith.constant 1.000000e+00 : f32
    %36 = vector.broadcast %cst_22 : f32 to vector<8x128xf32>
    %37 = arith.addf %36, %35 : vector<8x128xf32>
    %38 = arith.divf %36, %37 : vector<8x128xf32>
    %39 = arith.mulf %30, %14 : vector<8x128xf32>
    %40 = arith.mulf %24, %32 : vector<8x128xf32>
    %41 = arith.addf %39, %40 : vector<8x128xf32>
    %42 = math.tanh %41 : vector<8x128xf32>
    %43 = arith.mulf %38, %42 : vector<8x128xf32>
    %c0_23 = arith.constant 0 : index
    %c0_24 = arith.constant 0 : index
    %c0_25 = arith.constant 0 : index
    %44 = vector.load %arg10[%c0_23, %c0_24, %c0_25] : memref<8x8x256xf32, #tpu.memory_space<vmem>>, vector<1x8x128xf32>
    %45 = vector.shape_cast %44 : vector<1x8x128xf32> to vector<8x128xf32>
    %46 = vector.shape_cast %43 : vector<8x128xf32> to vector<1x8x128xf32>
    tpu.vector_store %arg10[%c0_23, %c0_24, %c0_25], %46 {strides = array<i32>} : memref<8x8x256xf32, #tpu.memory_space<vmem>>, vector<1x8x128xf32>,
    %c1 = arith.constant 1 : index
    %c0_26 = arith.constant 0 : index
    %c0_27 = arith.constant 0 : index
    %47 = vector.load %arg11[%c1, %c0_26, %c0_27] : memref<8x8x512xf32, #tpu.memory_space<vmem>>, vector<1x8x512xf32>
    %48 = vector.shape_cast %47 : vector<1x8x512xf32> to vector<8x512xf32>
    %cst_28 = arith.constant dense<0.000000e+00> : vector<8x512xf32>
    %49 = tpu.matmul %43, %5, %cst_28 {dimension_numbers = #tpu.dot_dimension_numbers<[1], [0], [0], [1], [0, 0, 1, 1], [], []>} : vector<8x128xf32>, vector<128x512xf32>, vector<8x512xf32> -> vector<8x512xf32>
    %50 = arith.addf %48, %49 : vector<8x512xf32>
    %51 = vector.extract_strided_slice %50 {offsets = [0, 0], sizes = [8, 128], strides = [1, 1]} : vector<8x512xf32> to vector<8x128xf32>
    %52 = arith.negf %51 : vector<8x128xf32>
    %53 = math.exp %52 : vector<8x128xf32>
    %cst_29 = arith.constant 1.000000e+00 : f32
    %54 = vector.broadcast %cst_29 : f32 to vector<8x128xf32>
    %55 = arith.addf %54, %53 : vector<8x128xf32>
    %56 = arith.divf %54, %55 : vector<8x128xf32>
    %57 = vector.extract_strided_slice %50 {offsets = [0, 128], sizes = [8, 128], strides = [1, 1]} : vector<8x512xf32> to vector<8x128xf32>
    %58 = arith.negf %57 : vector<8x128xf32>
    %59 = math.exp %58 : vector<8x128xf32>
    %cst_30 = arith.constant 1.000000e+00 : f32
    %60 = vector.broadcast %cst_30 : f32 to vector<8x128xf32>
    %61 = arith.addf %60, %59 : vector<8x128xf32>
    %62 = arith.divf %60, %61 : vector<8x128xf32>
    %63 = vector.extract_strided_slice %50 {offsets = [0, 256], sizes = [8, 128], strides = [1, 1]} : vector<8x512xf32> to vector<8x128xf32>
    %64 = math.tanh %63 : vector<8x128xf32>
    %65 = vector.extract_strided_slice %50 {offsets = [0, 384], sizes = [8, 128], strides = [1, 1]} : vector<8x512xf32> to vector<8x128xf32>
    %66 = arith.negf %65 : vector<8x128xf32>
    %67 = math.exp %66 : vector<8x128xf32>
    %cst_31 = arith.constant 1.000000e+00 : f32
    %68 = vector.broadcast %cst_31 : f32 to vector<8x128xf32>
    %69 = arith.addf %68, %67 : vector<8x128xf32>
    %70 = arith.divf %68, %69 : vector<8x128xf32>
    %71 = arith.mulf %62, %41 : vector<8x128xf32>
    %72 = arith.mulf %56, %64 : vector<8x128xf32>
    %73 = arith.addf %71, %72 : vector<8x128xf32>
    %74 = math.tanh %73 : vector<8x128xf32>
    %75 = arith.mulf %70, %74 : vector<8x128xf32>
    %c1_32 = arith.constant 1 : index
    %c0_33 = arith.constant 0 : index
    %c0_34 = arith.constant 0 : index
    %76 = vector.load %arg10[%c1_32, %c0_33, %c0_34] : memref<8x8x256xf32, #tpu.memory_space<vmem>>, vector<1x8x128xf32>
    %77 = vector.shape_cast %76 : vector<1x8x128xf32> to vector<8x128xf32>
    %78 = vector.shape_cast %75 : vector<8x128xf32> to vector<1x8x128xf32>
    tpu.vector_store %arg10[%c1_32, %c0_33, %c0_34], %78 {strides = array<i32>} : memref<8x8x256xf32, #tpu.memory_space<vmem>>, vector<1x8x128xf32>,
    %c2 = arith.constant 2 : index
    %c0_35 = arith.constant 0 : index
    %c0_36 = arith.constant 0 : index
    %79 = vector.load %arg11[%c2, %c0_35, %c0_36] : memref<8x8x512xf32, #tpu.memory_space<vmem>>, vector<1x8x512xf32>
    %80 = vector.shape_cast %79 : vector<1x8x512xf32> to vector<8x512xf32>
    %cst_37 = arith.constant dense<0.000000e+00> : vector<8x512xf32>
    %81 = tpu.matmul %75, %5, %cst_37 {dimension_numbers = #tpu.dot_dimension_numbers<[1], [0], [0], [1], [0, 0, 1, 1], [], []>} : vector<8x128xf32>, vector<128x512xf32>, vector<8x512xf32> -> vector<8x512xf32>
    %82 = arith.addf %80, %81 : vector<8x512xf32>
    %83 = vector.extract_strided_slice %82 {offsets = [0, 0], sizes = [8, 128], strides = [1, 1]} : vector<8x512xf32> to vector<8x128xf32>
    %84 = arith.negf %83 : vector<8x128xf32>
    %85 = math.exp %84 : vector<8x128xf32>
    %cst_38 = arith.constant 1.000000e+00 : f32
    %86 = vector.broadcast %cst_38 : f32 to vector<8x128xf32>
    %87 = arith.addf %86, %85 : vector<8x128xf32>
    %88 = arith.divf %86, %87 : vector<8x128xf32>
    %89 = vector.extract_strided_slice %82 {offsets = [0, 128], sizes = [8, 128], strides = [1, 1]} : vector<8x512xf32> to vector<8x128xf32>
    %90 = arith.negf %89 : vector<8x128xf32>
    %91 = math.exp %90 : vector<8x128xf32>
    %cst_39 = arith.constant 1.000000e+00 : f32
    %92 = vector.broadcast %cst_39 : f32 to vector<8x128xf32>
    %93 = arith.addf %92, %91 : vector<8x128xf32>
    %94 = arith.divf %92, %93 : vector<8x128xf32>
    %95 = vector.extract_strided_slice %82 {offsets = [0, 256], sizes = [8, 128], strides = [1, 1]} : vector<8x512xf32> to vector<8x128xf32>
    %96 = math.tanh %95 : vector<8x128xf32>
    %97 = vector.extract_strided_slice %82 {offsets = [0, 384], sizes = [8, 128], strides = [1, 1]} : vector<8x512xf32> to vector<8x128xf32>
    %98 = arith.negf %97 : vector<8x128xf32>
    %99 = math.exp %98 : vector<8x128xf32>
    %cst_40 = arith.constant 1.000000e+00 : f32
    %100 = vector.broadcast %cst_40 : f32 to vector<8x128xf32>
    %101 = arith.addf %100, %99 : vector<8x128xf32>
    %102 = arith.divf %100, %101 : vector<8x128xf32>
    %103 = arith.mulf %94, %73 : vector<8x128xf32>
    %104 = arith.mulf %88, %96 : vector<8x128xf32>
    %105 = arith.addf %103, %104 : vector<8x128xf32>
    %106 = math.tanh %105 : vector<8x128xf32>
    %107 = arith.mulf %102, %106 : vector<8x128xf32>
    %c2_41 = arith.constant 2 : index
    %c0_42 = arith.constant 0 : index
    %c0_43 = arith.constant 0 : index
    %108 = vector.load %arg10[%c2_41, %c0_42, %c0_43] : memref<8x8x256xf32, #tpu.memory_space<vmem>>, vector<1x8x128xf32>
    %109 = vector.shape_cast %108 : vector<1x8x128xf32> to vector<8x128xf32>
    %110 = vector.shape_cast %107 : vector<8x128xf32> to vector<1x8x128xf32>
    tpu.vector_store %arg10[%c2_41, %c0_42, %c0_43], %110 {strides = array<i32>} : memref<8x8x256xf32, #tpu.memory_space<vmem>>, vector<1x8x128xf32>,
    %c3 = arith.constant 3 : index
    %c0_44 = arith.constant 0 : index
    %c0_45 = arith.constant 0 : index
    %111 = vector.load %arg11[%c3, %c0_44, %c0_45] : memref<8x8x512xf32, #tpu.memory_space<vmem>>, vector<1x8x512xf32>
    %112 = vector.shape_cast %111 : vector<1x8x512xf32> to vector<8x512xf32>
    %cst_46 = arith.constant dense<0.000000e+00> : vector<8x512xf32>
    %113 = tpu.matmul %107, %5, %cst_46 {dimension_numbers = #tpu.dot_dimension_numbers<[1], [0], [0], [1], [0, 0, 1, 1], [], []>} : vector<8x128xf32>, vector<128x512xf32>, vector<8x512xf32> -> vector<8x512xf32>
    %114 = arith.addf %112, %113 : vector<8x512xf32>
    %115 = vector.extract_strided_slice %114 {offsets = [0, 0], sizes = [8, 128], strides = [1, 1]} : vector<8x512xf32> to vector<8x128xf32>
    %116 = arith.negf %115 : vector<8x128xf32>
    %117 = math.exp %116 : vector<8x128xf32>
    %cst_47 = arith.constant 1.000000e+00 : f32
    %118 = vector.broadcast %cst_47 : f32 to vector<8x128xf32>
    %119 = arith.addf %118, %117 : vector<8x128xf32>
    %120 = arith.divf %118, %119 : vector<8x128xf32>
    %121 = vector.extract_strided_slice %114 {offsets = [0, 128], sizes = [8, 128], strides = [1, 1]} : vector<8x512xf32> to vector<8x128xf32>
    %122 = arith.negf %121 : vector<8x128xf32>
    %123 = math.exp %122 : vector<8x128xf32>
    %cst_48 = arith.constant 1.000000e+00 : f32
    %124 = vector.broadcast %cst_48 : f32 to vector<8x128xf32>
    %125 = arith.addf %124, %123 : vector<8x128xf32>
    %126 = arith.divf %124, %125 : vector<8x128xf32>
    %127 = vector.extract_strided_slice %114 {offsets = [0, 256], sizes = [8, 128], strides = [1, 1]} : vector<8x512xf32> to vector<8x128xf32>
    %128 = math.tanh %127 : vector<8x128xf32>
    %129 = vector.extract_strided_slice %114 {offsets = [0, 384], sizes = [8, 128], strides = [1, 1]} : vector<8x512xf32> to vector<8x128xf32>
    %130 = arith.negf %129 : vector<8x128xf32>
    %131 = math.exp %130 : vector<8x128xf32>
    %cst_49 = arith.constant 1.000000e+00 : f32
    %132 = vector.broadcast %cst_49 : f32 to vector<8x128xf32>
    %133 = arith.addf %132, %131 : vector<8x128xf32>
    %134 = arith.divf %132, %133 : vector<8x128xf32>
    %135 = arith.mulf %126, %105 : vector<8x128xf32>
    %136 = arith.mulf %120, %128 : vector<8x128xf32>
    %137 = arith.addf %135, %136 : vector<8x128xf32>
    %138 = math.tanh %137 : vector<8x128xf32>
    %139 = arith.mulf %134, %138 : vector<8x128xf32>
    %c3_50 = arith.constant 3 : index
    %c0_51 = arith.constant 0 : index
    %c0_52 = arith.constant 0 : index
    %140 = vector.load %arg10[%c3_50, %c0_51, %c0_52] : memref<8x8x256xf32, #tpu.memory_space<vmem>>, vector<1x8x128xf32>
    %141 = vector.shape_cast %140 : vector<1x8x128xf32> to vector<8x128xf32>
    %142 = vector.shape_cast %139 : vector<8x128xf32> to vector<1x8x128xf32>
    tpu.vector_store %arg10[%c3_50, %c0_51, %c0_52], %142 {strides = array<i32>} : memref<8x8x256xf32, #tpu.memory_space<vmem>>, vector<1x8x128xf32>,
    %c4 = arith.constant 4 : index
    %c0_53 = arith.constant 0 : index
    %c0_54 = arith.constant 0 : index
    %143 = vector.load %arg11[%c4, %c0_53, %c0_54] : memref<8x8x512xf32, #tpu.memory_space<vmem>>, vector<1x8x512xf32>
    %144 = vector.shape_cast %143 : vector<1x8x512xf32> to vector<8x512xf32>
    %cst_55 = arith.constant dense<0.000000e+00> : vector<8x512xf32>
    %145 = tpu.matmul %139, %5, %cst_55 {dimension_numbers = #tpu.dot_dimension_numbers<[1], [0], [0], [1], [0, 0, 1, 1], [], []>} : vector<8x128xf32>, vector<128x512xf32>, vector<8x512xf32> -> vector<8x512xf32>
    %146 = arith.addf %144, %145 : vector<8x512xf32>
    %147 = vector.extract_strided_slice %146 {offsets = [0, 0], sizes = [8, 128], strides = [1, 1]} : vector<8x512xf32> to vector<8x128xf32>
    %148 = arith.negf %147 : vector<8x128xf32>
    %149 = math.exp %148 : vector<8x128xf32>
    %cst_56 = arith.constant 1.000000e+00 : f32
    %150 = vector.broadcast %cst_56 : f32 to vector<8x128xf32>
    %151 = arith.addf %150, %149 : vector<8x128xf32>
    %152 = arith.divf %150, %151 : vector<8x128xf32>
    %153 = vector.extract_strided_slice %146 {offsets = [0, 128], sizes = [8, 128], strides = [1, 1]} : vector<8x512xf32> to vector<8x128xf32>
    %154 = arith.negf %153 : vector<8x128xf32>
    %155 = math.exp %154 : vector<8x128xf32>
    %cst_57 = arith.constant 1.000000e+00 : f32
    %156 = vector.broadcast %cst_57 : f32 to vector<8x128xf32>
    %157 = arith.addf %156, %155 : vector<8x128xf32>
    %158 = arith.divf %156, %157 : vector<8x128xf32>
    %159 = vector.extract_strided_slice %146 {offsets = [0, 256], sizes = [8, 128], strides = [1, 1]} : vector<8x512xf32> to vector<8x128xf32>
    %160 = math.tanh %159 : vector<8x128xf32>
    %161 = vector.extract_strided_slice %146 {offsets = [0, 384], sizes = [8, 128], strides = [1, 1]} : vector<8x512xf32> to vector<8x128xf32>
    %162 = arith.negf %161 : vector<8x128xf32>
    %163 = math.exp %162 : vector<8x128xf32>
    %cst_58 = arith.constant 1.000000e+00 : f32
    %164 = vector.broadcast %cst_58 : f32 to vector<8x128xf32>
    %165 = arith.addf %164, %163 : vector<8x128xf32>
    %166 = arith.divf %164, %165 : vector<8x128xf32>
    %167 = arith.mulf %158, %137 : vector<8x128xf32>
    %168 = arith.mulf %152, %160 : vector<8x128xf32>
    %169 = arith.addf %167, %168 : vector<8x128xf32>
    %170 = math.tanh %169 : vector<8x128xf32>
    %171 = arith.mulf %166, %170 : vector<8x128xf32>
    %c4_59 = arith.constant 4 : index
    %c0_60 = arith.constant 0 : index
    %c0_61 = arith.constant 0 : index
    %172 = vector.load %arg10[%c4_59, %c0_60, %c0_61] : memref<8x8x256xf32, #tpu.memory_space<vmem>>, vector<1x8x128xf32>
    %173 = vector.shape_cast %172 : vector<1x8x128xf32> to vector<8x128xf32>
    %174 = vector.shape_cast %171 : vector<8x128xf32> to vector<1x8x128xf32>
    tpu.vector_store %arg10[%c4_59, %c0_60, %c0_61], %174 {strides = array<i32>} : memref<8x8x256xf32, #tpu.memory_space<vmem>>, vector<1x8x128xf32>,
    %c5 = arith.constant 5 : index
    %c0_62 = arith.constant 0 : index
    %c0_63 = arith.constant 0 : index
    %175 = vector.load %arg11[%c5, %c0_62, %c0_63] : memref<8x8x512xf32, #tpu.memory_space<vmem>>, vector<1x8x512xf32>
    %176 = vector.shape_cast %175 : vector<1x8x512xf32> to vector<8x512xf32>
    %cst_64 = arith.constant dense<0.000000e+00> : vector<8x512xf32>
    %177 = tpu.matmul %171, %5, %cst_64 {dimension_numbers = #tpu.dot_dimension_numbers<[1], [0], [0], [1], [0, 0, 1, 1], [], []>} : vector<8x128xf32>, vector<128x512xf32>, vector<8x512xf32> -> vector<8x512xf32>
    %178 = arith.addf %176, %177 : vector<8x512xf32>
    %179 = vector.extract_strided_slice %178 {offsets = [0, 0], sizes = [8, 128], strides = [1, 1]} : vector<8x512xf32> to vector<8x128xf32>
    %180 = arith.negf %179 : vector<8x128xf32>
    %181 = math.exp %180 : vector<8x128xf32>
    %cst_65 = arith.constant 1.000000e+00 : f32
    %182 = vector.broadcast %cst_65 : f32 to vector<8x128xf32>
    %183 = arith.addf %182, %181 : vector<8x128xf32>
    %184 = arith.divf %182, %183 : vector<8x128xf32>
    %185 = vector.extract_strided_slice %178 {offsets = [0, 128], sizes = [8, 128], strides = [1, 1]} : vector<8x512xf32> to vector<8x128xf32>
    %186 = arith.negf %185 : vector<8x128xf32>
    %187 = math.exp %186 : vector<8x128xf32>
    %cst_66 = arith.constant 1.000000e+00 : f32
    %188 = vector.broadcast %cst_66 : f32 to vector<8x128xf32>
    %189 = arith.addf %188, %187 : vector<8x128xf32>
    %190 = arith.divf %188, %189 : vector<8x128xf32>
    %191 = vector.extract_strided_slice %178 {offsets = [0, 256], sizes = [8, 128], strides = [1, 1]} : vector<8x512xf32> to vector<8x128xf32>
    %192 = math.tanh %191 : vector<8x128xf32>
    %193 = vector.extract_strided_slice %178 {offsets = [0, 384], sizes = [8, 128], strides = [1, 1]} : vector<8x512xf32> to vector<8x128xf32>
    %194 = arith.negf %193 : vector<8x128xf32>
    %195 = math.exp %194 : vector<8x128xf32>
    %cst_67 = arith.constant 1.000000e+00 : f32
    %196 = vector.broadcast %cst_67 : f32 to vector<8x128xf32>
    %197 = arith.addf %196, %195 : vector<8x128xf32>
    %198 = arith.divf %196, %197 : vector<8x128xf32>
    %199 = arith.mulf %190, %169 : vector<8x128xf32>
    %200 = arith.mulf %184, %192 : vector<8x128xf32>
    %201 = arith.addf %199, %200 : vector<8x128xf32>
    %202 = math.tanh %201 : vector<8x128xf32>
    %203 = arith.mulf %198, %202 : vector<8x128xf32>
    %c5_68 = arith.constant 5 : index
    %c0_69 = arith.constant 0 : index
    %c0_70 = arith.constant 0 : index
    %204 = vector.load %arg10[%c5_68, %c0_69, %c0_70] : memref<8x8x256xf32, #tpu.memory_space<vmem>>, vector<1x8x128xf32>
    %205 = vector.shape_cast %204 : vector<1x8x128xf32> to vector<8x128xf32>
    %206 = vector.shape_cast %203 : vector<8x128xf32> to vector<1x8x128xf32>
    tpu.vector_store %arg10[%c5_68, %c0_69, %c0_70], %206 {strides = array<i32>} : memref<8x8x256xf32, #tpu.memory_space<vmem>>, vector<1x8x128xf32>,
    %c6 = arith.constant 6 : index
    %c0_71 = arith.constant 0 : index
    %c0_72 = arith.constant 0 : index
    %207 = vector.load %arg11[%c6, %c0_71, %c0_72] : memref<8x8x512xf32, #tpu.memory_space<vmem>>, vector<1x8x512xf32>
    %208 = vector.shape_cast %207 : vector<1x8x512xf32> to vector<8x512xf32>
    %cst_73 = arith.constant dense<0.000000e+00> : vector<8x512xf32>
    %209 = tpu.matmul %203, %5, %cst_73 {dimension_numbers = #tpu.dot_dimension_numbers<[1], [0], [0], [1], [0, 0, 1, 1], [], []>} : vector<8x128xf32>, vector<128x512xf32>, vector<8x512xf32> -> vector<8x512xf32>
    %210 = arith.addf %208, %209 : vector<8x512xf32>
    %211 = vector.extract_strided_slice %210 {offsets = [0, 0], sizes = [8, 128], strides = [1, 1]} : vector<8x512xf32> to vector<8x128xf32>
    %212 = arith.negf %211 : vector<8x128xf32>
    %213 = math.exp %212 : vector<8x128xf32>
    %cst_74 = arith.constant 1.000000e+00 : f32
    %214 = vector.broadcast %cst_74 : f32 to vector<8x128xf32>
    %215 = arith.addf %214, %213 : vector<8x128xf32>
    %216 = arith.divf %214, %215 : vector<8x128xf32>
    %217 = vector.extract_strided_slice %210 {offsets = [0, 128], sizes = [8, 128], strides = [1, 1]} : vector<8x512xf32> to vector<8x128xf32>
    %218 = arith.negf %217 : vector<8x128xf32>
    %219 = math.exp %218 : vector<8x128xf32>
    %cst_75 = arith.constant 1.000000e+00 : f32
    %220 = vector.broadcast %cst_75 : f32 to vector<8x128xf32>
    %221 = arith.addf %220, %219 : vector<8x128xf32>
    %222 = arith.divf %220, %221 : vector<8x128xf32>
    %223 = vector.extract_strided_slice %210 {offsets = [0, 256], sizes = [8, 128], strides = [1, 1]} : vector<8x512xf32> to vector<8x128xf32>
    %224 = math.tanh %223 : vector<8x128xf32>
    %225 = vector.extract_strided_slice %210 {offsets = [0, 384], sizes = [8, 128], strides = [1, 1]} : vector<8x512xf32> to vector<8x128xf32>
    %226 = arith.negf %225 : vector<8x128xf32>
    %227 = math.exp %226 : vector<8x128xf32>
    %cst_76 = arith.constant 1.000000e+00 : f32
    %228 = vector.broadcast %cst_76 : f32 to vector<8x128xf32>
    %229 = arith.addf %228, %227 : vector<8x128xf32>
    %230 = arith.divf %228, %229 : vector<8x128xf32>
    %231 = arith.mulf %222, %201 : vector<8x128xf32>
    %232 = arith.mulf %216, %224 : vector<8x128xf32>
    %233 = arith.addf %231, %232 : vector<8x128xf32>
    %234 = math.tanh %233 : vector<8x128xf32>
    %235 = arith.mulf %230, %234 : vector<8x128xf32>
    %c6_77 = arith.constant 6 : index
    %c0_78 = arith.constant 0 : index
    %c0_79 = arith.constant 0 : index
    %236 = vector.load %arg10[%c6_77, %c0_78, %c0_79] : memref<8x8x256xf32, #tpu.memory_space<vmem>>, vector<1x8x128xf32>
    %237 = vector.shape_cast %236 : vector<1x8x128xf32> to vector<8x128xf32>
    %238 = vector.shape_cast %235 : vector<8x128xf32> to vector<1x8x128xf32>
    tpu.vector_store %arg10[%c6_77, %c0_78, %c0_79], %238 {strides = array<i32>} : memref<8x8x256xf32, #tpu.memory_space<vmem>>, vector<1x8x128xf32>,
    %c7 = arith.constant 7 : index
    %c0_80 = arith.constant 0 : index
    %c0_81 = arith.constant 0 : index
    %239 = vector.load %arg11[%c7, %c0_80, %c0_81] : memref<8x8x512xf32, #tpu.memory_space<vmem>>, vector<1x8x512xf32>
    %240 = vector.shape_cast %239 : vector<1x8x512xf32> to vector<8x512xf32>
    %cst_82 = arith.constant dense<0.000000e+00> : vector<8x512xf32>
    %241 = tpu.matmul %235, %5, %cst_82 {dimension_numbers = #tpu.dot_dimension_numbers<[1], [0], [0], [1], [0, 0, 1, 1], [], []>} : vector<8x128xf32>, vector<128x512xf32>, vector<8x512xf32> -> vector<8x512xf32>
    %242 = arith.addf %240, %241 : vector<8x512xf32>
    %243 = vector.extract_strided_slice %242 {offsets = [0, 0], sizes = [8, 128], strides = [1, 1]} : vector<8x512xf32> to vector<8x128xf32>
    %244 = arith.negf %243 : vector<8x128xf32>
    %245 = math.exp %244 : vector<8x128xf32>
    %cst_83 = arith.constant 1.000000e+00 : f32
    %246 = vector.broadcast %cst_83 : f32 to vector<8x128xf32>
    %247 = arith.addf %246, %245 : vector<8x128xf32>
    %248 = arith.divf %246, %247 : vector<8x128xf32>
    %249 = vector.extract_strided_slice %242 {offsets = [0, 128], sizes = [8, 128], strides = [1, 1]} : vector<8x512xf32> to vector<8x128xf32>
    %250 = arith.negf %249 : vector<8x128xf32>
    %251 = math.exp %250 : vector<8x128xf32>
    %cst_84 = arith.constant 1.000000e+00 : f32
    %252 = vector.broadcast %cst_84 : f32 to vector<8x128xf32>
    %253 = arith.addf %252, %251 : vector<8x128xf32>
    %254 = arith.divf %252, %253 : vector<8x128xf32>
    %255 = vector.extract_strided_slice %242 {offsets = [0, 256], sizes = [8, 128], strides = [1, 1]} : vector<8x512xf32> to vector<8x128xf32>
    %256 = math.tanh %255 : vector<8x128xf32>
    %257 = vector.extract_strided_slice %242 {offsets = [0, 384], sizes = [8, 128], strides = [1, 1]} : vector<8x512xf32> to vector<8x128xf32>
    %258 = arith.negf %257 : vector<8x128xf32>
    %259 = math.exp %258 : vector<8x128xf32>
    %cst_85 = arith.constant 1.000000e+00 : f32
    %260 = vector.broadcast %cst_85 : f32 to vector<8x128xf32>
    %261 = arith.addf %260, %259 : vector<8x128xf32>
    %262 = arith.divf %260, %261 : vector<8x128xf32>
    %263 = arith.mulf %254, %233 : vector<8x128xf32>
    %264 = arith.mulf %248, %256 : vector<8x128xf32>
    %265 = arith.addf %263, %264 : vector<8x128xf32>
    %266 = math.tanh %265 : vector<8x128xf32>
    %267 = arith.mulf %262, %266 : vector<8x128xf32>
    %c7_86 = arith.constant 7 : index
    %c0_87 = arith.constant 0 : index
    %c0_88 = arith.constant 0 : index
    %268 = vector.load %arg10[%c7_86, %c0_87, %c0_88] : memref<8x8x256xf32, #tpu.memory_space<vmem>>, vector<1x8x128xf32>
    %269 = vector.shape_cast %268 : vector<1x8x128xf32> to vector<8x128xf32>
    %270 = vector.shape_cast %267 : vector<8x128xf32> to vector<1x8x128xf32>
    tpu.vector_store %arg10[%c7_86, %c0_87, %c0_88], %270 {strides = array<i32>} : memref<8x8x256xf32, #tpu.memory_space<vmem>>, vector<1x8x128xf32>,
    %c1_89 = arith.constant 1 : index
    %c0_90 = arith.constant 0 : index
    %c0_91 = arith.constant 0 : index
    %271 = vector.load %arg1[%c1_89, %c0_90, %c0_91] : memref<2x128x512xf32, #tpu.memory_space<vmem>>, vector<1x128x512xf32>
    %272 = vector.shape_cast %271 : vector<1x128x512xf32> to vector<128x512xf32>
    %c1_92 = arith.constant 1 : index
    %c0_93 = arith.constant 0 : index
    %c0_94 = arith.constant 0 : index
    %273 = vector.load %arg2[%c1_92, %c0_93, %c0_94] : memref<2x128x512xf32, #tpu.memory_space<vmem>>, vector<1x128x512xf32>
    %274 = vector.shape_cast %273 : vector<1x128x512xf32> to vector<128x512xf32>
    %c1_95 = arith.constant 1 : index
    %c0_96 = arith.constant 0 : index
    %c0_97 = arith.constant 0 : index
    %275 = vector.load %arg3[%c1_95, %c0_96, %c0_97] : memref<2x1x512xf32, #tpu.memory_space<vmem>>, vector<1x1x512xf32>
    %276 = vector.shape_cast %275 : vector<1x1x512xf32> to vector<1x512xf32>
    %cst_98 = arith.constant dense<0.000000e+00> : vector<64x512xf32>
    %277 = tpu.matmul %1, %272, %cst_98 {dimension_numbers = #tpu.dot_dimension_numbers<[1], [0], [0], [1], [0, 0, 1, 1], [], []>} : vector<64x128xf32>, vector<128x512xf32>, vector<64x512xf32> -> vector<64x512xf32>
    %278 = vector.broadcast %276 : vector<1x512xf32> to vector<64x512xf32>
    %279 = arith.addf %277, %278 : vector<64x512xf32>
    %280 = vector.shape_cast %279 : vector<64x512xf32> to vector<8x8x512xf32>
    %c0_99 = arith.constant 0 : index
    %c0_100 = arith.constant 0 : index
    %c0_101 = arith.constant 0 : index
    %281 = vector.load %arg11[%c0_99, %c0_100, %c0_101] : memref<8x8x512xf32, #tpu.memory_space<vmem>>, vector<8x8x512xf32>
    tpu.vector_store %arg11[%c0_99, %c0_100, %c0_101], %280 {strides = array<i32>} : memref<8x8x512xf32, #tpu.memory_space<vmem>>, vector<8x8x512xf32>,
    %cst_102 = arith.constant 0.000000e+00 : f32
    %282 = vector.broadcast %cst_102 : f32 to vector<8x128xf32>
    %cst_103 = arith.constant 0.000000e+00 : f32
    %283 = vector.broadcast %cst_103 : f32 to vector<8x128xf32>
    %c7_104 = arith.constant 7 : index
    %c0_105 = arith.constant 0 : index
    %c0_106 = arith.constant 0 : index
    %284 = vector.load %arg11[%c7_104, %c0_105, %c0_106] : memref<8x8x512xf32, #tpu.memory_space<vmem>>, vector<1x8x512xf32>
    %285 = vector.shape_cast %284 : vector<1x8x512xf32> to vector<8x512xf32>
    %cst_107 = arith.constant dense<0.000000e+00> : vector<8x512xf32>
    %286 = tpu.matmul %282, %274, %cst_107 {dimension_numbers = #tpu.dot_dimension_numbers<[1], [0], [0], [1], [0, 0, 1, 1], [], []>} : vector<8x128xf32>, vector<128x512xf32>, vector<8x512xf32> -> vector<8x512xf32>
    %287 = arith.addf %285, %286 : vector<8x512xf32>
    %288 = vector.extract_strided_slice %287 {offsets = [0, 0], sizes = [8, 128], strides = [1, 1]} : vector<8x512xf32> to vector<8x128xf32>
    %289 = arith.negf %288 : vector<8x128xf32>
    %290 = math.exp %289 : vector<8x128xf32>
    %cst_108 = arith.constant 1.000000e+00 : f32
    %291 = vector.broadcast %cst_108 : f32 to vector<8x128xf32>
    %292 = arith.addf %291, %290 : vector<8x128xf32>
    %293 = arith.divf %291, %292 : vector<8x128xf32>
    %294 = vector.extract_strided_slice %287 {offsets = [0, 128], sizes = [8, 128], strides = [1, 1]} : vector<8x512xf32> to vector<8x128xf32>
    %295 = arith.negf %294 : vector<8x128xf32>
    %296 = math.exp %295 : vector<8x128xf32>
    %cst_109 = arith.constant 1.000000e+00 : f32
    %297 = vector.broadcast %cst_109 : f32 to vector<8x128xf32>
    %298 = arith.addf %297, %296 : vector<8x128xf32>
    %299 = arith.divf %297, %298 : vector<8x128xf32>
    %300 = vector.extract_strided_slice %287 {offsets = [0, 256], sizes = [8, 128], strides = [1, 1]} : vector<8x512xf32> to vector<8x128xf32>
    %301 = math.tanh %300 : vector<8x128xf32>
    %302 = vector.extract_strided_slice %287 {offsets = [0, 384], sizes = [8, 128], strides = [1, 1]} : vector<8x512xf32> to vector<8x128xf32>
    %303 = arith.negf %302 : vector<8x128xf32>
    %304 = math.exp %303 : vector<8x128xf32>
    %cst_110 = arith.constant 1.000000e+00 : f32
    %305 = vector.broadcast %cst_110 : f32 to vector<8x128xf32>
    %306 = arith.addf %305, %304 : vector<8x128xf32>
    %307 = arith.divf %305, %306 : vector<8x128xf32>
    %308 = arith.mulf %299, %283 : vector<8x128xf32>
    %309 = arith.mulf %293, %301 : vector<8x128xf32>
    %310 = arith.addf %308, %309 : vector<8x128xf32>
    %311 = math.tanh %310 : vector<8x128xf32>
    %312 = arith.mulf %307, %311 : vector<8x128xf32>
    %c7_111 = arith.constant 7 : index
    %c0_112 = arith.constant 0 : index
    %c128 = arith.constant 128 : index
    %313 = vector.load %arg10[%c7_111, %c0_112, %c128] : memref<8x8x256xf32, #tpu.memory_space<vmem>>, vector<1x8x128xf32>
    %314 = vector.shape_cast %313 : vector<1x8x128xf32> to vector<8x128xf32>
    %315 = vector.shape_cast %312 : vector<8x128xf32> to vector<1x8x128xf32>
    tpu.vector_store %arg10[%c7_111, %c0_112, %c128], %315 {strides = array<i32>} : memref<8x8x256xf32, #tpu.memory_space<vmem>>, vector<1x8x128xf32>,
    %c6_113 = arith.constant 6 : index
    %c0_114 = arith.constant 0 : index
    %c0_115 = arith.constant 0 : index
    %316 = vector.load %arg11[%c6_113, %c0_114, %c0_115] : memref<8x8x512xf32, #tpu.memory_space<vmem>>, vector<1x8x512xf32>
    %317 = vector.shape_cast %316 : vector<1x8x512xf32> to vector<8x512xf32>
    %cst_116 = arith.constant dense<0.000000e+00> : vector<8x512xf32>
    %318 = tpu.matmul %312, %274, %cst_116 {dimension_numbers = #tpu.dot_dimension_numbers<[1], [0], [0], [1], [0, 0, 1, 1], [], []>} : vector<8x128xf32>, vector<128x512xf32>, vector<8x512xf32> -> vector<8x512xf32>
    %319 = arith.addf %317, %318 : vector<8x512xf32>
    %320 = vector.extract_strided_slice %319 {offsets = [0, 0], sizes = [8, 128], strides = [1, 1]} : vector<8x512xf32> to vector<8x128xf32>
    %321 = arith.negf %320 : vector<8x128xf32>
    %322 = math.exp %321 : vector<8x128xf32>
    %cst_117 = arith.constant 1.000000e+00 : f32
    %323 = vector.broadcast %cst_117 : f32 to vector<8x128xf32>
    %324 = arith.addf %323, %322 : vector<8x128xf32>
    %325 = arith.divf %323, %324 : vector<8x128xf32>
    %326 = vector.extract_strided_slice %319 {offsets = [0, 128], sizes = [8, 128], strides = [1, 1]} : vector<8x512xf32> to vector<8x128xf32>
    %327 = arith.negf %326 : vector<8x128xf32>
    %328 = math.exp %327 : vector<8x128xf32>
    %cst_118 = arith.constant 1.000000e+00 : f32
    %329 = vector.broadcast %cst_118 : f32 to vector<8x128xf32>
    %330 = arith.addf %329, %328 : vector<8x128xf32>
    %331 = arith.divf %329, %330 : vector<8x128xf32>
    %332 = vector.extract_strided_slice %319 {offsets = [0, 256], sizes = [8, 128], strides = [1, 1]} : vector<8x512xf32> to vector<8x128xf32>
    %333 = math.tanh %332 : vector<8x128xf32>
    %334 = vector.extract_strided_slice %319 {offsets = [0, 384], sizes = [8, 128], strides = [1, 1]} : vector<8x512xf32> to vector<8x128xf32>
    %335 = arith.negf %334 : vector<8x128xf32>
    %336 = math.exp %335 : vector<8x128xf32>
    %cst_119 = arith.constant 1.000000e+00 : f32
    %337 = vector.broadcast %cst_119 : f32 to vector<8x128xf32>
    %338 = arith.addf %337, %336 : vector<8x128xf32>
    %339 = arith.divf %337, %338 : vector<8x128xf32>
    %340 = arith.mulf %331, %310 : vector<8x128xf32>
    %341 = arith.mulf %325, %333 : vector<8x128xf32>
    %342 = arith.addf %340, %341 : vector<8x128xf32>
    %343 = math.tanh %342 : vector<8x128xf32>
    %344 = arith.mulf %339, %343 : vector<8x128xf32>
    %c6_120 = arith.constant 6 : index
    %c0_121 = arith.constant 0 : index
    %c128_122 = arith.constant 128 : index
    %345 = vector.load %arg10[%c6_120, %c0_121, %c128_122] : memref<8x8x256xf32, #tpu.memory_space<vmem>>, vector<1x8x128xf32>
    %346 = vector.shape_cast %345 : vector<1x8x128xf32> to vector<8x128xf32>
    %347 = vector.shape_cast %344 : vector<8x128xf32> to vector<1x8x128xf32>
    tpu.vector_store %arg10[%c6_120, %c0_121, %c128_122], %347 {strides = array<i32>} : memref<8x8x256xf32, #tpu.memory_space<vmem>>, vector<1x8x128xf32>,
    %c5_123 = arith.constant 5 : index
    %c0_124 = arith.constant 0 : index
    %c0_125 = arith.constant 0 : index
    %348 = vector.load %arg11[%c5_123, %c0_124, %c0_125] : memref<8x8x512xf32, #tpu.memory_space<vmem>>, vector<1x8x512xf32>
    %349 = vector.shape_cast %348 : vector<1x8x512xf32> to vector<8x512xf32>
    %cst_126 = arith.constant dense<0.000000e+00> : vector<8x512xf32>
    %350 = tpu.matmul %344, %274, %cst_126 {dimension_numbers = #tpu.dot_dimension_numbers<[1], [0], [0], [1], [0, 0, 1, 1], [], []>} : vector<8x128xf32>, vector<128x512xf32>, vector<8x512xf32> -> vector<8x512xf32>
    %351 = arith.addf %349, %350 : vector<8x512xf32>
    %352 = vector.extract_strided_slice %351 {offsets = [0, 0], sizes = [8, 128], strides = [1, 1]} : vector<8x512xf32> to vector<8x128xf32>
    %353 = arith.negf %352 : vector<8x128xf32>
    %354 = math.exp %353 : vector<8x128xf32>
    %cst_127 = arith.constant 1.000000e+00 : f32
    %355 = vector.broadcast %cst_127 : f32 to vector<8x128xf32>
    %356 = arith.addf %355, %354 : vector<8x128xf32>
    %357 = arith.divf %355, %356 : vector<8x128xf32>
    %358 = vector.extract_strided_slice %351 {offsets = [0, 128], sizes = [8, 128], strides = [1, 1]} : vector<8x512xf32> to vector<8x128xf32>
    %359 = arith.negf %358 : vector<8x128xf32>
    %360 = math.exp %359 : vector<8x128xf32>
    %cst_128 = arith.constant 1.000000e+00 : f32
    %361 = vector.broadcast %cst_128 : f32 to vector<8x128xf32>
    %362 = arith.addf %361, %360 : vector<8x128xf32>
    %363 = arith.divf %361, %362 : vector<8x128xf32>
    %364 = vector.extract_strided_slice %351 {offsets = [0, 256], sizes = [8, 128], strides = [1, 1]} : vector<8x512xf32> to vector<8x128xf32>
    %365 = math.tanh %364 : vector<8x128xf32>
    %366 = vector.extract_strided_slice %351 {offsets = [0, 384], sizes = [8, 128], strides = [1, 1]} : vector<8x512xf32> to vector<8x128xf32>
    %367 = arith.negf %366 : vector<8x128xf32>
    %368 = math.exp %367 : vector<8x128xf32>
    %cst_129 = arith.constant 1.000000e+00 : f32
    %369 = vector.broadcast %cst_129 : f32 to vector<8x128xf32>
    %370 = arith.addf %369, %368 : vector<8x128xf32>
    %371 = arith.divf %369, %370 : vector<8x128xf32>
    %372 = arith.mulf %363, %342 : vector<8x128xf32>
    %373 = arith.mulf %357, %365 : vector<8x128xf32>
    %374 = arith.addf %372, %373 : vector<8x128xf32>
    %375 = math.tanh %374 : vector<8x128xf32>
    %376 = arith.mulf %371, %375 : vector<8x128xf32>
    %c5_130 = arith.constant 5 : index
    %c0_131 = arith.constant 0 : index
    %c128_132 = arith.constant 128 : index
    %377 = vector.load %arg10[%c5_130, %c0_131, %c128_132] : memref<8x8x256xf32, #tpu.memory_space<vmem>>, vector<1x8x128xf32>
    %378 = vector.shape_cast %377 : vector<1x8x128xf32> to vector<8x128xf32>
    %379 = vector.shape_cast %376 : vector<8x128xf32> to vector<1x8x128xf32>
    tpu.vector_store %arg10[%c5_130, %c0_131, %c128_132], %379 {strides = array<i32>} : memref<8x8x256xf32, #tpu.memory_space<vmem>>, vector<1x8x128xf32>,
    %c4_133 = arith.constant 4 : index
    %c0_134 = arith.constant 0 : index
    %c0_135 = arith.constant 0 : index
    %380 = vector.load %arg11[%c4_133, %c0_134, %c0_135] : memref<8x8x512xf32, #tpu.memory_space<vmem>>, vector<1x8x512xf32>
    %381 = vector.shape_cast %380 : vector<1x8x512xf32> to vector<8x512xf32>
    %cst_136 = arith.constant dense<0.000000e+00> : vector<8x512xf32>
    %382 = tpu.matmul %376, %274, %cst_136 {dimension_numbers = #tpu.dot_dimension_numbers<[1], [0], [0], [1], [0, 0, 1, 1], [], []>} : vector<8x128xf32>, vector<128x512xf32>, vector<8x512xf32> -> vector<8x512xf32>
    %383 = arith.addf %381, %382 : vector<8x512xf32>
    %384 = vector.extract_strided_slice %383 {offsets = [0, 0], sizes = [8, 128], strides = [1, 1]} : vector<8x512xf32> to vector<8x128xf32>
    %385 = arith.negf %384 : vector<8x128xf32>
    %386 = math.exp %385 : vector<8x128xf32>
    %cst_137 = arith.constant 1.000000e+00 : f32
    %387 = vector.broadcast %cst_137 : f32 to vector<8x128xf32>
    %388 = arith.addf %387, %386 : vector<8x128xf32>
    %389 = arith.divf %387, %388 : vector<8x128xf32>
    %390 = vector.extract_strided_slice %383 {offsets = [0, 128], sizes = [8, 128], strides = [1, 1]} : vector<8x512xf32> to vector<8x128xf32>
    %391 = arith.negf %390 : vector<8x128xf32>
    %392 = math.exp %391 : vector<8x128xf32>
    %cst_138 = arith.constant 1.000000e+00 : f32
    %393 = vector.broadcast %cst_138 : f32 to vector<8x128xf32>
    %394 = arith.addf %393, %392 : vector<8x128xf32>
    %395 = arith.divf %393, %394 : vector<8x128xf32>
    %396 = vector.extract_strided_slice %383 {offsets = [0, 256], sizes = [8, 128], strides = [1, 1]} : vector<8x512xf32> to vector<8x128xf32>
    %397 = math.tanh %396 : vector<8x128xf32>
    %398 = vector.extract_strided_slice %383 {offsets = [0, 384], sizes = [8, 128], strides = [1, 1]} : vector<8x512xf32> to vector<8x128xf32>
    %399 = arith.negf %398 : vector<8x128xf32>
    %400 = math.exp %399 : vector<8x128xf32>
    %cst_139 = arith.constant 1.000000e+00 : f32
    %401 = vector.broadcast %cst_139 : f32 to vector<8x128xf32>
    %402 = arith.addf %401, %400 : vector<8x128xf32>
    %403 = arith.divf %401, %402 : vector<8x128xf32>
    %404 = arith.mulf %395, %374 : vector<8x128xf32>
    %405 = arith.mulf %389, %397 : vector<8x128xf32>
    %406 = arith.addf %404, %405 : vector<8x128xf32>
    %407 = math.tanh %406 : vector<8x128xf32>
    %408 = arith.mulf %403, %407 : vector<8x128xf32>
    %c4_140 = arith.constant 4 : index
    %c0_141 = arith.constant 0 : index
    %c128_142 = arith.constant 128 : index
    %409 = vector.load %arg10[%c4_140, %c0_141, %c128_142] : memref<8x8x256xf32, #tpu.memory_space<vmem>>, vector<1x8x128xf32>
    %410 = vector.shape_cast %409 : vector<1x8x128xf32> to vector<8x128xf32>
    %411 = vector.shape_cast %408 : vector<8x128xf32> to vector<1x8x128xf32>
    tpu.vector_store %arg10[%c4_140, %c0_141, %c128_142], %411 {strides = array<i32>} : memref<8x8x256xf32, #tpu.memory_space<vmem>>, vector<1x8x128xf32>,
    %c3_143 = arith.constant 3 : index
    %c0_144 = arith.constant 0 : index
    %c0_145 = arith.constant 0 : index
    %412 = vector.load %arg11[%c3_143, %c0_144, %c0_145] : memref<8x8x512xf32, #tpu.memory_space<vmem>>, vector<1x8x512xf32>
    %413 = vector.shape_cast %412 : vector<1x8x512xf32> to vector<8x512xf32>
    %cst_146 = arith.constant dense<0.000000e+00> : vector<8x512xf32>
    %414 = tpu.matmul %408, %274, %cst_146 {dimension_numbers = #tpu.dot_dimension_numbers<[1], [0], [0], [1], [0, 0, 1, 1], [], []>} : vector<8x128xf32>, vector<128x512xf32>, vector<8x512xf32> -> vector<8x512xf32>
    %415 = arith.addf %413, %414 : vector<8x512xf32>
    %416 = vector.extract_strided_slice %415 {offsets = [0, 0], sizes = [8, 128], strides = [1, 1]} : vector<8x512xf32> to vector<8x128xf32>
    %417 = arith.negf %416 : vector<8x128xf32>
    %418 = math.exp %417 : vector<8x128xf32>
    %cst_147 = arith.constant 1.000000e+00 : f32
    %419 = vector.broadcast %cst_147 : f32 to vector<8x128xf32>
    %420 = arith.addf %419, %418 : vector<8x128xf32>
    %421 = arith.divf %419, %420 : vector<8x128xf32>
    %422 = vector.extract_strided_slice %415 {offsets = [0, 128], sizes = [8, 128], strides = [1, 1]} : vector<8x512xf32> to vector<8x128xf32>
    %423 = arith.negf %422 : vector<8x128xf32>
    %424 = math.exp %423 : vector<8x128xf32>
    %cst_148 = arith.constant 1.000000e+00 : f32
    %425 = vector.broadcast %cst_148 : f32 to vector<8x128xf32>
    %426 = arith.addf %425, %424 : vector<8x128xf32>
    %427 = arith.divf %425, %426 : vector<8x128xf32>
    %428 = vector.extract_strided_slice %415 {offsets = [0, 256], sizes = [8, 128], strides = [1, 1]} : vector<8x512xf32> to vector<8x128xf32>
    %429 = math.tanh %428 : vector<8x128xf32>
    %430 = vector.extract_strided_slice %415 {offsets = [0, 384], sizes = [8, 128], strides = [1, 1]} : vector<8x512xf32> to vector<8x128xf32>
    %431 = arith.negf %430 : vector<8x128xf32>
    %432 = math.exp %431 : vector<8x128xf32>
    %cst_149 = arith.constant 1.000000e+00 : f32
    %433 = vector.broadcast %cst_149 : f32 to vector<8x128xf32>
    %434 = arith.addf %433, %432 : vector<8x128xf32>
    %435 = arith.divf %433, %434 : vector<8x128xf32>
    %436 = arith.mulf %427, %406 : vector<8x128xf32>
    %437 = arith.mulf %421, %429 : vector<8x128xf32>
    %438 = arith.addf %436, %437 : vector<8x128xf32>
    %439 = math.tanh %438 : vector<8x128xf32>
    %440 = arith.mulf %435, %439 : vector<8x128xf32>
    %c3_150 = arith.constant 3 : index
    %c0_151 = arith.constant 0 : index
    %c128_152 = arith.constant 128 : index
    %441 = vector.load %arg10[%c3_150, %c0_151, %c128_152] : memref<8x8x256xf32, #tpu.memory_space<vmem>>, vector<1x8x128xf32>
    %442 = vector.shape_cast %441 : vector<1x8x128xf32> to vector<8x128xf32>
    %443 = vector.shape_cast %440 : vector<8x128xf32> to vector<1x8x128xf32>
    tpu.vector_store %arg10[%c3_150, %c0_151, %c128_152], %443 {strides = array<i32>} : memref<8x8x256xf32, #tpu.memory_space<vmem>>, vector<1x8x128xf32>,
    %c2_153 = arith.constant 2 : index
    %c0_154 = arith.constant 0 : index
    %c0_155 = arith.constant 0 : index
    %444 = vector.load %arg11[%c2_153, %c0_154, %c0_155] : memref<8x8x512xf32, #tpu.memory_space<vmem>>, vector<1x8x512xf32>
    %445 = vector.shape_cast %444 : vector<1x8x512xf32> to vector<8x512xf32>
    %cst_156 = arith.constant dense<0.000000e+00> : vector<8x512xf32>
    %446 = tpu.matmul %440, %274, %cst_156 {dimension_numbers = #tpu.dot_dimension_numbers<[1], [0], [0], [1], [0, 0, 1, 1], [], []>} : vector<8x128xf32>, vector<128x512xf32>, vector<8x512xf32> -> vector<8x512xf32>
    %447 = arith.addf %445, %446 : vector<8x512xf32>
    %448 = vector.extract_strided_slice %447 {offsets = [0, 0], sizes = [8, 128], strides = [1, 1]} : vector<8x512xf32> to vector<8x128xf32>
    %449 = arith.negf %448 : vector<8x128xf32>
    %450 = math.exp %449 : vector<8x128xf32>
    %cst_157 = arith.constant 1.000000e+00 : f32
    %451 = vector.broadcast %cst_157 : f32 to vector<8x128xf32>
    %452 = arith.addf %451, %450 : vector<8x128xf32>
    %453 = arith.divf %451, %452 : vector<8x128xf32>
    %454 = vector.extract_strided_slice %447 {offsets = [0, 128], sizes = [8, 128], strides = [1, 1]} : vector<8x512xf32> to vector<8x128xf32>
    %455 = arith.negf %454 : vector<8x128xf32>
    %456 = math.exp %455 : vector<8x128xf32>
    %cst_158 = arith.constant 1.000000e+00 : f32
    %457 = vector.broadcast %cst_158 : f32 to vector<8x128xf32>
    %458 = arith.addf %457, %456 : vector<8x128xf32>
    %459 = arith.divf %457, %458 : vector<8x128xf32>
    %460 = vector.extract_strided_slice %447 {offsets = [0, 256], sizes = [8, 128], strides = [1, 1]} : vector<8x512xf32> to vector<8x128xf32>
    %461 = math.tanh %460 : vector<8x128xf32>
    %462 = vector.extract_strided_slice %447 {offsets = [0, 384], sizes = [8, 128], strides = [1, 1]} : vector<8x512xf32> to vector<8x128xf32>
    %463 = arith.negf %462 : vector<8x128xf32>
    %464 = math.exp %463 : vector<8x128xf32>
    %cst_159 = arith.constant 1.000000e+00 : f32
    %465 = vector.broadcast %cst_159 : f32 to vector<8x128xf32>
    %466 = arith.addf %465, %464 : vector<8x128xf32>
    %467 = arith.divf %465, %466 : vector<8x128xf32>
    %468 = arith.mulf %459, %438 : vector<8x128xf32>
    %469 = arith.mulf %453, %461 : vector<8x128xf32>
    %470 = arith.addf %468, %469 : vector<8x128xf32>
    %471 = math.tanh %470 : vector<8x128xf32>
    %472 = arith.mulf %467, %471 : vector<8x128xf32>
    %c2_160 = arith.constant 2 : index
    %c0_161 = arith.constant 0 : index
    %c128_162 = arith.constant 128 : index
    %473 = vector.load %arg10[%c2_160, %c0_161, %c128_162] : memref<8x8x256xf32, #tpu.memory_space<vmem>>, vector<1x8x128xf32>
    %474 = vector.shape_cast %473 : vector<1x8x128xf32> to vector<8x128xf32>
    %475 = vector.shape_cast %472 : vector<8x128xf32> to vector<1x8x128xf32>
    tpu.vector_store %arg10[%c2_160, %c0_161, %c128_162], %475 {strides = array<i32>} : memref<8x8x256xf32, #tpu.memory_space<vmem>>, vector<1x8x128xf32>,
    %c1_163 = arith.constant 1 : index
    %c0_164 = arith.constant 0 : index
    %c0_165 = arith.constant 0 : index
    %476 = vector.load %arg11[%c1_163, %c0_164, %c0_165] : memref<8x8x512xf32, #tpu.memory_space<vmem>>, vector<1x8x512xf32>
    %477 = vector.shape_cast %476 : vector<1x8x512xf32> to vector<8x512xf32>
    %cst_166 = arith.constant dense<0.000000e+00> : vector<8x512xf32>
    %478 = tpu.matmul %472, %274, %cst_166 {dimension_numbers = #tpu.dot_dimension_numbers<[1], [0], [0], [1], [0, 0, 1, 1], [], []>} : vector<8x128xf32>, vector<128x512xf32>, vector<8x512xf32> -> vector<8x512xf32>
    %479 = arith.addf %477, %478 : vector<8x512xf32>
    %480 = vector.extract_strided_slice %479 {offsets = [0, 0], sizes = [8, 128], strides = [1, 1]} : vector<8x512xf32> to vector<8x128xf32>
    %481 = arith.negf %480 : vector<8x128xf32>
    %482 = math.exp %481 : vector<8x128xf32>
    %cst_167 = arith.constant 1.000000e+00 : f32
    %483 = vector.broadcast %cst_167 : f32 to vector<8x128xf32>
    %484 = arith.addf %483, %482 : vector<8x128xf32>
    %485 = arith.divf %483, %484 : vector<8x128xf32>
    %486 = vector.extract_strided_slice %479 {offsets = [0, 128], sizes = [8, 128], strides = [1, 1]} : vector<8x512xf32> to vector<8x128xf32>
    %487 = arith.negf %486 : vector<8x128xf32>
    %488 = math.exp %487 : vector<8x128xf32>
    %cst_168 = arith.constant 1.000000e+00 : f32
    %489 = vector.broadcast %cst_168 : f32 to vector<8x128xf32>
    %490 = arith.addf %489, %488 : vector<8x128xf32>
    %491 = arith.divf %489, %490 : vector<8x128xf32>
    %492 = vector.extract_strided_slice %479 {offsets = [0, 256], sizes = [8, 128], strides = [1, 1]} : vector<8x512xf32> to vector<8x128xf32>
    %493 = math.tanh %492 : vector<8x128xf32>
    %494 = vector.extract_strided_slice %479 {offsets = [0, 384], sizes = [8, 128], strides = [1, 1]} : vector<8x512xf32> to vector<8x128xf32>
    %495 = arith.negf %494 : vector<8x128xf32>
    %496 = math.exp %495 : vector<8x128xf32>
    %cst_169 = arith.constant 1.000000e+00 : f32
    %497 = vector.broadcast %cst_169 : f32 to vector<8x128xf32>
    %498 = arith.addf %497, %496 : vector<8x128xf32>
    %499 = arith.divf %497, %498 : vector<8x128xf32>
    %500 = arith.mulf %491, %470 : vector<8x128xf32>
    %501 = arith.mulf %485, %493 : vector<8x128xf32>
    %502 = arith.addf %500, %501 : vector<8x128xf32>
    %503 = math.tanh %502 : vector<8x128xf32>
    %504 = arith.mulf %499, %503 : vector<8x128xf32>
    %c1_170 = arith.constant 1 : index
    %c0_171 = arith.constant 0 : index
    %c128_172 = arith.constant 128 : index
    %505 = vector.load %arg10[%c1_170, %c0_171, %c128_172] : memref<8x8x256xf32, #tpu.memory_space<vmem>>, vector<1x8x128xf32>
    %506 = vector.shape_cast %505 : vector<1x8x128xf32> to vector<8x128xf32>
    %507 = vector.shape_cast %504 : vector<8x128xf32> to vector<1x8x128xf32>
    tpu.vector_store %arg10[%c1_170, %c0_171, %c128_172], %507 {strides = array<i32>} : memref<8x8x256xf32, #tpu.memory_space<vmem>>, vector<1x8x128xf32>,
    %c0_173 = arith.constant 0 : index
    %c0_174 = arith.constant 0 : index
    %c0_175 = arith.constant 0 : index
    %508 = vector.load %arg11[%c0_173, %c0_174, %c0_175] : memref<8x8x512xf32, #tpu.memory_space<vmem>>, vector<1x8x512xf32>
    %509 = vector.shape_cast %508 : vector<1x8x512xf32> to vector<8x512xf32>
    %cst_176 = arith.constant dense<0.000000e+00> : vector<8x512xf32>
    %510 = tpu.matmul %504, %274, %cst_176 {dimension_numbers = #tpu.dot_dimension_numbers<[1], [0], [0], [1], [0, 0, 1, 1], [], []>} : vector<8x128xf32>, vector<128x512xf32>, vector<8x512xf32> -> vector<8x512xf32>
    %511 = arith.addf %509, %510 : vector<8x512xf32>
    %512 = vector.extract_strided_slice %511 {offsets = [0, 0], sizes = [8, 128], strides = [1, 1]} : vector<8x512xf32> to vector<8x128xf32>
    %513 = arith.negf %512 : vector<8x128xf32>
    %514 = math.exp %513 : vector<8x128xf32>
    %cst_177 = arith.constant 1.000000e+00 : f32
    %515 = vector.broadcast %cst_177 : f32 to vector<8x128xf32>
    %516 = arith.addf %515, %514 : vector<8x128xf32>
    %517 = arith.divf %515, %516 : vector<8x128xf32>
    %518 = vector.extract_strided_slice %511 {offsets = [0, 128], sizes = [8, 128], strides = [1, 1]} : vector<8x512xf32> to vector<8x128xf32>
    %519 = arith.negf %518 : vector<8x128xf32>
    %520 = math.exp %519 : vector<8x128xf32>
    %cst_178 = arith.constant 1.000000e+00 : f32
    %521 = vector.broadcast %cst_178 : f32 to vector<8x128xf32>
    %522 = arith.addf %521, %520 : vector<8x128xf32>
    %523 = arith.divf %521, %522 : vector<8x128xf32>
    %524 = vector.extract_strided_slice %511 {offsets = [0, 256], sizes = [8, 128], strides = [1, 1]} : vector<8x512xf32> to vector<8x128xf32>
    %525 = math.tanh %524 : vector<8x128xf32>
    %526 = vector.extract_strided_slice %511 {offsets = [0, 384], sizes = [8, 128], strides = [1, 1]} : vector<8x512xf32> to vector<8x128xf32>
    %527 = arith.negf %526 : vector<8x128xf32>
    %528 = math.exp %527 : vector<8x128xf32>
    %cst_179 = arith.constant 1.000000e+00 : f32
    %529 = vector.broadcast %cst_179 : f32 to vector<8x128xf32>
    %530 = arith.addf %529, %528 : vector<8x128xf32>
    %531 = arith.divf %529, %530 : vector<8x128xf32>
    %532 = arith.mulf %523, %502 : vector<8x128xf32>
    %533 = arith.mulf %517, %525 : vector<8x128xf32>
    %534 = arith.addf %532, %533 : vector<8x128xf32>
    %535 = math.tanh %534 : vector<8x128xf32>
    %536 = arith.mulf %531, %535 : vector<8x128xf32>
    %c0_180 = arith.constant 0 : index
    %c0_181 = arith.constant 0 : index
    %c128_182 = arith.constant 128 : index
    %537 = vector.load %arg10[%c0_180, %c0_181, %c128_182] : memref<8x8x256xf32, #tpu.memory_space<vmem>>, vector<1x8x128xf32>
    %538 = vector.shape_cast %537 : vector<1x8x128xf32> to vector<8x128xf32>
    %539 = vector.shape_cast %536 : vector<8x128xf32> to vector<1x8x128xf32>
    tpu.vector_store %arg10[%c0_180, %c0_181, %c128_182], %539 {strides = array<i32>} : memref<8x8x256xf32, #tpu.memory_space<vmem>>, vector<1x8x128xf32>,
    %c0_183 = arith.constant 0 : index
    %c0_184 = arith.constant 0 : index
    %c0_185 = arith.constant 0 : index
    %540 = vector.load %arg10[%c0_183, %c0_184, %c0_185] : memref<8x8x256xf32, #tpu.memory_space<vmem>>, vector<8x8x256xf32>
    %541 = vector.shape_cast %540 : vector<8x8x256xf32> to vector<64x256xf32>
    %c0_186 = arith.constant 0 : index
    %c0_187 = arith.constant 0 : index
    %c0_188 = arith.constant 0 : index
    %542 = vector.load %arg4[%c0_186, %c0_187, %c0_188] : memref<2x256x512xf32, #tpu.memory_space<vmem>>, vector<1x256x512xf32>
    %543 = vector.shape_cast %542 : vector<1x256x512xf32> to vector<256x512xf32>
    %c0_189 = arith.constant 0 : index
    %c0_190 = arith.constant 0 : index
    %c0_191 = arith.constant 0 : index
    %544 = vector.load %arg5[%c0_189, %c0_190, %c0_191] : memref<2x128x512xf32, #tpu.memory_space<vmem>>, vector<1x128x512xf32>
    %545 = vector.shape_cast %544 : vector<1x128x512xf32> to vector<128x512xf32>
    %c0_192 = arith.constant 0 : index
    %c0_193 = arith.constant 0 : index
    %c0_194 = arith.constant 0 : index
    %546 = vector.load %arg6[%c0_192, %c0_193, %c0_194] : memref<2x1x512xf32, #tpu.memory_space<vmem>>, vector<1x1x512xf32>
    %547 = vector.shape_cast %546 : vector<1x1x512xf32> to vector<1x512xf32>
    %cst_195 = arith.constant dense<0.000000e+00> : vector<64x512xf32>
    %548 = tpu.matmul %541, %543, %cst_195 {dimension_numbers = #tpu.dot_dimension_numbers<[1], [0], [0], [1], [0, 0, 1, 1], [], []>} : vector<64x256xf32>, vector<256x512xf32>, vector<64x512xf32> -> vector<64x512xf32>
    %549 = vector.broadcast %547 : vector<1x512xf32> to vector<64x512xf32>
    %550 = arith.addf %548, %549 : vector<64x512xf32>
    %551 = vector.shape_cast %550 : vector<64x512xf32> to vector<8x8x512xf32>
    %c0_196 = arith.constant 0 : index
    %c0_197 = arith.constant 0 : index
    %c0_198 = arith.constant 0 : index
    %552 = vector.load %arg11[%c0_196, %c0_197, %c0_198] : memref<8x8x512xf32, #tpu.memory_space<vmem>>, vector<8x8x512xf32>
    tpu.vector_store %arg11[%c0_196, %c0_197, %c0_198], %551 {strides = array<i32>} : memref<8x8x512xf32, #tpu.memory_space<vmem>>, vector<8x8x512xf32>,
    %cst_199 = arith.constant 0.000000e+00 : f32
    %553 = vector.broadcast %cst_199 : f32 to vector<8x128xf32>
    %cst_200 = arith.constant 0.000000e+00 : f32
    %554 = vector.broadcast %cst_200 : f32 to vector<8x128xf32>
    %c0_201 = arith.constant 0 : index
    %c0_202 = arith.constant 0 : index
    %c0_203 = arith.constant 0 : index
    %555 = vector.load %arg11[%c0_201, %c0_202, %c0_203] : memref<8x8x512xf32, #tpu.memory_space<vmem>>, vector<1x8x512xf32>
    %556 = vector.shape_cast %555 : vector<1x8x512xf32> to vector<8x512xf32>
    %cst_204 = arith.constant dense<0.000000e+00> : vector<8x512xf32>
    %557 = tpu.matmul %553, %545, %cst_204 {dimension_numbers = #tpu.dot_dimension_numbers<[1], [0], [0], [1], [0, 0, 1, 1], [], []>} : vector<8x128xf32>, vector<128x512xf32>, vector<8x512xf32> -> vector<8x512xf32>
    %558 = arith.addf %556, %557 : vector<8x512xf32>
    %559 = vector.extract_strided_slice %558 {offsets = [0, 0], sizes = [8, 128], strides = [1, 1]} : vector<8x512xf32> to vector<8x128xf32>
    %560 = arith.negf %559 : vector<8x128xf32>
    %561 = math.exp %560 : vector<8x128xf32>
    %cst_205 = arith.constant 1.000000e+00 : f32
    %562 = vector.broadcast %cst_205 : f32 to vector<8x128xf32>
    %563 = arith.addf %562, %561 : vector<8x128xf32>
    %564 = arith.divf %562, %563 : vector<8x128xf32>
    %565 = vector.extract_strided_slice %558 {offsets = [0, 128], sizes = [8, 128], strides = [1, 1]} : vector<8x512xf32> to vector<8x128xf32>
    %566 = arith.negf %565 : vector<8x128xf32>
    %567 = math.exp %566 : vector<8x128xf32>
    %cst_206 = arith.constant 1.000000e+00 : f32
    %568 = vector.broadcast %cst_206 : f32 to vector<8x128xf32>
    %569 = arith.addf %568, %567 : vector<8x128xf32>
    %570 = arith.divf %568, %569 : vector<8x128xf32>
    %571 = vector.extract_strided_slice %558 {offsets = [0, 256], sizes = [8, 128], strides = [1, 1]} : vector<8x512xf32> to vector<8x128xf32>
    %572 = math.tanh %571 : vector<8x128xf32>
    %573 = vector.extract_strided_slice %558 {offsets = [0, 384], sizes = [8, 128], strides = [1, 1]} : vector<8x512xf32> to vector<8x128xf32>
    %574 = arith.negf %573 : vector<8x128xf32>
    %575 = math.exp %574 : vector<8x128xf32>
    %cst_207 = arith.constant 1.000000e+00 : f32
    %576 = vector.broadcast %cst_207 : f32 to vector<8x128xf32>
    %577 = arith.addf %576, %575 : vector<8x128xf32>
    %578 = arith.divf %576, %577 : vector<8x128xf32>
    %579 = arith.mulf %570, %554 : vector<8x128xf32>
    %580 = arith.mulf %564, %572 : vector<8x128xf32>
    %581 = arith.addf %579, %580 : vector<8x128xf32>
    %582 = math.tanh %581 : vector<8x128xf32>
    %583 = arith.mulf %578, %582 : vector<8x128xf32>
    %c1_208 = arith.constant 1 : index
    %c0_209 = arith.constant 0 : index
    %c0_210 = arith.constant 0 : index
    %584 = vector.load %arg11[%c1_208, %c0_209, %c0_210] : memref<8x8x512xf32, #tpu.memory_space<vmem>>, vector<1x8x512xf32>
    %585 = vector.shape_cast %584 : vector<1x8x512xf32> to vector<8x512xf32>
    %cst_211 = arith.constant dense<0.000000e+00> : vector<8x512xf32>
    %586 = tpu.matmul %583, %545, %cst_211 {dimension_numbers = #tpu.dot_dimension_numbers<[1], [0], [0], [1], [0, 0, 1, 1], [], []>} : vector<8x128xf32>, vector<128x512xf32>, vector<8x512xf32> -> vector<8x512xf32>
    %587 = arith.addf %585, %586 : vector<8x512xf32>
    %588 = vector.extract_strided_slice %587 {offsets = [0, 0], sizes = [8, 128], strides = [1, 1]} : vector<8x512xf32> to vector<8x128xf32>
    %589 = arith.negf %588 : vector<8x128xf32>
    %590 = math.exp %589 : vector<8x128xf32>
    %cst_212 = arith.constant 1.000000e+00 : f32
    %591 = vector.broadcast %cst_212 : f32 to vector<8x128xf32>
    %592 = arith.addf %591, %590 : vector<8x128xf32>
    %593 = arith.divf %591, %592 : vector<8x128xf32>
    %594 = vector.extract_strided_slice %587 {offsets = [0, 128], sizes = [8, 128], strides = [1, 1]} : vector<8x512xf32> to vector<8x128xf32>
    %595 = arith.negf %594 : vector<8x128xf32>
    %596 = math.exp %595 : vector<8x128xf32>
    %cst_213 = arith.constant 1.000000e+00 : f32
    %597 = vector.broadcast %cst_213 : f32 to vector<8x128xf32>
    %598 = arith.addf %597, %596 : vector<8x128xf32>
    %599 = arith.divf %597, %598 : vector<8x128xf32>
    %600 = vector.extract_strided_slice %587 {offsets = [0, 256], sizes = [8, 128], strides = [1, 1]} : vector<8x512xf32> to vector<8x128xf32>
    %601 = math.tanh %600 : vector<8x128xf32>
    %602 = vector.extract_strided_slice %587 {offsets = [0, 384], sizes = [8, 128], strides = [1, 1]} : vector<8x512xf32> to vector<8x128xf32>
    %603 = arith.negf %602 : vector<8x128xf32>
    %604 = math.exp %603 : vector<8x128xf32>
    %cst_214 = arith.constant 1.000000e+00 : f32
    %605 = vector.broadcast %cst_214 : f32 to vector<8x128xf32>
    %606 = arith.addf %605, %604 : vector<8x128xf32>
    %607 = arith.divf %605, %606 : vector<8x128xf32>
    %608 = arith.mulf %599, %581 : vector<8x128xf32>
    %609 = arith.mulf %593, %601 : vector<8x128xf32>
    %610 = arith.addf %608, %609 : vector<8x128xf32>
    %611 = math.tanh %610 : vector<8x128xf32>
    %612 = arith.mulf %607, %611 : vector<8x128xf32>
    %c2_215 = arith.constant 2 : index
    %c0_216 = arith.constant 0 : index
    %c0_217 = arith.constant 0 : index
    %613 = vector.load %arg11[%c2_215, %c0_216, %c0_217] : memref<8x8x512xf32, #tpu.memory_space<vmem>>, vector<1x8x512xf32>
    %614 = vector.shape_cast %613 : vector<1x8x512xf32> to vector<8x512xf32>
    %cst_218 = arith.constant dense<0.000000e+00> : vector<8x512xf32>
    %615 = tpu.matmul %612, %545, %cst_218 {dimension_numbers = #tpu.dot_dimension_numbers<[1], [0], [0], [1], [0, 0, 1, 1], [], []>} : vector<8x128xf32>, vector<128x512xf32>, vector<8x512xf32> -> vector<8x512xf32>
    %616 = arith.addf %614, %615 : vector<8x512xf32>
    %617 = vector.extract_strided_slice %616 {offsets = [0, 0], sizes = [8, 128], strides = [1, 1]} : vector<8x512xf32> to vector<8x128xf32>
    %618 = arith.negf %617 : vector<8x128xf32>
    %619 = math.exp %618 : vector<8x128xf32>
    %cst_219 = arith.constant 1.000000e+00 : f32
    %620 = vector.broadcast %cst_219 : f32 to vector<8x128xf32>
    %621 = arith.addf %620, %619 : vector<8x128xf32>
    %622 = arith.divf %620, %621 : vector<8x128xf32>
    %623 = vector.extract_strided_slice %616 {offsets = [0, 128], sizes = [8, 128], strides = [1, 1]} : vector<8x512xf32> to vector<8x128xf32>
    %624 = arith.negf %623 : vector<8x128xf32>
    %625 = math.exp %624 : vector<8x128xf32>
    %cst_220 = arith.constant 1.000000e+00 : f32
    %626 = vector.broadcast %cst_220 : f32 to vector<8x128xf32>
    %627 = arith.addf %626, %625 : vector<8x128xf32>
    %628 = arith.divf %626, %627 : vector<8x128xf32>
    %629 = vector.extract_strided_slice %616 {offsets = [0, 256], sizes = [8, 128], strides = [1, 1]} : vector<8x512xf32> to vector<8x128xf32>
    %630 = math.tanh %629 : vector<8x128xf32>
    %631 = vector.extract_strided_slice %616 {offsets = [0, 384], sizes = [8, 128], strides = [1, 1]} : vector<8x512xf32> to vector<8x128xf32>
    %632 = arith.negf %631 : vector<8x128xf32>
    %633 = math.exp %632 : vector<8x128xf32>
    %cst_221 = arith.constant 1.000000e+00 : f32
    %634 = vector.broadcast %cst_221 : f32 to vector<8x128xf32>
    %635 = arith.addf %634, %633 : vector<8x128xf32>
    %636 = arith.divf %634, %635 : vector<8x128xf32>
    %637 = arith.mulf %628, %610 : vector<8x128xf32>
    %638 = arith.mulf %622, %630 : vector<8x128xf32>
    %639 = arith.addf %637, %638 : vector<8x128xf32>
    %640 = math.tanh %639 : vector<8x128xf32>
    %641 = arith.mulf %636, %640 : vector<8x128xf32>
    %c3_222 = arith.constant 3 : index
    %c0_223 = arith.constant 0 : index
    %c0_224 = arith.constant 0 : index
    %642 = vector.load %arg11[%c3_222, %c0_223, %c0_224] : memref<8x8x512xf32, #tpu.memory_space<vmem>>, vector<1x8x512xf32>
    %643 = vector.shape_cast %642 : vector<1x8x512xf32> to vector<8x512xf32>
    %cst_225 = arith.constant dense<0.000000e+00> : vector<8x512xf32>
    %644 = tpu.matmul %641, %545, %cst_225 {dimension_numbers = #tpu.dot_dimension_numbers<[1], [0], [0], [1], [0, 0, 1, 1], [], []>} : vector<8x128xf32>, vector<128x512xf32>, vector<8x512xf32> -> vector<8x512xf32>
    %645 = arith.addf %643, %644 : vector<8x512xf32>
    %646 = vector.extract_strided_slice %645 {offsets = [0, 0], sizes = [8, 128], strides = [1, 1]} : vector<8x512xf32> to vector<8x128xf32>
    %647 = arith.negf %646 : vector<8x128xf32>
    %648 = math.exp %647 : vector<8x128xf32>
    %cst_226 = arith.constant 1.000000e+00 : f32
    %649 = vector.broadcast %cst_226 : f32 to vector<8x128xf32>
    %650 = arith.addf %649, %648 : vector<8x128xf32>
    %651 = arith.divf %649, %650 : vector<8x128xf32>
    %652 = vector.extract_strided_slice %645 {offsets = [0, 128], sizes = [8, 128], strides = [1, 1]} : vector<8x512xf32> to vector<8x128xf32>
    %653 = arith.negf %652 : vector<8x128xf32>
    %654 = math.exp %653 : vector<8x128xf32>
    %cst_227 = arith.constant 1.000000e+00 : f32
    %655 = vector.broadcast %cst_227 : f32 to vector<8x128xf32>
    %656 = arith.addf %655, %654 : vector<8x128xf32>
    %657 = arith.divf %655, %656 : vector<8x128xf32>
    %658 = vector.extract_strided_slice %645 {offsets = [0, 256], sizes = [8, 128], strides = [1, 1]} : vector<8x512xf32> to vector<8x128xf32>
    %659 = math.tanh %658 : vector<8x128xf32>
    %660 = vector.extract_strided_slice %645 {offsets = [0, 384], sizes = [8, 128], strides = [1, 1]} : vector<8x512xf32> to vector<8x128xf32>
    %661 = arith.negf %660 : vector<8x128xf32>
    %662 = math.exp %661 : vector<8x128xf32>
    %cst_228 = arith.constant 1.000000e+00 : f32
    %663 = vector.broadcast %cst_228 : f32 to vector<8x128xf32>
    %664 = arith.addf %663, %662 : vector<8x128xf32>
    %665 = arith.divf %663, %664 : vector<8x128xf32>
    %666 = arith.mulf %657, %639 : vector<8x128xf32>
    %667 = arith.mulf %651, %659 : vector<8x128xf32>
    %668 = arith.addf %666, %667 : vector<8x128xf32>
    %669 = math.tanh %668 : vector<8x128xf32>
    %670 = arith.mulf %665, %669 : vector<8x128xf32>
    %c4_229 = arith.constant 4 : index
    %c0_230 = arith.constant 0 : index
    %c0_231 = arith.constant 0 : index
    %671 = vector.load %arg11[%c4_229, %c0_230, %c0_231] : memref<8x8x512xf32, #tpu.memory_space<vmem>>, vector<1x8x512xf32>
    %672 = vector.shape_cast %671 : vector<1x8x512xf32> to vector<8x512xf32>
    %cst_232 = arith.constant dense<0.000000e+00> : vector<8x512xf32>
    %673 = tpu.matmul %670, %545, %cst_232 {dimension_numbers = #tpu.dot_dimension_numbers<[1], [0], [0], [1], [0, 0, 1, 1], [], []>} : vector<8x128xf32>, vector<128x512xf32>, vector<8x512xf32> -> vector<8x512xf32>
    %674 = arith.addf %672, %673 : vector<8x512xf32>
    %675 = vector.extract_strided_slice %674 {offsets = [0, 0], sizes = [8, 128], strides = [1, 1]} : vector<8x512xf32> to vector<8x128xf32>
    %676 = arith.negf %675 : vector<8x128xf32>
    %677 = math.exp %676 : vector<8x128xf32>
    %cst_233 = arith.constant 1.000000e+00 : f32
    %678 = vector.broadcast %cst_233 : f32 to vector<8x128xf32>
    %679 = arith.addf %678, %677 : vector<8x128xf32>
    %680 = arith.divf %678, %679 : vector<8x128xf32>
    %681 = vector.extract_strided_slice %674 {offsets = [0, 128], sizes = [8, 128], strides = [1, 1]} : vector<8x512xf32> to vector<8x128xf32>
    %682 = arith.negf %681 : vector<8x128xf32>
    %683 = math.exp %682 : vector<8x128xf32>
    %cst_234 = arith.constant 1.000000e+00 : f32
    %684 = vector.broadcast %cst_234 : f32 to vector<8x128xf32>
    %685 = arith.addf %684, %683 : vector<8x128xf32>
    %686 = arith.divf %684, %685 : vector<8x128xf32>
    %687 = vector.extract_strided_slice %674 {offsets = [0, 256], sizes = [8, 128], strides = [1, 1]} : vector<8x512xf32> to vector<8x128xf32>
    %688 = math.tanh %687 : vector<8x128xf32>
    %689 = vector.extract_strided_slice %674 {offsets = [0, 384], sizes = [8, 128], strides = [1, 1]} : vector<8x512xf32> to vector<8x128xf32>
    %690 = arith.negf %689 : vector<8x128xf32>
    %691 = math.exp %690 : vector<8x128xf32>
    %cst_235 = arith.constant 1.000000e+00 : f32
    %692 = vector.broadcast %cst_235 : f32 to vector<8x128xf32>
    %693 = arith.addf %692, %691 : vector<8x128xf32>
    %694 = arith.divf %692, %693 : vector<8x128xf32>
    %695 = arith.mulf %686, %668 : vector<8x128xf32>
    %696 = arith.mulf %680, %688 : vector<8x128xf32>
    %697 = arith.addf %695, %696 : vector<8x128xf32>
    %698 = math.tanh %697 : vector<8x128xf32>
    %699 = arith.mulf %694, %698 : vector<8x128xf32>
    %c5_236 = arith.constant 5 : index
    %c0_237 = arith.constant 0 : index
    %c0_238 = arith.constant 0 : index
    %700 = vector.load %arg11[%c5_236, %c0_237, %c0_238] : memref<8x8x512xf32, #tpu.memory_space<vmem>>, vector<1x8x512xf32>
    %701 = vector.shape_cast %700 : vector<1x8x512xf32> to vector<8x512xf32>
    %cst_239 = arith.constant dense<0.000000e+00> : vector<8x512xf32>
    %702 = tpu.matmul %699, %545, %cst_239 {dimension_numbers = #tpu.dot_dimension_numbers<[1], [0], [0], [1], [0, 0, 1, 1], [], []>} : vector<8x128xf32>, vector<128x512xf32>, vector<8x512xf32> -> vector<8x512xf32>
    %703 = arith.addf %701, %702 : vector<8x512xf32>
    %704 = vector.extract_strided_slice %703 {offsets = [0, 0], sizes = [8, 128], strides = [1, 1]} : vector<8x512xf32> to vector<8x128xf32>
    %705 = arith.negf %704 : vector<8x128xf32>
    %706 = math.exp %705 : vector<8x128xf32>
    %cst_240 = arith.constant 1.000000e+00 : f32
    %707 = vector.broadcast %cst_240 : f32 to vector<8x128xf32>
    %708 = arith.addf %707, %706 : vector<8x128xf32>
    %709 = arith.divf %707, %708 : vector<8x128xf32>
    %710 = vector.extract_strided_slice %703 {offsets = [0, 128], sizes = [8, 128], strides = [1, 1]} : vector<8x512xf32> to vector<8x128xf32>
    %711 = arith.negf %710 : vector<8x128xf32>
    %712 = math.exp %711 : vector<8x128xf32>
    %cst_241 = arith.constant 1.000000e+00 : f32
    %713 = vector.broadcast %cst_241 : f32 to vector<8x128xf32>
    %714 = arith.addf %713, %712 : vector<8x128xf32>
    %715 = arith.divf %713, %714 : vector<8x128xf32>
    %716 = vector.extract_strided_slice %703 {offsets = [0, 256], sizes = [8, 128], strides = [1, 1]} : vector<8x512xf32> to vector<8x128xf32>
    %717 = math.tanh %716 : vector<8x128xf32>
    %718 = vector.extract_strided_slice %703 {offsets = [0, 384], sizes = [8, 128], strides = [1, 1]} : vector<8x512xf32> to vector<8x128xf32>
    %719 = arith.negf %718 : vector<8x128xf32>
    %720 = math.exp %719 : vector<8x128xf32>
    %cst_242 = arith.constant 1.000000e+00 : f32
    %721 = vector.broadcast %cst_242 : f32 to vector<8x128xf32>
    %722 = arith.addf %721, %720 : vector<8x128xf32>
    %723 = arith.divf %721, %722 : vector<8x128xf32>
    %724 = arith.mulf %715, %697 : vector<8x128xf32>
    %725 = arith.mulf %709, %717 : vector<8x128xf32>
    %726 = arith.addf %724, %725 : vector<8x128xf32>
    %727 = math.tanh %726 : vector<8x128xf32>
    %728 = arith.mulf %723, %727 : vector<8x128xf32>
    %c6_243 = arith.constant 6 : index
    %c0_244 = arith.constant 0 : index
    %c0_245 = arith.constant 0 : index
    %729 = vector.load %arg11[%c6_243, %c0_244, %c0_245] : memref<8x8x512xf32, #tpu.memory_space<vmem>>, vector<1x8x512xf32>
    %730 = vector.shape_cast %729 : vector<1x8x512xf32> to vector<8x512xf32>
    %cst_246 = arith.constant dense<0.000000e+00> : vector<8x512xf32>
    %731 = tpu.matmul %728, %545, %cst_246 {dimension_numbers = #tpu.dot_dimension_numbers<[1], [0], [0], [1], [0, 0, 1, 1], [], []>} : vector<8x128xf32>, vector<128x512xf32>, vector<8x512xf32> -> vector<8x512xf32>
    %732 = arith.addf %730, %731 : vector<8x512xf32>
    %733 = vector.extract_strided_slice %732 {offsets = [0, 0], sizes = [8, 128], strides = [1, 1]} : vector<8x512xf32> to vector<8x128xf32>
    %734 = arith.negf %733 : vector<8x128xf32>
    %735 = math.exp %734 : vector<8x128xf32>
    %cst_247 = arith.constant 1.000000e+00 : f32
    %736 = vector.broadcast %cst_247 : f32 to vector<8x128xf32>
    %737 = arith.addf %736, %735 : vector<8x128xf32>
    %738 = arith.divf %736, %737 : vector<8x128xf32>
    %739 = vector.extract_strided_slice %732 {offsets = [0, 128], sizes = [8, 128], strides = [1, 1]} : vector<8x512xf32> to vector<8x128xf32>
    %740 = arith.negf %739 : vector<8x128xf32>
    %741 = math.exp %740 : vector<8x128xf32>
    %cst_248 = arith.constant 1.000000e+00 : f32
    %742 = vector.broadcast %cst_248 : f32 to vector<8x128xf32>
    %743 = arith.addf %742, %741 : vector<8x128xf32>
    %744 = arith.divf %742, %743 : vector<8x128xf32>
    %745 = vector.extract_strided_slice %732 {offsets = [0, 256], sizes = [8, 128], strides = [1, 1]} : vector<8x512xf32> to vector<8x128xf32>
    %746 = math.tanh %745 : vector<8x128xf32>
    %747 = vector.extract_strided_slice %732 {offsets = [0, 384], sizes = [8, 128], strides = [1, 1]} : vector<8x512xf32> to vector<8x128xf32>
    %748 = arith.negf %747 : vector<8x128xf32>
    %749 = math.exp %748 : vector<8x128xf32>
    %cst_249 = arith.constant 1.000000e+00 : f32
    %750 = vector.broadcast %cst_249 : f32 to vector<8x128xf32>
    %751 = arith.addf %750, %749 : vector<8x128xf32>
    %752 = arith.divf %750, %751 : vector<8x128xf32>
    %753 = arith.mulf %744, %726 : vector<8x128xf32>
    %754 = arith.mulf %738, %746 : vector<8x128xf32>
    %755 = arith.addf %753, %754 : vector<8x128xf32>
    %756 = math.tanh %755 : vector<8x128xf32>
    %757 = arith.mulf %752, %756 : vector<8x128xf32>
    %c7_250 = arith.constant 7 : index
    %c0_251 = arith.constant 0 : index
    %c0_252 = arith.constant 0 : index
    %758 = vector.load %arg11[%c7_250, %c0_251, %c0_252] : memref<8x8x512xf32, #tpu.memory_space<vmem>>, vector<1x8x512xf32>
    %759 = vector.shape_cast %758 : vector<1x8x512xf32> to vector<8x512xf32>
    %cst_253 = arith.constant dense<0.000000e+00> : vector<8x512xf32>
    %760 = tpu.matmul %757, %545, %cst_253 {dimension_numbers = #tpu.dot_dimension_numbers<[1], [0], [0], [1], [0, 0, 1, 1], [], []>} : vector<8x128xf32>, vector<128x512xf32>, vector<8x512xf32> -> vector<8x512xf32>
    %761 = arith.addf %759, %760 : vector<8x512xf32>
    %762 = vector.extract_strided_slice %761 {offsets = [0, 0], sizes = [8, 128], strides = [1, 1]} : vector<8x512xf32> to vector<8x128xf32>
    %763 = arith.negf %762 : vector<8x128xf32>
    %764 = math.exp %763 : vector<8x128xf32>
    %cst_254 = arith.constant 1.000000e+00 : f32
    %765 = vector.broadcast %cst_254 : f32 to vector<8x128xf32>
    %766 = arith.addf %765, %764 : vector<8x128xf32>
    %767 = arith.divf %765, %766 : vector<8x128xf32>
    %768 = vector.extract_strided_slice %761 {offsets = [0, 128], sizes = [8, 128], strides = [1, 1]} : vector<8x512xf32> to vector<8x128xf32>
    %769 = arith.negf %768 : vector<8x128xf32>
    %770 = math.exp %769 : vector<8x128xf32>
    %cst_255 = arith.constant 1.000000e+00 : f32
    %771 = vector.broadcast %cst_255 : f32 to vector<8x128xf32>
    %772 = arith.addf %771, %770 : vector<8x128xf32>
    %773 = arith.divf %771, %772 : vector<8x128xf32>
    %774 = vector.extract_strided_slice %761 {offsets = [0, 256], sizes = [8, 128], strides = [1, 1]} : vector<8x512xf32> to vector<8x128xf32>
    %775 = math.tanh %774 : vector<8x128xf32>
    %776 = vector.extract_strided_slice %761 {offsets = [0, 384], sizes = [8, 128], strides = [1, 1]} : vector<8x512xf32> to vector<8x128xf32>
    %777 = arith.negf %776 : vector<8x128xf32>
    %778 = math.exp %777 : vector<8x128xf32>
    %cst_256 = arith.constant 1.000000e+00 : f32
    %779 = vector.broadcast %cst_256 : f32 to vector<8x128xf32>
    %780 = arith.addf %779, %778 : vector<8x128xf32>
    %781 = arith.divf %779, %780 : vector<8x128xf32>
    %782 = arith.mulf %773, %755 : vector<8x128xf32>
    %783 = arith.mulf %767, %775 : vector<8x128xf32>
    %784 = arith.addf %782, %783 : vector<8x128xf32>
    %785 = math.tanh %784 : vector<8x128xf32>
    %786 = arith.mulf %781, %785 : vector<8x128xf32>
    %c7_257 = arith.constant 7 : index
    %c0_258 = arith.constant 0 : index
    %c0_259 = arith.constant 0 : index
    %787 = vector.load %arg10[%c7_257, %c0_258, %c0_259] : memref<8x8x256xf32, #tpu.memory_space<vmem>>, vector<1x8x256xf32>
    %788 = vector.shape_cast %787 : vector<1x8x256xf32> to vector<8x256xf32>
    %c1_260 = arith.constant 1 : index
    %c0_261 = arith.constant 0 : index
    %c0_262 = arith.constant 0 : index
    %789 = vector.load %arg4[%c1_260, %c0_261, %c0_262] : memref<2x256x512xf32, #tpu.memory_space<vmem>>, vector<1x256x512xf32>
    %790 = vector.shape_cast %789 : vector<1x256x512xf32> to vector<256x512xf32>
    %cst_263 = arith.constant dense<0.000000e+00> : vector<8x512xf32>
    %791 = tpu.matmul %788, %790, %cst_263 {dimension_numbers = #tpu.dot_dimension_numbers<[1], [0], [0], [1], [0, 0, 1, 1], [], []>} : vector<8x256xf32>, vector<256x512xf32>, vector<8x512xf32> -> vector<8x512xf32>
    %c1_264 = arith.constant 1 : index
    %c0_265 = arith.constant 0 : index
    %c0_266 = arith.constant 0 : index
    %792 = vector.load %arg6[%c1_264, %c0_265, %c0_266] : memref<2x1x512xf32, #tpu.memory_space<vmem>>, vector<1x1x512xf32>
    %793 = vector.shape_cast %792 : vector<1x1x512xf32> to vector<1x512xf32>
    %794 = vector.broadcast %793 : vector<1x512xf32> to vector<8x512xf32>
    %795 = arith.addf %791, %794 : vector<8x512xf32>
    %796 = vector.extract_strided_slice %795 {offsets = [0, 0], sizes = [8, 128], strides = [1, 1]} : vector<8x512xf32> to vector<8x128xf32>
    %797 = arith.negf %796 : vector<8x128xf32>
    %798 = math.exp %797 : vector<8x128xf32>
    %cst_267 = arith.constant 1.000000e+00 : f32
    %799 = vector.broadcast %cst_267 : f32 to vector<8x128xf32>
    %800 = arith.addf %799, %798 : vector<8x128xf32>
    %801 = arith.divf %799, %800 : vector<8x128xf32>
    %802 = vector.extract_strided_slice %795 {offsets = [0, 256], sizes = [8, 128], strides = [1, 1]} : vector<8x512xf32> to vector<8x128xf32>
    %803 = math.tanh %802 : vector<8x128xf32>
    %804 = vector.extract_strided_slice %795 {offsets = [0, 384], sizes = [8, 128], strides = [1, 1]} : vector<8x512xf32> to vector<8x128xf32>
    %805 = arith.negf %804 : vector<8x128xf32>
    %806 = math.exp %805 : vector<8x128xf32>
    %cst_268 = arith.constant 1.000000e+00 : f32
    %807 = vector.broadcast %cst_268 : f32 to vector<8x128xf32>
    %808 = arith.addf %807, %806 : vector<8x128xf32>
    %809 = arith.divf %807, %808 : vector<8x128xf32>
    %810 = arith.mulf %801, %803 : vector<8x128xf32>
    %811 = math.tanh %810 : vector<8x128xf32>
    %812 = arith.mulf %809, %811 : vector<8x128xf32>
    %c0_269 = arith.constant 0 : index
    %c0_270 = arith.constant 0 : index
    %813 = vector.load %arg7[%c0_269, %c0_270] : memref<256x128xf32, #tpu.memory_space<vmem>>, vector<128x128xf32>
    %cst_271 = arith.constant dense<0.000000e+00> : vector<8x128xf32>
    %814 = tpu.matmul %786, %813, %cst_271 {dimension_numbers = #tpu.dot_dimension_numbers<[1], [0], [0], [1], [0, 0, 1, 1], [], []>} : vector<8x128xf32>, vector<128x128xf32>, vector<8x128xf32> -> vector<8x128xf32>
    %c128_272 = arith.constant 128 : index
    %c0_273 = arith.constant 0 : index
    %815 = vector.load %arg7[%c128_272, %c0_273] : memref<256x128xf32, #tpu.memory_space<vmem>>, vector<128x128xf32>
    %cst_274 = arith.constant dense<0.000000e+00> : vector<8x128xf32>
    %816 = tpu.matmul %812, %815, %cst_274 {dimension_numbers = #tpu.dot_dimension_numbers<[1], [0], [0], [1], [0, 0, 1, 1], [], []>} : vector<8x128xf32>, vector<128x128xf32>, vector<8x128xf32> -> vector<8x128xf32>
    %817 = arith.addf %814, %816 : vector<8x128xf32>
    %c0_275 = arith.constant 0 : index
    %c0_276 = arith.constant 0 : index
    %818 = vector.load %arg8[%c0_275, %c0_276] : memref<1x128xf32, #tpu.memory_space<vmem>>, vector<1x128xf32>
    %819 = vector.broadcast %818 : vector<1x128xf32> to vector<8x128xf32>
    %820 = arith.addf %817, %819 : vector<8x128xf32>
    %c0_277 = arith.constant 0 : index
    %c0_278 = arith.constant 0 : index
    %821 = vector.load %arg9[%c0_277, %c0_278] : memref<8x128xf32, #tpu.memory_space<vmem>>, vector<8x128xf32>
    tpu.vector_store %arg9[%c0_277, %c0_278], %820 {strides = array<i32>} : memref<8x128xf32, #tpu.memory_space<vmem>>, vector<8x128xf32>,
    return
  }
}

</mosaic_0001>

<llo_original>
// kernel: bilstm_forward.1
$region0: #{bilstm_forward.1}
  #allocation0 [shape = 'u32[]', space=smem, size = 0x4, offset = 0x4, fixed_abs, tag = 'smem constant byte address 0x4 - core index']
  #allocation1 [shape = 'u32[144,128]{1,0:T(1,128)}', space=vmem, size = 0x12000, scoped, tag = 'internal scratch']
  #allocation2 [shape = 'f32[8,8,256]{2,1,0:T(8,128)}', space=vmem, size = 0x10000, scoped, tag = 'scratch operand']
  #allocation3 [shape = 'f32[8,8,512]{2,1,0:T(8,128)}', space=vmem, size = 0x20000, scoped, tag = 'scratch operand']
  %s0 = inlined_call_operand.vmem [shape: f32[8,8,128], index: 0, kind: input, shape index: {}]
  %s1 = inlined_call_operand.hbm [shape: f32[2,128,512], index: 1, kind: input, shape index: {}]
  %s2 = inlined_call_operand.hbm [shape: f32[2,128,512], index: 2, kind: input, shape index: {}]
  %s3 = inlined_call_operand.vmem [shape: f32[2,1,512], index: 3, kind: input, shape index: {}]
  %s4 = inlined_call_operand.hbm [shape: f32[2,256,512], index: 4, kind: input, shape index: {}]
  %s5 = inlined_call_operand.hbm [shape: f32[2,128,512], index: 5, kind: input, shape index: {}]
  %s6 = inlined_call_operand.vmem [shape: f32[2,1,512], index: 6, kind: input, shape index: {}]
  %s7 = inlined_call_operand.hbm [shape: f32[256,128], index: 7, kind: input, shape index: {}]
  %s8 = inlined_call_operand.vmem [shape: f32[1,128], index: 8, kind: input, shape index: {}]
  %s9 = inlined_call_operand.vmem [shape: f32[8,128], index: 9, kind: output, shape index: {}]
  %s10 = sld [smem:[#allocation0]]
  $region66: #{bilstm_forward.1} parent=0
    _
  %s12 = ssub.s32 1, %s10
  %s13 = scalar_select 0, %s12, %s10
  $region1: #{bilstm_forward.1} parent=0
    #allocation4 [shape = 'u8[524288]{0}', space=vmem, size = 0x80000, scoped, tag = 'input window, operand 1, single buffered']
    #allocation5 [shape = 's32[1]{0}', space=sflag, size = 0x4, scoped, tag = 'scoped memory for bilstm_forward.1']
    #allocation6 [shape = 'u8[524288]{0}', space=vmem, size = 0x80000, scoped, tag = 'input window, operand 2, single buffered']
    #allocation7 [shape = 's32[1]{0}', space=sflag, size = 0x4, scoped, tag = 'scoped memory for bilstm_forward.1']
    #allocation8 [shape = 'u8[1048576]{0}', space=vmem, size = 0x100000, scoped, tag = 'input window, operand 4, single buffered']
    #allocation9 [shape = 'u8[524288]{0}', space=vmem, size = 0x80000, scoped, tag = 'input window, operand 5, single buffered']
    #allocation10 [shape = 's32[1]{0}', space=sflag, size = 0x4, scoped, tag = 'scoped memory for bilstm_forward.1']
    #allocation11 [shape = 'u8[131072]{0}', space=vmem, size = 0x20000, scoped, tag = 'input window, operand 7, single buffered']
    %14 = vsyncpa [#allocation5], 0
    %15 = vsyncpa [#allocation7], 0
    %16 = vsyncpa [#allocation10], 0
    // Predicated region
    $region2: #{bilstm_forward.1} parent=1 // pred_check
      _
    $region3: #{bilstm_forward.1} parent=1 // pred_check_branch
      %18 = sbr.rel (0) target = $region5
    $region4: #{bilstm_forward.1} parent=1 // pred_region
      _
    $region5: #{bilstm_forward.1} parent=1 // pred_fallthru
      _
    // Predicated region
    $region6: #{bilstm_forward.1} parent=1 // pred_check
      _
    $region7: #{bilstm_forward.1} parent=1 // pred_check_branch
      %20 = sbr.rel (0) target = $region9
    $region8: #{bilstm_forward.1} parent=1 // pred_region
      %s22 = ssub.s32 16384, 16384
      %23 = vsyncadd [#allocation5], %s22
      %s24 = sshll.u32 [#allocation4], 4
      %s25 = int_to_ptr.vmem [resolvable:$true] %s24
      %30 = dma.hbm_to_vmem [thread:$0]  %s1, 16384, %s25, [#allocation5], 512, 512, 32
    $region9: #{bilstm_forward.1} parent=1 // pred_fallthru
      _
    // Predicated region
    $region10: #{bilstm_forward.1} parent=1 // pred_check
      _
    $region11: #{bilstm_forward.1} parent=1 // pred_check_branch
      %32 = sbr.rel (0) target = $region13
    $region12: #{bilstm_forward.1} parent=1 // pred_region
      %s34 = ssub.s32 16384, 16384
      %35 = vsyncadd [#allocation7], %s34
      %s36 = sshll.u32 [#allocation6], 4
      %s37 = int_to_ptr.vmem [resolvable:$true] %s36
      %42 = dma.hbm_to_vmem [thread:$0]  %s2, 16384, %s37, [#allocation7], 512, 512, 32
    $region13: #{bilstm_forward.1} parent=1 // pred_fallthru
      _
    // Predicated region
    $region14: #{bilstm_forward.1} parent=1 // pred_check
      _
    $region15: #{bilstm_forward.1} parent=1 // pred_check_branch
      %44 = sbr.rel (0) target = $region17
    $region16: #{bilstm_forward.1} parent=1 // pred_region
      _
    $region17: #{bilstm_forward.1} parent=1 // pred_fallthru
      _
    // Predicated region
    $region18: #{bilstm_forward.1} parent=1 // pred_check
      _
    $region19: #{bilstm_forward.1} parent=1 // pred_check_branch
      %46 = sbr.rel (0) target = $region21
    $region20: #{bilstm_forward.1} parent=1 // pred_region
      %s48 = ssub.s32 32768, 32768
      %49 = vsyncadd [#allocation7], %s48
      %s50 = sshll.u32 [#allocation8], 4
      %s51 = int_to_ptr.vmem [resolvable:$true] %s50
      %56 = dma.hbm_to_vmem [thread:$0]  %s4, 32768, %s51, [#allocation7], 512, 512, 32
    $region21: #{bilstm_forward.1} parent=1 // pred_fallthru
      _
    // Predicated region
    $region22: #{bilstm_forward.1} parent=1 // pred_check
      _
    $region23: #{bilstm_forward.1} parent=1 // pred_check_branch
      %58 = sbr.rel (0) target = $region25
    $region24: #{bilstm_forward.1} parent=1 // pred_region
      %s60 = ssub.s32 16384, 16384
      %61 = vsyncadd [#allocation10], %s60
      %s62 = sshll.u32 [#allocation9], 4
      %s63 = int_to_ptr.vmem [resolvable:$true] %s62
      %68 = dma.hbm_to_vmem [thread:$0]  %s5, 16384, %s63, [#allocation10], 512, 512, 32
    $region25: #{bilstm_forward.1} parent=1 // pred_fallthru
      _
    // Predicated region
    $region26: #{bilstm_forward.1} parent=1 // pred_check
      _
    $region27: #{bilstm_forward.1} parent=1 // pred_check_branch
      %70 = sbr.rel (0) target = $region29
    $region28: #{bilstm_forward.1} parent=1 // pred_region
      _
    $region29: #{bilstm_forward.1} parent=1 // pred_fallthru
      _
    // Predicated region
    $region30: #{bilstm_forward.1} parent=1 // pred_check
      _
    $region31: #{bilstm_forward.1} parent=1 // pred_check_branch
      %72 = sbr.rel (0) target = $region33
    $region32: #{bilstm_forward.1} parent=1 // pred_region
      %s74 = ssub.s32 4096, 4096
      %75 = vsyncadd [#allocation10], %s74
      %s76 = sshll.u32 [#allocation11], 4
      %s77 = int_to_ptr.vmem [resolvable:$true] %s76
      %82 = dma.hbm_to_vmem [thread:$0]  %s7, 4096, %s77, [#allocation10], 128, 128, 8
    $region33: #{bilstm_forward.1} parent=1 // pred_fallthru
      _
    // Predicated region
    $region34: #{bilstm_forward.1} parent=1 // pred_check
      _
    $region35: #{bilstm_forward.1} parent=1 // pred_check_branch
      %84 = sbr.rel (0) target = $region37
    $region36: #{bilstm_forward.1} parent=1 // pred_region
      _
    $region37: #{bilstm_forward.1} parent=1 // pred_fallthru
      _
    // Predicated region
    $region38: #{bilstm_forward.1} parent=1 // pred_check
      _
    $region39: #{bilstm_forward.1} parent=1 // pred_check_branch
      %86 = sbr.rel (0) target = $region41
    $region40: #{bilstm_forward.1} parent=1 // pred_region
      %87 = dma.done [#allocation5], 16384
    $region41: #{bilstm_forward.1} parent=1 // pred_fallthru
      _
    // Predicated region
    $region42: #{bilstm_forward.1} parent=1 // pred_check
      _
    $region43: #{bilstm_forward.1} parent=1 // pred_check_branch
      %89 = sbr.rel (0) target = $region45
    $region44: #{bilstm_forward.1} parent=1 // pred_region
      %90 = dma.done [#allocation7], 16384
    $region45: #{bilstm_forward.1} parent=1 // pred_fallthru
      _
    // Predicated region
    $region46: #{bilstm_forward.1} parent=1 // pred_check
      _
    $region47: #{bilstm_forward.1} parent=1 // pred_check_branch
      %92 = sbr.rel (0) target = $region49
    $region48: #{bilstm_forward.1} parent=1 // pred_region
      %93 = dma.done [#allocation7], 32768
    $region49: #{bilstm_forward.1} parent=1 // pred_fallthru
      _
    // Predicated region
    $region50: #{bilstm_forward.1} parent=1 // pred_check
      _
    $region51: #{bilstm_forward.1} parent=1 // pred_check_branch
      %95 = sbr.rel (0) target = $region53
    $region52: #{bilstm_forward.1} parent=1 // pred_region
      %96 = dma.done [#allocation10], 16384
    $region53: #{bilstm_forward.1} parent=1 // pred_fallthru
      _
    // Predicated region
    $region54: #{bilstm_forward.1} parent=1 // pred_check
      _
    $region55: #{bilstm_forward.1} parent=1 // pred_check_branch
      %98 = sbr.rel (0) target = $region57
    $region56: #{bilstm_forward.1} parent=1 // pred_region
      %99 = dma.done [#allocation10], 4096
    $region57: #{bilstm_forward.1} parent=1 // pred_fallthru
      _
    %v100 = vld [vmem:[%s0] sm:$0xff]
    %v101 = vld [vmem:[%s0 + $0x8] sm:$0xff]
    %v102 = vld [vmem:[%s0 + $0x10] sm:$0xff]
    %v103 = vld [vmem:[%s0 + $0x18] sm:$0xff]
    %v104 = vld [vmem:[%s0 + $0x20] sm:$0xff]
    %v105 = vld [vmem:[%s0 + $0x28] sm:$0xff]
    %v106 = vld [vmem:[%s0 + $0x30] sm:$0xff]
    %v107 = vld [vmem:[%s0 + $0x38] sm:$0xff]
    %v108 = vld [vmem:[#allocation4] sm:$0xff]
    %v109 = vld [vmem:[#allocation4 + $0x8] sm:$0xff]
    %v110 = vld [vmem:[#allocation4 + $0x10] sm:$0xff]
    %v111 = vld [vmem:[#allocation4 + $0x18] sm:$0xff]
    %v112 = vld [vmem:[#allocation4 + $0x20] sm:$0xff]
    %v113 = vld [vmem:[#allocation4 + $0x28] sm:$0xff]
    %v114 = vld [vmem:[#allocation4 + $0x30] sm:$0xff]
    %v115 = vld [vmem:[#allocation4 + $0x38] sm:$0xff]
    %v116 = vld [vmem:[#allocation4 + $0x40] sm:$0xff]
    %v117 = vld [vmem:[#allocation4 + $0x48] sm:$0xff]
    %v118 = vld [vmem:[#allocation4 + $0x50] sm:$0xff]
    %v119 = vld [vmem:[#allocation4 + $0x58] sm:$0xff]
    %v120 = vld [vmem:[#allocation4 + $0x60] sm:$0xff]
    %v121 = vld [vmem:[#allocation4 + $0x68] sm:$0xff]
    %v122 = vld [vmem:[#allocation4 + $0x70] sm:$0xff]
    %v123 = vld [vmem:[#allocation4 + $0x78] sm:$0xff]
    %v124 = vld [vmem:[#allocation4 + $0x80] sm:$0xff]
    %v125 = vld [vmem:[#allocation4 + $0x88] sm:$0xff]
    %v126 = vld [vmem:[#allocation4 + $0x90] sm:$0xff]
    %v127 = vld [vmem:[#allocation4 + $0x98] sm:$0xff]
    %v128 = vld [vmem:[#allocation4 + $0xa0] sm:$0xff]
    %v129 = vld [vmem:[#allocation4 + $0xa8] sm:$0xff]
    %v130 = vld [vmem:[#allocation4 + $0xb0] sm:$0xff]
    %v131 = vld [vmem:[#allocation4 + $0xb8] sm:$0xff]
    %v132 = vld [vmem:[#allocation4 + $0xc0] sm:$0xff]
    %v133 = vld [vmem:[#allocation4 + $0xc8] sm:$0xff]
    %v134 = vld [vmem:[#allocation4 + $0xd0] sm:$0xff]
    %v135 = vld [vmem:[#allocation4 + $0xd8] sm:$0xff]
    %v136 = vld [vmem:[#allocation4 + $0xe0] sm:$0xff]
    %v137 = vld [vmem:[#allocation4 + $0xe8] sm:$0xff]
    %v138 = vld [vmem:[#allocation4 + $0xf0] sm:$0xff]
    %v139 = vld [vmem:[#allocation4 + $0xf8] sm:$0xff]
    %v140 = vld [vmem:[#allocation4 + $0x100] sm:$0xff]
    %v141 = vld [vmem:[#allocation4 + $0x108] sm:$0xff]
    %v142 = vld [vmem:[#allocation4 + $0x110] sm:$0xff]
    %v143 = vld [vmem:[#allocation4 + $0x118] sm:$0xff]
    %v144 = vld [vmem:[#allocation4 + $0x120] sm:$0xff]
    %v145 = vld [vmem:[#allocation4 + $0x128] sm:$0xff]
    %v146 = vld [vmem:[#allocation4 + $0x130] sm:$0xff]
    %v147 = vld [vmem:[#allocation4 + $0x138] sm:$0xff]
    %v148 = vld [vmem:[#allocation4 + $0x140] sm:$0xff]
    %v149 = vld [vmem:[#allocation4 + $0x148] sm:$0xff]
    %v150 = vld [vmem:[#allocation4 + $0x150] sm:$0xff]
    %v151 = vld [vmem:[#allocation4 + $0x158] sm:$0xff]
    %v152 = vld [vmem:[#allocation4 + $0x160] sm:$0xff]
    %v153 = vld [vmem:[#allocation4 + $0x168] sm:$0xff]
    %v154 = vld [vmem:[#allocation4 + $0x170] sm:$0xff]
    %v155 = vld [vmem:[#allocation4 + $0x178] sm:$0xff]
    %v156 = vld [vmem:[#allocation4 + $0x180] sm:$0xff]
    %v157 = vld [vmem:[#allocation4 + $0x188] sm:$0xff]
    %v158 = vld [vmem:[#allocation4 + $0x190] sm:$0xff]
    %v159 = vld [vmem:[#allocation4 + $0x198] sm:$0xff]
    %v160 = vld [vmem:[#allocation4 + $0x1a0] sm:$0xff]
    %v161 = vld [vmem:[#allocation4 + $0x1a8] sm:$0xff]
    %v162 = vld [vmem:[#allocation4 + $0x1b0] sm:$0xff]
    %v163 = vld [vmem:[#allocation4 + $0x1b8] sm:$0xff]
    %v164 = vld [vmem:[#allocation4 + $0x1c0] sm:$0xff]
    %v165 = vld [vmem:[#allocation4 + $0x1c8] sm:$0xff]
    %v166 = vld [vmem:[#allocation4 + $0x1d0] sm:$0xff]
    %v167 = vld [vmem:[#allocation4 + $0x1d8] sm:$0xff]
    %v168 = vld [vmem:[#allocation4 + $0x1e0] sm:$0xff]
    %v169 = vld [vmem:[#allocation4 + $0x1e8] sm:$0xff]
    %v170 = vld [vmem:[#allocation4 + $0x1f0] sm:$0xff]
    %v171 = vld [vmem:[#allocation4 + $0x1f8] sm:$0xff]
    %v172 = vld [vmem:[#allocation6] sm:$0xff]
    %v173 = vld [vmem:[#allocation6 + $0x8] sm:$0xff]
    %v174 = vld [vmem:[#allocation6 + $0x10] sm:$0xff]
    %v175 = vld [vmem:[#allocation6 + $0x18] sm:$0xff]
    %v176 = vld [vmem:[#allocation6 + $0x20] sm:$0xff]
    %v177 = vld [vmem:[#allocation6 + $0x28] sm:$0xff]
    %v178 = vld [vmem:[#allocation6 + $0x30] sm:$0xff]
    %v179 = vld [vmem:[#allocation6 + $0x38] sm:$0xff]
    %v180 = vld [vmem:[#allocation6 + $0x40] sm:$0xff]
    %v181 = vld [vmem:[#allocation6 + $0x48] sm:$0xff]
    %v182 = vld [vmem:[#allocation6 + $0x50] sm:$0xff]
    %v183 = vld [vmem:[#allocation6 + $0x58] sm:$0xff]
    %v184 = vld [vmem:[#allocation6 + $0x60] sm:$0xff]
    %v185 = vld [vmem:[#allocation6 + $0x68] sm:$0xff]
    %v186 = vld [vmem:[#allocation6 + $0x70] sm:$0xff]
    %v187 = vld [vmem:[#allocation6 + $0x78] sm:$0xff]
    %v188 = vld [vmem:[#allocation6 + $0x80] sm:$0xff]
    %v189 = vld [vmem:[#allocation6 + $0x88] sm:$0xff]
    %v190 = vld [vmem:[#allocation6 + $0x90] sm:$0xff]
    %v191 = vld [vmem:[#allocation6 + $0x98] sm:$0xff]
    %v192 = vld [vmem:[#allocation6 + $0xa0] sm:$0xff]
    %v193 = vld [vmem:[#allocation6 + $0xa8] sm:$0xff]
    %v194 = vld [vmem:[#allocation6 + $0xb0] sm:$0xff]
    %v195 = vld [vmem:[#allocation6 + $0xb8] sm:$0xff]
    %v196 = vld [vmem:[#allocation6 + $0xc0] sm:$0xff]
    %v197 = vld [vmem:[#allocation6 + $0xc8] sm:$0xff]
    %v198 = vld [vmem:[#allocation6 + $0xd0] sm:$0xff]
    %v199 = vld [vmem:[#allocation6 + $0xd8] sm:$0xff]
    %v200 = vld [vmem:[#allocation6 + $0xe0] sm:$0xff]
    %v201 = vld [vmem:[#allocation6 + $0xe8] sm:$0xff]
    %v202 = vld [vmem:[#allocation6 + $0xf0] sm:$0xff]
    %v203 = vld [vmem:[#allocation6 + $0xf8] sm:$0xff]
    %v204 = vld [vmem:[#allocation6 + $0x100] sm:$0xff]
    %v205 = vld [vmem:[#allocation6 + $0x108] sm:$0xff]
    %v206 = vld [vmem:[#allocation6 + $0x110] sm:$0xff]
    %v207 = vld [vmem:[#allocation6 + $0x118] sm:$0xff]
    %v208 = vld [vmem:[#allocation6 + $0x120] sm:$0xff]
    %v209 = vld [vmem:[#allocation6 + $0x128] sm:$0xff]
    %v210 = vld [vmem:[#allocation6 + $0x130] sm:$0xff]
    %v211 = vld [vmem:[#allocation6 + $0x138] sm:$0xff]
    %v212 = vld [vmem:[#allocation6 + $0x140] sm:$0xff]
    %v213 = vld [vmem:[#allocation6 + $0x148] sm:$0xff]
    %v214 = vld [vmem:[#allocation6 + $0x150] sm:$0xff]
    %v215 = vld [vmem:[#allocation6 + $0x158] sm:$0xff]
    %v216 = vld [vmem:[#allocation6 + $0x160] sm:$0xff]
    %v217 = vld [vmem:[#allocation6 + $0x168] sm:$0xff]
    %v218 = vld [vmem:[#allocation6 + $0x170] sm:$0xff]
    %v219 = vld [vmem:[#allocation6 + $0x178] sm:$0xff]
    %v220 = vld [vmem:[#allocation6 + $0x180] sm:$0xff]
    %v221 = vld [vmem:[#allocation6 + $0x188] sm:$0xff]
    %v222 = vld [vmem:[#allocation6 + $0x190] sm:$0xff]
    %v223 = vld [vmem:[#allocation6 + $0x198] sm:$0xff]
    %v224 = vld [vmem:[#allocation6 + $0x1a0] sm:$0xff]
    %v225 = vld [vmem:[#allocation6 + $0x1a8] sm:$0xff]
    %v226 = vld [vmem:[#allocation6 + $0x1b0] sm:$0xff]
    %v227 = vld [vmem:[#allocation6 + $0x1b8] sm:$0xff]
    %v228 = vld [vmem:[#allocation6 + $0x1c0] sm:$0xff]
    %v229 = vld [vmem:[#allocation6 + $0x1c8] sm:$0xff]
    %v230 = vld [vmem:[#allocation6 + $0x1d0] sm:$0xff]
    %v231 = vld [vmem:[#allocation6 + $0x1d8] sm:$0xff]
    %v232 = vld [vmem:[#allocation6 + $0x1e0] sm:$0xff]
    %v233 = vld [vmem:[#allocation6 + $0x1e8] sm:$0xff]
    %v234 = vld [vmem:[#allocation6 + $0x1f0] sm:$0xff]
    %v235 = vld [vmem:[#allocation6 + $0x1f8] sm:$0xff]
    %v236 = vld [vmem:[%s3] sm:$0xf]
    %v238 = vlaneseq
    %v239 = vshrl.u32 %v238, 7
    %v240 = vsub.s32 0, %v239
    %v241 = vrot.slane %v236, %v240
    %v242 = vlaneseq
    %v243 = vshrl.u32 %v242, 7
    %v244 = vsub.s32 1, %v243
    %v245 = vrot.slane %v236, %v244
    %v246 = vlaneseq
    %v247 = vshrl.u32 %v246, 7
    %v248 = vsub.s32 2, %v247
    %v249 = vrot.slane %v236, %v248
    %v250 = vlaneseq
    %v251 = vshrl.u32 %v250, 7
    %v252 = vsub.s32 3, %v251
    %v253 = vrot.slane %v236, %v252
    %258 = vmatprep.subr.mxu0 %v109
    %259 = vmatpush1.msra.mxu0 %v108
    %260 = vmatprep.subr.mxu0 %v113
    %261 = vmatpush1.msra.mxu0 %v112
    %262 = vmatprep.subr.mxu0 %v117
    %263 = vmatpush1.msra.mxu0 %v116
    %264 = vmatprep.subr.mxu0 %v121
    %265 = vmatpush1.msra.mxu0 %v120
    %266 = vmatprep.subr.mxu0 %v125
    %267 = vmatpush1.msra.mxu0 %v124
    %268 = vmatprep.subr.mxu0 %v129
    %269 = vmatpush1.msra.mxu0 %v128
    %270 = vmatprep.subr.mxu0 %v133
    %271 = vmatpush1.msra.mxu0 %v132
    %272 = vmatprep.subr.mxu0 %v137
    %273 = vmatpush1.msra.mxu0 %v136
    %274 = vmatprep.subr.mxu0 %v141
    %275 = vmatpush1.msra.mxu0 %v140
    %276 = vmatprep.subr.mxu0 %v145
    %277 = vmatpush1.msra.mxu0 %v144
    %278 = vmatprep.subr.mxu0 %v149
    %279 = vmatpush1.msra.mxu0 %v148
    %280 = vmatprep.subr.mxu0 %v153
    %281 = vmatpush1.msra.mxu0 %v152
    %282 = vmatprep.subr.mxu0 %v157
    %283 = vmatpush1.msra.mxu0 %v156
    %284 = vmatprep.subr.mxu0 %v161
    %285 = vmatpush1.msra.mxu0 %v160
    %286 = vmatprep.subr.mxu0 %v165
    %287 = vmatpush1.msra.mxu0 %v164
    %288 = vmatprep.subr.mxu0 %v169
    %289 = vmatpush1.msra.mxu0 %v168
    %290 = vmatprep.subr.mxu0 0.0
    %291 = vmatpush1.msra.mxu0 0.0
    %292 = vmatprep.subr.mxu0 0.0
    %293 = vmatpush1.msra.mxu0 0.0
    %294 = vmatprep.subr.mxu0 0.0
    %295 = vmatpush1.msra.mxu0 0.0
    %296 = vmatprep.subr.mxu0 0.0
    %297 = vmatpush1.msra.mxu0 0.0
    %298 = vmatprep.subr.mxu0 0.0
    %299 = vmatpush1.msra.mxu0 0.0
    %300 = vmatprep.subr.mxu0 0.0
    %301 = vmatpush1.msra.mxu0 0.0
    %302 = vmatprep.subr.mxu0 0.0
    %303 = vmatpush1.msra.mxu0 0.0
    %304 = vmatprep.subr.mxu0 0.0
    %305 = vmatpush1.msra.mxu0 0.0
    %306 = vmatprep.subr.mxu0 0.0
    %307 = vmatpush1.msra.mxu0 0.0
    %308 = vmatprep.subr.mxu0 0.0
    %309 = vmatpush1.msra.mxu0 0.0
    %310 = vmatprep.subr.mxu0 0.0
    %311 = vmatpush1.msra.mxu0 0.0
    %312 = vmatprep.subr.mxu0 0.0
    %313 = vmatpush1.msra.mxu0 0.0
    %314 = vmatprep.subr.mxu0 0.0
    %315 = vmatpush1.msra.mxu0 0.0
    %316 = vmatprep.subr.mxu0 0.0
    %317 = vmatpush1.msra.mxu0 0.0
    %318 = vmatprep.subr.mxu0 0.0
    %319 = vmatpush1.msra.mxu0 0.0
    %320 = vmatprep.subr.mxu0 0.0
    %321 = vmatpush1.msra.mxu0 0.0
    %322 = vmatprep.mubr.f32.mxu0 0.0
    %323 = vmatmul.mubr.f32.gmra.mrb[0].mxu0 %v100
    %v324 = vpop.f32.mrb[0].mxu0
    %v325 = vadd.f32 %v241, %v324
    %v326 = vpop.f32.mrb[0].mxu0
    %v327 = vadd.f32 %v245, %v326
    %328 = vmatprep.mubr.f32.mxu0 0.0
    %329 = vmatmul.mubr.f32.gmra.mrb[0].mxu0 %v101
    %v330 = vpop.f32.mrb[0].mxu0
    %v331 = vadd.f32 %v241, %v330
    %v332 = vpop.f32.mrb[0].mxu0
    %v333 = vadd.f32 %v245, %v332
    %334 = vmatprep.mubr.f32.mxu0 0.0
    %335 = vmatmul.mubr.f32.gmra.mrb[0].mxu0 %v102
    %v336 = vpop.f32.mrb[0].mxu0
    %v337 = vadd.f32 %v241, %v336
    %v338 = vpop.f32.mrb[0].mxu0
    %v339 = vadd.f32 %v245, %v338
    %340 = vmatprep.mubr.f32.mxu0 0.0
    %341 = vmatmul.mubr.f32.gmra.mrb[0].mxu0 %v103
    %v342 = vpop.f32.mrb[0].mxu0
    %v343 = vadd.f32 %v241, %v342
    %v344 = vpop.f32.mrb[0].mxu0
    %v345 = vadd.f32 %v245, %v344
    %346 = vmatprep.mubr.f32.mxu0 0.0
    %347 = vmatmul.mubr.f32.gmra.mrb[0].mxu0 %v104
    %v348 = vpop.f32.mrb[0].mxu0
    %v349 = vadd.f32 %v241, %v348
    %v350 = vpop.f32.mrb[0].mxu0
    %v351 = vadd.f32 %v245, %v350
    %352 = vmatprep.mubr.f32.mxu0 0.0
    %353 = vmatmul.mubr.f32.gmra.mrb[0].mxu0 %v105
    %v354 = vpop.f32.mrb[0].mxu0
    %v355 = vadd.f32 %v241, %v354
    %v356 = vpop.f32.mrb[0].mxu0
    %v357 = vadd.f32 %v245, %v356
    %358 = vmatprep.mubr.f32.mxu0 0.0
    %359 = vmatmul.mubr.f32.gmra.mrb[0].mxu0 %v106
    %v360 = vpop.f32.mrb[0].mxu0
    %v361 = vadd.f32 %v241, %v360
    %v362 = vpop.f32.mrb[0].mxu0
    %v363 = vadd.f32 %v245, %v362
    %364 = vmatprep.mubr.f32.mxu0 0.0
    %365 = vmatmul.mubr.f32.gmra.mrb[0].mxu0 %v107
    %v366 = vpop.f32.mrb[0].mxu0
    %v367 = vadd.f32 %v241, %v366
    %v368 = vpop.f32.mrb[0].mxu0
    %v369 = vadd.f32 %v245, %v368
    %370 = vdwg.mxu0
    %371 = vmatprep.subr.mxu0 %v111
    %372 = vmatpush1.msra.mxu0 %v110
    %373 = vmatprep.subr.mxu0 %v115
    %374 = vmatpush1.msra.mxu0 %v114
    %375 = vmatprep.subr.mxu0 %v119
    %376 = vmatpush1.msra.mxu0 %v118
    %377 = vmatprep.subr.mxu0 %v123
    %378 = vmatpush1.msra.mxu0 %v122
    %379 = vmatprep.subr.mxu0 %v127
    %380 = vmatpush1.msra.mxu0 %v126
    %381 = vmatprep.subr.mxu0 %v131
    %382 = vmatpush1.msra.mxu0 %v130
    %383 = vmatprep.subr.mxu0 %v135
    %384 = vmatpush1.msra.mxu0 %v134
    %385 = vmatprep.subr.mxu0 %v139
    %386 = vmatpush1.msra.mxu0 %v138
    %387 = vmatprep.subr.mxu0 %v143
    %388 = vmatpush1.msra.mxu0 %v142
    %389 = vmatprep.subr.mxu0 %v147
    %390 = vmatpush1.msra.mxu0 %v146
    %391 = vmatprep.subr.mxu0 %v151
    %392 = vmatpush1.msra.mxu0 %v150
    %393 = vmatprep.subr.mxu0 %v155
    %394 = vmatpush1.msra.mxu0 %v154
    %395 = vmatprep.subr.mxu0 %v159
    %396 = vmatpush1.msra.mxu0 %v158
    %397 = vmatprep.subr.mxu0 %v163
    %398 = vmatpush1.msra.mxu0 %v162
    %399 = vmatprep.subr.mxu0 %v167
    %400 = vmatpush1.msra.mxu0 %v166
    %401 = vmatprep.subr.mxu0 %v171
    %402 = vmatpush1.msra.mxu0 %v170
    %403 = vmatprep.subr.mxu0 0.0
    %404 = vmatpush1.msra.mxu0 0.0
    %405 = vmatprep.subr.mxu0 0.0
    %406 = vmatpush1.msra.mxu0 0.0
    %407 = vmatprep.subr.mxu0 0.0
    %408 = vmatpush1.msra.mxu0 0.0
    %409 = vmatprep.subr.mxu0 0.0
    %410 = vmatpush1.msra.mxu0 0.0
    %411 = vmatprep.subr.mxu0 0.0
    %412 = vmatpush1.msra.mxu0 0.0
    %413 = vmatprep.subr.mxu0 0.0
    %414 = vmatpush1.msra.mxu0 0.0
    %415 = vmatprep.subr.mxu0 0.0
    %416 = vmatpush1.msra.mxu0 0.0
    %417 = vmatprep.subr.mxu0 0.0
    %418 = vmatpush1.msra.mxu0 0.0
    %419 = vmatprep.subr.mxu0 0.0
    %420 = vmatpush1.msra.mxu0 0.0
    %421 = vmatprep.subr.mxu0 0.0
    %422 = vmatpush1.msra.mxu0 0.0
    %423 = vmatprep.subr.mxu0 0.0
    %424 = vmatpush1.msra.mxu0 0.0
    %425 = vmatprep.subr.mxu0 0.0
    %426 = vmatpush1.msra.mxu0 0.0
    %427 = vmatprep.subr.mxu0 0.0
    %428 = vmatpush1.msra.mxu0 0.0
    %429 = vmatprep.subr.mxu0 0.0
    %430 = vmatpush1.msra.mxu0 0.0
    %431 = vmatprep.subr.mxu0 0.0
    %432 = vmatpush1.msra.mxu0 0.0
    %433 = vmatprep.subr.mxu0 0.0
    %434 = vmatpush1.msra.mxu0 0.0
    %435 = vmatprep.mubr.f32.mxu0 0.0
    %436 = vmatmul.mubr.f32.gmra.mrb[0].mxu0 %v100
    %v437 = vpop.f32.mrb[0].mxu0
    %v438 = vadd.f32 %v249, %v437
    %v439 = vpop.f32.mrb[0].mxu0
    %v440 = vadd.f32 %v253, %v439
    %441 = vmatprep.mubr.f32.mxu0 0.0
    %442 = vmatmul.mubr.f32.gmra.mrb[0].mxu0 %v101
    %v443 = vpop.f32.mrb[0].mxu0
    %v444 = vadd.f32 %v249, %v443
    %v445 = vpop.f32.mrb[0].mxu0
    %v446 = vadd.f32 %v253, %v445
    %447 = vmatprep.mubr.f32.mxu0 0.0
    %448 = vmatmul.mubr.f32.gmra.mrb[0].mxu0 %v102
    %v449 = vpop.f32.mrb[0].mxu0
    %v450 = vadd.f32 %v249, %v449
    %v451 = vpop.f32.mrb[0].mxu0
    %v452 = vadd.f32 %v253, %v451
    %453 = vmatprep.mubr.f32.mxu0 0.0
    %454 = vmatmul.mubr.f32.gmra.mrb[0].mxu0 %v103
    %v455 = vpop.f32.mrb[0].mxu0
    %v456 = vadd.f32 %v249, %v455
    %v457 = vpop.f32.mrb[0].mxu0
    %v458 = vadd.f32 %v253, %v457
    %459 = vmatprep.mubr.f32.mxu0 0.0
    %460 = vmatmul.mubr.f32.gmra.mrb[0].mxu0 %v104
    %v461 = vpop.f32.mrb[0].mxu0
    %v462 = vadd.f32 %v249, %v461
    %v463 = vpop.f32.mrb[0].mxu0
    %v464 = vadd.f32 %v253, %v463
    %465 = vmatprep.mubr.f32.mxu0 0.0
    %466 = vmatmul.mubr.f32.gmra.mrb[0].mxu0 %v105
    %v467 = vpop.f32.mrb[0].mxu0
    %v468 = vadd.f32 %v249, %v467
    %v469 = vpop.f32.mrb[0].mxu0
    %v470 = vadd.f32 %v253, %v469
    %471 = vmatprep.mubr.f32.mxu0 0.0
    %472 = vmatmul.mubr.f32.gmra.mrb[0].mxu0 %v106
    %v473 = vpop.f32.mrb[0].mxu0
    %v474 = vadd.f32 %v249, %v473
    %v475 = vpop.f32.mrb[0].mxu0
    %v476 = vadd.f32 %v253, %v475
    %477 = vmatprep.mubr.f32.mxu0 0.0
    %478 = vmatmul.mubr.f32.gmra.mrb[0].mxu0 %v107
    %v479 = vpop.f32.mrb[0].mxu0
    %v480 = vadd.f32 %v249, %v479
    %v481 = vpop.f32.mrb[0].mxu0
    %v482 = vadd.f32 %v253, %v481
    %483 = vdwg.mxu0
    %484 = vst [vmem:[#allocation3] sm:$0xff] %v325
    %485 = vst [vmem:[#allocation3 + $0x8] sm:$0xff] %v327
    %486 = vst [vmem:[#allocation3 + $0x10] sm:$0xff] %v438
    %487 = vst [vmem:[#allocation3 + $0x18] sm:$0xff] %v440
    %488 = vst [vmem:[#allocation3 + $0x20] sm:$0xff] %v331
    %489 = vst [vmem:[#allocation3 + $0x28] sm:$0xff] %v333
    %490 = vst [vmem:[#allocation3 + $0x30] sm:$0xff] %v444
    %491 = vst [vmem:[#allocation3 + $0x38] sm:$0xff] %v446
    %492 = vst [vmem:[#allocation3 + $0x40] sm:$0xff] %v337
    %493 = vst [vmem:[#allocation3 + $0x48] sm:$0xff] %v339
    %494 = vst [vmem:[#allocation3 + $0x50] sm:$0xff] %v450
    %495 = vst [vmem:[#allocation3 + $0x58] sm:$0xff] %v452
    %496 = vst [vmem:[#allocation3 + $0x60] sm:$0xff] %v343
    %497 = vst [vmem:[#allocation3 + $0x68] sm:$0xff] %v345
    %498 = vst [vmem:[#allocation3 + $0x70] sm:$0xff] %v456
    %499 = vst [vmem:[#allocation3 + $0x78] sm:$0xff] %v458
    %500 = vst [vmem:[#allocation3 + $0x80] sm:$0xff] %v349
    %501 = vst [vmem:[#allocation3 + $0x88] sm:$0xff] %v351
    %502 = vst [vmem:[#allocation3 + $0x90] sm:$0xff] %v462
    %503 = vst [vmem:[#allocation3 + $0x98] sm:$0xff] %v464
    %504 = vst [vmem:[#allocation3 + $0xa0] sm:$0xff] %v355
    %505 = vst [vmem:[#allocation3 + $0xa8] sm:$0xff] %v357
    %506 = vst [vmem:[#allocation3 + $0xb0] sm:$0xff] %v468
    %507 = vst [vmem:[#allocation3 + $0xb8] sm:$0xff] %v470
    %508 = vst [vmem:[#allocation3 + $0xc0] sm:$0xff] %v361
    %509 = vst [vmem:[#allocation3 + $0xc8] sm:$0xff] %v363
    %510 = vst [vmem:[#allocation3 + $0xd0] sm:$0xff] %v474
    %511 = vst [vmem:[#allocation3 + $0xd8] sm:$0xff] %v476
    %512 = vst [vmem:[#allocation3 + $0xe0] sm:$0xff] %v367
    %513 = vst [vmem:[#allocation3 + $0xe8] sm:$0xff] %v369
    %514 = vst [vmem:[#allocation3 + $0xf0] sm:$0xff] %v480
    %515 = vst [vmem:[#allocation3 + $0xf8] sm:$0xff] %v482
    %v516 = vld [vmem:[#allocation3] sm:$0xff]
    %v517 = vld [vmem:[#allocation3 + $0x8] sm:$0xff]
    %v518 = vld [vmem:[#allocation3 + $0x10] sm:$0xff]
    %v519 = vld [vmem:[#allocation3 + $0x18] sm:$0xff]
    %520 = vmatprep.subr.mxu0 %v173
    %521 = vmatpush1.msra.mxu0 %v172
    %522 = vmatprep.subr.mxu0 %v177
    %523 = vmatpush1.msra.mxu0 %v176
    %524 = vmatprep.subr.mxu0 %v181
    %525 = vmatpush1.msra.mxu0 %v180
    %526 = vmatprep.subr.mxu0 %v185
    %527 = vmatpush1.msra.mxu0 %v184
    %528 = vmatprep.subr.mxu0 %v189
    %529 = vmatpush1.msra.mxu0 %v188
    %530 = vmatprep.subr.mxu0 %v193
    %531 = vmatpush1.msra.mxu0 %v192
    %532 = vmatprep.subr.mxu0 %v197
    %533 = vmatpush1.msra.mxu0 %v196
    %534 = vmatprep.subr.mxu0 %v201
    %535 = vmatpush1.msra.mxu0 %v200
    %536 = vmatprep.subr.mxu0 %v205
    %537 = vmatpush1.msra.mxu0 %v204
    %538 = vmatprep.subr.mxu0 %v209
    %539 = vmatpush1.msra.mxu0 %v208
    %540 = vmatprep.subr.mxu0 %v213
    %541 = vmatpush1.msra.mxu0 %v212
    %542 = vmatprep.subr.mxu0 %v217
    %543 = vmatpush1.msra.mxu0 %v216
    %544 = vmatprep.subr.mxu0 %v221
    %545 = vmatpush1.msra.mxu0 %v220
    %546 = vmatprep.subr.mxu0 %v225
    %547 = vmatpush1.msra.mxu0 %v224
    %548 = vmatprep.subr.mxu0 %v229
    %549 = vmatpush1.msra.mxu0 %v228
    %550 = vmatprep.subr.mxu0 %v233
    %551 = vmatpush1.msra.mxu0 %v232
    %552 = vmatprep.subr.mxu0 0.0
    %553 = vmatpush1.msra.mxu0 0.0
    %554 = vmatprep.subr.mxu0 0.0
    %555 = vmatpush1.msra.mxu0 0.0
    %556 = vmatprep.subr.mxu0 0.0
    %557 = vmatpush1.msra.mxu0 0.0
    %558 = vmatprep.subr.mxu0 0.0
    %559 = vmatpush1.msra.mxu0 0.0
    %560 = vmatprep.subr.mxu0 0.0
    %561 = vmatpush1.msra.mxu0 0.0
    %562 = vmatprep.subr.mxu0 0.0
    %563 = vmatpush1.msra.mxu0 0.0
    %564 = vmatprep.subr.mxu0 0.0
    %565 = vmatpush1.msra.mxu0 0.0
    %566 = vmatprep.subr.mxu0 0.0
    %567 = vmatpush1.msra.mxu0 0.0
    %568 = vmatprep.subr.mxu0 0.0
    %569 = vmatpush1.msra.mxu0 0.0
    %570 = vmatprep.subr.mxu0 0.0
    %571 = vmatpush1.msra.mxu0 0.0
    %572 = vmatprep.subr.mxu0 0.0
    %573 = vmatpush1.msra.mxu0 0.0
    %574 = vmatprep.subr.mxu0 0.0
    %575 = vmatpush1.msra.mxu0 0.0
    %576 = vmatprep.subr.mxu0 0.0
    %577 = vmatpush1.msra.mxu0 0.0
    %578 = vmatprep.subr.mxu0 0.0
    %579 = vmatpush1.msra.mxu0 0.0
    %580 = vmatprep.subr.mxu0 0.0
    %581 = vmatpush1.msra.mxu0 0.0
    %582 = vmatprep.subr.mxu0 0.0
    %583 = vmatpush1.msra.mxu0 0.0
    %584 = vmatprep.mubr.f32.mxu0 0.0
    %585 = vmatmul.mubr.f32.gmra.mrb[0].mxu0 0.0
    %v586 = vpop.f32.mrb[0].mxu0
    %v587 = vadd.f32 0.0, %v586
    %v588 = vpop.f32.mrb[0].mxu0
    %v589 = vadd.f32 0.0, %v588
    %590 = vdwg.mxu0
    %591 = vmatprep.subr.mxu0 %v175
    %592 = vmatpush1.msra.mxu0 %v174
    %593 = vmatprep.subr.mxu0 %v179
    %594 = vmatpush1.msra.mxu0 %v178
    %595 = vmatprep.subr.mxu0 %v183
    %596 = vmatpush1.msra.mxu0 %v182
    %597 = vmatprep.subr.mxu0 %v187
    %598 = vmatpush1.msra.mxu0 %v186
    %599 = vmatprep.subr.mxu0 %v191
    %600 = vmatpush1.msra.mxu0 %v190
    %601 = vmatprep.subr.mxu0 %v195
    %602 = vmatpush1.msra.mxu0 %v194
    %603 = vmatprep.subr.mxu0 %v199
    %604 = vmatpush1.msra.mxu0 %v198
    %605 = vmatprep.subr.mxu0 %v203
    %606 = vmatpush1.msra.mxu0 %v202
    %607 = vmatprep.subr.mxu0 %v207
    %608 = vmatpush1.msra.mxu0 %v206
    %609 = vmatprep.subr.mxu0 %v211
    %610 = vmatpush1.msra.mxu0 %v210
    %611 = vmatprep.subr.mxu0 %v215
    %612 = vmatpush1.msra.mxu0 %v214
    %613 = vmatprep.subr.mxu0 %v219
    %614 = vmatpush1.msra.mxu0 %v218
    %615 = vmatprep.subr.mxu0 %v223
    %616 = vmatpush1.msra.mxu0 %v222
    %617 = vmatprep.subr.mxu0 %v227
    %618 = vmatpush1.msra.mxu0 %v226
    %619 = vmatprep.subr.mxu0 %v231
    %620 = vmatpush1.msra.mxu0 %v230
    %621 = vmatprep.subr.mxu0 %v235
    %622 = vmatpush1.msra.mxu0 %v234
    %623 = vmatprep.subr.mxu0 0.0
    %624 = vmatpush1.msra.mxu0 0.0
    %625 = vmatprep.subr.mxu0 0.0
    %626 = vmatpush1.msra.mxu0 0.0
    %627 = vmatprep.subr.mxu0 0.0
    %628 = vmatpush1.msra.mxu0 0.0
    %629 = vmatprep.subr.mxu0 0.0
    %630 = vmatpush1.msra.mxu0 0.0
    %631 = vmatprep.subr.mxu0 0.0
    %632 = vmatpush1.msra.mxu0 0.0
    %633 = vmatprep.subr.mxu0 0.0
    %634 = vmatpush1.msra.mxu0 0.0
    %635 = vmatprep.subr.mxu0 0.0
    %636 = vmatpush1.msra.mxu0 0.0
    %637 = vmatprep.subr.mxu0 0.0
    %638 = vmatpush1.msra.mxu0 0.0
    %639 = vmatprep.subr.mxu0 0.0
    %640 = vmatpush1.msra.mxu0 0.0
    %641 = vmatprep.subr.mxu0 0.0
    %642 = vmatpush1.msra.mxu0 0.0
    %643 = vmatprep.subr.mxu0 0.0
    %644 = vmatpush1.msra.mxu0 0.0
    %645 = vmatprep.subr.mxu0 0.0
    %646 = vmatpush1.msra.mxu0 0.0
    %647 = vmatprep.subr.mxu0 0.0
    %648 = vmatpush1.msra.mxu0 0.0
    %649 = vmatprep.subr.mxu0 0.0
    %650 = vmatpush1.msra.mxu0 0.0
    %651 = vmatprep.subr.mxu0 0.0
    %652 = vmatpush1.msra.mxu0 0.0
    %653 = vmatprep.subr.mxu0 0.0
    %654 = vmatpush1.msra.mxu0 0.0
    %655 = vmatprep.mubr.f32.mxu0 0.0
    %656 = vmatmul.mubr.f32.gmra.mrb[0].mxu0 0.0
    %v657 = vpop.f32.mrb[0].mxu0
    %v658 = vadd.f32 0.0, %v657
    %v659 = vpop.f32.mrb[0].mxu0
    %v660 = vadd.f32 0.0, %v659
    %661 = vdwg.mxu0
    %v662 = vadd.f32 %v516, %v587
    %v663 = vadd.f32 %v517, %v589
    %v664 = vadd.f32 %v518, %v658
    %v665 = vadd.f32 %v519, %v660
    %v666 = vxor.u32 %v662, 2147483648
    %v667 = vmul.f32 %v666, 1.442695
    %v668 = vpow.pop %v667
    %v669 = vadd.f32 %v668, 1.0
    %v670 = vrcp.pop %v669
    %v671 = vmul.f32 1.0, %v670
    %v672 = vxor.u32 %v663, 2147483648
    %v673 = vmul.f32 %v672, 1.442695
    %v674 = vpow.pop %v673
    %v675 = vadd.f32 %v674, 1.0
    %v676 = vrcp.pop %v675
    %v677 = vmul.f32 1.0, %v676
    %v678 = vtanh.pop %v664
    %v679 = vxor.u32 %v665, 2147483648
    %v680 = vmul.f32 %v679, 1.442695
    %v681 = vpow.pop %v680
    %v682 = vadd.f32 %v681, 1.0
    %v683 = vrcp.pop %v682
    %v684 = vmul.f32 1.0, %v683
    %v685 = vmul.f32 %v677, 0.0
    %v686 = vmul.f32 %v671, %v678
    %v687 = vadd.f32 %v685, %v686
    %v688 = vtanh.pop %v687
    %v689 = vmul.f32 %v684, %v688
    %690 = vst [vmem:[#allocation2] sm:$0xff] %v689
    %s691 = scalar_lea.vmem [#allocation3], 32
    %v692 = vld [vmem:[%s691] sm:$0xff]
    %v693 = vld [vmem:[%s691 + $0x8] sm:$0xff]
    %v694 = vld [vmem:[%s691 + $0x10] sm:$0xff]
    %v695 = vld [vmem:[%s691 + $0x18] sm:$0xff]
    %696 = vmatprep.subr.mxu0 %v173
    %697 = vmatpush1.msra.mxu0 %v172
    %698 = vmatprep.subr.mxu0 %v177
    %699 = vmatpush1.msra.mxu0 %v176
    %700 = vmatprep.subr.mxu0 %v181
    %701 = vmatpush1.msra.mxu0 %v180
    %702 = vmatprep.subr.mxu0 %v185
    %703 = vmatpush1.msra.mxu0 %v184
    %704 = vmatprep.subr.mxu0 %v189
    %705 = vmatpush1.msra.mxu0 %v188
    %706 = vmatprep.subr.mxu0 %v193
    %707 = vmatpush1.msra.mxu0 %v192
    %708 = vmatprep.subr.mxu0 %v197
    %709 = vmatpush1.msra.mxu0 %v196
    %710 = vmatprep.subr.mxu0 %v201
    %711 = vmatpush1.msra.mxu0 %v200
    %712 = vmatprep.subr.mxu0 %v205
    %713 = vmatpush1.msra.mxu0 %v204
    %714 = vmatprep.subr.mxu0 %v209
    %715 = vmatpush1.msra.mxu0 %v208
    %716 = vmatprep.subr.mxu0 %v213
    %717 = vmatpush1.msra.mxu0 %v212
    %718 = vmatprep.subr.mxu0 %v217
    %719 = vmatpush1.msra.mxu0 %v216
    %720 = vmatprep.subr.mxu0 %v221
    %721 = vmatpush1.msra.mxu0 %v220
    %722 = vmatprep.subr.mxu0 %v225
    %723 = vmatpush1.msra.mxu0 %v224
    %724 = vmatprep.subr.mxu0 %v229
    %725 = vmatpush1.msra.mxu0 %v228
    %726 = vmatprep.subr.mxu0 %v233
    %727 = vmatpush1.msra.mxu0 %v232
    %728 = vmatprep.subr.mxu0 0.0
    %729 = vmatpush1.msra.mxu0 0.0
    %730 = vmatprep.subr.mxu0 0.0
    %731 = vmatpush1.msra.mxu0 0.0
    %732 = vmatprep.subr.mxu0 0.0
    %733 = vmatpush1.msra.mxu0 0.0
    %734 = vmatprep.subr.mxu0 0.0
    %735 = vmatpush1.msra.mxu0 0.0
    %736 = vmatprep.subr.mxu0 0.0
    %737 = vmatpush1.msra.mxu0 0.0
    %738 = vmatprep.subr.mxu0 0.0
    %739 = vmatpush1.msra.mxu0 0.0
    %740 = vmatprep.subr.mxu0 0.0
    %741 = vmatpush1.msra.mxu0 0.0
    %742 = vmatprep.subr.mxu0 0.0
    %743 = vmatpush1.msra.mxu0 0.0
    %744 = vmatprep.subr.mxu0 0.0
    %745 = vmatpush1.msra.mxu0 0.0
    %746 = vmatprep.subr.mxu0 0.0
    %747 = vmatpush1.msra.mxu0 0.0
    %748 = vmatprep.subr.mxu0 0.0
    %749 = vmatpush1.msra.mxu0 0.0
    %750 = vmatprep.subr.mxu0 0.0
    %751 = vmatpush1.msra.mxu0 0.0
    %752 = vmatprep.subr.mxu0 0.0
    %753 = vmatpush1.msra.mxu0 0.0
    %754 = vmatprep.subr.mxu0 0.0
    %755 = vmatpush1.msra.mxu0 0.0
    %756 = vmatprep.subr.mxu0 0.0
    %757 = vmatpush1.msra.mxu0 0.0
    %758 = vmatprep.subr.mxu0 0.0
    %759 = vmatpush1.msra.mxu0 0.0
    %760 = vmatprep.mubr.f32.mxu0 0.0
    %761 = vmatmul.mubr.f32.gmra.mrb[0].mxu0 %v689
    %v762 = vpop.f32.mrb[0].mxu0
    %v763 = vadd.f32 0.0, %v762
    %v764 = vpop.f32.mrb[0].mxu0
    %v765 = vadd.f32 0.0, %v764
    %766 = vdwg.mxu0
    %767 = vmatprep.subr.mxu0 %v175
    %768 = vmatpush1.msra.mxu0 %v174
    %769 = vmatprep.subr.mxu0 %v179
    %770 = vmatpush1.msra.mxu0 %v178
    %771 = vmatprep.subr.mxu0 %v183
    %772 = vmatpush1.msra.mxu0 %v182
    %773 = vmatprep.subr.mxu0 %v187
    %774 = vmatpush1.msra.mxu0 %v186
    %775 = vmatprep.subr.mxu0 %v191
    %776 = vmatpush1.msra.mxu0 %v190
    %777 = vmatprep.subr.mxu0 %v195
    %778 = vmatpush1.msra.mxu0 %v194
    %779 = vmatprep.subr.mxu0 %v199
    %780 = vmatpush1.msra.mxu0 %v198
    %781 = vmatprep.subr.mxu0 %v203
    %782 = vmatpush1.msra.mxu0 %v202
    %783 = vmatprep.subr.mxu0 %v207
    %784 = vmatpush1.msra.mxu0 %v206
    %785 = vmatprep.subr.mxu0 %v211
    %786 = vmatpush1.msra.mxu0 %v210
    %787 = vmatprep.subr.mxu0 %v215
    %788 = vmatpush1.msra.mxu0 %v214
    %789 = vmatprep.subr.mxu0 %v219
    %790 = vmatpush1.msra.mxu0 %v218
    %791 = vmatprep.subr.mxu0 %v223
    %792 = vmatpush1.msra.mxu0 %v222
    %793 = vmatprep.subr.mxu0 %v227
    %794 = vmatpush1.msra.mxu0 %v226
    %795 = vmatprep.subr.mxu0 %v231
    %796 = vmatpush1.msra.mxu0 %v230
    %797 = vmatprep.subr.mxu0 %v235
    %798 = vmatpush1.msra.mxu0 %v234
    %799 = vmatprep.subr.mxu0 0.0
    %800 = vmatpush1.msra.mxu0 0.0
    %801 = vmatprep.subr.mxu0 0.0
    %802 = vmatpush1.msra.mxu0 0.0
    %803 = vmatprep.subr.mxu0 0.0
    %804 = vmatpush1.msra.mxu0 0.0
    %805 = vmatprep.subr.mxu0 0.0
    %806 = vmatpush1.msra.mxu0 0.0
    %807 = vmatprep.subr.mxu0 0.0
    %808 = vmatpush1.msra.mxu0 0.0
    %809 = vmatprep.subr.mxu0 0.0
    %810 = vmatpush1.msra.mxu0 0.0
    %811 = vmatprep.subr.mxu0 0.0
    %812 = vmatpush1.msra.mxu0 0.0
    %813 = vmatprep.subr.mxu0 0.0
    %814 = vmatpush1.msra.mxu0 0.0
    %815 = vmatprep.subr.mxu0 0.0
    %816 = vmatpush1.msra.mxu0 0.0
    %817 = vmatprep.subr.mxu0 0.0
    %818 = vmatpush1.msra.mxu0 0.0
    %819 = vmatprep.subr.mxu0 0.0
    %820 = vmatpush1.msra.mxu0 0.0
    %821 = vmatprep.subr.mxu0 0.0
    %822 = vmatpush1.msra.mxu0 0.0
    %823 = vmatprep.subr.mxu0 0.0
    %824 = vmatpush1.msra.mxu0 0.0
    %825 = vmatprep.subr.mxu0 0.0
    %826 = vmatpush1.msra.mxu0 0.0
    %827 = vmatprep.subr.mxu0 0.0
    %828 = vmatpush1.msra.mxu0 0.0
    %829 = vmatprep.subr.mxu0 0.0
    %830 = vmatpush1.msra.mxu0 0.0
    %831 = vmatprep.mubr.f32.mxu0 0.0
    %832 = vmatmul.mubr.f32.gmra.mrb[0].mxu0 %v689
    %v833 = vpop.f32.mrb[0].mxu0
    %v834 = vadd.f32 0.0, %v833
    %v835 = vpop.f32.mrb[0].mxu0
    %v836 = vadd.f32 0.0, %v835
    %837 = vdwg.mxu0
    %v838 = vadd.f32 %v692, %v763
    %v839 = vadd.f32 %v693, %v765
    %v840 = vadd.f32 %v694, %v834
    %v841 = vadd.f32 %v695, %v836
    %v842 = vxor.u32 %v838, 2147483648
    %v843 = vmul.f32 %v842, 1.442695
    %v844 = vpow.pop %v843
    %v845 = vadd.f32 %v844, 1.0
    %v846 = vrcp.pop %v845
    %v847 = vmul.f32 1.0, %v846
    %v848 = vxor.u32 %v839, 2147483648
    %v849 = vmul.f32 %v848, 1.442695
    %v850 = vpow.pop %v849
    %v851 = vadd.f32 %v850, 1.0
    %v852 = vrcp.pop %v851
    %v853 = vmul.f32 1.0, %v852
    %v854 = vtanh.pop %v840
    %v855 = vxor.u32 %v841, 2147483648
    %v856 = vmul.f32 %v855, 1.442695
    %v857 = vpow.pop %v856
    %v858 = vadd.f32 %v857, 1.0
    %v859 = vrcp.pop %v858
    %v860 = vmul.f32 1.0, %v859
    %v861 = vmul.f32 %v853, %v687
    %v862 = vmul.f32 %v847, %v854
    %v863 = vadd.f32 %v861, %v862
    %v864 = vtanh.pop %v863
    %v865 = vmul.f32 %v860, %v864
    %s866 = scalar_lea.vmem [#allocation2], 16
    %867 = vst [vmem:[%s866] sm:$0xff] %v865
    %s868 = scalar_lea.vmem [#allocation3], 64
    %v869 = vld [vmem:[%s868] sm:$0xff]
    %v870 = vld [vmem:[%s868 + $0x8] sm:$0xff]
    %v871 = vld [vmem:[%s868 + $0x10] sm:$0xff]
    %v872 = vld [vmem:[%s868 + $0x18] sm:$0xff]
    %873 = vmatprep.subr.mxu0 %v173
    %874 = vmatpush1.msra.mxu0 %v172
    %875 = vmatprep.subr.mxu0 %v177
    %876 = vmatpush1.msra.mxu0 %v176
    %877 = vmatprep.subr.mxu0 %v181
    %878 = vmatpush1.msra.mxu0 %v180
    %879 = vmatprep.subr.mxu0 %v185
    %880 = vmatpush1.msra.mxu0 %v184
    %881 = vmatprep.subr.mxu0 %v189
    %882 = vmatpush1.msra.mxu0 %v188
    %883 = vmatprep.subr.mxu0 %v193
    %884 = vmatpush1.msra.mxu0 %v192
    %885 = vmatprep.subr.mxu0 %v197
    %886 = vmatpush1.msra.mxu0 %v196
    %887 = vmatprep.subr.mxu0 %v201
    %888 = vmatpush1.msra.mxu0 %v200
    %889 = vmatprep.subr.mxu0 %v205
    %890 = vmatpush1.msra.mxu0 %v204
    %891 = vmatprep.subr.mxu0 %v209
    %892 = vmatpush1.msra.mxu0 %v208
    %893 = vmatprep.subr.mxu0 %v213
    %894 = vmatpush1.msra.mxu0 %v212
    %895 = vmatprep.subr.mxu0 %v217
    %896 = vmatpush1.msra.mxu0 %v216
    %897 = vmatprep.subr.mxu0 %v221
    %898 = vmatpush1.msra.mxu0 %v220
    %899 = vmatprep.subr.mxu0 %v225
    %900 = vmatpush1.msra.mxu0 %v224
    %901 = vmatprep.subr.mxu0 %v229
    %902 = vmatpush1.msra.mxu0 %v228
    %903 = vmatprep.subr.mxu0 %v233
    %904 = vmatpush1.msra.mxu0 %v232
    %905 = vmatprep.subr.mxu0 0.0
    %906 = vmatpush1.msra.mxu0 0.0
    %907 = vmatprep.subr.mxu0 0.0
    %908 = vmatpush1.msra.mxu0 0.0
    %909 = vmatprep.subr.mxu0 0.0
    %910 = vmatpush1.msra.mxu0 0.0
    %911 = vmatprep.subr.mxu0 0.0
    %912 = vmatpush1.msra.mxu0 0.0
    %913 = vmatprep.subr.mxu0 0.0
    %914 = vmatpush1.msra.mxu0 0.0
    %915 = vmatprep.subr.mxu0 0.0
    %916 = vmatpush1.msra.mxu0 0.0
    %917 = vmatprep.subr.mxu0 0.0
    %918 = vmatpush1.msra.mxu0 0.0
    %919 = vmatprep.subr.mxu0 0.0
    %920 = vmatpush1.msra.mxu0 0.0
    %921 = vmatprep.subr.mxu0 0.0
    %922 = vmatpush1.msra.mxu0 0.0
    %923 = vmatprep.subr.mxu0 0.0
    %924 = vmatpush1.msra.mxu0 0.0
    %925 = vmatprep.subr.mxu0 0.0
    %926 = vmatpush1.msra.mxu0 0.0
    %927 = vmatprep.subr.mxu0 0.0
    %928 = vmatpush1.msra.mxu0 0.0
    %929 = vmatprep.subr.mxu0 0.0
    %930 = vmatpush1.msra.mxu0 0.0
    %931 = vmatprep.subr.mxu0 0.0
    %932 = vmatpush1.msra.mxu0 0.0
    %933 = vmatprep.subr.mxu0 0.0
    %934 = vmatpush1.msra.mxu0 0.0
    %935 = vmatprep.subr.mxu0 0.0
    %936 = vmatpush1.msra.mxu0 0.0
    %937 = vmatprep.mubr.f32.mxu0 0.0
    %938 = vmatmul.mubr.f32.gmra.mrb[0].mxu0 %v865
    %v939 = vpop.f32.mrb[0].mxu0
    %v940 = vadd.f32 0.0, %v939
    %v941 = vpop.f32.mrb[0].mxu0
    %v942 = vadd.f32 0.0, %v941
    %943 = vdwg.mxu0
    %944 = vmatprep.subr.mxu0 %v175
    %945 = vmatpush1.msra.mxu0 %v174
    %946 = vmatprep.subr.mxu0 %v179
    %947 = vmatpush1.msra.mxu0 %v178
    %948 = vmatprep.subr.mxu0 %v183
    %949 = vmatpush1.msra.mxu0 %v182
    %950 = vmatprep.subr.mxu0 %v187
    %951 = vmatpush1.msra.mxu0 %v186
    %952 = vmatprep.subr.mxu0 %v191
    %953 = vmatpush1.msra.mxu0 %v190
    %954 = vmatprep.subr.mxu0 %v195
    %955 = vmatpush1.msra.mxu0 %v194
    %956 = vmatprep.subr.mxu0 %v199
    %957 = vmatpush1.msra.mxu0 %v198
    %958 = vmatprep.subr.mxu0 %v203
    %959 = vmatpush1.msra.mxu0 %v202
    %960 = vmatprep.subr.mxu0 %v207
    %961 = vmatpush1.msra.mxu0 %v206
    %962 = vmatprep.subr.mxu0 %v211
    %963 = vmatpush1.msra.mxu0 %v210
    %964 = vmatprep.subr.mxu0 %v215
    %965 = vmatpush1.msra.mxu0 %v214
    %966 = vmatprep.subr.mxu0 %v219
    %967 = vmatpush1.msra.mxu0 %v218
    %968 = vmatprep.subr.mxu0 %v223
    %969 = vmatpush1.msra.mxu0 %v222
    %970 = vmatprep.subr.mxu0 %v227
    %971 = vmatpush1.msra.mxu0 %v226
    %972 = vmatprep.subr.mxu0 %v231
    %973 = vmatpush1.msra.mxu0 %v230
    %974 = vmatprep.subr.mxu0 %v235
    %975 = vmatpush1.msra.mxu0 %v234
    %976 = vmatprep.subr.mxu0 0.0
    %977 = vmatpush1.msra.mxu0 0.0
    %978 = vmatprep.subr.mxu0 0.0
    %979 = vmatpush1.msra.mxu0 0.0
    %980 = vmatprep.subr.mxu0 0.0
    %981 = vmatpush1.msra.mxu0 0.0
    %982 = vmatprep.subr.mxu0 0.0
    %983 = vmatpush1.msra.mxu0 0.0
    %984 = vmatprep.subr.mxu0 0.0
    %985 = vmatpush1.msra.mxu0 0.0
    %986 = vmatprep.subr.mxu0 0.0
    %987 = vmatpush1.msra.mxu0 0.0
    %988 = vmatprep.subr.mxu0 0.0
    %989 = vmatpush1.msra.mxu0 0.0
    %990 = vmatprep.subr.mxu0 0.0
    %991 = vmatpush1.msra.mxu0 0.0
    %992 = vmatprep.subr.mxu0 0.0
    %993 = vmatpush1.msra.mxu0 0.0
    %994 = vmatprep.subr.mxu0 0.0
    %995 = vmatpush1.msra.mxu0 0.0
    %996 = vmatprep.subr.mxu0 0.0
    %997 = vmatpush1.msra.mxu0 0.0
    %998 = vmatprep.subr.mxu0 0.0
    %999 = vmatpush1.msra.mxu0 0.0
    %1000 = vmatprep.subr.mxu0 0.0
    %1001 = vmatpush1.msra.mxu0 0.0
    %1002 = vmatprep.subr.mxu0 0.0
    %1003 = vmatpush1.msra.mxu0 0.0
    %1004 = vmatprep.subr.mxu0 0.0
    %1005 = vmatpush1.msra.mxu0 0.0
    %1006 = vmatprep.subr.mxu0 0.0
    %1007 = vmatpush1.msra.mxu0 0.0
    %1008 = vmatprep.mubr.f32.mxu0 0.0
    %1009 = vmatmul.mubr.f32.gmra.mrb[0].mxu0 %v865
    %v1010 = vpop.f32.mrb[0].mxu0
    %v1011 = vadd.f32 0.0, %v1010
    %v1012 = vpop.f32.mrb[0].mxu0
    %v1013 = vadd.f32 0.0, %v1012
    %1014 = vdwg.mxu0
    %v1015 = vadd.f32 %v869, %v940
    %v1016 = vadd.f32 %v870, %v942
    %v1017 = vadd.f32 %v871, %v1011
    %v1018 = vadd.f32 %v872, %v1013
    %v1019 = vxor.u32 %v1015, 2147483648
    %v1020 = vmul.f32 %v1019, 1.442695
    %v1021 = vpow.pop %v1020
    %v1022 = vadd.f32 %v1021, 1.0
    %v1023 = vrcp.pop %v1022
    %v1024 = vmul.f32 1.0, %v1023
    %v1025 = vxor.u32 %v1016, 2147483648
    %v1026 = vmul.f32 %v1025, 1.442695
    %v1027 = vpow.pop %v1026
    %v1028 = vadd.f32 %v1027, 1.0
    %v1029 = vrcp.pop %v1028
    %v1030 = vmul.f32 1.0, %v1029
    %v1031 = vtanh.pop %v1017
    %v1032 = vxor.u32 %v1018, 2147483648
    %v1033 = vmul.f32 %v1032, 1.442695
    %v1034 = vpow.pop %v1033
    %v1035 = vadd.f32 %v1034, 1.0
    %v1036 = vrcp.pop %v1035
    %v1037 = vmul.f32 1.0, %v1036
    %v1038 = vmul.f32 %v1030, %v863
    %v1039 = vmul.f32 %v1024, %v1031
    %v1040 = vadd.f32 %v1038, %v1039
    %v1041 = vtanh.pop %v1040
    %v1042 = vmul.f32 %v1037, %v1041
    %s1043 = scalar_lea.vmem [#allocation2], 32
    %1044 = vst [vmem:[%s1043] sm:$0xff] %v1042
    %s1045 = scalar_lea.vmem [#allocation3], 96
    %v1046 = vld [vmem:[%s1045] sm:$0xff]
    %v1047 = vld [vmem:[%s1045 + $0x8] sm:$0xff]
    %v1048 = vld [vmem:[%s1045 + $0x10] sm:$0xff]
    %v1049 = vld [vmem:[%s1045 + $0x18] sm:$0xff]
    %1050 = vmatprep.subr.mxu0 %v173
    %1051 = vmatpush1.msra.mxu0 %v172
    %1052 = vmatprep.subr.mxu0 %v177
    %1053 = vmatpush1.msra.mxu0 %v176
    %1054 = vmatprep.subr.mxu0 %v181
    %1055 = vmatpush1.msra.mxu0 %v180
    %1056 = vmatprep.subr.mxu0 %v185
    %1057 = vmatpush1.msra.mxu0 %v184
    %1058 = vmatprep.subr.mxu0 %v189
    %1059 = vmatpush1.msra.mxu0 %v188
    %1060 = vmatprep.subr.mxu0 %v193
    %1061 = vmatpush1.msra.mxu0 %v192
    %1062 = vmatprep.subr.mxu0 %v197
    %1063 = vmatpush1.msra.mxu0 %v196
    %1064 = vmatprep.subr.mxu0 %v201
    %1065 = vmatpush1.msra.mxu0 %v200
    %1066 = vmatprep.subr.mxu0 %v205
    %1067 = vmatpush1.msra.mxu0 %v204
    %1068 = vmatprep.subr.mxu0 %v209
    %1069 = vmatpush1.msra.mxu0 %v208
    %1070 = vmatprep.subr.mxu0 %v213
    %1071 = vmatpush1.msra.mxu0 %v212
    %1072 = vmatprep.subr.mxu0 %v217
    %1073 = vmatpush1.msra.mxu0 %v216
    %1074 = vmatprep.subr.mxu0 %v221
    %1075 = vmatpush1.msra.mxu0 %v220
    %1076 = vmatprep.subr.mxu0 %v225
    %1077 = vmatpush1.msra.mxu0 %v224
    %1078 = vmatprep.subr.mxu0 %v229
    %1079 = vmatpush1.msra.mxu0 %v228
    %1080 = vmatprep.subr.mxu0 %v233
    %1081 = vmatpush1.msra.mxu0 %v232
    %1082 = vmatprep.subr.mxu0 0.0
    %1083 = vmatpush1.msra.mxu0 0.0
    %1084 = vmatprep.subr.mxu0 0.0
    %1085 = vmatpush1.msra.mxu0 0.0
    %1086 = vmatprep.subr.mxu0 0.0
    %1087 = vmatpush1.msra.mxu0 0.0
    %1088 = vmatprep.subr.mxu0 0.0
    %1089 = vmatpush1.msra.mxu0 0.0
    %1090 = vmatprep.subr.mxu0 0.0
    %1091 = vmatpush1.msra.mxu0 0.0
    %1092 = vmatprep.subr.mxu0 0.0
    %1093 = vmatpush1.msra.mxu0 0.0
    %1094 = vmatprep.subr.mxu0 0.0
    %1095 = vmatpush1.msra.mxu0 0.0
    %1096 = vmatprep.subr.mxu0 0.0
    %1097 = vmatpush1.msra.mxu0 0.0
    %1098 = vmatprep.subr.mxu0 0.0
    %1099 = vmatpush1.msra.mxu0 0.0
    %1100 = vmatprep.subr.mxu0 0.0
    %1101 = vmatpush1.msra.mxu0 0.0
    %1102 = vmatprep.subr.mxu0 0.0
    %1103 = vmatpush1.msra.mxu0 0.0
    %1104 = vmatprep.subr.mxu0 0.0
    %1105 = vmatpush1.msra.mxu0 0.0
    %1106 = vmatprep.subr.mxu0 0.0
    %1107 = vmatpush1.msra.mxu0 0.0
    %1108 = vmatprep.subr.mxu0 0.0
    %1109 = vmatpush1.msra.mxu0 0.0
    %1110 = vmatprep.subr.mxu0 0.0
    %1111 = vmatpush1.msra.mxu0 0.0
    %1112 = vmatprep.subr.mxu0 0.0
    %1113 = vmatpush1.msra.mxu0 0.0
    %1114 = vmatprep.mubr.f32.mxu0 0.0
    %1115 = vmatmul.mubr.f32.gmra.mrb[0].mxu0 %v1042
    %v1116 = vpop.f32.mrb[0].mxu0
    %v1117 = vadd.f32 0.0, %v1116
    %v1118 = vpop.f32.mrb[0].mxu0
    %v1119 = vadd.f32 0.0, %v1118
    %1120 = vdwg.mxu0
    %1121 = vmatprep.subr.mxu0 %v175
    %1122 = vmatpush1.msra.mxu0 %v174
    %1123 = vmatprep.subr.mxu0 %v179
    %1124 = vmatpush1.msra.mxu0 %v178
    %1125 = vmatprep.subr.mxu0 %v183
    %1126 = vmatpush1.msra.mxu0 %v182
    %1127 = vmatprep.subr.mxu0 %v187
    %1128 = vmatpush1.msra.mxu0 %v186
    %1129 = vmatprep.subr.mxu0 %v191
    %1130 = vmatpush1.msra.mxu0 %v190
    %1131 = vmatprep.subr.mxu0 %v195
    %1132 = vmatpush1.msra.mxu0 %v194
    %1133 = vmatprep.subr.mxu0 %v199
    %1134 = vmatpush1.msra.mxu0 %v198
    %1135 = vmatprep.subr.mxu0 %v203
    %1136 = vmatpush1.msra.mxu0 %v202
    %1137 = vmatprep.subr.mxu0 %v207
    %1138 = vmatpush1.msra.mxu0 %v206
    %1139 = vmatprep.subr.mxu0 %v211
    %1140 = vmatpush1.msra.mxu0 %v210
    %1141 = vmatprep.subr.mxu0 %v215
    %1142 = vmatpush1.msra.mxu0 %v214
    %1143 = vmatprep.subr.mxu0 %v219
    %1144 = vmatpush1.msra.mxu0 %v218
    %1145 = vmatprep.subr.mxu0 %v223
    %1146 = vmatpush1.msra.mxu0 %v222
    %1147 = vmatprep.subr.mxu0 %v227
    %1148 = vmatpush1.msra.mxu0 %v226
    %1149 = vmatprep.subr.mxu0 %v231
    %1150 = vmatpush1.msra.mxu0 %v230
    %1151 = vmatprep.subr.mxu0 %v235
    %1152 = vmatpush1.msra.mxu0 %v234
    %1153 = vmatprep.subr.mxu0 0.0
    %1154 = vmatpush1.msra.mxu0 0.0
    %1155 = vmatprep.subr.mxu0 0.0
    %1156 = vmatpush1.msra.mxu0 0.0
    %1157 = vmatprep.subr.mxu0 0.0
    %1158 = vmatpush1.msra.mxu0 0.0
    %1159 = vmatprep.subr.mxu0 0.0
    %1160 = vmatpush1.msra.mxu0 0.0
    %1161 = vmatprep.subr.mxu0 0.0
    %1162 = vmatpush1.msra.mxu0 0.0
    %1163 = vmatprep.subr.mxu0 0.0
    %1164 = vmatpush1.msra.mxu0 0.0
    %1165 = vmatprep.subr.mxu0 0.0
    %1166 = vmatpush1.msra.mxu0 0.0
    %1167 = vmatprep.subr.mxu0 0.0
    %1168 = vmatpush1.msra.mxu0 0.0
    %1169 = vmatprep.subr.mxu0 0.0
    %1170 = vmatpush1.msra.mxu0 0.0
    %1171 = vmatprep.subr.mxu0 0.0
    %1172 = vmatpush1.msra.mxu0 0.0
    %1173 = vmatprep.subr.mxu0 0.0
    %1174 = vmatpush1.msra.mxu0 0.0
    %1175 = vmatprep.subr.mxu0 0.0
    %1176 = vmatpush1.msra.mxu0 0.0
    %1177 = vmatprep.subr.mxu0 0.0
    %1178 = vmatpush1.msra.mxu0 0.0
    %1179 = vmatprep.subr.mxu0 0.0
    %1180 = vmatpush1.msra.mxu0 0.0
    %1181 = vmatprep.subr.mxu0 0.0
    %1182 = vmatpush1.msra.mxu0 0.0
    %1183 = vmatprep.subr.mxu0 0.0
    %1184 = vmatpush1.msra.mxu0 0.0
    %1185 = vmatprep.mubr.f32.mxu0 0.0
    %1186 = vmatmul.mubr.f32.gmra.mrb[0].mxu0 %v1042
    %v1187 = vpop.f32.mrb[0].mxu0
    %v1188 = vadd.f32 0.0, %v1187
    %v1189 = vpop.f32.mrb[0].mxu0
    %v1190 = vadd.f32 0.0, %v1189
    %1191 = vdwg.mxu0
    %v1192 = vadd.f32 %v1046, %v1117
    %v1193 = vadd.f32 %v1047, %v1119
    %v1194 = vadd.f32 %v1048, %v1188
    %v1195 = vadd.f32 %v1049, %v1190
    %v1196 = vxor.u32 %v1192, 2147483648
    %v1197 = vmul.f32 %v1196, 1.442695
    %v1198 = vpow.pop %v1197
    %v1199 = vadd.f32 %v1198, 1.0
    %v1200 = vrcp.pop %v1199
    %v1201 = vmul.f32 1.0, %v1200
    %v1202 = vxor.u32 %v1193, 2147483648
    %v1203 = vmul.f32 %v1202, 1.442695
    %v1204 = vpow.pop %v1203
    %v1205 = vadd.f32 %v1204, 1.0
    %v1206 = vrcp.pop %v1205
    %v1207 = vmul.f32 1.0, %v1206
    %v1208 = vtanh.pop %v1194
    %v1209 = vxor.u32 %v1195, 2147483648
    %v1210 = vmul.f32 %v1209, 1.442695
    %v1211 = vpow.pop %v1210
    %v1212 = vadd.f32 %v1211, 1.0
    %v1213 = vrcp.pop %v1212
    %v1214 = vmul.f32 1.0, %v1213
    %v1215 = vmul.f32 %v1207, %v1040
    %v1216 = vmul.f32 %v1201, %v1208
    %v1217 = vadd.f32 %v1215, %v1216
    %v1218 = vtanh.pop %v1217
    %v1219 = vmul.f32 %v1214, %v1218
    %s1220 = scalar_lea.vmem [#allocation2], 48
    %1221 = vst [vmem:[%s1220] sm:$0xff] %v1219
    %s1222 = scalar_lea.vmem [#allocation3], 128
    %v1223 = vld [vmem:[%s1222] sm:$0xff]
    %v1224 = vld [vmem:[%s1222 + $0x8] sm:$0xff]
    %v1225 = vld [vmem:[%s1222 + $0x10] sm:$0xff]
    %v1226 = vld [vmem:[%s1222 + $0x18] sm:$0xff]
    %1227 = vmatprep.subr.mxu0 %v173
    %1228 = vmatpush1.msra.mxu0 %v172
    %1229 = vmatprep.subr.mxu0 %v177
    %1230 = vmatpush1.msra.mxu0 %v176
    %1231 = vmatprep.subr.mxu0 %v181
    %1232 = vmatpush1.msra.mxu0 %v180
    %1233 = vmatprep.subr.mxu0 %v185
    %1234 = vmatpush1.msra.mxu0 %v184
    %1235 = vmatprep.subr.mxu0 %v189
    %1236 = vmatpush1.msra.mxu0 %v188
    %1237 = vmatprep.subr.mxu0 %v193
    %1238 = vmatpush1.msra.mxu0 %v192
    %1239 = vmatprep.subr.mxu0 %v197
    %1240 = vmatpush1.msra.mxu0 %v196
    %1241 = vmatprep.subr.mxu0 %v201
    %1242 = vmatpush1.msra.mxu0 %v200
    %1243 = vmatprep.subr.mxu0 %v205
    %1244 = vmatpush1.msra.mxu0 %v204
    %1245 = vmatprep.subr.mxu0 %v209
    %1246 = vmatpush1.msra.mxu0 %v208
    %1247 = vmatprep.subr.mxu0 %v213
    %1248 = vmatpush1.msra.mxu0 %v212
    %1249 = vmatprep.subr.mxu0 %v217
    %1250 = vmatpush1.msra.mxu0 %v216
    %1251 = vmatprep.subr.mxu0 %v221
    %1252 = vmatpush1.msra.mxu0 %v220
    %1253 = vmatprep.subr.mxu0 %v225
    %1254 = vmatpush1.msra.mxu0 %v224
    %1255 = vmatprep.subr.mxu0 %v229
    %1256 = vmatpush1.msra.mxu0 %v228
    %1257 = vmatprep.subr.mxu0 %v233
    %1258 = vmatpush1.msra.mxu0 %v232
    %1259 = vmatprep.subr.mxu0 0.0
    %1260 = vmatpush1.msra.mxu0 0.0
    %1261 = vmatprep.subr.mxu0 0.0
    %1262 = vmatpush1.msra.mxu0 0.0
    %1263 = vmatprep.subr.mxu0 0.0
    %1264 = vmatpush1.msra.mxu0 0.0
    %1265 = vmatprep.subr.mxu0 0.0
    %1266 = vmatpush1.msra.mxu0 0.0
    %1267 = vmatprep.subr.mxu0 0.0
    %1268 = vmatpush1.msra.mxu0 0.0
    %1269 = vmatprep.subr.mxu0 0.0
    %1270 = vmatpush1.msra.mxu0 0.0
    %1271 = vmatprep.subr.mxu0 0.0
    %1272 = vmatpush1.msra.mxu0 0.0
    %1273 = vmatprep.subr.mxu0 0.0
    %1274 = vmatpush1.msra.mxu0 0.0
    %1275 = vmatprep.subr.mxu0 0.0
    %1276 = vmatpush1.msra.mxu0 0.0
    %1277 = vmatprep.subr.mxu0 0.0
    %1278 = vmatpush1.msra.mxu0 0.0
    %1279 = vmatprep.subr.mxu0 0.0
    %1280 = vmatpush1.msra.mxu0 0.0
    %1281 = vmatprep.subr.mxu0 0.0
    %1282 = vmatpush1.msra.mxu0 0.0
    %1283 = vmatprep.subr.mxu0 0.0
    %1284 = vmatpush1.msra.mxu0 0.0
    %1285 = vmatprep.subr.mxu0 0.0
    %1286 = vmatpush1.msra.mxu0 0.0
    %1287 = vmatprep.subr.mxu0 0.0
    %1288 = vmatpush1.msra.mxu0 0.0
    %1289 = vmatprep.subr.mxu0 0.0
    %1290 = vmatpush1.msra.mxu0 0.0
    %1291 = vmatprep.mubr.f32.mxu0 0.0
    %1292 = vmatmul.mubr.f32.gmra.mrb[0].mxu0 %v1219
    %v1293 = vpop.f32.mrb[0].mxu0
    %v1294 = vadd.f32 0.0, %v1293
    %v1295 = vpop.f32.mrb[0].mxu0
    %v1296 = vadd.f32 0.0, %v1295
    %1297 = vdwg.mxu0
    %1298 = vmatprep.subr.mxu0 %v175
    %1299 = vmatpush1.msra.mxu0 %v174
    %1300 = vmatprep.subr.mxu0 %v179
    %1301 = vmatpush1.msra.mxu0 %v178
    %1302 = vmatprep.subr.mxu0 %v183
    %1303 = vmatpush1.msra.mxu0 %v182
    %1304 = vmatprep.subr.mxu0 %v187
    %1305 = vmatpush1.msra.mxu0 %v186
    %1306 = vmatprep.subr.mxu0 %v191
    %1307 = vmatpush1.msra.mxu0 %v190
    %1308 = vmatprep.subr.mxu0 %v195
    %1309 = vmatpush1.msra.mxu0 %v194
    %1310 = vmatprep.subr.mxu0 %v199
    %1311 = vmatpush1.msra.mxu0 %v198
    %1312 = vmatprep.subr.mxu0 %v203
    %1313 = vmatpush1.msra.mxu0 %v202
    %1314 = vmatprep.subr.mxu0 %v207
    %1315 = vmatpush1.msra.mxu0 %v206
    %1316 = vmatprep.subr.mxu0 %v211
    %1317 = vmatpush1.msra.mxu0 %v210
    %1318 = vmatprep.subr.mxu0 %v215
    %1319 = vmatpush1.msra.mxu0 %v214
    %1320 = vmatprep.subr.mxu0 %v219
    %1321 = vmatpush1.msra.mxu0 %v218
    %1322 = vmatprep.subr.mxu0 %v223
    %1323 = vmatpush1.msra.mxu0 %v222
    %1324 = vmatprep.subr.mxu0 %v227
    %1325 = vmatpush1.msra.mxu0 %v226
    %1326 = vmatprep.subr.mxu0 %v231
    %1327 = vmatpush1.msra.mxu0 %v230
    %1328 = vmatprep.subr.mxu0 %v235
    %1329 = vmatpush1.msra.mxu0 %v234
    %1330 = vmatprep.subr.mxu0 0.0
    %1331 = vmatpush1.msra.mxu0 0.0
    %1332 = vmatprep.subr.mxu0 0.0
    %1333 = vmatpush1.msra.mxu0 0.0
    %1334 = vmatprep.subr.mxu0 0.0
    %1335 = vmatpush1.msra.mxu0 0.0
    %1336 = vmatprep.subr.mxu0 0.0
    %1337 = vmatpush1.msra.mxu0 0.0
    %1338 = vmatprep.subr.mxu0 0.0
    %1339 = vmatpush1.msra.mxu0 0.0
    %1340 = vmatprep.subr.mxu0 0.0
    %1341 = vmatpush1.msra.mxu0 0.0
    %1342 = vmatprep.subr.mxu0 0.0
    %1343 = vmatpush1.msra.mxu0 0.0
    %1344 = vmatprep.subr.mxu0 0.0
    %1345 = vmatpush1.msra.mxu0 0.0
    %1346 = vmatprep.subr.mxu0 0.0
    %1347 = vmatpush1.msra.mxu0 0.0
    %1348 = vmatprep.subr.mxu0 0.0
    %1349 = vmatpush1.msra.mxu0 0.0
    %1350 = vmatprep.subr.mxu0 0.0
    %1351 = vmatpush1.msra.mxu0 0.0
    %1352 = vmatprep.subr.mxu0 0.0
    %1353 = vmatpush1.msra.mxu0 0.0
    %1354 = vmatprep.subr.mxu0 0.0
    %1355 = vmatpush1.msra.mxu0 0.0
    %1356 = vmatprep.subr.mxu0 0.0
    %1357 = vmatpush1.msra.mxu0 0.0
    %1358 = vmatprep.subr.mxu0 0.0
    %1359 = vmatpush1.msra.mxu0 0.0
    %1360 = vmatprep.subr.mxu0 0.0
    %1361 = vmatpush1.msra.mxu0 0.0
    %1362 = vmatprep.mubr.f32.mxu0 0.0
    %1363 = vmatmul.mubr.f32.gmra.mrb[0].mxu0 %v1219
    %v1364 = vpop.f32.mrb[0].mxu0
    %v1365 = vadd.f32 0.0, %v1364
    %v1366 = vpop.f32.mrb[0].mxu0
    %v1367 = vadd.f32 0.0, %v1366
    %1368 = vdwg.mxu0
    %v1369 = vadd.f32 %v1223, %v1294
    %v1370 = vadd.f32 %v1224, %v1296
    %v1371 = vadd.f32 %v1225, %v1365
    %v1372 = vadd.f32 %v1226, %v1367
    %v1373 = vxor.u32 %v1369, 2147483648
    %v1374 = vmul.f32 %v1373, 1.442695
    %v1375 = vpow.pop %v1374
    %v1376 = vadd.f32 %v1375, 1.0
    %v1377 = vrcp.pop %v1376
    %v1378 = vmul.f32 1.0, %v1377
    %v1379 = vxor.u32 %v1370, 2147483648
    %v1380 = vmul.f32 %v1379, 1.442695
    %v1381 = vpow.pop %v1380
    %v1382 = vadd.f32 %v1381, 1.0
    %v1383 = vrcp.pop %v1382
    %v1384 = vmul.f32 1.0, %v1383
    %v1385 = vtanh.pop %v1371
    %v1386 = vxor.u32 %v1372, 2147483648
    %v1387 = vmul.f32 %v1386, 1.442695
    %v1388 = vpow.pop %v1387
    %v1389 = vadd.f32 %v1388, 1.0
    %v1390 = vrcp.pop %v1389
    %v1391 = vmul.f32 1.0, %v1390
    %v1392 = vmul.f32 %v1384, %v1217
    %v1393 = vmul.f32 %v1378, %v1385
    %v1394 = vadd.f32 %v1392, %v1393
    %v1395 = vtanh.pop %v1394
    %v1396 = vmul.f32 %v1391, %v1395
    %s1397 = scalar_lea.vmem [#allocation2], 64
    %1398 = vst [vmem:[%s1397] sm:$0xff] %v1396
    %s1399 = scalar_lea.vmem [#allocation3], 160
    %v1400 = vld [vmem:[%s1399] sm:$0xff]
    %v1401 = vld [vmem:[%s1399 + $0x8] sm:$0xff]
    %v1402 = vld [vmem:[%s1399 + $0x10] sm:$0xff]
    %v1403 = vld [vmem:[%s1399 + $0x18] sm:$0xff]
    %1404 = vmatprep.subr.mxu0 %v173
    %1405 = vmatpush1.msra.mxu0 %v172
    %1406 = vmatprep.subr.mxu0 %v177
    %1407 = vmatpush1.msra.mxu0 %v176
    %1408 = vmatprep.subr.mxu0 %v181
    %1409 = vmatpush1.msra.mxu0 %v180
    %1410 = vmatprep.subr.mxu0 %v185
    %1411 = vmatpush1.msra.mxu0 %v184
    %1412 = vmatprep.subr.mxu0 %v189
    %1413 = vmatpush1.msra.mxu0 %v188
    %1414 = vmatprep.subr.mxu0 %v193
    %1415 = vmatpush1.msra.mxu0 %v192
    %1416 = vmatprep.subr.mxu0 %v197
    %1417 = vmatpush1.msra.mxu0 %v196
    %1418 = vmatprep.subr.mxu0 %v201
    %1419 = vmatpush1.msra.mxu0 %v200
    %1420 = vmatprep.subr.mxu0 %v205
    %1421 = vmatpush1.msra.mxu0 %v204
    %1422 = vmatprep.subr.mxu0 %v209
    %1423 = vmatpush1.msra.mxu0 %v208
    %1424 = vmatprep.subr.mxu0 %v213
    %1425 = vmatpush1.msra.mxu0 %v212
    %1426 = vmatprep.subr.mxu0 %v217
    %1427 = vmatpush1.msra.mxu0 %v216
    %1428 = vmatprep.subr.mxu0 %v221
    %1429 = vmatpush1.msra.mxu0 %v220
    %1430 = vmatprep.subr.mxu0 %v225
    %1431 = vmatpush1.msra.mxu0 %v224
    %1432 = vmatprep.subr.mxu0 %v229
    %1433 = vmatpush1.msra.mxu0 %v228
    %1434 = vmatprep.subr.mxu0 %v233
    %1435 = vmatpush1.msra.mxu0 %v232
    %1436 = vmatprep.subr.mxu0 0.0
    %1437 = vmatpush1.msra.mxu0 0.0
    %1438 = vmatprep.subr.mxu0 0.0
    %1439 = vmatpush1.msra.mxu0 0.0
    %1440 = vmatprep.subr.mxu0 0.0
    %1441 = vmatpush1.msra.mxu0 0.0
    %1442 = vmatprep.subr.mxu0 0.0
    %1443 = vmatpush1.msra.mxu0 0.0
    %1444 = vmatprep.subr.mxu0 0.0
    %1445 = vmatpush1.msra.mxu0 0.0
    %1446 = vmatprep.subr.mxu0 0.0
    %1447 = vmatpush1.msra.mxu0 0.0
    %1448 = vmatprep.subr.mxu0 0.0
    %1449 = vmatpush1.msra.mxu0 0.0
    %1450 = vmatprep.subr.mxu0 0.0
    %1451 = vmatpush1.msra.mxu0 0.0
    %1452 = vmatprep.subr.mxu0 0.0
    %1453 = vmatpush1.msra.mxu0 0.0
    %1454 = vmatprep.subr.mxu0 0.0
    %1455 = vmatpush1.msra.mxu0 0.0
    %1456 = vmatprep.subr.mxu0 0.0
    %1457 = vmatpush1.msra.mxu0 0.0
    %1458 = vmatprep.subr.mxu0 0.0
    %1459 = vmatpush1.msra.mxu0 0.0
    %1460 = vmatprep.subr.mxu0 0.0
    %1461 = vmatpush1.msra.mxu0 0.0
    %1462 = vmatprep.subr.mxu0 0.0
    %1463 = vmatpush1.msra.mxu0 0.0
    %1464 = vmatprep.subr.mxu0 0.0
    %1465 = vmatpush1.msra.mxu0 0.0
    %1466 = vmatprep.subr.mxu0 0.0
    %1467 = vmatpush1.msra.mxu0 0.0
    %1468 = vmatprep.mubr.f32.mxu0 0.0
    %1469 = vmatmul.mubr.f32.gmra.mrb[0].mxu0 %v1396
    %v1470 = vpop.f32.mrb[0].mxu0
    %v1471 = vadd.f32 0.0, %v1470
    %v1472 = vpop.f32.mrb[0].mxu0
    %v1473 = vadd.f32 0.0, %v1472
    %1474 = vdwg.mxu0
    %1475 = vmatprep.subr.mxu0 %v175
    %1476 = vmatpush1.msra.mxu0 %v174
    %1477 = vmatprep.subr.mxu0 %v179
    %1478 = vmatpush1.msra.mxu0 %v178
    %1479 = vmatprep.subr.mxu0 %v183
    %1480 = vmatpush1.msra.mxu0 %v182
    %1481 = vmatprep.subr.mxu0 %v187
    %1482 = vmatpush1.msra.mxu0 %v186
    %1483 = vmatprep.subr.mxu0 %v191
    %1484 = vmatpush1.msra.mxu0 %v190
    %1485 = vmatprep.subr.mxu0 %v195
    %1486 = vmatpush1.msra.mxu0 %v194
    %1487 = vmatprep.subr.mxu0 %v199
    %1488 = vmatpush1.msra.mxu0 %v198
    %1489 = vmatprep.subr.mxu0 %v203
    %1490 = vmatpush1.msra.mxu0 %v202
    %1491 = vmatprep.subr.mxu0 %v207
    %1492 = vmatpush1.msra.mxu0 %v206
    %1493 = vmatprep.subr.mxu0 %v211
    %1494 = vmatpush1.msra.mxu0 %v210
    %1495 = vmatprep.subr.mxu0 %v215
    %1496 = vmatpush1.msra.mxu0 %v214
    %1497 = vmatprep.subr.mxu0 %v219
    %1498 = vmatpush1.msra.mxu0 %v218
    %1499 = vmatprep.subr.mxu0 %v223
    %1500 = vmatpush1.msra.mxu0 %v222
    %1501 = vmatprep.subr.mxu0 %v227
    %1502 = vmatpush1.msra.mxu0 %v226
    %1503 = vmatprep.subr.mxu0 %v231
    %1504 = vmatpush1.msra.mxu0 %v230
    %1505 = vmatprep.subr.mxu0 %v235
    %1506 = vmatpush1.msra.mxu0 %v234
    %1507 = vmatprep.subr.mxu0 0.0
    %1508 = vmatpush1.msra.mxu0 0.0
    %1509 = vmatprep.subr.mxu0 0.0
    %1510 = vmatpush1.msra.mxu0 0.0
    %1511 = vmatprep.subr.mxu0 0.0
    %1512 = vmatpush1.msra.mxu0 0.0
    %1513 = vmatprep.subr.mxu0 0.0
    %1514 = vmatpush1.msra.mxu0 0.0
    %1515 = vmatprep.subr.mxu0 0.0
    %1516 = vmatpush1.msra.mxu0 0.0
    %1517 = vmatprep.subr.mxu0 0.0
    %1518 = vmatpush1.msra.mxu0 0.0
    %1519 = vmatprep.subr.mxu0 0.0
    %1520 = vmatpush1.msra.mxu0 0.0
    %1521 = vmatprep.subr.mxu0 0.0
    %1522 = vmatpush1.msra.mxu0 0.0
    %1523 = vmatprep.subr.mxu0 0.0
    %1524 = vmatpush1.msra.mxu0 0.0
    %1525 = vmatprep.subr.mxu0 0.0
    %1526 = vmatpush1.msra.mxu0 0.0
    %1527 = vmatprep.subr.mxu0 0.0
    %1528 = vmatpush1.msra.mxu0 0.0
    %1529 = vmatprep.subr.mxu0 0.0
    %1530 = vmatpush1.msra.mxu0 0.0
    %1531 = vmatprep.subr.mxu0 0.0
    %1532 = vmatpush1.msra.mxu0 0.0
    %1533 = vmatprep.subr.mxu0 0.0
    %1534 = vmatpush1.msra.mxu0 0.0
    %1535 = vmatprep.subr.mxu0 0.0
    %1536 = vmatpush1.msra.mxu0 0.0
    %1537 = vmatprep.subr.mxu0 0.0
    %1538 = vmatpush1.msra.mxu0 0.0
    %1539 = vmatprep.mubr.f32.mxu0 0.0
    %1540 = vmatmul.mubr.f32.gmra.mrb[0].mxu0 %v1396
    %v1541 = vpop.f32.mrb[0].mxu0
    %v1542 = vadd.f32 0.0, %v1541
    %v1543 = vpop.f32.mrb[0].mxu0
    %v1544 = vadd.f32 0.0, %v1543
    %1545 = vdwg.mxu0
    %v1546 = vadd.f32 %v1400, %v1471
    %v1547 = vadd.f32 %v1401, %v1473
    %v1548 = vadd.f32 %v1402, %v1542
    %v1549 = vadd.f32 %v1403, %v1544
    %v1550 = vxor.u32 %v1546, 2147483648
    %v1551 = vmul.f32 %v1550, 1.442695
    %v1552 = vpow.pop %v1551
    %v1553 = vadd.f32 %v1552, 1.0
    %v1554 = vrcp.pop %v1553
    %v1555 = vmul.f32 1.0, %v1554
    %v1556 = vxor.u32 %v1547, 2147483648
    %v1557 = vmul.f32 %v1556, 1.442695
    %v1558 = vpow.pop %v1557
    %v1559 = vadd.f32 %v1558, 1.0
    %v1560 = vrcp.pop %v1559
    %v1561 = vmul.f32 1.0, %v1560
    %v1562 = vtanh.pop %v1548
    %v1563 = vxor.u32 %v1549, 2147483648
    %v1564 = vmul.f32 %v1563, 1.442695
    %v1565 = vpow.pop %v1564
    %v1566 = vadd.f32 %v1565, 1.0
    %v1567 = vrcp.pop %v1566
    %v1568 = vmul.f32 1.0, %v1567
    %v1569 = vmul.f32 %v1561, %v1394
    %v1570 = vmul.f32 %v1555, %v1562
    %v1571 = vadd.f32 %v1569, %v1570
    %v1572 = vtanh.pop %v1571
    %v1573 = vmul.f32 %v1568, %v1572
    %s1574 = scalar_lea.vmem [#allocation2], 80
    %1575 = vst [vmem:[%s1574] sm:$0xff] %v1573
    %s1576 = scalar_lea.vmem [#allocation3], 192
    %v1577 = vld [vmem:[%s1576] sm:$0xff]
    %v1578 = vld [vmem:[%s1576 + $0x8] sm:$0xff]
    %v1579 = vld [vmem:[%s1576 + $0x10] sm:$0xff]
    %v1580 = vld [vmem:[%s1576 + $0x18] sm:$0xff]
    %1581 = vmatprep.subr.mxu0 %v173
    %1582 = vmatpush1.msra.mxu0 %v172
    %1583 = vmatprep.subr.mxu0 %v177
    %1584 = vmatpush1.msra.mxu0 %v176
    %1585 = vmatprep.subr.mxu0 %v181
    %1586 = vmatpush1.msra.mxu0 %v180
    %1587 = vmatprep.subr.mxu0 %v185
    %1588 = vmatpush1.msra.mxu0 %v184
    %1589 = vmatprep.subr.mxu0 %v189
    %1590 = vmatpush1.msra.mxu0 %v188
    %1591 = vmatprep.subr.mxu0 %v193
    %1592 = vmatpush1.msra.mxu0 %v192
    %1593 = vmatprep.subr.mxu0 %v197
    %1594 = vmatpush1.msra.mxu0 %v196
    %1595 = vmatprep.subr.mxu0 %v201
    %1596 = vmatpush1.msra.mxu0 %v200
    %1597 = vmatprep.subr.mxu0 %v205
    %1598 = vmatpush1.msra.mxu0 %v204
    %1599 = vmatprep.subr.mxu0 %v209
    %1600 = vmatpush1.msra.mxu0 %v208
    %1601 = vmatprep.subr.mxu0 %v213
    %1602 = vmatpush1.msra.mxu0 %v212
    %1603 = vmatprep.subr.mxu0 %v217
    %1604 = vmatpush1.msra.mxu0 %v216
    %1605 = vmatprep.subr.mxu0 %v221
    %1606 = vmatpush1.msra.mxu0 %v220
    %1607 = vmatprep.subr.mxu0 %v225
    %1608 = vmatpush1.msra.mxu0 %v224
    %1609 = vmatprep.subr.mxu0 %v229
    %1610 = vmatpush1.msra.mxu0 %v228
    %1611 = vmatprep.subr.mxu0 %v233
    %1612 = vmatpush1.msra.mxu0 %v232
    %1613 = vmatprep.subr.mxu0 0.0
    %1614 = vmatpush1.msra.mxu0 0.0
    %1615 = vmatprep.subr.mxu0 0.0
    %1616 = vmatpush1.msra.mxu0 0.0
    %1617 = vmatprep.subr.mxu0 0.0
    %1618 = vmatpush1.msra.mxu0 0.0
    %1619 = vmatprep.subr.mxu0 0.0
    %1620 = vmatpush1.msra.mxu0 0.0
    %1621 = vmatprep.subr.mxu0 0.0
    %1622 = vmatpush1.msra.mxu0 0.0
    %1623 = vmatprep.subr.mxu0 0.0
    %1624 = vmatpush1.msra.mxu0 0.0
    %1625 = vmatprep.subr.mxu0 0.0
    %1626 = vmatpush1.msra.mxu0 0.0
    %1627 = vmatprep.subr.mxu0 0.0
    %1628 = vmatpush1.msra.mxu0 0.0
    %1629 = vmatprep.subr.mxu0 0.0
    %1630 = vmatpush1.msra.mxu0 0.0
    %1631 = vmatprep.subr.mxu0 0.0
    %1632 = vmatpush1.msra.mxu0 0.0
    %1633 = vmatprep.subr.mxu0 0.0
    %1634 = vmatpush1.msra.mxu0 0.0
    %1635 = vmatprep.subr.mxu0 0.0
    %1636 = vmatpush1.msra.mxu0 0.0
    %1637 = vmatprep.subr.mxu0 0.0
    %1638 = vmatpush1.msra.mxu0 0.0
    %1639 = vmatprep.subr.mxu0 0.0
    %1640 = vmatpush1.msra.mxu0 0.0
    %1641 = vmatprep.subr.mxu0 0.0
    %1642 = vmatpush1.msra.mxu0 0.0
    %1643 = vmatprep.subr.mxu0 0.0
    %1644 = vmatpush1.msra.mxu0 0.0
    %1645 = vmatprep.mubr.f32.mxu0 0.0
    %1646 = vmatmul.mubr.f32.gmra.mrb[0].mxu0 %v1573
    %v1647 = vpop.f32.mrb[0].mxu0
    %v1648 = vadd.f32 0.0, %v1647
    %v1649 = vpop.f32.mrb[0].mxu0
    %v1650 = vadd.f32 0.0, %v1649
    %1651 = vdwg.mxu0
    %1652 = vmatprep.subr.mxu0 %v175
    %1653 = vmatpush1.msra.mxu0 %v174
    %1654 = vmatprep.subr.mxu0 %v179
    %1655 = vmatpush1.msra.mxu0 %v178
    %1656 = vmatprep.subr.mxu0 %v183
    %1657 = vmatpush1.msra.mxu0 %v182
    %1658 = vmatprep.subr.mxu0 %v187
    %1659 = vmatpush1.msra.mxu0 %v186
    %1660 = vmatprep.subr.mxu0 %v191
    %1661 = vmatpush1.msra.mxu0 %v190
    %1662 = vmatprep.subr.mxu0 %v195
    %1663 = vmatpush1.msra.mxu0 %v194
    %1664 = vmatprep.subr.mxu0 %v199
    %1665 = vmatpush1.msra.mxu0 %v198
    %1666 = vmatprep.subr.mxu0 %v203
    %1667 = vmatpush1.msra.mxu0 %v202
    %1668 = vmatprep.subr.mxu0 %v207
    %1669 = vmatpush1.msra.mxu0 %v206
    %1670 = vmatprep.subr.mxu0 %v211
    %1671 = vmatpush1.msra.mxu0 %v210
    %1672 = vmatprep.subr.mxu0 %v215
    %1673 = vmatpush1.msra.mxu0 %v214
    %1674 = vmatprep.subr.mxu0 %v219
    %1675 = vmatpush1.msra.mxu0 %v218
    %1676 = vmatprep.subr.mxu0 %v223
    %1677 = vmatpush1.msra.mxu0 %v222
    %1678 = vmatprep.subr.mxu0 %v227
    %1679 = vmatpush1.msra.mxu0 %v226
    %1680 = vmatprep.subr.mxu0 %v231
    %1681 = vmatpush1.msra.mxu0 %v230
    %1682 = vmatprep.subr.mxu0 %v235
    %1683 = vmatpush1.msra.mxu0 %v234
    %1684 = vmatprep.subr.mxu0 0.0
    %1685 = vmatpush1.msra.mxu0 0.0
    %1686 = vmatprep.subr.mxu0 0.0
    %1687 = vmatpush1.msra.mxu0 0.0
    %1688 = vmatprep.subr.mxu0 0.0
    %1689 = vmatpush1.msra.mxu0 0.0
    %1690 = vmatprep.subr.mxu0 0.0
    %1691 = vmatpush1.msra.mxu0 0.0
    %1692 = vmatprep.subr.mxu0 0.0
    %1693 = vmatpush1.msra.mxu0 0.0
    %1694 = vmatprep.subr.mxu0 0.0
    %1695 = vmatpush1.msra.mxu0 0.0
    %1696 = vmatprep.subr.mxu0 0.0
    %1697 = vmatpush1.msra.mxu0 0.0
    %1698 = vmatprep.subr.mxu0 0.0
    %1699 = vmatpush1.msra.mxu0 0.0
    %1700 = vmatprep.subr.mxu0 0.0
    %1701 = vmatpush1.msra.mxu0 0.0
    %1702 = vmatprep.subr.mxu0 0.0
    %1703 = vmatpush1.msra.mxu0 0.0
    %1704 = vmatprep.subr.mxu0 0.0
    %1705 = vmatpush1.msra.mxu0 0.0
    %1706 = vmatprep.subr.mxu0 0.0
    %1707 = vmatpush1.msra.mxu0 0.0
    %1708 = vmatprep.subr.mxu0 0.0
    %1709 = vmatpush1.msra.mxu0 0.0
    %1710 = vmatprep.subr.mxu0 0.0
    %1711 = vmatpush1.msra.mxu0 0.0
    %1712 = vmatprep.subr.mxu0 0.0
    %1713 = vmatpush1.msra.mxu0 0.0
    %1714 = vmatprep.subr.mxu0 0.0
    %1715 = vmatpush1.msra.mxu0 0.0
    %1716 = vmatprep.mubr.f32.mxu0 0.0
    %1717 = vmatmul.mubr.f32.gmra.mrb[0].mxu0 %v1573
    %v1718 = vpop.f32.mrb[0].mxu0
    %v1719 = vadd.f32 0.0, %v1718
    %v1720 = vpop.f32.mrb[0].mxu0
    %v1721 = vadd.f32 0.0, %v1720
    %1722 = vdwg.mxu0
    %v1723 = vadd.f32 %v1577, %v1648
    %v1724 = vadd.f32 %v1578, %v1650
    %v1725 = vadd.f32 %v1579, %v1719
    %v1726 = vadd.f32 %v1580, %v1721
    %v1727 = vxor.u32 %v1723, 2147483648
    %v1728 = vmul.f32 %v1727, 1.442695
    %v1729 = vpow.pop %v1728
    %v1730 = vadd.f32 %v1729, 1.0
    %v1731 = vrcp.pop %v1730
    %v1732 = vmul.f32 1.0, %v1731
    %v1733 = vxor.u32 %v1724, 2147483648
    %v1734 = vmul.f32 %v1733, 1.442695
    %v1735 = vpow.pop %v1734
    %v1736 = vadd.f32 %v1735, 1.0
    %v1737 = vrcp.pop %v1736
    %v1738 = vmul.f32 1.0, %v1737
    %v1739 = vtanh.pop %v1725
    %v1740 = vxor.u32 %v1726, 2147483648
    %v1741 = vmul.f32 %v1740, 1.442695
    %v1742 = vpow.pop %v1741
    %v1743 = vadd.f32 %v1742, 1.0
    %v1744 = vrcp.pop %v1743
    %v1745 = vmul.f32 1.0, %v1744
    %v1746 = vmul.f32 %v1738, %v1571
    %v1747 = vmul.f32 %v1732, %v1739
    %v1748 = vadd.f32 %v1746, %v1747
    %v1749 = vtanh.pop %v1748
    %v1750 = vmul.f32 %v1745, %v1749
    %s1751 = scalar_lea.vmem [#allocation2], 96
    %1752 = vst [vmem:[%s1751] sm:$0xff] %v1750
    %s1753 = scalar_lea.vmem [#allocation3], 224
    %v1754 = vld [vmem:[%s1753] sm:$0xff]
    %v1755 = vld [vmem:[%s1753 + $0x8] sm:$0xff]
    %v1756 = vld [vmem:[%s1753 + $0x10] sm:$0xff]
    %v1757 = vld [vmem:[%s1753 + $0x18] sm:$0xff]
    %1758 = vmatprep.subr.mxu0 %v173
    %1759 = vmatpush1.msra.mxu0 %v172
    %1760 = vmatprep.subr.mxu0 %v177
    %1761 = vmatpush1.msra.mxu0 %v176
    %1762 = vmatprep.subr.mxu0 %v181
    %1763 = vmatpush1.msra.mxu0 %v180
    %1764 = vmatprep.subr.mxu0 %v185
    %1765 = vmatpush1.msra.mxu0 %v184
    %1766 = vmatprep.subr.mxu0 %v189
    %1767 = vmatpush1.msra.mxu0 %v188
    %1768 = vmatprep.subr.mxu0 %v193
    %1769 = vmatpush1.msra.mxu0 %v192
    %1770 = vmatprep.subr.mxu0 %v197
    %1771 = vmatpush1.msra.mxu0 %v196
    %1772 = vmatprep.subr.mxu0 %v201
    %1773 = vmatpush1.msra.mxu0 %v200
    %1774 = vmatprep.subr.mxu0 %v205
    %1775 = vmatpush1.msra.mxu0 %v204
    %1776 = vmatprep.subr.mxu0 %v209
    %1777 = vmatpush1.msra.mxu0 %v208
    %1778 = vmatprep.subr.mxu0 %v213
    %1779 = vmatpush1.msra.mxu0 %v212
    %1780 = vmatprep.subr.mxu0 %v217
    %1781 = vmatpush1.msra.mxu0 %v216
    %1782 = vmatprep.subr.mxu0 %v221
    %1783 = vmatpush1.msra.mxu0 %v220
    %1784 = vmatprep.subr.mxu0 %v225
    %1785 = vmatpush1.msra.mxu0 %v224
    %1786 = vmatprep.subr.mxu0 %v229
    %1787 = vmatpush1.msra.mxu0 %v228
    %1788 = vmatprep.subr.mxu0 %v233
    %1789 = vmatpush1.msra.mxu0 %v232
    %1790 = vmatprep.subr.mxu0 0.0
    %1791 = vmatpush1.msra.mxu0 0.0
    %1792 = vmatprep.subr.mxu0 0.0
    %1793 = vmatpush1.msra.mxu0 0.0
    %1794 = vmatprep.subr.mxu0 0.0
    %1795 = vmatpush1.msra.mxu0 0.0
    %1796 = vmatprep.subr.mxu0 0.0
    %1797 = vmatpush1.msra.mxu0 0.0
    %1798 = vmatprep.subr.mxu0 0.0
    %1799 = vmatpush1.msra.mxu0 0.0
    %1800 = vmatprep.subr.mxu0 0.0
    %1801 = vmatpush1.msra.mxu0 0.0
    %1802 = vmatprep.subr.mxu0 0.0
    %1803 = vmatpush1.msra.mxu0 0.0
    %1804 = vmatprep.subr.mxu0 0.0
    %1805 = vmatpush1.msra.mxu0 0.0
    %1806 = vmatprep.subr.mxu0 0.0
    %1807 = vmatpush1.msra.mxu0 0.0
    %1808 = vmatprep.subr.mxu0 0.0
    %1809 = vmatpush1.msra.mxu0 0.0
    %1810 = vmatprep.subr.mxu0 0.0
    %1811 = vmatpush1.msra.mxu0 0.0
    %1812 = vmatprep.subr.mxu0 0.0
    %1813 = vmatpush1.msra.mxu0 0.0
    %1814 = vmatprep.subr.mxu0 0.0
    %1815 = vmatpush1.msra.mxu0 0.0
    %1816 = vmatprep.subr.mxu0 0.0
    %1817 = vmatpush1.msra.mxu0 0.0
    %1818 = vmatprep.subr.mxu0 0.0
    %1819 = vmatpush1.msra.mxu0 0.0
    %1820 = vmatprep.subr.mxu0 0.0
    %1821 = vmatpush1.msra.mxu0 0.0
    %1822 = vmatprep.mubr.f32.mxu0 0.0
    %1823 = vmatmul.mubr.f32.gmra.mrb[0].mxu0 %v1750
    %v1824 = vpop.f32.mrb[0].mxu0
    %v1825 = vadd.f32 0.0, %v1824
    %v1826 = vpop.f32.mrb[0].mxu0
    %v1827 = vadd.f32 0.0, %v1826
    %1828 = vdwg.mxu0
    %1829 = vmatprep.subr.mxu0 %v175
    %1830 = vmatpush1.msra.mxu0 %v174
    %1831 = vmatprep.subr.mxu0 %v179
    %1832 = vmatpush1.msra.mxu0 %v178
    %1833 = vmatprep.subr.mxu0 %v183
    %1834 = vmatpush1.msra.mxu0 %v182
    %1835 = vmatprep.subr.mxu0 %v187
    %1836 = vmatpush1.msra.mxu0 %v186
    %1837 = vmatprep.subr.mxu0 %v191
    %1838 = vmatpush1.msra.mxu0 %v190
    %1839 = vmatprep.subr.mxu0 %v195
    %1840 = vmatpush1.msra.mxu0 %v194
    %1841 = vmatprep.subr.mxu0 %v199
    %1842 = vmatpush1.msra.mxu0 %v198
    %1843 = vmatprep.subr.mxu0 %v203
    %1844 = vmatpush1.msra.mxu0 %v202
    %1845 = vmatprep.subr.mxu0 %v207
    %1846 = vmatpush1.msra.mxu0 %v206
    %1847 = vmatprep.subr.mxu0 %v211
    %1848 = vmatpush1.msra.mxu0 %v210
    %1849 = vmatprep.subr.mxu0 %v215
    %1850 = vmatpush1.msra.mxu0 %v214
    %1851 = vmatprep.subr.mxu0 %v219
    %1852 = vmatpush1.msra.mxu0 %v218
    %1853 = vmatprep.subr.mxu0 %v223
    %1854 = vmatpush1.msra.mxu0 %v222
    %1855 = vmatprep.subr.mxu0 %v227
    %1856 = vmatpush1.msra.mxu0 %v226
    %1857 = vmatprep.subr.mxu0 %v231
    %1858 = vmatpush1.msra.mxu0 %v230
    %1859 = vmatprep.subr.mxu0 %v235
    %1860 = vmatpush1.msra.mxu0 %v234
    %1861 = vmatprep.subr.mxu0 0.0
    %1862 = vmatpush1.msra.mxu0 0.0
    %1863 = vmatprep.subr.mxu0 0.0
    %1864 = vmatpush1.msra.mxu0 0.0
    %1865 = vmatprep.subr.mxu0 0.0
    %1866 = vmatpush1.msra.mxu0 0.0
    %1867 = vmatprep.subr.mxu0 0.0
    %1868 = vmatpush1.msra.mxu0 0.0
    %1869 = vmatprep.subr.mxu0 0.0
    %1870 = vmatpush1.msra.mxu0 0.0
    %1871 = vmatprep.subr.mxu0 0.0
    %1872 = vmatpush1.msra.mxu0 0.0
    %1873 = vmatprep.subr.mxu0 0.0
    %1874 = vmatpush1.msra.mxu0 0.0
    %1875 = vmatprep.subr.mxu0 0.0
    %1876 = vmatpush1.msra.mxu0 0.0
    %1877 = vmatprep.subr.mxu0 0.0
    %1878 = vmatpush1.msra.mxu0 0.0
    %1879 = vmatprep.subr.mxu0 0.0
    %1880 = vmatpush1.msra.mxu0 0.0
    %1881 = vmatprep.subr.mxu0 0.0
    %1882 = vmatpush1.msra.mxu0 0.0
    %1883 = vmatprep.subr.mxu0 0.0
    %1884 = vmatpush1.msra.mxu0 0.0
    %1885 = vmatprep.subr.mxu0 0.0
    %1886 = vmatpush1.msra.mxu0 0.0
    %1887 = vmatprep.subr.mxu0 0.0
    %1888 = vmatpush1.msra.mxu0 0.0
    %1889 = vmatprep.subr.mxu0 0.0
    %1890 = vmatpush1.msra.mxu0 0.0
    %1891 = vmatprep.subr.mxu0 0.0
    %1892 = vmatpush1.msra.mxu0 0.0
    %1893 = vmatprep.mubr.f32.mxu0 0.0
    %1894 = vmatmul.mubr.f32.gmra.mrb[0].mxu0 %v1750
    %v1895 = vpop.f32.mrb[0].mxu0
    %v1896 = vadd.f32 0.0, %v1895
    %v1897 = vpop.f32.mrb[0].mxu0
    %v1898 = vadd.f32 0.0, %v1897
    %1899 = vdwg.mxu0
    %v1900 = vadd.f32 %v1754, %v1825
    %v1901 = vadd.f32 %v1755, %v1827
    %v1902 = vadd.f32 %v1756, %v1896
    %v1903 = vadd.f32 %v1757, %v1898
    %v1904 = vxor.u32 %v1900, 2147483648
    %v1905 = vmul.f32 %v1904, 1.442695
    %v1906 = vpow.pop %v1905
    %v1907 = vadd.f32 %v1906, 1.0
    %v1908 = vrcp.pop %v1907
    %v1909 = vmul.f32 1.0, %v1908
    %v1910 = vxor.u32 %v1901, 2147483648
    %v1911 = vmul.f32 %v1910, 1.442695
    %v1912 = vpow.pop %v1911
    %v1913 = vadd.f32 %v1912, 1.0
    %v1914 = vrcp.pop %v1913
    %v1915 = vmul.f32 1.0, %v1914
    %v1916 = vtanh.pop %v1902
    %v1917 = vxor.u32 %v1903, 2147483648
    %v1918 = vmul.f32 %v1917, 1.442695
    %v1919 = vpow.pop %v1918
    %v1920 = vadd.f32 %v1919, 1.0
    %v1921 = vrcp.pop %v1920
    %v1922 = vmul.f32 1.0, %v1921
    %v1923 = vmul.f32 %v1915, %v1748
    %v1924 = vmul.f32 %v1909, %v1916
    %v1925 = vadd.f32 %v1923, %v1924
    %v1926 = vtanh.pop %v1925
    %v1927 = vmul.f32 %v1922, %v1926
    %s1928 = scalar_lea.vmem [#allocation2], 112
    %1929 = vst [vmem:[%s1928] sm:$0xff] %v1927
    %s1930 = scalar_lea.vmem [#allocation4], 512
    %v1931 = vld [vmem:[%s1930] sm:$0xff]
    %v1932 = vld [vmem:[%s1930 + $0x8] sm:$0xff]
    %v1933 = vld [vmem:[%s1930 + $0x10] sm:$0xff]
    %v1934 = vld [vmem:[%s1930 + $0x18] sm:$0xff]
    %v1935 = vld [vmem:[%s1930 + $0x20] sm:$0xff]
    %v1936 = vld [vmem:[%s1930 + $0x28] sm:$0xff]
    %v1937 = vld [vmem:[%s1930 + $0x30] sm:$0xff]
    %v1938 = vld [vmem:[%s1930 + $0x38] sm:$0xff]
    %v1939 = vld [vmem:[%s1930 + $0x40] sm:$0xff]
    %v1940 = vld [vmem:[%s1930 + $0x48] sm:$0xff]
    %v1941 = vld [vmem:[%s1930 + $0x50] sm:$0xff]
    %v1942 = vld [vmem:[%s1930 + $0x58] sm:$0xff]
    %v1943 = vld [vmem:[%s1930 + $0x60] sm:$0xff]
    %v1944 = vld [vmem:[%s1930 + $0x68] sm:$0xff]
    %v1945 = vld [vmem:[%s1930 + $0x70] sm:$0xff]
    %v1946 = vld [vmem:[%s1930 + $0x78] sm:$0xff]
    %v1947 = vld [vmem:[%s1930 + $0x80] sm:$0xff]
    %v1948 = vld [vmem:[%s1930 + $0x88] sm:$0xff]
    %v1949 = vld [vmem:[%s1930 + $0x90] sm:$0xff]
    %v1950 = vld [vmem:[%s1930 + $0x98] sm:$0xff]
    %v1951 = vld [vmem:[%s1930 + $0xa0] sm:$0xff]
    %v1952 = vld [vmem:[%s1930 + $0xa8] sm:$0xff]
    %v1953 = vld [vmem:[%s1930 + $0xb0] sm:$0xff]
    %v1954 = vld [vmem:[%s1930 + $0xb8] sm:$0xff]
    %v1955 = vld [vmem:[%s1930 + $0xc0] sm:$0xff]
    %v1956 = vld [vmem:[%s1930 + $0xc8] sm:$0xff]
    %v1957 = vld [vmem:[%s1930 + $0xd0] sm:$0xff]
    %v1958 = vld [vmem:[%s1930 + $0xd8] sm:$0xff]
    %v1959 = vld [vmem:[%s1930 + $0xe0] sm:$0xff]
    %v1960 = vld [vmem:[%s1930 + $0xe8] sm:$0xff]
    %v1961 = vld [vmem:[%s1930 + $0xf0] sm:$0xff]
    %v1962 = vld [vmem:[%s1930 + $0xf8] sm:$0xff]
    %v1963 = vld [vmem:[%s1930 + $0x100] sm:$0xff]
    %v1964 = vld [vmem:[%s1930 + $0x108] sm:$0xff]
    %v1965 = vld [vmem:[%s1930 + $0x110] sm:$0xff]
    %v1966 = vld [vmem:[%s1930 + $0x118] sm:$0xff]
    %v1967 = vld [vmem:[%s1930 + $0x120] sm:$0xff]
    %v1968 = vld [vmem:[%s1930 + $0x128] sm:$0xff]
    %v1969 = vld [vmem:[%s1930 + $0x130] sm:$0xff]
    %v1970 = vld [vmem:[%s1930 + $0x138] sm:$0xff]
    %v1971 = vld [vmem:[%s1930 + $0x140] sm:$0xff]
    %v1972 = vld [vmem:[%s1930 + $0x148] sm:$0xff]
    %v1973 = vld [vmem:[%s1930 + $0x150] sm:$0xff]
    %v1974 = vld [vmem:[%s1930 + $0x158] sm:$0xff]
    %v1975 = vld [vmem:[%s1930 + $0x160] sm:$0xff]
    %v1976 = vld [vmem:[%s1930 + $0x168] sm:$0xff]
    %v1977 = vld [vmem:[%s1930 + $0x170] sm:$0xff]
    %v1978 = vld [vmem:[%s1930 + $0x178] sm:$0xff]
    %v1979 = vld [vmem:[%s1930 + $0x180] sm:$0xff]
    %v1980 = vld [vmem:[%s1930 + $0x188] sm:$0xff]
    %v1981 = vld [vmem:[%s1930 + $0x190] sm:$0xff]
    %v1982 = vld [vmem:[%s1930 + $0x198] sm:$0xff]
    %v1983 = vld [vmem:[%s1930 + $0x1a0] sm:$0xff]
    %v1984 = vld [vmem:[%s1930 + $0x1a8] sm:$0xff]
    %v1985 = vld [vmem:[%s1930 + $0x1b0] sm:$0xff]
    %v1986 = vld [vmem:[%s1930 + $0x1b8] sm:$0xff]
    %v1987 = vld [vmem:[%s1930 + $0x1c0] sm:$0xff]
    %v1988 = vld [vmem:[%s1930 + $0x1c8] sm:$0xff]
    %v1989 = vld [vmem:[%s1930 + $0x1d0] sm:$0xff]
    %v1990 = vld [vmem:[%s1930 + $0x1d8] sm:$0xff]
    %v1991 = vld [vmem:[%s1930 + $0x1e0] sm:$0xff]
    %v1992 = vld [vmem:[%s1930 + $0x1e8] sm:$0xff]
    %v1993 = vld [vmem:[%s1930 + $0x1f0] sm:$0xff]
    %v1994 = vld [vmem:[%s1930 + $0x1f8] sm:$0xff]
    %s1995 = scalar_lea.vmem [#allocation6], 512
    %v1996 = vld [vmem:[%s1995] sm:$0xff]
    %v1997 = vld [vmem:[%s1995 + $0x8] sm:$0xff]
    %v1998 = vld [vmem:[%s1995 + $0x10] sm:$0xff]
    %v1999 = vld [vmem:[%s1995 + $0x18] sm:$0xff]
    %v2000 = vld [vmem:[%s1995 + $0x20] sm:$0xff]
    %v2001 = vld [vmem:[%s1995 + $0x28] sm:$0xff]
    %v2002 = vld [vmem:[%s1995 + $0x30] sm:$0xff]
    %v2003 = vld [vmem:[%s1995 + $0x38] sm:$0xff]
    %v2004 = vld [vmem:[%s1995 + $0x40] sm:$0xff]
    %v2005 = vld [vmem:[%s1995 + $0x48] sm:$0xff]
    %v2006 = vld [vmem:[%s1995 + $0x50] sm:$0xff]
    %v2007 = vld [vmem:[%s1995 + $0x58] sm:$0xff]
    %v2008 = vld [vmem:[%s1995 + $0x60] sm:$0xff]
    %v2009 = vld [vmem:[%s1995 + $0x68] sm:$0xff]
    %v2010 = vld [vmem:[%s1995 + $0x70] sm:$0xff]
    %v2011 = vld [vmem:[%s1995 + $0x78] sm:$0xff]
    %v2012 = vld [vmem:[%s1995 + $0x80] sm:$0xff]
    %v2013 = vld [vmem:[%s1995 + $0x88] sm:$0xff]
    %v2014 = vld [vmem:[%s1995 + $0x90] sm:$0xff]
    %v2015 = vld [vmem:[%s1995 + $0x98] sm:$0xff]
    %v2016 = vld [vmem:[%s1995 + $0xa0] sm:$0xff]
    %v2017 = vld [vmem:[%s1995 + $0xa8] sm:$0xff]
    %v2018 = vld [vmem:[%s1995 + $0xb0] sm:$0xff]
    %v2019 = vld [vmem:[%s1995 + $0xb8] sm:$0xff]
    %v2020 = vld [vmem:[%s1995 + $0xc0] sm:$0xff]
    %v2021 = vld [vmem:[%s1995 + $0xc8] sm:$0xff]
    %v2022 = vld [vmem:[%s1995 + $0xd0] sm:$0xff]
    %v2023 = vld [vmem:[%s1995 + $0xd8] sm:$0xff]
    %v2024 = vld [vmem:[%s1995 + $0xe0] sm:$0xff]
    %v2025 = vld [vmem:[%s1995 + $0xe8] sm:$0xff]
    %v2026 = vld [vmem:[%s1995 + $0xf0] sm:$0xff]
    %v2027 = vld [vmem:[%s1995 + $0xf8] sm:$0xff]
    %v2028 = vld [vmem:[%s1995 + $0x100] sm:$0xff]
    %v2029 = vld [vmem:[%s1995 + $0x108] sm:$0xff]
    %v2030 = vld [vmem:[%s1995 + $0x110] sm:$0xff]
    %v2031 = vld [vmem:[%s1995 + $0x118] sm:$0xff]
    %v2032 = vld [vmem:[%s1995 + $0x120] sm:$0xff]
    %v2033 = vld [vmem:[%s1995 + $0x128] sm:$0xff]
    %v2034 = vld [vmem:[%s1995 + $0x130] sm:$0xff]
    %v2035 = vld [vmem:[%s1995 + $0x138] sm:$0xff]
    %v2036 = vld [vmem:[%s1995 + $0x140] sm:$0xff]
    %v2037 = vld [vmem:[%s1995 + $0x148] sm:$0xff]
    %v2038 = vld [vmem:[%s1995 + $0x150] sm:$0xff]
    %v2039 = vld [vmem:[%s1995 + $0x158] sm:$0xff]
    %v2040 = vld [vmem:[%s1995 + $0x160] sm:$0xff]
    %v2041 = vld [vmem:[%s1995 + $0x168] sm:$0xff]
    %v2042 = vld [vmem:[%s1995 + $0x170] sm:$0xff]
    %v2043 = vld [vmem:[%s1995 + $0x178] sm:$0xff]
    %v2044 = vld [vmem:[%s1995 + $0x180] sm:$0xff]
    %v2045 = vld [vmem:[%s1995 + $0x188] sm:$0xff]
    %v2046 = vld [vmem:[%s1995 + $0x190] sm:$0xff]
    %v2047 = vld [vmem:[%s1995 + $0x198] sm:$0xff]
    %v2048 = vld [vmem:[%s1995 + $0x1a0] sm:$0xff]
    %v2049 = vld [vmem:[%s1995 + $0x1a8] sm:$0xff]
    %v2050 = vld [vmem:[%s1995 + $0x1b0] sm:$0xff]
    %v2051 = vld [vmem:[%s1995 + $0x1b8] sm:$0xff]
    %v2052 = vld [vmem:[%s1995 + $0x1c0] sm:$0xff]
    %v2053 = vld [vmem:[%s1995 + $0x1c8] sm:$0xff]
    %v2054 = vld [vmem:[%s1995 + $0x1d0] sm:$0xff]
    %v2055 = vld [vmem:[%s1995 + $0x1d8] sm:$0xff]
    %v2056 = vld [vmem:[%s1995 + $0x1e0] sm:$0xff]
    %v2057 = vld [vmem:[%s1995 + $0x1e8] sm:$0xff]
    %v2058 = vld [vmem:[%s1995 + $0x1f0] sm:$0xff]
    %v2059 = vld [vmem:[%s1995 + $0x1f8] sm:$0xff]
    %s2060 = scalar_lea.vmem %s3, 4
    %v2061 = vld [vmem:[%s2060] sm:$0xf]
    %v2063 = vlaneseq
    %v2064 = vshrl.u32 %v2063, 7
    %v2065 = vsub.s32 0, %v2064
    %v2066 = vrot.slane %v2061, %v2065
    %v2067 = vlaneseq
    %v2068 = vshrl.u32 %v2067, 7
    %v2069 = vsub.s32 1, %v2068
    %v2070 = vrot.slane %v2061, %v2069
    %v2071 = vlaneseq
    %v2072 = vshrl.u32 %v2071, 7
    %v2073 = vsub.s32 2, %v2072
    %v2074 = vrot.slane %v2061, %v2073
    %v2075 = vlaneseq
    %v2076 = vshrl.u32 %v2075, 7
    %v2077 = vsub.s32 3, %v2076
    %v2078 = vrot.slane %v2061, %v2077
    %2083 = vmatprep.subr.mxu0 %v1932
    %2084 = vmatpush1.msra.mxu0 %v1931
    %2085 = vmatprep.subr.mxu0 %v1936
    %2086 = vmatpush1.msra.mxu0 %v1935
    %2087 = vmatprep.subr.mxu0 %v1940
    %2088 = vmatpush1.msra.mxu0 %v1939
    %2089 = vmatprep.subr.mxu0 %v1944
    %2090 = vmatpush1.msra.mxu0 %v1943
    %2091 = vmatprep.subr.mxu0 %v1948
    %2092 = vmatpush1.msra.mxu0 %v1947
    %2093 = vmatprep.subr.mxu0 %v1952
    %2094 = vmatpush1.msra.mxu0 %v1951
    %2095 = vmatprep.subr.mxu0 %v1956
    %2096 = vmatpush1.msra.mxu0 %v1955
    %2097 = vmatprep.subr.mxu0 %v1960
    %2098 = vmatpush1.msra.mxu0 %v1959
    %2099 = vmatprep.subr.mxu0 %v1964
    %2100 = vmatpush1.msra.mxu0 %v1963
    %2101 = vmatprep.subr.mxu0 %v1968
    %2102 = vmatpush1.msra.mxu0 %v1967
    %2103 = vmatprep.subr.mxu0 %v1972
    %2104 = vmatpush1.msra.mxu0 %v1971
    %2105 = vmatprep.subr.mxu0 %v1976
    %2106 = vmatpush1.msra.mxu0 %v1975
    %2107 = vmatprep.subr.mxu0 %v1980
    %2108 = vmatpush1.msra.mxu0 %v1979
    %2109 = vmatprep.subr.mxu0 %v1984
    %2110 = vmatpush1.msra.mxu0 %v1983
    %2111 = vmatprep.subr.mxu0 %v1988
    %2112 = vmatpush1.msra.mxu0 %v1987
    %2113 = vmatprep.subr.mxu0 %v1992
    %2114 = vmatpush1.msra.mxu0 %v1991
    %2115 = vmatprep.subr.mxu0 0.0
    %2116 = vmatpush1.msra.mxu0 0.0
    %2117 = vmatprep.subr.mxu0 0.0
    %2118 = vmatpush1.msra.mxu0 0.0
    %2119 = vmatprep.subr.mxu0 0.0
    %2120 = vmatpush1.msra.mxu0 0.0
    %2121 = vmatprep.subr.mxu0 0.0
    %2122 = vmatpush1.msra.mxu0 0.0
    %2123 = vmatprep.subr.mxu0 0.0
    %2124 = vmatpush1.msra.mxu0 0.0
    %2125 = vmatprep.subr.mxu0 0.0
    %2126 = vmatpush1.msra.mxu0 0.0
    %2127 = vmatprep.subr.mxu0 0.0
    %2128 = vmatpush1.msra.mxu0 0.0
    %2129 = vmatprep.subr.mxu0 0.0
    %2130 = vmatpush1.msra.mxu0 0.0
    %2131 = vmatprep.subr.mxu0 0.0
    %2132 = vmatpush1.msra.mxu0 0.0
    %2133 = vmatprep.subr.mxu0 0.0
    %2134 = vmatpush1.msra.mxu0 0.0
    %2135 = vmatprep.subr.mxu0 0.0
    %2136 = vmatpush1.msra.mxu0 0.0
    %2137 = vmatprep.subr.mxu0 0.0
    %2138 = vmatpush1.msra.mxu0 0.0
    %2139 = vmatprep.subr.mxu0 0.0
    %2140 = vmatpush1.msra.mxu0 0.0
    %2141 = vmatprep.subr.mxu0 0.0
    %2142 = vmatpush1.msra.mxu0 0.0
    %2143 = vmatprep.subr.mxu0 0.0
    %2144 = vmatpush1.msra.mxu0 0.0
    %2145 = vmatprep.subr.mxu0 0.0
    %2146 = vmatpush1.msra.mxu0 0.0
    %2147 = vmatprep.mubr.f32.mxu0 0.0
    %2148 = vmatmul.mubr.f32.gmra.mrb[0].mxu0 %v100
    %v2149 = vpop.f32.mrb[0].mxu0
    %v2150 = vadd.f32 %v2066, %v2149
    %v2151 = vpop.f32.mrb[0].mxu0
    %v2152 = vadd.f32 %v2070, %v2151
    %2153 = vmatprep.mubr.f32.mxu0 0.0
    %2154 = vmatmul.mubr.f32.gmra.mrb[0].mxu0 %v101
    %v2155 = vpop.f32.mrb[0].mxu0
    %v2156 = vadd.f32 %v2066, %v2155
    %v2157 = vpop.f32.mrb[0].mxu0
    %v2158 = vadd.f32 %v2070, %v2157
    %2159 = vmatprep.mubr.f32.mxu0 0.0
    %2160 = vmatmul.mubr.f32.gmra.mrb[0].mxu0 %v102
    %v2161 = vpop.f32.mrb[0].mxu0
    %v2162 = vadd.f32 %v2066, %v2161
    %v2163 = vpop.f32.mrb[0].mxu0
    %v2164 = vadd.f32 %v2070, %v2163
    %2165 = vmatprep.mubr.f32.mxu0 0.0
    %2166 = vmatmul.mubr.f32.gmra.mrb[0].mxu0 %v103
    %v2167 = vpop.f32.mrb[0].mxu0
    %v2168 = vadd.f32 %v2066, %v2167
    %v2169 = vpop.f32.mrb[0].mxu0
    %v2170 = vadd.f32 %v2070, %v2169
    %2171 = vmatprep.mubr.f32.mxu0 0.0
    %2172 = vmatmul.mubr.f32.gmra.mrb[0].mxu0 %v104
    %v2173 = vpop.f32.mrb[0].mxu0
    %v2174 = vadd.f32 %v2066, %v2173
    %v2175 = vpop.f32.mrb[0].mxu0
    %v2176 = vadd.f32 %v2070, %v2175
    %2177 = vmatprep.mubr.f32.mxu0 0.0
    %2178 = vmatmul.mubr.f32.gmra.mrb[0].mxu0 %v105
    %v2179 = vpop.f32.mrb[0].mxu0
    %v2180 = vadd.f32 %v2066, %v2179
    %v2181 = vpop.f32.mrb[0].mxu0
    %v2182 = vadd.f32 %v2070, %v2181
    %2183 = vmatprep.mubr.f32.mxu0 0.0
    %2184 = vmatmul.mubr.f32.gmra.mrb[0].mxu0 %v106
    %v2185 = vpop.f32.mrb[0].mxu0
    %v2186 = vadd.f32 %v2066, %v2185
    %v2187 = vpop.f32.mrb[0].mxu0
    %v2188 = vadd.f32 %v2070, %v2187
    %2189 = vmatprep.mubr.f32.mxu0 0.0
    %2190 = vmatmul.mubr.f32.gmra.mrb[0].mxu0 %v107
    %v2191 = vpop.f32.mrb[0].mxu0
    %v2192 = vadd.f32 %v2066, %v2191
    %v2193 = vpop.f32.mrb[0].mxu0
    %v2194 = vadd.f32 %v2070, %v2193
    %2195 = vdwg.mxu0
    %2196 = vmatprep.subr.mxu0 %v1934
    %2197 = vmatpush1.msra.mxu0 %v1933
    %2198 = vmatprep.subr.mxu0 %v1938
    %2199 = vmatpush1.msra.mxu0 %v1937
    %2200 = vmatprep.subr.mxu0 %v1942
    %2201 = vmatpush1.msra.mxu0 %v1941
    %2202 = vmatprep.subr.mxu0 %v1946
    %2203 = vmatpush1.msra.mxu0 %v1945
    %2204 = vmatprep.subr.mxu0 %v1950
    %2205 = vmatpush1.msra.mxu0 %v1949
    %2206 = vmatprep.subr.mxu0 %v1954
    %2207 = vmatpush1.msra.mxu0 %v1953
    %2208 = vmatprep.subr.mxu0 %v1958
    %2209 = vmatpush1.msra.mxu0 %v1957
    %2210 = vmatprep.subr.mxu0 %v1962
    %2211 = vmatpush1.msra.mxu0 %v1961
    %2212 = vmatprep.subr.mxu0 %v1966
    %2213 = vmatpush1.msra.mxu0 %v1965
    %2214 = vmatprep.subr.mxu0 %v1970
    %2215 = vmatpush1.msra.mxu0 %v1969
    %2216 = vmatprep.subr.mxu0 %v1974
    %2217 = vmatpush1.msra.mxu0 %v1973
    %2218 = vmatprep.subr.mxu0 %v1978
    %2219 = vmatpush1.msra.mxu0 %v1977
    %2220 = vmatprep.subr.mxu0 %v1982
    %2221 = vmatpush1.msra.mxu0 %v1981
    %2222 = vmatprep.subr.mxu0 %v1986
    %2223 = vmatpush1.msra.mxu0 %v1985
    %2224 = vmatprep.subr.mxu0 %v1990
    %2225 = vmatpush1.msra.mxu0 %v1989
    %2226 = vmatprep.subr.mxu0 %v1994
    %2227 = vmatpush1.msra.mxu0 %v1993
    %2228 = vmatprep.subr.mxu0 0.0
    %2229 = vmatpush1.msra.mxu0 0.0
    %2230 = vmatprep.subr.mxu0 0.0
    %2231 = vmatpush1.msra.mxu0 0.0
    %2232 = vmatprep.subr.mxu0 0.0
    %2233 = vmatpush1.msra.mxu0 0.0
    %2234 = vmatprep.subr.mxu0 0.0
    %2235 = vmatpush1.msra.mxu0 0.0
    %2236 = vmatprep.subr.mxu0 0.0
    %2237 = vmatpush1.msra.mxu0 0.0
    %2238 = vmatprep.subr.mxu0 0.0
    %2239 = vmatpush1.msra.mxu0 0.0
    %2240 = vmatprep.subr.mxu0 0.0
    %2241 = vmatpush1.msra.mxu0 0.0
    %2242 = vmatprep.subr.mxu0 0.0
    %2243 = vmatpush1.msra.mxu0 0.0
    %2244 = vmatprep.subr.mxu0 0.0
    %2245 = vmatpush1.msra.mxu0 0.0
    %2246 = vmatprep.subr.mxu0 0.0
    %2247 = vmatpush1.msra.mxu0 0.0
    %2248 = vmatprep.subr.mxu0 0.0
    %2249 = vmatpush1.msra.mxu0 0.0
    %2250 = vmatprep.subr.mxu0 0.0
    %2251 = vmatpush1.msra.mxu0 0.0
    %2252 = vmatprep.subr.mxu0 0.0
    %2253 = vmatpush1.msra.mxu0 0.0
    %2254 = vmatprep.subr.mxu0 0.0
    %2255 = vmatpush1.msra.mxu0 0.0
    %2256 = vmatprep.subr.mxu0 0.0
    %2257 = vmatpush1.msra.mxu0 0.0
    %2258 = vmatprep.subr.mxu0 0.0
    %2259 = vmatpush1.msra.mxu0 0.0
    %2260 = vmatprep.mubr.f32.mxu0 0.0
    %2261 = vmatmul.mubr.f32.gmra.mrb[0].mxu0 %v100
    %v2262 = vpop.f32.mrb[0].mxu0
    %v2263 = vadd.f32 %v2074, %v2262
    %v2264 = vpop.f32.mrb[0].mxu0
    %v2265 = vadd.f32 %v2078, %v2264
    %2266 = vmatprep.mubr.f32.mxu0 0.0
    %2267 = vmatmul.mubr.f32.gmra.mrb[0].mxu0 %v101
    %v2268 = vpop.f32.mrb[0].mxu0
    %v2269 = vadd.f32 %v2074, %v2268
    %v2270 = vpop.f32.mrb[0].mxu0
    %v2271 = vadd.f32 %v2078, %v2270
    %2272 = vmatprep.mubr.f32.mxu0 0.0
    %2273 = vmatmul.mubr.f32.gmra.mrb[0].mxu0 %v102
    %v2274 = vpop.f32.mrb[0].mxu0
    %v2275 = vadd.f32 %v2074, %v2274
    %v2276 = vpop.f32.mrb[0].mxu0
    %v2277 = vadd.f32 %v2078, %v2276
    %2278 = vmatprep.mubr.f32.mxu0 0.0
    %2279 = vmatmul.mubr.f32.gmra.mrb[0].mxu0 %v103
    %v2280 = vpop.f32.mrb[0].mxu0
    %v2281 = vadd.f32 %v2074, %v2280
    %v2282 = vpop.f32.mrb[0].mxu0
    %v2283 = vadd.f32 %v2078, %v2282
    %2284 = vmatprep.mubr.f32.mxu0 0.0
    %2285 = vmatmul.mubr.f32.gmra.mrb[0].mxu0 %v104
    %v2286 = vpop.f32.mrb[0].mxu0
    %v2287 = vadd.f32 %v2074, %v2286
    %v2288 = vpop.f32.mrb[0].mxu0
    %v2289 = vadd.f32 %v2078, %v2288
    %2290 = vmatprep.mubr.f32.mxu0 0.0
    %2291 = vmatmul.mubr.f32.gmra.mrb[0].mxu0 %v105
    %v2292 = vpop.f32.mrb[0].mxu0
    %v2293 = vadd.f32 %v2074, %v2292
    %v2294 = vpop.f32.mrb[0].mxu0
    %v2295 = vadd.f32 %v2078, %v2294
    %2296 = vmatprep.mubr.f32.mxu0 0.0
    %2297 = vmatmul.mubr.f32.gmra.mrb[0].mxu0 %v106
    %v2298 = vpop.f32.mrb[0].mxu0
    %v2299 = vadd.f32 %v2074, %v2298
    %v2300 = vpop.f32.mrb[0].mxu0
    %v2301 = vadd.f32 %v2078, %v2300
    %2302 = vmatprep.mubr.f32.mxu0 0.0
    %2303 = vmatmul.mubr.f32.gmra.mrb[0].mxu0 %v107
    %v2304 = vpop.f32.mrb[0].mxu0
    %v2305 = vadd.f32 %v2074, %v2304
    %v2306 = vpop.f32.mrb[0].mxu0
    %v2307 = vadd.f32 %v2078, %v2306
    %2308 = vdwg.mxu0
    %2309 = vst [vmem:[#allocation3] sm:$0xff] %v2150
    %2310 = vst [vmem:[#allocation3 + $0x8] sm:$0xff] %v2152
    %2311 = vst [vmem:[#allocation3 + $0x10] sm:$0xff] %v2263
    %2312 = vst [vmem:[#allocation3 + $0x18] sm:$0xff] %v2265
    %2313 = vst [vmem:[#allocation3 + $0x20] sm:$0xff] %v2156
    %2314 = vst [vmem:[#allocation3 + $0x28] sm:$0xff] %v2158
    %2315 = vst [vmem:[#allocation3 + $0x30] sm:$0xff] %v2269
    %2316 = vst [vmem:[#allocation3 + $0x38] sm:$0xff] %v2271
    %2317 = vst [vmem:[#allocation3 + $0x40] sm:$0xff] %v2162
    %2318 = vst [vmem:[#allocation3 + $0x48] sm:$0xff] %v2164
    %2319 = vst [vmem:[#allocation3 + $0x50] sm:$0xff] %v2275
    %2320 = vst [vmem:[#allocation3 + $0x58] sm:$0xff] %v2277
    %2321 = vst [vmem:[#allocation3 + $0x60] sm:$0xff] %v2168
    %2322 = vst [vmem:[#allocation3 + $0x68] sm:$0xff] %v2170
    %2323 = vst [vmem:[#allocation3 + $0x70] sm:$0xff] %v2281
    %2324 = vst [vmem:[#allocation3 + $0x78] sm:$0xff] %v2283
    %2325 = vst [vmem:[#allocation3 + $0x80] sm:$0xff] %v2174
    %2326 = vst [vmem:[#allocation3 + $0x88] sm:$0xff] %v2176
    %2327 = vst [vmem:[#allocation3 + $0x90] sm:$0xff] %v2287
    %2328 = vst [vmem:[#allocation3 + $0x98] sm:$0xff] %v2289
    %2329 = vst [vmem:[#allocation3 + $0xa0] sm:$0xff] %v2180
    %2330 = vst [vmem:[#allocation3 + $0xa8] sm:$0xff] %v2182
    %2331 = vst [vmem:[#allocation3 + $0xb0] sm:$0xff] %v2293
    %2332 = vst [vmem:[#allocation3 + $0xb8] sm:$0xff] %v2295
    %2333 = vst [vmem:[#allocation3 + $0xc0] sm:$0xff] %v2186
    %2334 = vst [vmem:[#allocation3 + $0xc8] sm:$0xff] %v2188
    %2335 = vst [vmem:[#allocation3 + $0xd0] sm:$0xff] %v2299
    %2336 = vst [vmem:[#allocation3 + $0xd8] sm:$0xff] %v2301
    %2337 = vst [vmem:[#allocation3 + $0xe0] sm:$0xff] %v2192
    %2338 = vst [vmem:[#allocation3 + $0xe8] sm:$0xff] %v2194
    %2339 = vst [vmem:[#allocation3 + $0xf0] sm:$0xff] %v2305
    %2340 = vst [vmem:[#allocation3 + $0xf8] sm:$0xff] %v2307
    %v2341 = vld [vmem:[%s1753] sm:$0xff]
    %v2342 = vld [vmem:[%s1753 + $0x8] sm:$0xff]
    %v2343 = vld [vmem:[%s1753 + $0x10] sm:$0xff]
    %v2344 = vld [vmem:[%s1753 + $0x18] sm:$0xff]
    %2345 = vmatprep.subr.mxu0 %v1997
    %2346 = vmatpush1.msra.mxu0 %v1996
    %2347 = vmatprep.subr.mxu0 %v2001
    %2348 = vmatpush1.msra.mxu0 %v2000
    %2349 = vmatprep.subr.mxu0 %v2005
    %2350 = vmatpush1.msra.mxu0 %v2004
    %2351 = vmatprep.subr.mxu0 %v2009
    %2352 = vmatpush1.msra.mxu0 %v2008
    %2353 = vmatprep.subr.mxu0 %v2013
    %2354 = vmatpush1.msra.mxu0 %v2012
    %2355 = vmatprep.subr.mxu0 %v2017
    %2356 = vmatpush1.msra.mxu0 %v2016
    %2357 = vmatprep.subr.mxu0 %v2021
    %2358 = vmatpush1.msra.mxu0 %v2020
    %2359 = vmatprep.subr.mxu0 %v2025
    %2360 = vmatpush1.msra.mxu0 %v2024
    %2361 = vmatprep.subr.mxu0 %v2029
    %2362 = vmatpush1.msra.mxu0 %v2028
    %2363 = vmatprep.subr.mxu0 %v2033
    %2364 = vmatpush1.msra.mxu0 %v2032
    %2365 = vmatprep.subr.mxu0 %v2037
    %2366 = vmatpush1.msra.mxu0 %v2036
    %2367 = vmatprep.subr.mxu0 %v2041
    %2368 = vmatpush1.msra.mxu0 %v2040
    %2369 = vmatprep.subr.mxu0 %v2045
    %2370 = vmatpush1.msra.mxu0 %v2044
    %2371 = vmatprep.subr.mxu0 %v2049
    %2372 = vmatpush1.msra.mxu0 %v2048
    %2373 = vmatprep.subr.mxu0 %v2053
    %2374 = vmatpush1.msra.mxu0 %v2052
    %2375 = vmatprep.subr.mxu0 %v2057
    %2376 = vmatpush1.msra.mxu0 %v2056
    %2377 = vmatprep.subr.mxu0 0.0
    %2378 = vmatpush1.msra.mxu0 0.0
    %2379 = vmatprep.subr.mxu0 0.0
    %2380 = vmatpush1.msra.mxu0 0.0
    %2381 = vmatprep.subr.mxu0 0.0
    %2382 = vmatpush1.msra.mxu0 0.0
    %2383 = vmatprep.subr.mxu0 0.0
    %2384 = vmatpush1.msra.mxu0 0.0
    %2385 = vmatprep.subr.mxu0 0.0
    %2386 = vmatpush1.msra.mxu0 0.0
    %2387 = vmatprep.subr.mxu0 0.0
    %2388 = vmatpush1.msra.mxu0 0.0
    %2389 = vmatprep.subr.mxu0 0.0
    %2390 = vmatpush1.msra.mxu0 0.0
    %2391 = vmatprep.subr.mxu0 0.0
    %2392 = vmatpush1.msra.mxu0 0.0
    %2393 = vmatprep.subr.mxu0 0.0
    %2394 = vmatpush1.msra.mxu0 0.0
    %2395 = vmatprep.subr.mxu0 0.0
    %2396 = vmatpush1.msra.mxu0 0.0
    %2397 = vmatprep.subr.mxu0 0.0
    %2398 = vmatpush1.msra.mxu0 0.0
    %2399 = vmatprep.subr.mxu0 0.0
    %2400 = vmatpush1.msra.mxu0 0.0
    %2401 = vmatprep.subr.mxu0 0.0
    %2402 = vmatpush1.msra.mxu0 0.0
    %2403 = vmatprep.subr.mxu0 0.0
    %2404 = vmatpush1.msra.mxu0 0.0
    %2405 = vmatprep.subr.mxu0 0.0
    %2406 = vmatpush1.msra.mxu0 0.0
    %2407 = vmatprep.subr.mxu0 0.0
    %2408 = vmatpush1.msra.mxu0 0.0
    %2409 = vmatprep.mubr.f32.mxu0 0.0
    %2410 = vmatmul.mubr.f32.gmra.mrb[0].mxu0 0.0
    %v2411 = vpop.f32.mrb[0].mxu0
    %v2412 = vadd.f32 0.0, %v2411
    %v2413 = vpop.f32.mrb[0].mxu0
    %v2414 = vadd.f32 0.0, %v2413
    %2415 = vdwg.mxu0
    %2416 = vmatprep.subr.mxu0 %v1999
    %2417 = vmatpush1.msra.mxu0 %v1998
    %2418 = vmatprep.subr.mxu0 %v2003
    %2419 = vmatpush1.msra.mxu0 %v2002
    %2420 = vmatprep.subr.mxu0 %v2007
    %2421 = vmatpush1.msra.mxu0 %v2006
    %2422 = vmatprep.subr.mxu0 %v2011
    %2423 = vmatpush1.msra.mxu0 %v2010
    %2424 = vmatprep.subr.mxu0 %v2015
    %2425 = vmatpush1.msra.mxu0 %v2014
    %2426 = vmatprep.subr.mxu0 %v2019
    %2427 = vmatpush1.msra.mxu0 %v2018
    %2428 = vmatprep.subr.mxu0 %v2023
    %2429 = vmatpush1.msra.mxu0 %v2022
    %2430 = vmatprep.subr.mxu0 %v2027
    %2431 = vmatpush1.msra.mxu0 %v2026
    %2432 = vmatprep.subr.mxu0 %v2031
    %2433 = vmatpush1.msra.mxu0 %v2030
    %2434 = vmatprep.subr.mxu0 %v2035
    %2435 = vmatpush1.msra.mxu0 %v2034
    %2436 = vmatprep.subr.mxu0 %v2039
    %2437 = vmatpush1.msra.mxu0 %v2038
    %2438 = vmatprep.subr.mxu0 %v2043
    %2439 = vmatpush1.msra.mxu0 %v2042
    %2440 = vmatprep.subr.mxu0 %v2047
    %2441 = vmatpush1.msra.mxu0 %v2046
    %2442 = vmatprep.subr.mxu0 %v2051
    %2443 = vmatpush1.msra.mxu0 %v2050
    %2444 = vmatprep.subr.mxu0 %v2055
    %2445 = vmatpush1.msra.mxu0 %v2054
    %2446 = vmatprep.subr.mxu0 %v2059
    %2447 = vmatpush1.msra.mxu0 %v2058
    %2448 = vmatprep.subr.mxu0 0.0
    %2449 = vmatpush1.msra.mxu0 0.0
    %2450 = vmatprep.subr.mxu0 0.0
    %2451 = vmatpush1.msra.mxu0 0.0
    %2452 = vmatprep.subr.mxu0 0.0
    %2453 = vmatpush1.msra.mxu0 0.0
    %2454 = vmatprep.subr.mxu0 0.0
    %2455 = vmatpush1.msra.mxu0 0.0
    %2456 = vmatprep.subr.mxu0 0.0
    %2457 = vmatpush1.msra.mxu0 0.0
    %2458 = vmatprep.subr.mxu0 0.0
    %2459 = vmatpush1.msra.mxu0 0.0
    %2460 = vmatprep.subr.mxu0 0.0
    %2461 = vmatpush1.msra.mxu0 0.0
    %2462 = vmatprep.subr.mxu0 0.0
    %2463 = vmatpush1.msra.mxu0 0.0
    %2464 = vmatprep.subr.mxu0 0.0
    %2465 = vmatpush1.msra.mxu0 0.0
    %2466 = vmatprep.subr.mxu0 0.0
    %2467 = vmatpush1.msra.mxu0 0.0
    %2468 = vmatprep.subr.mxu0 0.0
    %2469 = vmatpush1.msra.mxu0 0.0
    %2470 = vmatprep.subr.mxu0 0.0
    %2471 = vmatpush1.msra.mxu0 0.0
    %2472 = vmatprep.subr.mxu0 0.0
    %2473 = vmatpush1.msra.mxu0 0.0
    %2474 = vmatprep.subr.mxu0 0.0
    %2475 = vmatpush1.msra.mxu0 0.0
    %2476 = vmatprep.subr.mxu0 0.0
    %2477 = vmatpush1.msra.mxu0 0.0
    %2478 = vmatprep.subr.mxu0 0.0
    %2479 = vmatpush1.msra.mxu0 0.0
    %2480 = vmatprep.mubr.f32.mxu0 0.0
    %2481 = vmatmul.mubr.f32.gmra.mrb[0].mxu0 0.0
    %v2482 = vpop.f32.mrb[0].mxu0
    %v2483 = vadd.f32 0.0, %v2482
    %v2484 = vpop.f32.mrb[0].mxu0
    %v2485 = vadd.f32 0.0, %v2484
    %2486 = vdwg.mxu0
    %v2487 = vadd.f32 %v2341, %v2412
    %v2488 = vadd.f32 %v2342, %v2414
    %v2489 = vadd.f32 %v2343, %v2483
    %v2490 = vadd.f32 %v2344, %v2485
    %v2491 = vxor.u32 %v2487, 2147483648
    %v2492 = vmul.f32 %v2491, 1.442695
    %v2493 = vpow.pop %v2492
    %v2494 = vadd.f32 %v2493, 1.0
    %v2495 = vrcp.pop %v2494
    %v2496 = vmul.f32 1.0, %v2495
    %v2497 = vxor.u32 %v2488, 2147483648
    %v2498 = vmul.f32 %v2497, 1.442695
    %v2499 = vpow.pop %v2498
    %v2500 = vadd.f32 %v2499, 1.0
    %v2501 = vrcp.pop %v2500
    %v2502 = vmul.f32 1.0, %v2501
    %v2503 = vtanh.pop %v2489
    %v2504 = vxor.u32 %v2490, 2147483648
    %v2505 = vmul.f32 %v2504, 1.442695
    %v2506 = vpow.pop %v2505
    %v2507 = vadd.f32 %v2506, 1.0
    %v2508 = vrcp.pop %v2507
    %v2509 = vmul.f32 1.0, %v2508
    %v2510 = vmul.f32 %v2502, 0.0
    %v2511 = vmul.f32 %v2496, %v2503
    %v2512 = vadd.f32 %v2510, %v2511
    %v2513 = vtanh.pop %v2512
    %v2514 = vmul.f32 %v2509, %v2513
    %2515 = vst [vmem:[%s1928 + $0x8] sm:$0xff] %v2514
    %v2516 = vld [vmem:[%s1576] sm:$0xff]
    %v2517 = vld [vmem:[%s1576 + $0x8] sm:$0xff]
    %v2518 = vld [vmem:[%s1576 + $0x10] sm:$0xff]
    %v2519 = vld [vmem:[%s1576 + $0x18] sm:$0xff]
    %2520 = vmatprep.subr.mxu0 %v1997
    %2521 = vmatpush1.msra.mxu0 %v1996
    %2522 = vmatprep.subr.mxu0 %v2001
    %2523 = vmatpush1.msra.mxu0 %v2000
    %2524 = vmatprep.subr.mxu0 %v2005
    %2525 = vmatpush1.msra.mxu0 %v2004
    %2526 = vmatprep.subr.mxu0 %v2009
    %2527 = vmatpush1.msra.mxu0 %v2008
    %2528 = vmatprep.subr.mxu0 %v2013
    %2529 = vmatpush1.msra.mxu0 %v2012
    %2530 = vmatprep.subr.mxu0 %v2017
    %2531 = vmatpush1.msra.mxu0 %v2016
    %2532 = vmatprep.subr.mxu0 %v2021
    %2533 = vmatpush1.msra.mxu0 %v2020
    %2534 = vmatprep.subr.mxu0 %v2025
    %2535 = vmatpush1.msra.mxu0 %v2024
    %2536 = vmatprep.subr.mxu0 %v2029
    %2537 = vmatpush1.msra.mxu0 %v2028
    %2538 = vmatprep.subr.mxu0 %v2033
    %2539 = vmatpush1.msra.mxu0 %v2032
    %2540 = vmatprep.subr.mxu0 %v2037
    %2541 = vmatpush1.msra.mxu0 %v2036
    %2542 = vmatprep.subr.mxu0 %v2041
    %2543 = vmatpush1.msra.mxu0 %v2040
    %2544 = vmatprep.subr.mxu0 %v2045
    %2545 = vmatpush1.msra.mxu0 %v2044
    %2546 = vmatprep.subr.mxu0 %v2049
    %2547 = vmatpush1.msra.mxu0 %v2048
    %2548 = vmatprep.subr.mxu0 %v2053
    %2549 = vmatpush1.msra.mxu0 %v2052
    %2550 = vmatprep.subr.mxu0 %v2057
    %2551 = vmatpush1.msra.mxu0 %v2056
    %2552 = vmatprep.subr.mxu0 0.0
    %2553 = vmatpush1.msra.mxu0 0.0
    %2554 = vmatprep.subr.mxu0 0.0
    %2555 = vmatpush1.msra.mxu0 0.0
    %2556 = vmatprep.subr.mxu0 0.0
    %2557 = vmatpush1.msra.mxu0 0.0
    %2558 = vmatprep.subr.mxu0 0.0
    %2559 = vmatpush1.msra.mxu0 0.0
    %2560 = vmatprep.subr.mxu0 0.0
    %2561 = vmatpush1.msra.mxu0 0.0
    %2562 = vmatprep.subr.mxu0 0.0
    %2563 = vmatpush1.msra.mxu0 0.0
    %2564 = vmatprep.subr.mxu0 0.0
    %2565 = vmatpush1.msra.mxu0 0.0
    %2566 = vmatprep.subr.mxu0 0.0
    %2567 = vmatpush1.msra.mxu0 0.0
    %2568 = vmatprep.subr.mxu0 0.0
    %2569 = vmatpush1.msra.mxu0 0.0
    %2570 = vmatprep.subr.mxu0 0.0
    %2571 = vmatpush1.msra.mxu0 0.0
    %2572 = vmatprep.subr.mxu0 0.0
    %2573 = vmatpush1.msra.mxu0 0.0
    %2574 = vmatprep.subr.mxu0 0.0
    %2575 = vmatpush1.msra.mxu0 0.0
    %2576 = vmatprep.subr.mxu0 0.0
    %2577 = vmatpush1.msra.mxu0 0.0
    %2578 = vmatprep.subr.mxu0 0.0
    %2579 = vmatpush1.msra.mxu0 0.0
    %2580 = vmatprep.subr.mxu0 0.0
    %2581 = vmatpush1.msra.mxu0 0.0
    %2582 = vmatprep.subr.mxu0 0.0
    %2583 = vmatpush1.msra.mxu0 0.0
    %2584 = vmatprep.mubr.f32.mxu0 0.0
    %2585 = vmatmul.mubr.f32.gmra.mrb[0].mxu0 %v2514
    %v2586 = vpop.f32.mrb[0].mxu0
    %v2587 = vadd.f32 0.0, %v2586
    %v2588 = vpop.f32.mrb[0].mxu0
    %v2589 = vadd.f32 0.0, %v2588
    %2590 = vdwg.mxu0
    %2591 = vmatprep.subr.mxu0 %v1999
    %2592 = vmatpush1.msra.mxu0 %v1998
    %2593 = vmatprep.subr.mxu0 %v2003
    %2594 = vmatpush1.msra.mxu0 %v2002
    %2595 = vmatprep.subr.mxu0 %v2007
    %2596 = vmatpush1.msra.mxu0 %v2006
    %2597 = vmatprep.subr.mxu0 %v2011
    %2598 = vmatpush1.msra.mxu0 %v2010
    %2599 = vmatprep.subr.mxu0 %v2015
    %2600 = vmatpush1.msra.mxu0 %v2014
    %2601 = vmatprep.subr.mxu0 %v2019
    %2602 = vmatpush1.msra.mxu0 %v2018
    %2603 = vmatprep.subr.mxu0 %v2023
    %2604 = vmatpush1.msra.mxu0 %v2022
    %2605 = vmatprep.subr.mxu0 %v2027
    %2606 = vmatpush1.msra.mxu0 %v2026
    %2607 = vmatprep.subr.mxu0 %v2031
    %2608 = vmatpush1.msra.mxu0 %v2030
    %2609 = vmatprep.subr.mxu0 %v2035
    %2610 = vmatpush1.msra.mxu0 %v2034
    %2611 = vmatprep.subr.mxu0 %v2039
    %2612 = vmatpush1.msra.mxu0 %v2038
    %2613 = vmatprep.subr.mxu0 %v2043
    %2614 = vmatpush1.msra.mxu0 %v2042
    %2615 = vmatprep.subr.mxu0 %v2047
    %2616 = vmatpush1.msra.mxu0 %v2046
    %2617 = vmatprep.subr.mxu0 %v2051
    %2618 = vmatpush1.msra.mxu0 %v2050
    %2619 = vmatprep.subr.mxu0 %v2055
    %2620 = vmatpush1.msra.mxu0 %v2054
    %2621 = vmatprep.subr.mxu0 %v2059
    %2622 = vmatpush1.msra.mxu0 %v2058
    %2623 = vmatprep.subr.mxu0 0.0
    %2624 = vmatpush1.msra.mxu0 0.0
    %2625 = vmatprep.subr.mxu0 0.0
    %2626 = vmatpush1.msra.mxu0 0.0
    %2627 = vmatprep.subr.mxu0 0.0
    %2628 = vmatpush1.msra.mxu0 0.0
    %2629 = vmatprep.subr.mxu0 0.0
    %2630 = vmatpush1.msra.mxu0 0.0
    %2631 = vmatprep.subr.mxu0 0.0
    %2632 = vmatpush1.msra.mxu0 0.0
    %2633 = vmatprep.subr.mxu0 0.0
    %2634 = vmatpush1.msra.mxu0 0.0
    %2635 = vmatprep.subr.mxu0 0.0
    %2636 = vmatpush1.msra.mxu0 0.0
    %2637 = vmatprep.subr.mxu0 0.0
    %2638 = vmatpush1.msra.mxu0 0.0
    %2639 = vmatprep.subr.mxu0 0.0
    %2640 = vmatpush1.msra.mxu0 0.0
    %2641 = vmatprep.subr.mxu0 0.0
    %2642 = vmatpush1.msra.mxu0 0.0
    %2643 = vmatprep.subr.mxu0 0.0
    %2644 = vmatpush1.msra.mxu0 0.0
    %2645 = vmatprep.subr.mxu0 0.0
    %2646 = vmatpush1.msra.mxu0 0.0
    %2647 = vmatprep.subr.mxu0 0.0
    %2648 = vmatpush1.msra.mxu0 0.0
    %2649 = vmatprep.subr.mxu0 0.0
    %2650 = vmatpush1.msra.mxu0 0.0
    %2651 = vmatprep.subr.mxu0 0.0
    %2652 = vmatpush1.msra.mxu0 0.0
    %2653 = vmatprep.subr.mxu0 0.0
    %2654 = vmatpush1.msra.mxu0 0.0
    %2655 = vmatprep.mubr.f32.mxu0 0.0
    %2656 = vmatmul.mubr.f32.gmra.mrb[0].mxu0 %v2514
    %v2657 = vpop.f32.mrb[0].mxu0
    %v2658 = vadd.f32 0.0, %v2657
    %v2659 = vpop.f32.mrb[0].mxu0
    %v2660 = vadd.f32 0.0, %v2659
    %2661 = vdwg.mxu0
    %v2662 = vadd.f32 %v2516, %v2587
    %v2663 = vadd.f32 %v2517, %v2589
    %v2664 = vadd.f32 %v2518, %v2658
    %v2665 = vadd.f32 %v2519, %v2660
    %v2666 = vxor.u32 %v2662, 2147483648
    %v2667 = vmul.f32 %v2666, 1.442695
    %v2668 = vpow.pop %v2667
    %v2669 = vadd.f32 %v2668, 1.0
    %v2670 = vrcp.pop %v2669
    %v2671 = vmul.f32 1.0, %v2670
    %v2672 = vxor.u32 %v2663, 2147483648
    %v2673 = vmul.f32 %v2672, 1.442695
    %v2674 = vpow.pop %v2673
    %v2675 = vadd.f32 %v2674, 1.0
    %v2676 = vrcp.pop %v2675
    %v2677 = vmul.f32 1.0, %v2676
    %v2678 = vtanh.pop %v2664
    %v2679 = vxor.u32 %v2665, 2147483648
    %v2680 = vmul.f32 %v2679, 1.442695
    %v2681 = vpow.pop %v2680
    %v2682 = vadd.f32 %v2681, 1.0
    %v2683 = vrcp.pop %v2682
    %v2684 = vmul.f32 1.0, %v2683
    %v2685 = vmul.f32 %v2677, %v2512
    %v2686 = vmul.f32 %v2671, %v2678
    %v2687 = vadd.f32 %v2685, %v2686
    %v2688 = vtanh.pop %v2687
    %v2689 = vmul.f32 %v2684, %v2688
    %2690 = vst [vmem:[%s1751 + $0x8] sm:$0xff] %v2689
    %v2691 = vld [vmem:[%s1399] sm:$0xff]
    %v2692 = vld [vmem:[%s1399 + $0x8] sm:$0xff]
    %v2693 = vld [vmem:[%s1399 + $0x10] sm:$0xff]
    %v2694 = vld [vmem:[%s1399 + $0x18] sm:$0xff]
    %2695 = vmatprep.subr.mxu0 %v1997
    %2696 = vmatpush1.msra.mxu0 %v1996
    %2697 = vmatprep.subr.mxu0 %v2001
    %2698 = vmatpush1.msra.mxu0 %v2000
    %2699 = vmatprep.subr.mxu0 %v2005
    %2700 = vmatpush1.msra.mxu0 %v2004
    %2701 = vmatprep.subr.mxu0 %v2009
    %2702 = vmatpush1.msra.mxu0 %v2008
    %2703 = vmatprep.subr.mxu0 %v2013
    %2704 = vmatpush1.msra.mxu0 %v2012
    %2705 = vmatprep.subr.mxu0 %v2017
    %2706 = vmatpush1.msra.mxu0 %v2016
    %2707 = vmatprep.subr.mxu0 %v2021
    %2708 = vmatpush1.msra.mxu0 %v2020
    %2709 = vmatprep.subr.mxu0 %v2025
    %2710 = vmatpush1.msra.mxu0 %v2024
    %2711 = vmatprep.subr.mxu0 %v2029
    %2712 = vmatpush1.msra.mxu0 %v2028
    %2713 = vmatprep.subr.mxu0 %v2033
    %2714 = vmatpush1.msra.mxu0 %v2032
    %2715 = vmatprep.subr.mxu0 %v2037
    %2716 = vmatpush1.msra.mxu0 %v2036
    %2717 = vmatprep.subr.mxu0 %v2041
    %2718 = vmatpush1.msra.mxu0 %v2040
    %2719 = vmatprep.subr.mxu0 %v2045
    %2720 = vmatpush1.msra.mxu0 %v2044
    %2721 = vmatprep.subr.mxu0 %v2049
    %2722 = vmatpush1.msra.mxu0 %v2048
    %2723 = vmatprep.subr.mxu0 %v2053
    %2724 = vmatpush1.msra.mxu0 %v2052
    %2725 = vmatprep.subr.mxu0 %v2057
    %2726 = vmatpush1.msra.mxu0 %v2056
    %2727 = vmatprep.subr.mxu0 0.0
    %2728 = vmatpush1.msra.mxu0 0.0
    %2729 = vmatprep.subr.mxu0 0.0
    %2730 = vmatpush1.msra.mxu0 0.0
    %2731 = vmatprep.subr.mxu0 0.0
    %2732 = vmatpush1.msra.mxu0 0.0
    %2733 = vmatprep.subr.mxu0 0.0
    %2734 = vmatpush1.msra.mxu0 0.0
    %2735 = vmatprep.subr.mxu0 0.0
    %2736 = vmatpush1.msra.mxu0 0.0
    %2737 = vmatprep.subr.mxu0 0.0
    %2738 = vmatpush1.msra.mxu0 0.0
    %2739 = vmatprep.subr.mxu0 0.0
    %2740 = vmatpush1.msra.mxu0 0.0
    %2741 = vmatprep.subr.mxu0 0.0
    %2742 = vmatpush1.msra.mxu0 0.0
    %2743 = vmatprep.subr.mxu0 0.0
    %2744 = vmatpush1.msra.mxu0 0.0
    %2745 = vmatprep.subr.mxu0 0.0
    %2746 = vmatpush1.msra.mxu0 0.0
    %2747 = vmatprep.subr.mxu0 0.0
    %2748 = vmatpush1.msra.mxu0 0.0
    %2749 = vmatprep.subr.mxu0 0.0
    %2750 = vmatpush1.msra.mxu0 0.0
    %2751 = vmatprep.subr.mxu0 0.0
    %2752 = vmatpush1.msra.mxu0 0.0
    %2753 = vmatprep.subr.mxu0 0.0
    %2754 = vmatpush1.msra.mxu0 0.0
    %2755 = vmatprep.subr.mxu0 0.0
    %2756 = vmatpush1.msra.mxu0 0.0
    %2757 = vmatprep.subr.mxu0 0.0
    %2758 = vmatpush1.msra.mxu0 0.0
    %2759 = vmatprep.mubr.f32.mxu0 0.0
    %2760 = vmatmul.mubr.f32.gmra.mrb[0].mxu0 %v2689
    %v2761 = vpop.f32.mrb[0].mxu0
    %v2762 = vadd.f32 0.0, %v2761
    %v2763 = vpop.f32.mrb[0].mxu0
    %v2764 = vadd.f32 0.0, %v2763
    %2765 = vdwg.mxu0
    %2766 = vmatprep.subr.mxu0 %v1999
    %2767 = vmatpush1.msra.mxu0 %v1998
    %2768 = vmatprep.subr.mxu0 %v2003
    %2769 = vmatpush1.msra.mxu0 %v2002
    %2770 = vmatprep.subr.mxu0 %v2007
    %2771 = vmatpush1.msra.mxu0 %v2006
    %2772 = vmatprep.subr.mxu0 %v2011
    %2773 = vmatpush1.msra.mxu0 %v2010
    %2774 = vmatprep.subr.mxu0 %v2015
    %2775 = vmatpush1.msra.mxu0 %v2014
    %2776 = vmatprep.subr.mxu0 %v2019
    %2777 = vmatpush1.msra.mxu0 %v2018
    %2778 = vmatprep.subr.mxu0 %v2023
    %2779 = vmatpush1.msra.mxu0 %v2022
    %2780 = vmatprep.subr.mxu0 %v2027
    %2781 = vmatpush1.msra.mxu0 %v2026
    %2782 = vmatprep.subr.mxu0 %v2031
    %2783 = vmatpush1.msra.mxu0 %v2030
    %2784 = vmatprep.subr.mxu0 %v2035
    %2785 = vmatpush1.msra.mxu0 %v2034
    %2786 = vmatprep.subr.mxu0 %v2039
    %2787 = vmatpush1.msra.mxu0 %v2038
    %2788 = vmatprep.subr.mxu0 %v2043
    %2789 = vmatpush1.msra.mxu0 %v2042
    %2790 = vmatprep.subr.mxu0 %v2047
    %2791 = vmatpush1.msra.mxu0 %v2046
    %2792 = vmatprep.subr.mxu0 %v2051
    %2793 = vmatpush1.msra.mxu0 %v2050
    %2794 = vmatprep.subr.mxu0 %v2055
    %2795 = vmatpush1.msra.mxu0 %v2054
    %2796 = vmatprep.subr.mxu0 %v2059
    %2797 = vmatpush1.msra.mxu0 %v2058
    %2798 = vmatprep.subr.mxu0 0.0
    %2799 = vmatpush1.msra.mxu0 0.0
    %2800 = vmatprep.subr.mxu0 0.0
    %2801 = vmatpush1.msra.mxu0 0.0
    %2802 = vmatprep.subr.mxu0 0.0
    %2803 = vmatpush1.msra.mxu0 0.0
    %2804 = vmatprep.subr.mxu0 0.0
    %2805 = vmatpush1.msra.mxu0 0.0
    %2806 = vmatprep.subr.mxu0 0.0
    %2807 = vmatpush1.msra.mxu0 0.0
    %2808 = vmatprep.subr.mxu0 0.0
    %2809 = vmatpush1.msra.mxu0 0.0
    %2810 = vmatprep.subr.mxu0 0.0
    %2811 = vmatpush1.msra.mxu0 0.0
    %2812 = vmatprep.subr.mxu0 0.0
    %2813 = vmatpush1.msra.mxu0 0.0
    %2814 = vmatprep.subr.mxu0 0.0
    %2815 = vmatpush1.msra.mxu0 0.0
    %2816 = vmatprep.subr.mxu0 0.0
    %2817 = vmatpush1.msra.mxu0 0.0
    %2818 = vmatprep.subr.mxu0 0.0
    %2819 = vmatpush1.msra.mxu0 0.0
    %2820 = vmatprep.subr.mxu0 0.0
    %2821 = vmatpush1.msra.mxu0 0.0
    %2822 = vmatprep.subr.mxu0 0.0
    %2823 = vmatpush1.msra.mxu0 0.0
    %2824 = vmatprep.subr.mxu0 0.0
    %2825 = vmatpush1.msra.mxu0 0.0
    %2826 = vmatprep.subr.mxu0 0.0
    %2827 = vmatpush1.msra.mxu0 0.0
    %2828 = vmatprep.subr.mxu0 0.0
    %2829 = vmatpush1.msra.mxu0 0.0
    %2830 = vmatprep.mubr.f32.mxu0 0.0
    %2831 = vmatmul.mubr.f32.gmra.mrb[0].mxu0 %v2689
    %v2832 = vpop.f32.mrb[0].mxu0
    %v2833 = vadd.f32 0.0, %v2832
    %v2834 = vpop.f32.mrb[0].mxu0
    %v2835 = vadd.f32 0.0, %v2834
    %2836 = vdwg.mxu0
    %v2837 = vadd.f32 %v2691, %v2762
    %v2838 = vadd.f32 %v2692, %v2764
    %v2839 = vadd.f32 %v2693, %v2833
    %v2840 = vadd.f32 %v2694, %v2835
    %v2841 = vxor.u32 %v2837, 2147483648
    %v2842 = vmul.f32 %v2841, 1.442695
    %v2843 = vpow.pop %v2842
    %v2844 = vadd.f32 %v2843, 1.0
    %v2845 = vrcp.pop %v2844
    %v2846 = vmul.f32 1.0, %v2845
    %v2847 = vxor.u32 %v2838, 2147483648
    %v2848 = vmul.f32 %v2847, 1.442695
    %v2849 = vpow.pop %v2848
    %v2850 = vadd.f32 %v2849, 1.0
    %v2851 = vrcp.pop %v2850
    %v2852 = vmul.f32 1.0, %v2851
    %v2853 = vtanh.pop %v2839
    %v2854 = vxor.u32 %v2840, 2147483648
    %v2855 = vmul.f32 %v2854, 1.442695
    %v2856 = vpow.pop %v2855
    %v2857 = vadd.f32 %v2856, 1.0
    %v2858 = vrcp.pop %v2857
    %v2859 = vmul.f32 1.0, %v2858
    %v2860 = vmul.f32 %v2852, %v2687
    %v2861 = vmul.f32 %v2846, %v2853
    %v2862 = vadd.f32 %v2860, %v2861
    %v2863 = vtanh.pop %v2862
    %v2864 = vmul.f32 %v2859, %v2863
    %2865 = vst [vmem:[%s1574 + $0x8] sm:$0xff] %v2864
    %v2866 = vld [vmem:[%s1222] sm:$0xff]
    %v2867 = vld [vmem:[%s1222 + $0x8] sm:$0xff]
    %v2868 = vld [vmem:[%s1222 + $0x10] sm:$0xff]
    %v2869 = vld [vmem:[%s1222 + $0x18] sm:$0xff]
    %2870 = vmatprep.subr.mxu0 %v1997
    %2871 = vmatpush1.msra.mxu0 %v1996
    %2872 = vmatprep.subr.mxu0 %v2001
    %2873 = vmatpush1.msra.mxu0 %v2000
    %2874 = vmatprep.subr.mxu0 %v2005
    %2875 = vmatpush1.msra.mxu0 %v2004
    %2876 = vmatprep.subr.mxu0 %v2009
    %2877 = vmatpush1.msra.mxu0 %v2008
    %2878 = vmatprep.subr.mxu0 %v2013
    %2879 = vmatpush1.msra.mxu0 %v2012
    %2880 = vmatprep.subr.mxu0 %v2017
    %2881 = vmatpush1.msra.mxu0 %v2016
    %2882 = vmatprep.subr.mxu0 %v2021
    %2883 = vmatpush1.msra.mxu0 %v2020
    %2884 = vmatprep.subr.mxu0 %v2025
    %2885 = vmatpush1.msra.mxu0 %v2024
    %2886 = vmatprep.subr.mxu0 %v2029
    %2887 = vmatpush1.msra.mxu0 %v2028
    %2888 = vmatprep.subr.mxu0 %v2033
    %2889 = vmatpush1.msra.mxu0 %v2032
    %2890 = vmatprep.subr.mxu0 %v2037
    %2891 = vmatpush1.msra.mxu0 %v2036
    %2892 = vmatprep.subr.mxu0 %v2041
    %2893 = vmatpush1.msra.mxu0 %v2040
    %2894 = vmatprep.subr.mxu0 %v2045
    %2895 = vmatpush1.msra.mxu0 %v2044
    %2896 = vmatprep.subr.mxu0 %v2049
    %2897 = vmatpush1.msra.mxu0 %v2048
    %2898 = vmatprep.subr.mxu0 %v2053
    %2899 = vmatpush1.msra.mxu0 %v2052
    %2900 = vmatprep.subr.mxu0 %v2057
    %2901 = vmatpush1.msra.mxu0 %v2056
    %2902 = vmatprep.subr.mxu0 0.0
    %2903 = vmatpush1.msra.mxu0 0.0
    %2904 = vmatprep.subr.mxu0 0.0
    %2905 = vmatpush1.msra.mxu0 0.0
    %2906 = vmatprep.subr.mxu0 0.0
    %2907 = vmatpush1.msra.mxu0 0.0
    %2908 = vmatprep.subr.mxu0 0.0
    %2909 = vmatpush1.msra.mxu0 0.0
    %2910 = vmatprep.subr.mxu0 0.0
    %2911 = vmatpush1.msra.mxu0 0.0
    %2912 = vmatprep.subr.mxu0 0.0
    %2913 = vmatpush1.msra.mxu0 0.0
    %2914 = vmatprep.subr.mxu0 0.0
    %2915 = vmatpush1.msra.mxu0 0.0
    %2916 = vmatprep.subr.mxu0 0.0
    %2917 = vmatpush1.msra.mxu0 0.0
    %2918 = vmatprep.subr.mxu0 0.0
    %2919 = vmatpush1.msra.mxu0 0.0
    %2920 = vmatprep.subr.mxu0 0.0
    %2921 = vmatpush1.msra.mxu0 0.0
    %2922 = vmatprep.subr.mxu0 0.0
    %2923 = vmatpush1.msra.mxu0 0.0
    %2924 = vmatprep.subr.mxu0 0.0
    %2925 = vmatpush1.msra.mxu0 0.0
    %2926 = vmatprep.subr.mxu0 0.0
    %2927 = vmatpush1.msra.mxu0 0.0
    %2928 = vmatprep.subr.mxu0 0.0
    %2929 = vmatpush1.msra.mxu0 0.0
    %2930 = vmatprep.subr.mxu0 0.0
    %2931 = vmatpush1.msra.mxu0 0.0
    %2932 = vmatprep.subr.mxu0 0.0
    %2933 = vmatpush1.msra.mxu0 0.0
    %2934 = vmatprep.mubr.f32.mxu0 0.0
    %2935 = vmatmul.mubr.f32.gmra.mrb[0].mxu0 %v2864
    %v2936 = vpop.f32.mrb[0].mxu0
    %v2937 = vadd.f32 0.0, %v2936
    %v2938 = vpop.f32.mrb[0].mxu0
    %v2939 = vadd.f32 0.0, %v2938
    %2940 = vdwg.mxu0
    %2941 = vmatprep.subr.mxu0 %v1999
    %2942 = vmatpush1.msra.mxu0 %v1998
    %2943 = vmatprep.subr.mxu0 %v2003
    %2944 = vmatpush1.msra.mxu0 %v2002
    %2945 = vmatprep.subr.mxu0 %v2007
    %2946 = vmatpush1.msra.mxu0 %v2006
    %2947 = vmatprep.subr.mxu0 %v2011
    %2948 = vmatpush1.msra.mxu0 %v2010
    %2949 = vmatprep.subr.mxu0 %v2015
    %2950 = vmatpush1.msra.mxu0 %v2014
    %2951 = vmatprep.subr.mxu0 %v2019
    %2952 = vmatpush1.msra.mxu0 %v2018
    %2953 = vmatprep.subr.mxu0 %v2023
    %2954 = vmatpush1.msra.mxu0 %v2022
    %2955 = vmatprep.subr.mxu0 %v2027
    %2956 = vmatpush1.msra.mxu0 %v2026
    %2957 = vmatprep.subr.mxu0 %v2031
    %2958 = vmatpush1.msra.mxu0 %v2030
    %2959 = vmatprep.subr.mxu0 %v2035
    %2960 = vmatpush1.msra.mxu0 %v2034
    %2961 = vmatprep.subr.mxu0 %v2039
    %2962 = vmatpush1.msra.mxu0 %v2038
    %2963 = vmatprep.subr.mxu0 %v2043
    %2964 = vmatpush1.msra.mxu0 %v2042
    %2965 = vmatprep.subr.mxu0 %v2047
    %2966 = vmatpush1.msra.mxu0 %v2046
    %2967 = vmatprep.subr.mxu0 %v2051
    %2968 = vmatpush1.msra.mxu0 %v2050
    %2969 = vmatprep.subr.mxu0 %v2055
    %2970 = vmatpush1.msra.mxu0 %v2054
    %2971 = vmatprep.subr.mxu0 %v2059
    %2972 = vmatpush1.msra.mxu0 %v2058
    %2973 = vmatprep.subr.mxu0 0.0
    %2974 = vmatpush1.msra.mxu0 0.0
    %2975 = vmatprep.subr.mxu0 0.0
    %2976 = vmatpush1.msra.mxu0 0.0
    %2977 = vmatprep.subr.mxu0 0.0
    %2978 = vmatpush1.msra.mxu0 0.0
    %2979 = vmatprep.subr.mxu0 0.0
    %2980 = vmatpush1.msra.mxu0 0.0
    %2981 = vmatprep.subr.mxu0 0.0
    %2982 = vmatpush1.msra.mxu0 0.0
    %2983 = vmatprep.subr.mxu0 0.0
    %2984 = vmatpush1.msra.mxu0 0.0
    %2985 = vmatprep.subr.mxu0 0.0
    %2986 = vmatpush1.msra.mxu0 0.0
    %2987 = vmatprep.subr.mxu0 0.0
    %2988 = vmatpush1.msra.mxu0 0.0
    %2989 = vmatprep.subr.mxu0 0.0
    %2990 = vmatpush1.msra.mxu0 0.0
    %2991 = vmatprep.subr.mxu0 0.0
    %2992 = vmatpush1.msra.mxu0 0.0
    %2993 = vmatprep.subr.mxu0 0.0
    %2994 = vmatpush1.msra.mxu0 0.0
    %2995 = vmatprep.subr.mxu0 0.0
    %2996 = vmatpush1.msra.mxu0 0.0
    %2997 = vmatprep.subr.mxu0 0.0
    %2998 = vmatpush1.msra.mxu0 0.0
    %2999 = vmatprep.subr.mxu0 0.0
    %3000 = vmatpush1.msra.mxu0 0.0
    %3001 = vmatprep.subr.mxu0 0.0
    %3002 = vmatpush1.msra.mxu0 0.0
    %3003 = vmatprep.subr.mxu0 0.0
    %3004 = vmatpush1.msra.mxu0 0.0
    %3005 = vmatprep.mubr.f32.mxu0 0.0
    %3006 = vmatmul.mubr.f32.gmra.mrb[0].mxu0 %v2864
    %v3007 = vpop.f32.mrb[0].mxu0
    %v3008 = vadd.f32 0.0, %v3007
    %v3009 = vpop.f32.mrb[0].mxu0
    %v3010 = vadd.f32 0.0, %v3009
    %3011 = vdwg.mxu0
    %v3012 = vadd.f32 %v2866, %v2937
    %v3013 = vadd.f32 %v2867, %v2939
    %v3014 = vadd.f32 %v2868, %v3008
    %v3015 = vadd.f32 %v2869, %v3010
    %v3016 = vxor.u32 %v3012, 2147483648
    %v3017 = vmul.f32 %v3016, 1.442695
    %v3018 = vpow.pop %v3017
    %v3019 = vadd.f32 %v3018, 1.0
    %v3020 = vrcp.pop %v3019
    %v3021 = vmul.f32 1.0, %v3020
    %v3022 = vxor.u32 %v3013, 2147483648
    %v3023 = vmul.f32 %v3022, 1.442695
    %v3024 = vpow.pop %v3023
    %v3025 = vadd.f32 %v3024, 1.0
    %v3026 = vrcp.pop %v3025
    %v3027 = vmul.f32 1.0, %v3026
    %v3028 = vtanh.pop %v3014
    %v3029 = vxor.u32 %v3015, 2147483648
    %v3030 = vmul.f32 %v3029, 1.442695
    %v3031 = vpow.pop %v3030
    %v3032 = vadd.f32 %v3031, 1.0
    %v3033 = vrcp.pop %v3032
    %v3034 = vmul.f32 1.0, %v3033
    %v3035 = vmul.f32 %v3027, %v2862
    %v3036 = vmul.f32 %v3021, %v3028
    %v3037 = vadd.f32 %v3035, %v3036
    %v3038 = vtanh.pop %v3037
    %v3039 = vmul.f32 %v3034, %v3038
    %3040 = vst [vmem:[%s1397 + $0x8] sm:$0xff] %v3039
    %v3041 = vld [vmem:[%s1045] sm:$0xff]
    %v3042 = vld [vmem:[%s1045 + $0x8] sm:$0xff]
    %v3043 = vld [vmem:[%s1045 + $0x10] sm:$0xff]
    %v3044 = vld [vmem:[%s1045 + $0x18] sm:$0xff]
    %3045 = vmatprep.subr.mxu0 %v1997
    %3046 = vmatpush1.msra.mxu0 %v1996
    %3047 = vmatprep.subr.mxu0 %v2001
    %3048 = vmatpush1.msra.mxu0 %v2000
    %3049 = vmatprep.subr.mxu0 %v2005
    %3050 = vmatpush1.msra.mxu0 %v2004
    %3051 = vmatprep.subr.mxu0 %v2009
    %3052 = vmatpush1.msra.mxu0 %v2008
    %3053 = vmatprep.subr.mxu0 %v2013
    %3054 = vmatpush1.msra.mxu0 %v2012
    %3055 = vmatprep.subr.mxu0 %v2017
    %3056 = vmatpush1.msra.mxu0 %v2016
    %3057 = vmatprep.subr.mxu0 %v2021
    %3058 = vmatpush1.msra.mxu0 %v2020
    %3059 = vmatprep.subr.mxu0 %v2025
    %3060 = vmatpush1.msra.mxu0 %v2024
    %3061 = vmatprep.subr.mxu0 %v2029
    %3062 = vmatpush1.msra.mxu0 %v2028
    %3063 = vmatprep.subr.mxu0 %v2033
    %3064 = vmatpush1.msra.mxu0 %v2032
    %3065 = vmatprep.subr.mxu0 %v2037
    %3066 = vmatpush1.msra.mxu0 %v2036
    %3067 = vmatprep.subr.mxu0 %v2041
    %3068 = vmatpush1.msra.mxu0 %v2040
    %3069 = vmatprep.subr.mxu0 %v2045
    %3070 = vmatpush1.msra.mxu0 %v2044
    %3071 = vmatprep.subr.mxu0 %v2049
    %3072 = vmatpush1.msra.mxu0 %v2048
    %3073 = vmatprep.subr.mxu0 %v2053
    %3074 = vmatpush1.msra.mxu0 %v2052
    %3075 = vmatprep.subr.mxu0 %v2057
    %3076 = vmatpush1.msra.mxu0 %v2056
    %3077 = vmatprep.subr.mxu0 0.0
    %3078 = vmatpush1.msra.mxu0 0.0
    %3079 = vmatprep.subr.mxu0 0.0
    %3080 = vmatpush1.msra.mxu0 0.0
    %3081 = vmatprep.subr.mxu0 0.0
    %3082 = vmatpush1.msra.mxu0 0.0
    %3083 = vmatprep.subr.mxu0 0.0
    %3084 = vmatpush1.msra.mxu0 0.0
    %3085 = vmatprep.subr.mxu0 0.0
    %3086 = vmatpush1.msra.mxu0 0.0
    %3087 = vmatprep.subr.mxu0 0.0
    %3088 = vmatpush1.msra.mxu0 0.0
    %3089 = vmatprep.subr.mxu0 0.0
    %3090 = vmatpush1.msra.mxu0 0.0
    %3091 = vmatprep.subr.mxu0 0.0
    %3092 = vmatpush1.msra.mxu0 0.0
    %3093 = vmatprep.subr.mxu0 0.0
    %3094 = vmatpush1.msra.mxu0 0.0
    %3095 = vmatprep.subr.mxu0 0.0
    %3096 = vmatpush1.msra.mxu0 0.0
    %3097 = vmatprep.subr.mxu0 0.0
    %3098 = vmatpush1.msra.mxu0 0.0
    %3099 = vmatprep.subr.mxu0 0.0
    %3100 = vmatpush1.msra.mxu0 0.0
    %3101 = vmatprep.subr.mxu0 0.0
    %3102 = vmatpush1.msra.mxu0 0.0
    %3103 = vmatprep.subr.mxu0 0.0
    %3104 = vmatpush1.msra.mxu0 0.0
    %3105 = vmatprep.subr.mxu0 0.0
    %3106 = vmatpush1.msra.mxu0 0.0
    %3107 = vmatprep.subr.mxu0 0.0
    %3108 = vmatpush1.msra.mxu0 0.0
    %3109 = vmatprep.mubr.f32.mxu0 0.0
    %3110 = vmatmul.mubr.f32.gmra.mrb[0].mxu0 %v3039
    %v3111 = vpop.f32.mrb[0].mxu0
    %v3112 = vadd.f32 0.0, %v3111
    %v3113 = vpop.f32.mrb[0].mxu0
    %v3114 = vadd.f32 0.0, %v3113
    %3115 = vdwg.mxu0
    %3116 = vmatprep.subr.mxu0 %v1999
    %3117 = vmatpush1.msra.mxu0 %v1998
    %3118 = vmatprep.subr.mxu0 %v2003
    %3119 = vmatpush1.msra.mxu0 %v2002
    %3120 = vmatprep.subr.mxu0 %v2007
    %3121 = vmatpush1.msra.mxu0 %v2006
    %3122 = vmatprep.subr.mxu0 %v2011
    %3123 = vmatpush1.msra.mxu0 %v2010
    %3124 = vmatprep.subr.mxu0 %v2015
    %3125 = vmatpush1.msra.mxu0 %v2014
    %3126 = vmatprep.subr.mxu0 %v2019
    %3127 = vmatpush1.msra.mxu0 %v2018
    %3128 = vmatprep.subr.mxu0 %v2023
    %3129 = vmatpush1.msra.mxu0 %v2022
    %3130 = vmatprep.subr.mxu0 %v2027
    %3131 = vmatpush1.msra.mxu0 %v2026
    %3132 = vmatprep.subr.mxu0 %v2031
    %3133 = vmatpush1.msra.mxu0 %v2030
    %3134 = vmatprep.subr.mxu0 %v2035
    %3135 = vmatpush1.msra.mxu0 %v2034
    %3136 = vmatprep.subr.mxu0 %v2039
    %3137 = vmatpush1.msra.mxu0 %v2038
    %3138 = vmatprep.subr.mxu0 %v2043
    %3139 = vmatpush1.msra.mxu0 %v2042
    %3140 = vmatprep.subr.mxu0 %v2047
    %3141 = vmatpush1.msra.mxu0 %v2046
    %3142 = vmatprep.subr.mxu0 %v2051
    %3143 = vmatpush1.msra.mxu0 %v2050
    %3144 = vmatprep.subr.mxu0 %v2055
    %3145 = vmatpush1.msra.mxu0 %v2054
    %3146 = vmatprep.subr.mxu0 %v2059
    %3147 = vmatpush1.msra.mxu0 %v2058
    %3148 = vmatprep.subr.mxu0 0.0
    %3149 = vmatpush1.msra.mxu0 0.0
    %3150 = vmatprep.subr.mxu0 0.0
    %3151 = vmatpush1.msra.mxu0 0.0
    %3152 = vmatprep.subr.mxu0 0.0
    %3153 = vmatpush1.msra.mxu0 0.0
    %3154 = vmatprep.subr.mxu0 0.0
    %3155 = vmatpush1.msra.mxu0 0.0
    %3156 = vmatprep.subr.mxu0 0.0
    %3157 = vmatpush1.msra.mxu0 0.0
    %3158 = vmatprep.subr.mxu0 0.0
    %3159 = vmatpush1.msra.mxu0 0.0
    %3160 = vmatprep.subr.mxu0 0.0
    %3161 = vmatpush1.msra.mxu0 0.0
    %3162 = vmatprep.subr.mxu0 0.0
    %3163 = vmatpush1.msra.mxu0 0.0
    %3164 = vmatprep.subr.mxu0 0.0
    %3165 = vmatpush1.msra.mxu0 0.0
    %3166 = vmatprep.subr.mxu0 0.0
    %3167 = vmatpush1.msra.mxu0 0.0
    %3168 = vmatprep.subr.mxu0 0.0
    %3169 = vmatpush1.msra.mxu0 0.0
    %3170 = vmatprep.subr.mxu0 0.0
    %3171 = vmatpush1.msra.mxu0 0.0
    %3172 = vmatprep.subr.mxu0 0.0
    %3173 = vmatpush1.msra.mxu0 0.0
    %3174 = vmatprep.subr.mxu0 0.0
    %3175 = vmatpush1.msra.mxu0 0.0
    %3176 = vmatprep.subr.mxu0 0.0
    %3177 = vmatpush1.msra.mxu0 0.0
    %3178 = vmatprep.subr.mxu0 0.0
    %3179 = vmatpush1.msra.mxu0 0.0
    %3180 = vmatprep.mubr.f32.mxu0 0.0
    %3181 = vmatmul.mubr.f32.gmra.mrb[0].mxu0 %v3039
    %v3182 = vpop.f32.mrb[0].mxu0
    %v3183 = vadd.f32 0.0, %v3182
    %v3184 = vpop.f32.mrb[0].mxu0
    %v3185 = vadd.f32 0.0, %v3184
    %3186 = vdwg.mxu0
    %v3187 = vadd.f32 %v3041, %v3112
    %v3188 = vadd.f32 %v3042, %v3114
    %v3189 = vadd.f32 %v3043, %v3183
    %v3190 = vadd.f32 %v3044, %v3185
    %v3191 = vxor.u32 %v3187, 2147483648
    %v3192 = vmul.f32 %v3191, 1.442695
    %v3193 = vpow.pop %v3192
    %v3194 = vadd.f32 %v3193, 1.0
    %v3195 = vrcp.pop %v3194
    %v3196 = vmul.f32 1.0, %v3195
    %v3197 = vxor.u32 %v3188, 2147483648
    %v3198 = vmul.f32 %v3197, 1.442695
    %v3199 = vpow.pop %v3198
    %v3200 = vadd.f32 %v3199, 1.0
    %v3201 = vrcp.pop %v3200
    %v3202 = vmul.f32 1.0, %v3201
    %v3203 = vtanh.pop %v3189
    %v3204 = vxor.u32 %v3190, 2147483648
    %v3205 = vmul.f32 %v3204, 1.442695
    %v3206 = vpow.pop %v3205
    %v3207 = vadd.f32 %v3206, 1.0
    %v3208 = vrcp.pop %v3207
    %v3209 = vmul.f32 1.0, %v3208
    %v3210 = vmul.f32 %v3202, %v3037
    %v3211 = vmul.f32 %v3196, %v3203
    %v3212 = vadd.f32 %v3210, %v3211
    %v3213 = vtanh.pop %v3212
    %v3214 = vmul.f32 %v3209, %v3213
    %3215 = vst [vmem:[%s1220 + $0x8] sm:$0xff] %v3214
    %v3216 = vld [vmem:[%s868] sm:$0xff]
    %v3217 = vld [vmem:[%s868 + $0x8] sm:$0xff]
    %v3218 = vld [vmem:[%s868 + $0x10] sm:$0xff]
    %v3219 = vld [vmem:[%s868 + $0x18] sm:$0xff]
    %3220 = vmatprep.subr.mxu0 %v1997
    %3221 = vmatpush1.msra.mxu0 %v1996
    %3222 = vmatprep.subr.mxu0 %v2001
    %3223 = vmatpush1.msra.mxu0 %v2000
    %3224 = vmatprep.subr.mxu0 %v2005
    %3225 = vmatpush1.msra.mxu0 %v2004
    %3226 = vmatprep.subr.mxu0 %v2009
    %3227 = vmatpush1.msra.mxu0 %v2008
    %3228 = vmatprep.subr.mxu0 %v2013
    %3229 = vmatpush1.msra.mxu0 %v2012
    %3230 = vmatprep.subr.mxu0 %v2017
    %3231 = vmatpush1.msra.mxu0 %v2016
    %3232 = vmatprep.subr.mxu0 %v2021
    %3233 = vmatpush1.msra.mxu0 %v2020
    %3234 = vmatprep.subr.mxu0 %v2025
    %3235 = vmatpush1.msra.mxu0 %v2024
    %3236 = vmatprep.subr.mxu0 %v2029
    %3237 = vmatpush1.msra.mxu0 %v2028
    %3238 = vmatprep.subr.mxu0 %v2033
    %3239 = vmatpush1.msra.mxu0 %v2032
    %3240 = vmatprep.subr.mxu0 %v2037
    %3241 = vmatpush1.msra.mxu0 %v2036
    %3242 = vmatprep.subr.mxu0 %v2041
    %3243 = vmatpush1.msra.mxu0 %v2040
    %3244 = vmatprep.subr.mxu0 %v2045
    %3245 = vmatpush1.msra.mxu0 %v2044
    %3246 = vmatprep.subr.mxu0 %v2049
    %3247 = vmatpush1.msra.mxu0 %v2048
    %3248 = vmatprep.subr.mxu0 %v2053
    %3249 = vmatpush1.msra.mxu0 %v2052
    %3250 = vmatprep.subr.mxu0 %v2057
    %3251 = vmatpush1.msra.mxu0 %v2056
    %3252 = vmatprep.subr.mxu0 0.0
    %3253 = vmatpush1.msra.mxu0 0.0
    %3254 = vmatprep.subr.mxu0 0.0
    %3255 = vmatpush1.msra.mxu0 0.0
    %3256 = vmatprep.subr.mxu0 0.0
    %3257 = vmatpush1.msra.mxu0 0.0
    %3258 = vmatprep.subr.mxu0 0.0
    %3259 = vmatpush1.msra.mxu0 0.0
    %3260 = vmatprep.subr.mxu0 0.0
    %3261 = vmatpush1.msra.mxu0 0.0
    %3262 = vmatprep.subr.mxu0 0.0
    %3263 = vmatpush1.msra.mxu0 0.0
    %3264 = vmatprep.subr.mxu0 0.0
    %3265 = vmatpush1.msra.mxu0 0.0
    %3266 = vmatprep.subr.mxu0 0.0
    %3267 = vmatpush1.msra.mxu0 0.0
    %3268 = vmatprep.subr.mxu0 0.0
    %3269 = vmatpush1.msra.mxu0 0.0
    %3270 = vmatprep.subr.mxu0 0.0
    %3271 = vmatpush1.msra.mxu0 0.0
    %3272 = vmatprep.subr.mxu0 0.0
    %3273 = vmatpush1.msra.mxu0 0.0
    %3274 = vmatprep.subr.mxu0 0.0
    %3275 = vmatpush1.msra.mxu0 0.0
    %3276 = vmatprep.subr.mxu0 0.0
    %3277 = vmatpush1.msra.mxu0 0.0
    %3278 = vmatprep.subr.mxu0 0.0
    %3279 = vmatpush1.msra.mxu0 0.0
    %3280 = vmatprep.subr.mxu0 0.0
    %3281 = vmatpush1.msra.mxu0 0.0
    %3282 = vmatprep.subr.mxu0 0.0
    %3283 = vmatpush1.msra.mxu0 0.0
    %3284 = vmatprep.mubr.f32.mxu0 0.0
    %3285 = vmatmul.mubr.f32.gmra.mrb[0].mxu0 %v3214
    %v3286 = vpop.f32.mrb[0].mxu0
    %v3287 = vadd.f32 0.0, %v3286
    %v3288 = vpop.f32.mrb[0].mxu0
    %v3289 = vadd.f32 0.0, %v3288
    %3290 = vdwg.mxu0
    %3291 = vmatprep.subr.mxu0 %v1999
    %3292 = vmatpush1.msra.mxu0 %v1998
    %3293 = vmatprep.subr.mxu0 %v2003
    %3294 = vmatpush1.msra.mxu0 %v2002
    %3295 = vmatprep.subr.mxu0 %v2007
    %3296 = vmatpush1.msra.mxu0 %v2006
    %3297 = vmatprep.subr.mxu0 %v2011
    %3298 = vmatpush1.msra.mxu0 %v2010
    %3299 = vmatprep.subr.mxu0 %v2015
    %3300 = vmatpush1.msra.mxu0 %v2014
    %3301 = vmatprep.subr.mxu0 %v2019
    %3302 = vmatpush1.msra.mxu0 %v2018
    %3303 = vmatprep.subr.mxu0 %v2023
    %3304 = vmatpush1.msra.mxu0 %v2022
    %3305 = vmatprep.subr.mxu0 %v2027
    %3306 = vmatpush1.msra.mxu0 %v2026
    %3307 = vmatprep.subr.mxu0 %v2031
    %3308 = vmatpush1.msra.mxu0 %v2030
    %3309 = vmatprep.subr.mxu0 %v2035
    %3310 = vmatpush1.msra.mxu0 %v2034
    %3311 = vmatprep.subr.mxu0 %v2039
    %3312 = vmatpush1.msra.mxu0 %v2038
    %3313 = vmatprep.subr.mxu0 %v2043
    %3314 = vmatpush1.msra.mxu0 %v2042
    %3315 = vmatprep.subr.mxu0 %v2047
    %3316 = vmatpush1.msra.mxu0 %v2046
    %3317 = vmatprep.subr.mxu0 %v2051
    %3318 = vmatpush1.msra.mxu0 %v2050
    %3319 = vmatprep.subr.mxu0 %v2055
    %3320 = vmatpush1.msra.mxu0 %v2054
    %3321 = vmatprep.subr.mxu0 %v2059
    %3322 = vmatpush1.msra.mxu0 %v2058
    %3323 = vmatprep.subr.mxu0 0.0
    %3324 = vmatpush1.msra.mxu0 0.0
    %3325 = vmatprep.subr.mxu0 0.0
    %3326 = vmatpush1.msra.mxu0 0.0
    %3327 = vmatprep.subr.mxu0 0.0
    %3328 = vmatpush1.msra.mxu0 0.0
    %3329 = vmatprep.subr.mxu0 0.0
    %3330 = vmatpush1.msra.mxu0 0.0
    %3331 = vmatprep.subr.mxu0 0.0
    %3332 = vmatpush1.msra.mxu0 0.0
    %3333 = vmatprep.subr.mxu0 0.0
    %3334 = vmatpush1.msra.mxu0 0.0
    %3335 = vmatprep.subr.mxu0 0.0
    %3336 = vmatpush1.msra.mxu0 0.0
    %3337 = vmatprep.subr.mxu0 0.0
    %3338 = vmatpush1.msra.mxu0 0.0
    %3339 = vmatprep.subr.mxu0 0.0
    %3340 = vmatpush1.msra.mxu0 0.0
    %3341 = vmatprep.subr.mxu0 0.0
    %3342 = vmatpush1.msra.mxu0 0.0
    %3343 = vmatprep.subr.mxu0 0.0
    %3344 = vmatpush1.msra.mxu0 0.0
    %3345 = vmatprep.subr.mxu0 0.0
    %3346 = vmatpush1.msra.mxu0 0.0
    %3347 = vmatprep.subr.mxu0 0.0
    %3348 = vmatpush1.msra.mxu0 0.0
    %3349 = vmatprep.subr.mxu0 0.0
    %3350 = vmatpush1.msra.mxu0 0.0
    %3351 = vmatprep.subr.mxu0 0.0
    %3352 = vmatpush1.msra.mxu0 0.0
    %3353 = vmatprep.subr.mxu0 0.0
    %3354 = vmatpush1.msra.mxu0 0.0
    %3355 = vmatprep.mubr.f32.mxu0 0.0
    %3356 = vmatmul.mubr.f32.gmra.mrb[0].mxu0 %v3214
    %v3357 = vpop.f32.mrb[0].mxu0
    %v3358 = vadd.f32 0.0, %v3357
    %v3359 = vpop.f32.mrb[0].mxu0
    %v3360 = vadd.f32 0.0, %v3359
    %3361 = vdwg.mxu0
    %v3362 = vadd.f32 %v3216, %v3287
    %v3363 = vadd.f32 %v3217, %v3289
    %v3364 = vadd.f32 %v3218, %v3358
    %v3365 = vadd.f32 %v3219, %v3360
    %v3366 = vxor.u32 %v3362, 2147483648
    %v3367 = vmul.f32 %v3366, 1.442695
    %v3368 = vpow.pop %v3367
    %v3369 = vadd.f32 %v3368, 1.0
    %v3370 = vrcp.pop %v3369
    %v3371 = vmul.f32 1.0, %v3370
    %v3372 = vxor.u32 %v3363, 2147483648
    %v3373 = vmul.f32 %v3372, 1.442695
    %v3374 = vpow.pop %v3373
    %v3375 = vadd.f32 %v3374, 1.0
    %v3376 = vrcp.pop %v3375
    %v3377 = vmul.f32 1.0, %v3376
    %v3378 = vtanh.pop %v3364
    %v3379 = vxor.u32 %v3365, 2147483648
    %v3380 = vmul.f32 %v3379, 1.442695
    %v3381 = vpow.pop %v3380
    %v3382 = vadd.f32 %v3381, 1.0
    %v3383 = vrcp.pop %v3382
    %v3384 = vmul.f32 1.0, %v3383
    %v3385 = vmul.f32 %v3377, %v3212
    %v3386 = vmul.f32 %v3371, %v3378
    %v3387 = vadd.f32 %v3385, %v3386
    %v3388 = vtanh.pop %v3387
    %v3389 = vmul.f32 %v3384, %v3388
    %3390 = vst [vmem:[%s1043 + $0x8] sm:$0xff] %v3389
    %v3391 = vld [vmem:[%s691] sm:$0xff]
    %v3392 = vld [vmem:[%s691 + $0x8] sm:$0xff]
    %v3393 = vld [vmem:[%s691 + $0x10] sm:$0xff]
    %v3394 = vld [vmem:[%s691 + $0x18] sm:$0xff]
    %3395 = vmatprep.subr.mxu0 %v1997
    %3396 = vmatpush1.msra.mxu0 %v1996
    %3397 = vmatprep.subr.mxu0 %v2001
    %3398 = vmatpush1.msra.mxu0 %v2000
    %3399 = vmatprep.subr.mxu0 %v2005
    %3400 = vmatpush1.msra.mxu0 %v2004
    %3401 = vmatprep.subr.mxu0 %v2009
    %3402 = vmatpush1.msra.mxu0 %v2008
    %3403 = vmatprep.subr.mxu0 %v2013
    %3404 = vmatpush1.msra.mxu0 %v2012
    %3405 = vmatprep.subr.mxu0 %v2017
    %3406 = vmatpush1.msra.mxu0 %v2016
    %3407 = vmatprep.subr.mxu0 %v2021
    %3408 = vmatpush1.msra.mxu0 %v2020
    %3409 = vmatprep.subr.mxu0 %v2025
    %3410 = vmatpush1.msra.mxu0 %v2024
    %3411 = vmatprep.subr.mxu0 %v2029
    %3412 = vmatpush1.msra.mxu0 %v2028
    %3413 = vmatprep.subr.mxu0 %v2033
    %3414 = vmatpush1.msra.mxu0 %v2032
    %3415 = vmatprep.subr.mxu0 %v2037
    %3416 = vmatpush1.msra.mxu0 %v2036
    %3417 = vmatprep.subr.mxu0 %v2041
    %3418 = vmatpush1.msra.mxu0 %v2040
    %3419 = vmatprep.subr.mxu0 %v2045
    %3420 = vmatpush1.msra.mxu0 %v2044
    %3421 = vmatprep.subr.mxu0 %v2049
    %3422 = vmatpush1.msra.mxu0 %v2048
    %3423 = vmatprep.subr.mxu0 %v2053
    %3424 = vmatpush1.msra.mxu0 %v2052
    %3425 = vmatprep.subr.mxu0 %v2057
    %3426 = vmatpush1.msra.mxu0 %v2056
    %3427 = vmatprep.subr.mxu0 0.0
    %3428 = vmatpush1.msra.mxu0 0.0
    %3429 = vmatprep.subr.mxu0 0.0
    %3430 = vmatpush1.msra.mxu0 0.0
    %3431 = vmatprep.subr.mxu0 0.0
    %3432 = vmatpush1.msra.mxu0 0.0
    %3433 = vmatprep.subr.mxu0 0.0
    %3434 = vmatpush1.msra.mxu0 0.0
    %3435 = vmatprep.subr.mxu0 0.0
    %3436 = vmatpush1.msra.mxu0 0.0
    %3437 = vmatprep.subr.mxu0 0.0
    %3438 = vmatpush1.msra.mxu0 0.0
    %3439 = vmatprep.subr.mxu0 0.0
    %3440 = vmatpush1.msra.mxu0 0.0
    %3441 = vmatprep.subr.mxu0 0.0
    %3442 = vmatpush1.msra.mxu0 0.0
    %3443 = vmatprep.subr.mxu0 0.0
    %3444 = vmatpush1.msra.mxu0 0.0
    %3445 = vmatprep.subr.mxu0 0.0
    %3446 = vmatpush1.msra.mxu0 0.0
    %3447 = vmatprep.subr.mxu0 0.0
    %3448 = vmatpush1.msra.mxu0 0.0
    %3449 = vmatprep.subr.mxu0 0.0
    %3450 = vmatpush1.msra.mxu0 0.0
    %3451 = vmatprep.subr.mxu0 0.0
    %3452 = vmatpush1.msra.mxu0 0.0
    %3453 = vmatprep.subr.mxu0 0.0
    %3454 = vmatpush1.msra.mxu0 0.0
    %3455 = vmatprep.subr.mxu0 0.0
    %3456 = vmatpush1.msra.mxu0 0.0
    %3457 = vmatprep.subr.mxu0 0.0
    %3458 = vmatpush1.msra.mxu0 0.0
    %3459 = vmatprep.mubr.f32.mxu0 0.0
    %3460 = vmatmul.mubr.f32.gmra.mrb[0].mxu0 %v3389
    %v3461 = vpop.f32.mrb[0].mxu0
    %v3462 = vadd.f32 0.0, %v3461
    %v3463 = vpop.f32.mrb[0].mxu0
    %v3464 = vadd.f32 0.0, %v3463
    %3465 = vdwg.mxu0
    %3466 = vmatprep.subr.mxu0 %v1999
    %3467 = vmatpush1.msra.mxu0 %v1998
    %3468 = vmatprep.subr.mxu0 %v2003
    %3469 = vmatpush1.msra.mxu0 %v2002
    %3470 = vmatprep.subr.mxu0 %v2007
    %3471 = vmatpush1.msra.mxu0 %v2006
    %3472 = vmatprep.subr.mxu0 %v2011
    %3473 = vmatpush1.msra.mxu0 %v2010
    %3474 = vmatprep.subr.mxu0 %v2015
    %3475 = vmatpush1.msra.mxu0 %v2014
    %3476 = vmatprep.subr.mxu0 %v2019
    %3477 = vmatpush1.msra.mxu0 %v2018
    %3478 = vmatprep.subr.mxu0 %v2023
    %3479 = vmatpush1.msra.mxu0 %v2022
    %3480 = vmatprep.subr.mxu0 %v2027
    %3481 = vmatpush1.msra.mxu0 %v2026
    %3482 = vmatprep.subr.mxu0 %v2031
    %3483 = vmatpush1.msra.mxu0 %v2030
    %3484 = vmatprep.subr.mxu0 %v2035
    %3485 = vmatpush1.msra.mxu0 %v2034
    %3486 = vmatprep.subr.mxu0 %v2039
    %3487 = vmatpush1.msra.mxu0 %v2038
    %3488 = vmatprep.subr.mxu0 %v2043
    %3489 = vmatpush1.msra.mxu0 %v2042
    %3490 = vmatprep.subr.mxu0 %v2047
    %3491 = vmatpush1.msra.mxu0 %v2046
    %3492 = vmatprep.subr.mxu0 %v2051
    %3493 = vmatpush1.msra.mxu0 %v2050
    %3494 = vmatprep.subr.mxu0 %v2055
    %3495 = vmatpush1.msra.mxu0 %v2054
    %3496 = vmatprep.subr.mxu0 %v2059
    %3497 = vmatpush1.msra.mxu0 %v2058
    %3498 = vmatprep.subr.mxu0 0.0
    %3499 = vmatpush1.msra.mxu0 0.0
    %3500 = vmatprep.subr.mxu0 0.0
    %3501 = vmatpush1.msra.mxu0 0.0
    %3502 = vmatprep.subr.mxu0 0.0
    %3503 = vmatpush1.msra.mxu0 0.0
    %3504 = vmatprep.subr.mxu0 0.0
    %3505 = vmatpush1.msra.mxu0 0.0
    %3506 = vmatprep.subr.mxu0 0.0
    %3507 = vmatpush1.msra.mxu0 0.0
    %3508 = vmatprep.subr.mxu0 0.0
    %3509 = vmatpush1.msra.mxu0 0.0
    %3510 = vmatprep.subr.mxu0 0.0
    %3511 = vmatpush1.msra.mxu0 0.0
    %3512 = vmatprep.subr.mxu0 0.0
    %3513 = vmatpush1.msra.mxu0 0.0
    %3514 = vmatprep.subr.mxu0 0.0
    %3515 = vmatpush1.msra.mxu0 0.0
    %3516 = vmatprep.subr.mxu0 0.0
    %3517 = vmatpush1.msra.mxu0 0.0
    %3518 = vmatprep.subr.mxu0 0.0
    %3519 = vmatpush1.msra.mxu0 0.0
    %3520 = vmatprep.subr.mxu0 0.0
    %3521 = vmatpush1.msra.mxu0 0.0
    %3522 = vmatprep.subr.mxu0 0.0
    %3523 = vmatpush1.msra.mxu0 0.0
    %3524 = vmatprep.subr.mxu0 0.0
    %3525 = vmatpush1.msra.mxu0 0.0
    %3526 = vmatprep.subr.mxu0 0.0
    %3527 = vmatpush1.msra.mxu0 0.0
    %3528 = vmatprep.subr.mxu0 0.0
    %3529 = vmatpush1.msra.mxu0 0.0
    %3530 = vmatprep.mubr.f32.mxu0 0.0
    %3531 = vmatmul.mubr.f32.gmra.mrb[0].mxu0 %v3389
    %v3532 = vpop.f32.mrb[0].mxu0
    %v3533 = vadd.f32 0.0, %v3532
    %v3534 = vpop.f32.mrb[0].mxu0
    %v3535 = vadd.f32 0.0, %v3534
    %3536 = vdwg.mxu0
    %v3537 = vadd.f32 %v3391, %v3462
    %v3538 = vadd.f32 %v3392, %v3464
    %v3539 = vadd.f32 %v3393, %v3533
    %v3540 = vadd.f32 %v3394, %v3535
    %v3541 = vxor.u32 %v3537, 2147483648
    %v3542 = vmul.f32 %v3541, 1.442695
    %v3543 = vpow.pop %v3542
    %v3544 = vadd.f32 %v3543, 1.0
    %v3545 = vrcp.pop %v3544
    %v3546 = vmul.f32 1.0, %v3545
    %v3547 = vxor.u32 %v3538, 2147483648
    %v3548 = vmul.f32 %v3547, 1.442695
    %v3549 = vpow.pop %v3548
    %v3550 = vadd.f32 %v3549, 1.0
    %v3551 = vrcp.pop %v3550
    %v3552 = vmul.f32 1.0, %v3551
    %v3553 = vtanh.pop %v3539
    %v3554 = vxor.u32 %v3540, 2147483648
    %v3555 = vmul.f32 %v3554, 1.442695
    %v3556 = vpow.pop %v3555
    %v3557 = vadd.f32 %v3556, 1.0
    %v3558 = vrcp.pop %v3557
    %v3559 = vmul.f32 1.0, %v3558
    %v3560 = vmul.f32 %v3552, %v3387
    %v3561 = vmul.f32 %v3546, %v3553
    %v3562 = vadd.f32 %v3560, %v3561
    %v3563 = vtanh.pop %v3562
    %v3564 = vmul.f32 %v3559, %v3563
    %3565 = vst [vmem:[%s866 + $0x8] sm:$0xff] %v3564
    %v3566 = vld [vmem:[#allocation3] sm:$0xff]
    %v3567 = vld [vmem:[#allocation3 + $0x8] sm:$0xff]
    %v3568 = vld [vmem:[#allocation3 + $0x10] sm:$0xff]
    %v3569 = vld [vmem:[#allocation3 + $0x18] sm:$0xff]
    %3570 = vmatprep.subr.mxu0 %v1997
    %3571 = vmatpush1.msra.mxu0 %v1996
    %3572 = vmatprep.subr.mxu0 %v2001
    %3573 = vmatpush1.msra.mxu0 %v2000
    %3574 = vmatprep.subr.mxu0 %v2005
    %3575 = vmatpush1.msra.mxu0 %v2004
    %3576 = vmatprep.subr.mxu0 %v2009
    %3577 = vmatpush1.msra.mxu0 %v2008
    %3578 = vmatprep.subr.mxu0 %v2013
    %3579 = vmatpush1.msra.mxu0 %v2012
    %3580 = vmatprep.subr.mxu0 %v2017
    %3581 = vmatpush1.msra.mxu0 %v2016
    %3582 = vmatprep.subr.mxu0 %v2021
    %3583 = vmatpush1.msra.mxu0 %v2020
    %3584 = vmatprep.subr.mxu0 %v2025
    %3585 = vmatpush1.msra.mxu0 %v2024
    %3586 = vmatprep.subr.mxu0 %v2029
    %3587 = vmatpush1.msra.mxu0 %v2028
    %3588 = vmatprep.subr.mxu0 %v2033
    %3589 = vmatpush1.msra.mxu0 %v2032
    %3590 = vmatprep.subr.mxu0 %v2037
    %3591 = vmatpush1.msra.mxu0 %v2036
    %3592 = vmatprep.subr.mxu0 %v2041
    %3593 = vmatpush1.msra.mxu0 %v2040
    %3594 = vmatprep.subr.mxu0 %v2045
    %3595 = vmatpush1.msra.mxu0 %v2044
    %3596 = vmatprep.subr.mxu0 %v2049
    %3597 = vmatpush1.msra.mxu0 %v2048
    %3598 = vmatprep.subr.mxu0 %v2053
    %3599 = vmatpush1.msra.mxu0 %v2052
    %3600 = vmatprep.subr.mxu0 %v2057
    %3601 = vmatpush1.msra.mxu0 %v2056
    %3602 = vmatprep.subr.mxu0 0.0
    %3603 = vmatpush1.msra.mxu0 0.0
    %3604 = vmatprep.subr.mxu0 0.0
    %3605 = vmatpush1.msra.mxu0 0.0
    %3606 = vmatprep.subr.mxu0 0.0
    %3607 = vmatpush1.msra.mxu0 0.0
    %3608 = vmatprep.subr.mxu0 0.0
    %3609 = vmatpush1.msra.mxu0 0.0
    %3610 = vmatprep.subr.mxu0 0.0
    %3611 = vmatpush1.msra.mxu0 0.0
    %3612 = vmatprep.subr.mxu0 0.0
    %3613 = vmatpush1.msra.mxu0 0.0
    %3614 = vmatprep.subr.mxu0 0.0
    %3615 = vmatpush1.msra.mxu0 0.0
    %3616 = vmatprep.subr.mxu0 0.0
    %3617 = vmatpush1.msra.mxu0 0.0
    %3618 = vmatprep.subr.mxu0 0.0
    %3619 = vmatpush1.msra.mxu0 0.0
    %3620 = vmatprep.subr.mxu0 0.0
    %3621 = vmatpush1.msra.mxu0 0.0
    %3622 = vmatprep.subr.mxu0 0.0
    %3623 = vmatpush1.msra.mxu0 0.0
    %3624 = vmatprep.subr.mxu0 0.0
    %3625 = vmatpush1.msra.mxu0 0.0
    %3626 = vmatprep.subr.mxu0 0.0
    %3627 = vmatpush1.msra.mxu0 0.0
    %3628 = vmatprep.subr.mxu0 0.0
    %3629 = vmatpush1.msra.mxu0 0.0
    %3630 = vmatprep.subr.mxu0 0.0
    %3631 = vmatpush1.msra.mxu0 0.0
    %3632 = vmatprep.subr.mxu0 0.0
    %3633 = vmatpush1.msra.mxu0 0.0
    %3634 = vmatprep.mubr.f32.mxu0 0.0
    %3635 = vmatmul.mubr.f32.gmra.mrb[0].mxu0 %v3564
    %v3636 = vpop.f32.mrb[0].mxu0
    %v3637 = vadd.f32 0.0, %v3636
    %v3638 = vpop.f32.mrb[0].mxu0
    %v3639 = vadd.f32 0.0, %v3638
    %3640 = vdwg.mxu0
    %3641 = vmatprep.subr.mxu0 %v1999
    %3642 = vmatpush1.msra.mxu0 %v1998
    %3643 = vmatprep.subr.mxu0 %v2003
    %3644 = vmatpush1.msra.mxu0 %v2002
    %3645 = vmatprep.subr.mxu0 %v2007
    %3646 = vmatpush1.msra.mxu0 %v2006
    %3647 = vmatprep.subr.mxu0 %v2011
    %3648 = vmatpush1.msra.mxu0 %v2010
    %3649 = vmatprep.subr.mxu0 %v2015
    %3650 = vmatpush1.msra.mxu0 %v2014
    %3651 = vmatprep.subr.mxu0 %v2019
    %3652 = vmatpush1.msra.mxu0 %v2018
    %3653 = vmatprep.subr.mxu0 %v2023
    %3654 = vmatpush1.msra.mxu0 %v2022
    %3655 = vmatprep.subr.mxu0 %v2027
    %3656 = vmatpush1.msra.mxu0 %v2026
    %3657 = vmatprep.subr.mxu0 %v2031
    %3658 = vmatpush1.msra.mxu0 %v2030
    %3659 = vmatprep.subr.mxu0 %v2035
    %3660 = vmatpush1.msra.mxu0 %v2034
    %3661 = vmatprep.subr.mxu0 %v2039
    %3662 = vmatpush1.msra.mxu0 %v2038
    %3663 = vmatprep.subr.mxu0 %v2043
    %3664 = vmatpush1.msra.mxu0 %v2042
    %3665 = vmatprep.subr.mxu0 %v2047
    %3666 = vmatpush1.msra.mxu0 %v2046
    %3667 = vmatprep.subr.mxu0 %v2051
    %3668 = vmatpush1.msra.mxu0 %v2050
    %3669 = vmatprep.subr.mxu0 %v2055
    %3670 = vmatpush1.msra.mxu0 %v2054
    %3671 = vmatprep.subr.mxu0 %v2059
    %3672 = vmatpush1.msra.mxu0 %v2058
    %3673 = vmatprep.subr.mxu0 0.0
    %3674 = vmatpush1.msra.mxu0 0.0
    %3675 = vmatprep.subr.mxu0 0.0
    %3676 = vmatpush1.msra.mxu0 0.0
    %3677 = vmatprep.subr.mxu0 0.0
    %3678 = vmatpush1.msra.mxu0 0.0
    %3679 = vmatprep.subr.mxu0 0.0
    %3680 = vmatpush1.msra.mxu0 0.0
    %3681 = vmatprep.subr.mxu0 0.0
    %3682 = vmatpush1.msra.mxu0 0.0
    %3683 = vmatprep.subr.mxu0 0.0
    %3684 = vmatpush1.msra.mxu0 0.0
    %3685 = vmatprep.subr.mxu0 0.0
    %3686 = vmatpush1.msra.mxu0 0.0
    %3687 = vmatprep.subr.mxu0 0.0
    %3688 = vmatpush1.msra.mxu0 0.0
    %3689 = vmatprep.subr.mxu0 0.0
    %3690 = vmatpush1.msra.mxu0 0.0
    %3691 = vmatprep.subr.mxu0 0.0
    %3692 = vmatpush1.msra.mxu0 0.0
    %3693 = vmatprep.subr.mxu0 0.0
    %3694 = vmatpush1.msra.mxu0 0.0
    %3695 = vmatprep.subr.mxu0 0.0
    %3696 = vmatpush1.msra.mxu0 0.0
    %3697 = vmatprep.subr.mxu0 0.0
    %3698 = vmatpush1.msra.mxu0 0.0
    %3699 = vmatprep.subr.mxu0 0.0
    %3700 = vmatpush1.msra.mxu0 0.0
    %3701 = vmatprep.subr.mxu0 0.0
    %3702 = vmatpush1.msra.mxu0 0.0
    %3703 = vmatprep.subr.mxu0 0.0
    %3704 = vmatpush1.msra.mxu0 0.0
    %3705 = vmatprep.mubr.f32.mxu0 0.0
    %3706 = vmatmul.mubr.f32.gmra.mrb[0].mxu0 %v3564
    %v3707 = vpop.f32.mrb[0].mxu0
    %v3708 = vadd.f32 0.0, %v3707
    %v3709 = vpop.f32.mrb[0].mxu0
    %v3710 = vadd.f32 0.0, %v3709
    %3711 = vdwg.mxu0
    %v3712 = vadd.f32 %v3566, %v3637
    %v3713 = vadd.f32 %v3567, %v3639
    %v3714 = vadd.f32 %v3568, %v3708
    %v3715 = vadd.f32 %v3569, %v3710
    %v3716 = vxor.u32 %v3712, 2147483648
    %v3717 = vmul.f32 %v3716, 1.442695
    %v3718 = vpow.pop %v3717
    %v3719 = vadd.f32 %v3718, 1.0
    %v3720 = vrcp.pop %v3719
    %v3721 = vmul.f32 1.0, %v3720
    %v3722 = vxor.u32 %v3713, 2147483648
    %v3723 = vmul.f32 %v3722, 1.442695
    %v3724 = vpow.pop %v3723
    %v3725 = vadd.f32 %v3724, 1.0
    %v3726 = vrcp.pop %v3725
    %v3727 = vmul.f32 1.0, %v3726
    %v3728 = vtanh.pop %v3714
    %v3729 = vxor.u32 %v3715, 2147483648
    %v3730 = vmul.f32 %v3729, 1.442695
    %v3731 = vpow.pop %v3730
    %v3732 = vadd.f32 %v3731, 1.0
    %v3733 = vrcp.pop %v3732
    %v3734 = vmul.f32 1.0, %v3733
    %v3735 = vmul.f32 %v3727, %v3562
    %v3736 = vmul.f32 %v3721, %v3728
    %v3737 = vadd.f32 %v3735, %v3736
    %v3738 = vtanh.pop %v3737
    %v3739 = vmul.f32 %v3734, %v3738
    %3740 = vst [vmem:[#allocation2 + $0x8] sm:$0xff] %v3739
    %v3741 = vld [vmem:[#allocation2] sm:$0xff]
    %v3742 = vld [vmem:[#allocation2 + $0x8] sm:$0xff]
    %v3743 = vld [vmem:[#allocation2 + $0x10] sm:$0xff]
    %v3744 = vld [vmem:[#allocation2 + $0x18] sm:$0xff]
    %v3745 = vld [vmem:[#allocation2 + $0x20] sm:$0xff]
    %v3746 = vld [vmem:[#allocation2 + $0x28] sm:$0xff]
    %v3747 = vld [vmem:[#allocation2 + $0x30] sm:$0xff]
    %v3748 = vld [vmem:[#allocation2 + $0x38] sm:$0xff]
    %v3749 = vld [vmem:[#allocation2 + $0x40] sm:$0xff]
    %v3750 = vld [vmem:[#allocation2 + $0x48] sm:$0xff]
    %v3751 = vld [vmem:[#allocation2 + $0x50] sm:$0xff]
    %v3752 = vld [vmem:[#allocation2 + $0x58] sm:$0xff]
    %v3753 = vld [vmem:[#allocation2 + $0x60] sm:$0xff]
    %v3754 = vld [vmem:[#allocation2 + $0x68] sm:$0xff]
    %v3755 = vld [vmem:[#allocation2 + $0x70] sm:$0xff]
    %v3756 = vld [vmem:[#allocation2 + $0x78] sm:$0xff]
    %v3757 = vld [vmem:[#allocation8] sm:$0xff]
    %v3758 = vld [vmem:[#allocation8 + $0x8] sm:$0xff]
    %v3759 = vld [vmem:[#allocation8 + $0x10] sm:$0xff]
    %v3760 = vld [vmem:[#allocation8 + $0x18] sm:$0xff]
    %v3761 = vld [vmem:[#allocation8 + $0x20] sm:$0xff]
    %v3762 = vld [vmem:[#allocation8 + $0x28] sm:$0xff]
    %v3763 = vld [vmem:[#allocation8 + $0x30] sm:$0xff]
    %v3764 = vld [vmem:[#allocation8 + $0x38] sm:$0xff]
    %v3765 = vld [vmem:[#allocation8 + $0x40] sm:$0xff]
    %v3766 = vld [vmem:[#allocation8 + $0x48] sm:$0xff]
    %v3767 = vld [vmem:[#allocation8 + $0x50] sm:$0xff]
    %v3768 = vld [vmem:[#allocation8 + $0x58] sm:$0xff]
    %v3769 = vld [vmem:[#allocation8 + $0x60] sm:$0xff]
    %v3770 = vld [vmem:[#allocation8 + $0x68] sm:$0xff]
    %v3771 = vld [vmem:[#allocation8 + $0x70] sm:$0xff]
    %v3772 = vld [vmem:[#allocation8 + $0x78] sm:$0xff]
    %v3773 = vld [vmem:[#allocation8 + $0x80] sm:$0xff]
    %v3774 = vld [vmem:[#allocation8 + $0x88] sm:$0xff]
    %v3775 = vld [vmem:[#allocation8 + $0x90] sm:$0xff]
    %v3776 = vld [vmem:[#allocation8 + $0x98] sm:$0xff]
    %v3777 = vld [vmem:[#allocation8 + $0xa0] sm:$0xff]
    %v3778 = vld [vmem:[#allocation8 + $0xa8] sm:$0xff]
    %v3779 = vld [vmem:[#allocation8 + $0xb0] sm:$0xff]
    %v3780 = vld [vmem:[#allocation8 + $0xb8] sm:$0xff]
    %v3781 = vld [vmem:[#allocation8 + $0xc0] sm:$0xff]
    %v3782 = vld [vmem:[#allocation8 + $0xc8] sm:$0xff]
    %v3783 = vld [vmem:[#allocation8 + $0xd0] sm:$0xff]
    %v3784 = vld [vmem:[#allocation8 + $0xd8] sm:$0xff]
    %v3785 = vld [vmem:[#allocation8 + $0xe0] sm:$0xff]
    %v3786 = vld [vmem:[#allocation8 + $0xe8] sm:$0xff]
    %v3787 = vld [vmem:[#allocation8 + $0xf0] sm:$0xff]
    %v3788 = vld [vmem:[#allocation8 + $0xf8] sm:$0xff]
    %v3789 = vld [vmem:[#allocation8 + $0x100] sm:$0xff]
    %v3790 = vld [vmem:[#allocation8 + $0x108] sm:$0xff]
    %v3791 = vld [vmem:[#allocation8 + $0x110] sm:$0xff]
    %v3792 = vld [vmem:[#allocation8 + $0x118] sm:$0xff]
    %v3793 = vld [vmem:[#allocation8 + $0x120] sm:$0xff]
    %v3794 = vld [vmem:[#allocation8 + $0x128] sm:$0xff]
    %v3795 = vld [vmem:[#allocation8 + $0x130] sm:$0xff]
    %v3796 = vld [vmem:[#allocation8 + $0x138] sm:$0xff]
    %v3797 = vld [vmem:[#allocation8 + $0x140] sm:$0xff]
    %v3798 = vld [vmem:[#allocation8 + $0x148] sm:$0xff]
    %v3799 = vld [vmem:[#allocation8 + $0x150] sm:$0xff]
    %v3800 = vld [vmem:[#allocation8 + $0x158] sm:$0xff]
    %v3801 = vld [vmem:[#allocation8 + $0x160] sm:$0xff]
    %v3802 = vld [vmem:[#allocation8 + $0x168] sm:$0xff]
    %v3803 = vld [vmem:[#allocation8 + $0x170] sm:$0xff]
    %v3804 = vld [vmem:[#allocation8 + $0x178] sm:$0xff]
    %v3805 = vld [vmem:[#allocation8 + $0x180] sm:$0xff]
    %v3806 = vld [vmem:[#allocation8 + $0x188] sm:$0xff]
    %v3807 = vld [vmem:[#allocation8 + $0x190] sm:$0xff]
    %v3808 = vld [vmem:[#allocation8 + $0x198] sm:$0xff]
    %v3809 = vld [vmem:[#allocation8 + $0x1a0] sm:$0xff]
    %v3810 = vld [vmem:[#allocation8 + $0x1a8] sm:$0xff]
    %v3811 = vld [vmem:[#allocation8 + $0x1b0] sm:$0xff]
    %v3812 = vld [vmem:[#allocation8 + $0x1b8] sm:$0xff]
    %v3813 = vld [vmem:[#allocation8 + $0x1c0] sm:$0xff]
    %v3814 = vld [vmem:[#allocation8 + $0x1c8] sm:$0xff]
    %v3815 = vld [vmem:[#allocation8 + $0x1d0] sm:$0xff]
    %v3816 = vld [vmem:[#allocation8 + $0x1d8] sm:$0xff]
    %v3817 = vld [vmem:[#allocation8 + $0x1e0] sm:$0xff]
    %v3818 = vld [vmem:[#allocation8 + $0x1e8] sm:$0xff]
    %v3819 = vld [vmem:[#allocation8 + $0x1f0] sm:$0xff]
    %v3820 = vld [vmem:[#allocation8 + $0x1f8] sm:$0xff]
    %v3821 = vld [vmem:[#allocation8 + $0x200] sm:$0xff]
    %v3822 = vld [vmem:[#allocation8 + $0x208] sm:$0xff]
    %v3823 = vld [vmem:[#allocation8 + $0x210] sm:$0xff]
    %v3824 = vld [vmem:[#allocation8 + $0x218] sm:$0xff]
    %v3825 = vld [vmem:[#allocation8 + $0x220] sm:$0xff]
    %v3826 = vld [vmem:[#allocation8 + $0x228] sm:$0xff]
    %v3827 = vld [vmem:[#allocation8 + $0x230] sm:$0xff]
    %v3828 = vld [vmem:[#allocation8 + $0x238] sm:$0xff]
    %v3829 = vld [vmem:[#allocation8 + $0x240] sm:$0xff]
    %v3830 = vld [vmem:[#allocation8 + $0x248] sm:$0xff]
    %v3831 = vld [vmem:[#allocation8 + $0x250] sm:$0xff]
    %v3832 = vld [vmem:[#allocation8 + $0x258] sm:$0xff]
    %v3833 = vld [vmem:[#allocation8 + $0x260] sm:$0xff]
    %v3834 = vld [vmem:[#allocation8 + $0x268] sm:$0xff]
    %v3835 = vld [vmem:[#allocation8 + $0x270] sm:$0xff]
    %v3836 = vld [vmem:[#allocation8 + $0x278] sm:$0xff]
    %v3837 = vld [vmem:[#allocation8 + $0x280] sm:$0xff]
    %v3838 = vld [vmem:[#allocation8 + $0x288] sm:$0xff]
    %v3839 = vld [vmem:[#allocation8 + $0x290] sm:$0xff]
    %v3840 = vld [vmem:[#allocation8 + $0x298] sm:$0xff]
    %v3841 = vld [vmem:[#allocation8 + $0x2a0] sm:$0xff]
    %v3842 = vld [vmem:[#allocation8 + $0x2a8] sm:$0xff]
    %v3843 = vld [vmem:[#allocation8 + $0x2b0] sm:$0xff]
    %v3844 = vld [vmem:[#allocation8 + $0x2b8] sm:$0xff]
    %v3845 = vld [vmem:[#allocation8 + $0x2c0] sm:$0xff]
    %v3846 = vld [vmem:[#allocation8 + $0x2c8] sm:$0xff]
    %v3847 = vld [vmem:[#allocation8 + $0x2d0] sm:$0xff]
    %v3848 = vld [vmem:[#allocation8 + $0x2d8] sm:$0xff]
    %v3849 = vld [vmem:[#allocation8 + $0x2e0] sm:$0xff]
    %v3850 = vld [vmem:[#allocation8 + $0x2e8] sm:$0xff]
    %v3851 = vld [vmem:[#allocation8 + $0x2f0] sm:$0xff]
    %v3852 = vld [vmem:[#allocation8 + $0x2f8] sm:$0xff]
    %v3853 = vld [vmem:[#allocation8 + $0x300] sm:$0xff]
    %v3854 = vld [vmem:[#allocation8 + $0x308] sm:$0xff]
    %v3855 = vld [vmem:[#allocation8 + $0x310] sm:$0xff]
    %v3856 = vld [vmem:[#allocation8 + $0x318] sm:$0xff]
    %v3857 = vld [vmem:[#allocation8 + $0x320] sm:$0xff]
    %v3858 = vld [vmem:[#allocation8 + $0x328] sm:$0xff]
    %v3859 = vld [vmem:[#allocation8 + $0x330] sm:$0xff]
    %v3860 = vld [vmem:[#allocation8 + $0x338] sm:$0xff]
    %v3861 = vld [vmem:[#allocation8 + $0x340] sm:$0xff]
    %v3862 = vld [vmem:[#allocation8 + $0x348] sm:$0xff]
    %v3863 = vld [vmem:[#allocation8 + $0x350] sm:$0xff]
    %v3864 = vld [vmem:[#allocation8 + $0x358] sm:$0xff]
    %v3865 = vld [vmem:[#allocation8 + $0x360] sm:$0xff]
    %v3866 = vld [vmem:[#allocation8 + $0x368] sm:$0xff]
    %v3867 = vld [vmem:[#allocation8 + $0x370] sm:$0xff]
    %v3868 = vld [vmem:[#allocation8 + $0x378] sm:$0xff]
    %v3869 = vld [vmem:[#allocation8 + $0x380] sm:$0xff]
    %v3870 = vld [vmem:[#allocation8 + $0x388] sm:$0xff]
    %v3871 = vld [vmem:[#allocation8 + $0x390] sm:$0xff]
    %v3872 = vld [vmem:[#allocation8 + $0x398] sm:$0xff]
    %v3873 = vld [vmem:[#allocation8 + $0x3a0] sm:$0xff]
    %v3874 = vld [vmem:[#allocation8 + $0x3a8] sm:$0xff]
    %v3875 = vld [vmem:[#allocation8 + $0x3b0] sm:$0xff]
    %v3876 = vld [vmem:[#allocation8 + $0x3b8] sm:$0xff]
    %v3877 = vld [vmem:[#allocation8 + $0x3c0] sm:$0xff]
    %v3878 = vld [vmem:[#allocation8 + $0x3c8] sm:$0xff]
    %v3879 = vld [vmem:[#allocation8 + $0x3d0] sm:$0xff]
    %v3880 = vld [vmem:[#allocation8 + $0x3d8] sm:$0xff]
    %v3881 = vld [vmem:[#allocation8 + $0x3e0] sm:$0xff]
    %v3882 = vld [vmem:[#allocation8 + $0x3e8] sm:$0xff]
    %v3883 = vld [vmem:[#allocation8 + $0x3f0] sm:$0xff]
    %v3884 = vld [vmem:[#allocation8 + $0x3f8] sm:$0xff]
    %v3885 = vld [vmem:[#allocation9] sm:$0xff]
    %v3886 = vld [vmem:[#allocation9 + $0x8] sm:$0xff]
    %v3887 = vld [vmem:[#allocation9 + $0x10] sm:$0xff]
    %v3888 = vld [vmem:[#allocation9 + $0x18] sm:$0xff]
    %v3889 = vld [vmem:[#allocation9 + $0x20] sm:$0xff]
    %v3890 = vld [vmem:[#allocation9 + $0x28] sm:$0xff]
    %v3891 = vld [vmem:[#allocation9 + $0x30] sm:$0xff]
    %v3892 = vld [vmem:[#allocation9 + $0x38] sm:$0xff]
    %v3893 = vld [vmem:[#allocation9 + $0x40] sm:$0xff]
    %v3894 = vld [vmem:[#allocation9 + $0x48] sm:$0xff]
    %v3895 = vld [vmem:[#allocation9 + $0x50] sm:$0xff]
    %v3896 = vld [vmem:[#allocation9 + $0x58] sm:$0xff]
    %v3897 = vld [vmem:[#allocation9 + $0x60] sm:$0xff]
    %v3898 = vld [vmem:[#allocation9 + $0x68] sm:$0xff]
    %v3899 = vld [vmem:[#allocation9 + $0x70] sm:$0xff]
    %v3900 = vld [vmem:[#allocation9 + $0x78] sm:$0xff]
    %v3901 = vld [vmem:[#allocation9 + $0x80] sm:$0xff]
    %v3902 = vld [vmem:[#allocation9 + $0x88] sm:$0xff]
    %v3903 = vld [vmem:[#allocation9 + $0x90] sm:$0xff]
    %v3904 = vld [vmem:[#allocation9 + $0x98] sm:$0xff]
    %v3905 = vld [vmem:[#allocation9 + $0xa0] sm:$0xff]
    %v3906 = vld [vmem:[#allocation9 + $0xa8] sm:$0xff]
    %v3907 = vld [vmem:[#allocation9 + $0xb0] sm:$0xff]
    %v3908 = vld [vmem:[#allocation9 + $0xb8] sm:$0xff]
    %v3909 = vld [vmem:[#allocation9 + $0xc0] sm:$0xff]
    %v3910 = vld [vmem:[#allocation9 + $0xc8] sm:$0xff]
    %v3911 = vld [vmem:[#allocation9 + $0xd0] sm:$0xff]
    %v3912 = vld [vmem:[#allocation9 + $0xd8] sm:$0xff]
    %v3913 = vld [vmem:[#allocation9 + $0xe0] sm:$0xff]
    %v3914 = vld [vmem:[#allocation9 + $0xe8] sm:$0xff]
    %v3915 = vld [vmem:[#allocation9 + $0xf0] sm:$0xff]
    %v3916 = vld [vmem:[#allocation9 + $0xf8] sm:$0xff]
    %v3917 = vld [vmem:[#allocation9 + $0x100] sm:$0xff]
    %v3918 = vld [vmem:[#allocation9 + $0x108] sm:$0xff]
    %v3919 = vld [vmem:[#allocation9 + $0x110] sm:$0xff]
    %v3920 = vld [vmem:[#allocation9 + $0x118] sm:$0xff]
    %v3921 = vld [vmem:[#allocation9 + $0x120] sm:$0xff]
    %v3922 = vld [vmem:[#allocation9 + $0x128] sm:$0xff]
    %v3923 = vld [vmem:[#allocation9 + $0x130] sm:$0xff]
    %v3924 = vld [vmem:[#allocation9 + $0x138] sm:$0xff]
    %v3925 = vld [vmem:[#allocation9 + $0x140] sm:$0xff]
    %v3926 = vld [vmem:[#allocation9 + $0x148] sm:$0xff]
    %v3927 = vld [vmem:[#allocation9 + $0x150] sm:$0xff]
    %v3928 = vld [vmem:[#allocation9 + $0x158] sm:$0xff]
    %v3929 = vld [vmem:[#allocation9 + $0x160] sm:$0xff]
    %v3930 = vld [vmem:[#allocation9 + $0x168] sm:$0xff]
    %v3931 = vld [vmem:[#allocation9 + $0x170] sm:$0xff]
    %v3932 = vld [vmem:[#allocation9 + $0x178] sm:$0xff]
    %v3933 = vld [vmem:[#allocation9 + $0x180] sm:$0xff]
    %v3934 = vld [vmem:[#allocation9 + $0x188] sm:$0xff]
    %v3935 = vld [vmem:[#allocation9 + $0x190] sm:$0xff]
    %v3936 = vld [vmem:[#allocation9 + $0x198] sm:$0xff]
    %v3937 = vld [vmem:[#allocation9 + $0x1a0] sm:$0xff]
    %v3938 = vld [vmem:[#allocation9 + $0x1a8] sm:$0xff]
    %v3939 = vld [vmem:[#allocation9 + $0x1b0] sm:$0xff]
    %v3940 = vld [vmem:[#allocation9 + $0x1b8] sm:$0xff]
    %v3941 = vld [vmem:[#allocation9 + $0x1c0] sm:$0xff]
    %v3942 = vld [vmem:[#allocation9 + $0x1c8] sm:$0xff]
    %v3943 = vld [vmem:[#allocation9 + $0x1d0] sm:$0xff]
    %v3944 = vld [vmem:[#allocation9 + $0x1d8] sm:$0xff]
    %v3945 = vld [vmem:[#allocation9 + $0x1e0] sm:$0xff]
    %v3946 = vld [vmem:[#allocation9 + $0x1e8] sm:$0xff]
    %v3947 = vld [vmem:[#allocation9 + $0x1f0] sm:$0xff]
    %v3948 = vld [vmem:[#allocation9 + $0x1f8] sm:$0xff]
    %v3949 = vld [vmem:[%s6] sm:$0xf]
    %v3951 = vlaneseq
    %v3952 = vshrl.u32 %v3951, 7
    %v3953 = vsub.s32 0, %v3952
    %v3954 = vrot.slane %v3949, %v3953
    %v3955 = vlaneseq
    %v3956 = vshrl.u32 %v3955, 7
    %v3957 = vsub.s32 1, %v3956
    %v3958 = vrot.slane %v3949, %v3957
    %v3959 = vlaneseq
    %v3960 = vshrl.u32 %v3959, 7
    %v3961 = vsub.s32 2, %v3960
    %v3962 = vrot.slane %v3949, %v3961
    %v3963 = vlaneseq
    %v3964 = vshrl.u32 %v3963, 7
    %v3965 = vsub.s32 3, %v3964
    %v3966 = vrot.slane %v3949, %v3965
    %3971 = vmatprep.subr.mxu0 %v3758
    %3972 = vmatpush1.msra.mxu0 %v3757
    %3973 = vmatprep.subr.mxu0 %v3762
    %3974 = vmatpush1.msra.mxu0 %v3761
    %3975 = vmatprep.subr.mxu0 %v3766
    %3976 = vmatpush1.msra.mxu0 %v3765
    %3977 = vmatprep.subr.mxu0 %v3770
    %3978 = vmatpush1.msra.mxu0 %v3769
    %3979 = vmatprep.subr.mxu0 %v3774
    %3980 = vmatpush1.msra.mxu0 %v3773
    %3981 = vmatprep.subr.mxu0 %v3778
    %3982 = vmatpush1.msra.mxu0 %v3777
    %3983 = vmatprep.subr.mxu0 %v3782
    %3984 = vmatpush1.msra.mxu0 %v3781
    %3985 = vmatprep.subr.mxu0 %v3786
    %3986 = vmatpush1.msra.mxu0 %v3785
    %3987 = vmatprep.subr.mxu0 %v3790
    %3988 = vmatpush1.msra.mxu0 %v3789
    %3989 = vmatprep.subr.mxu0 %v3794
    %3990 = vmatpush1.msra.mxu0 %v3793
    %3991 = vmatprep.subr.mxu0 %v3798
    %3992 = vmatpush1.msra.mxu0 %v3797
    %3993 = vmatprep.subr.mxu0 %v3802
    %3994 = vmatpush1.msra.mxu0 %v3801
    %3995 = vmatprep.subr.mxu0 %v3806
    %3996 = vmatpush1.msra.mxu0 %v3805
    %3997 = vmatprep.subr.mxu0 %v3810
    %3998 = vmatpush1.msra.mxu0 %v3809
    %3999 = vmatprep.subr.mxu0 %v3814
    %4000 = vmatpush1.msra.mxu0 %v3813
    %4001 = vmatprep.subr.mxu0 %v3818
    %4002 = vmatpush1.msra.mxu0 %v3817
    %4003 = vmatprep.subr.mxu0 %v3822
    %4004 = vmatpush1.msra.mxu0 %v3821
    %4005 = vmatprep.subr.mxu0 %v3826
    %4006 = vmatpush1.msra.mxu0 %v3825
    %4007 = vmatprep.subr.mxu0 %v3830
    %4008 = vmatpush1.msra.mxu0 %v3829
    %4009 = vmatprep.subr.mxu0 %v3834
    %4010 = vmatpush1.msra.mxu0 %v3833
    %4011 = vmatprep.subr.mxu0 %v3838
    %4012 = vmatpush1.msra.mxu0 %v3837
    %4013 = vmatprep.subr.mxu0 %v3842
    %4014 = vmatpush1.msra.mxu0 %v3841
    %4015 = vmatprep.subr.mxu0 %v3846
    %4016 = vmatpush1.msra.mxu0 %v3845
    %4017 = vmatprep.subr.mxu0 %v3850
    %4018 = vmatpush1.msra.mxu0 %v3849
    %4019 = vmatprep.subr.mxu0 %v3854
    %4020 = vmatpush1.msra.mxu0 %v3853
    %4021 = vmatprep.subr.mxu0 %v3858
    %4022 = vmatpush1.msra.mxu0 %v3857
    %4023 = vmatprep.subr.mxu0 %v3862
    %4024 = vmatpush1.msra.mxu0 %v3861
    %4025 = vmatprep.subr.mxu0 %v3866
    %4026 = vmatpush1.msra.mxu0 %v3865
    %4027 = vmatprep.subr.mxu0 %v3870
    %4028 = vmatpush1.msra.mxu0 %v3869
    %4029 = vmatprep.subr.mxu0 %v3874
    %4030 = vmatpush1.msra.mxu0 %v3873
    %4031 = vmatprep.subr.mxu0 %v3878
    %4032 = vmatpush1.msra.mxu0 %v3877
    %4033 = vmatprep.subr.mxu0 %v3882
    %4034 = vmatpush1.msra.mxu0 %v3881
    %4035 = vmatprep.mubr.f32.mxu0 %v3742
    %4036 = vmatmul.mubr.f32.gmra.mrb[0].mxu0 %v3741
    %v4037 = vpop.f32.mrb[0].mxu0
    %v4038 = vadd.f32 %v3954, %v4037
    %v4039 = vpop.f32.mrb[0].mxu0
    %v4040 = vadd.f32 %v3958, %v4039
    %4041 = vmatprep.mubr.f32.mxu0 %v3744
    %4042 = vmatmul.mubr.f32.gmra.mrb[0].mxu0 %v3743
    %v4043 = vpop.f32.mrb[0].mxu0
    %v4044 = vadd.f32 %v3954, %v4043
    %v4045 = vpop.f32.mrb[0].mxu0
    %v4046 = vadd.f32 %v3958, %v4045
    %4047 = vmatprep.mubr.f32.mxu0 %v3746
    %4048 = vmatmul.mubr.f32.gmra.mrb[0].mxu0 %v3745
    %v4049 = vpop.f32.mrb[0].mxu0
    %v4050 = vadd.f32 %v3954, %v4049
    %v4051 = vpop.f32.mrb[0].mxu0
    %v4052 = vadd.f32 %v3958, %v4051
    %4053 = vmatprep.mubr.f32.mxu0 %v3748
    %4054 = vmatmul.mubr.f32.gmra.mrb[0].mxu0 %v3747
    %v4055 = vpop.f32.mrb[0].mxu0
    %v4056 = vadd.f32 %v3954, %v4055
    %v4057 = vpop.f32.mrb[0].mxu0
    %v4058 = vadd.f32 %v3958, %v4057
    %4059 = vmatprep.mubr.f32.mxu0 %v3750
    %4060 = vmatmul.mubr.f32.gmra.mrb[0].mxu0 %v3749
    %v4061 = vpop.f32.mrb[0].mxu0
    %v4062 = vadd.f32 %v3954, %v4061
    %v4063 = vpop.f32.mrb[0].mxu0
    %v4064 = vadd.f32 %v3958, %v4063
    %4065 = vmatprep.mubr.f32.mxu0 %v3752
    %4066 = vmatmul.mubr.f32.gmra.mrb[0].mxu0 %v3751
    %v4067 = vpop.f32.mrb[0].mxu0
    %v4068 = vadd.f32 %v3954, %v4067
    %v4069 = vpop.f32.mrb[0].mxu0
    %v4070 = vadd.f32 %v3958, %v4069
    %4071 = vmatprep.mubr.f32.mxu0 %v3754
    %4072 = vmatmul.mubr.f32.gmra.mrb[0].mxu0 %v3753
    %v4073 = vpop.f32.mrb[0].mxu0
    %v4074 = vadd.f32 %v3954, %v4073
    %v4075 = vpop.f32.mrb[0].mxu0
    %v4076 = vadd.f32 %v3958, %v4075
    %4077 = vmatprep.mubr.f32.mxu0 %v3756
    %4078 = vmatmul.mubr.f32.gmra.mrb[0].mxu0 %v3755
    %v4079 = vpop.f32.mrb[0].mxu0
    %v4080 = vadd.f32 %v3954, %v4079
    %v4081 = vpop.f32.mrb[0].mxu0
    %v4082 = vadd.f32 %v3958, %v4081
    %4083 = vdwg.mxu0
    %4084 = vmatprep.subr.mxu0 %v3760
    %4085 = vmatpush1.msra.mxu0 %v3759
    %4086 = vmatprep.subr.mxu0 %v3764
    %4087 = vmatpush1.msra.mxu0 %v3763
    %4088 = vmatprep.subr.mxu0 %v3768
    %4089 = vmatpush1.msra.mxu0 %v3767
    %4090 = vmatprep.subr.mxu0 %v3772
    %4091 = vmatpush1.msra.mxu0 %v3771
    %4092 = vmatprep.subr.mxu0 %v3776
    %4093 = vmatpush1.msra.mxu0 %v3775
    %4094 = vmatprep.subr.mxu0 %v3780
    %4095 = vmatpush1.msra.mxu0 %v3779
    %4096 = vmatprep.subr.mxu0 %v3784
    %4097 = vmatpush1.msra.mxu0 %v3783
    %4098 = vmatprep.subr.mxu0 %v3788
    %4099 = vmatpush1.msra.mxu0 %v3787
    %4100 = vmatprep.subr.mxu0 %v3792
    %4101 = vmatpush1.msra.mxu0 %v3791
    %4102 = vmatprep.subr.mxu0 %v3796
    %4103 = vmatpush1.msra.mxu0 %v3795
    %4104 = vmatprep.subr.mxu0 %v3800
    %4105 = vmatpush1.msra.mxu0 %v3799
    %4106 = vmatprep.subr.mxu0 %v3804
    %4107 = vmatpush1.msra.mxu0 %v3803
    %4108 = vmatprep.subr.mxu0 %v3808
    %4109 = vmatpush1.msra.mxu0 %v3807
    %4110 = vmatprep.subr.mxu0 %v3812
    %4111 = vmatpush1.msra.mxu0 %v3811
    %4112 = vmatprep.subr.mxu0 %v3816
    %4113 = vmatpush1.msra.mxu0 %v3815
    %4114 = vmatprep.subr.mxu0 %v3820
    %4115 = vmatpush1.msra.mxu0 %v3819
    %4116 = vmatprep.subr.mxu0 %v3824
    %4117 = vmatpush1.msra.mxu0 %v3823
    %4118 = vmatprep.subr.mxu0 %v3828
    %4119 = vmatpush1.msra.mxu0 %v3827
    %4120 = vmatprep.subr.mxu0 %v3832
    %4121 = vmatpush1.msra.mxu0 %v3831
    %4122 = vmatprep.subr.mxu0 %v3836
    %4123 = vmatpush1.msra.mxu0 %v3835
    %4124 = vmatprep.subr.mxu0 %v3840
    %4125 = vmatpush1.msra.mxu0 %v3839
    %4126 = vmatprep.subr.mxu0 %v3844
    %4127 = vmatpush1.msra.mxu0 %v3843
    %4128 = vmatprep.subr.mxu0 %v3848
    %4129 = vmatpush1.msra.mxu0 %v3847
    %4130 = vmatprep.subr.mxu0 %v3852
    %4131 = vmatpush1.msra.mxu0 %v3851
    %4132 = vmatprep.subr.mxu0 %v3856
    %4133 = vmatpush1.msra.mxu0 %v3855
    %4134 = vmatprep.subr.mxu0 %v3860
    %4135 = vmatpush1.msra.mxu0 %v3859
    %4136 = vmatprep.subr.mxu0 %v3864
    %4137 = vmatpush1.msra.mxu0 %v3863
    %4138 = vmatprep.subr.mxu0 %v3868
    %4139 = vmatpush1.msra.mxu0 %v3867
    %4140 = vmatprep.subr.mxu0 %v3872
    %4141 = vmatpush1.msra.mxu0 %v3871
    %4142 = vmatprep.subr.mxu0 %v3876
    %4143 = vmatpush1.msra.mxu0 %v3875
    %4144 = vmatprep.subr.mxu0 %v3880
    %4145 = vmatpush1.msra.mxu0 %v3879
    %4146 = vmatprep.subr.mxu0 %v3884
    %4147 = vmatpush1.msra.mxu0 %v3883
    %4148 = vmatprep.mubr.f32.mxu0 %v3742
    %4149 = vmatmul.mubr.f32.gmra.mrb[0].mxu0 %v3741
    %v4150 = vpop.f32.mrb[0].mxu0
    %v4151 = vadd.f32 %v3962, %v4150
    %v4152 = vpop.f32.mrb[0].mxu0
    %v4153 = vadd.f32 %v3966, %v4152
    %4154 = vmatprep.mubr.f32.mxu0 %v3744
    %4155 = vmatmul.mubr.f32.gmra.mrb[0].mxu0 %v3743
    %v4156 = vpop.f32.mrb[0].mxu0
    %v4157 = vadd.f32 %v3962, %v4156
    %v4158 = vpop.f32.mrb[0].mxu0
    %v4159 = vadd.f32 %v3966, %v4158
    %4160 = vmatprep.mubr.f32.mxu0 %v3746
    %4161 = vmatmul.mubr.f32.gmra.mrb[0].mxu0 %v3745
    %v4162 = vpop.f32.mrb[0].mxu0
    %v4163 = vadd.f32 %v3962, %v4162
    %v4164 = vpop.f32.mrb[0].mxu0
    %v4165 = vadd.f32 %v3966, %v4164
    %4166 = vmatprep.mubr.f32.mxu0 %v3748
    %4167 = vmatmul.mubr.f32.gmra.mrb[0].mxu0 %v3747
    %v4168 = vpop.f32.mrb[0].mxu0
    %v4169 = vadd.f32 %v3962, %v4168
    %v4170 = vpop.f32.mrb[0].mxu0
    %v4171 = vadd.f32 %v3966, %v4170
    %4172 = vmatprep.mubr.f32.mxu0 %v3750
    %4173 = vmatmul.mubr.f32.gmra.mrb[0].mxu0 %v3749
    %v4174 = vpop.f32.mrb[0].mxu0
    %v4175 = vadd.f32 %v3962, %v4174
    %v4176 = vpop.f32.mrb[0].mxu0
    %v4177 = vadd.f32 %v3966, %v4176
    %4178 = vmatprep.mubr.f32.mxu0 %v3752
    %4179 = vmatmul.mubr.f32.gmra.mrb[0].mxu0 %v3751
    %v4180 = vpop.f32.mrb[0].mxu0
    %v4181 = vadd.f32 %v3962, %v4180
    %v4182 = vpop.f32.mrb[0].mxu0
    %v4183 = vadd.f32 %v3966, %v4182
    %4184 = vmatprep.mubr.f32.mxu0 %v3754
    %4185 = vmatmul.mubr.f32.gmra.mrb[0].mxu0 %v3753
    %v4186 = vpop.f32.mrb[0].mxu0
    %v4187 = vadd.f32 %v3962, %v4186
    %v4188 = vpop.f32.mrb[0].mxu0
    %v4189 = vadd.f32 %v3966, %v4188
    %4190 = vmatprep.mubr.f32.mxu0 %v3756
    %4191 = vmatmul.mubr.f32.gmra.mrb[0].mxu0 %v3755
    %v4192 = vpop.f32.mrb[0].mxu0
    %v4193 = vadd.f32 %v3962, %v4192
    %v4194 = vpop.f32.mrb[0].mxu0
    %v4195 = vadd.f32 %v3966, %v4194
    %4196 = vdwg.mxu0
    %4197 = vst [vmem:[#allocation3] sm:$0xff] %v4038
    %4198 = vst [vmem:[#allocation3 + $0x8] sm:$0xff] %v4040
    %4199 = vst [vmem:[#allocation3 + $0x10] sm:$0xff] %v4151
    %4200 = vst [vmem:[#allocation3 + $0x18] sm:$0xff] %v4153
    %4201 = vst [vmem:[#allocation3 + $0x20] sm:$0xff] %v4044
    %4202 = vst [vmem:[#allocation3 + $0x28] sm:$0xff] %v4046
    %4203 = vst [vmem:[#allocation3 + $0x30] sm:$0xff] %v4157
    %4204 = vst [vmem:[#allocation3 + $0x38] sm:$0xff] %v4159
    %4205 = vst [vmem:[#allocation3 + $0x40] sm:$0xff] %v4050
    %4206 = vst [vmem:[#allocation3 + $0x48] sm:$0xff] %v4052
    %4207 = vst [vmem:[#allocation3 + $0x50] sm:$0xff] %v4163
    %4208 = vst [vmem:[#allocation3 + $0x58] sm:$0xff] %v4165
    %4209 = vst [vmem:[#allocation3 + $0x60] sm:$0xff] %v4056
    %4210 = vst [vmem:[#allocation3 + $0x68] sm:$0xff] %v4058
    %4211 = vst [vmem:[#allocation3 + $0x70] sm:$0xff] %v4169
    %4212 = vst [vmem:[#allocation3 + $0x78] sm:$0xff] %v4171
    %4213 = vst [vmem:[#allocation3 + $0x80] sm:$0xff] %v4062
    %4214 = vst [vmem:[#allocation3 + $0x88] sm:$0xff] %v4064
    %4215 = vst [vmem:[#allocation3 + $0x90] sm:$0xff] %v4175
    %4216 = vst [vmem:[#allocation3 + $0x98] sm:$0xff] %v4177
    %4217 = vst [vmem:[#allocation3 + $0xa0] sm:$0xff] %v4068
    %4218 = vst [vmem:[#allocation3 + $0xa8] sm:$0xff] %v4070
    %4219 = vst [vmem:[#allocation3 + $0xb0] sm:$0xff] %v4181
    %4220 = vst [vmem:[#allocation3 + $0xb8] sm:$0xff] %v4183
    %4221 = vst [vmem:[#allocation3 + $0xc0] sm:$0xff] %v4074
    %4222 = vst [vmem:[#allocation3 + $0xc8] sm:$0xff] %v4076
    %4223 = vst [vmem:[#allocation3 + $0xd0] sm:$0xff] %v4187
    %4224 = vst [vmem:[#allocation3 + $0xd8] sm:$0xff] %v4189
    %4225 = vst [vmem:[#allocation3 + $0xe0] sm:$0xff] %v4080
    %4226 = vst [vmem:[#allocation3 + $0xe8] sm:$0xff] %v4082
    %4227 = vst [vmem:[#allocation3 + $0xf0] sm:$0xff] %v4193
    %4228 = vst [vmem:[#allocation3 + $0xf8] sm:$0xff] %v4195
    %v4229 = vld [vmem:[#allocation3] sm:$0xff]
    %v4230 = vld [vmem:[#allocation3 + $0x8] sm:$0xff]
    %v4231 = vld [vmem:[#allocation3 + $0x10] sm:$0xff]
    %v4232 = vld [vmem:[#allocation3 + $0x18] sm:$0xff]
    %4233 = vmatprep.subr.mxu0 %v3886
    %4234 = vmatpush1.msra.mxu0 %v3885
    %4235 = vmatprep.subr.mxu0 %v3890
    %4236 = vmatpush1.msra.mxu0 %v3889
    %4237 = vmatprep.subr.mxu0 %v3894
    %4238 = vmatpush1.msra.mxu0 %v3893
    %4239 = vmatprep.subr.mxu0 %v3898
    %4240 = vmatpush1.msra.mxu0 %v3897
    %4241 = vmatprep.subr.mxu0 %v3902
    %4242 = vmatpush1.msra.mxu0 %v3901
    %4243 = vmatprep.subr.mxu0 %v3906
    %4244 = vmatpush1.msra.mxu0 %v3905
    %4245 = vmatprep.subr.mxu0 %v3910
    %4246 = vmatpush1.msra.mxu0 %v3909
    %4247 = vmatprep.subr.mxu0 %v3914
    %4248 = vmatpush1.msra.mxu0 %v3913
    %4249 = vmatprep.subr.mxu0 %v3918
    %4250 = vmatpush1.msra.mxu0 %v3917
    %4251 = vmatprep.subr.mxu0 %v3922
    %4252 = vmatpush1.msra.mxu0 %v3921
    %4253 = vmatprep.subr.mxu0 %v3926
    %4254 = vmatpush1.msra.mxu0 %v3925
    %4255 = vmatprep.subr.mxu0 %v3930
    %4256 = vmatpush1.msra.mxu0 %v3929
    %4257 = vmatprep.subr.mxu0 %v3934
    %4258 = vmatpush1.msra.mxu0 %v3933
    %4259 = vmatprep.subr.mxu0 %v3938
    %4260 = vmatpush1.msra.mxu0 %v3937
    %4261 = vmatprep.subr.mxu0 %v3942
    %4262 = vmatpush1.msra.mxu0 %v3941
    %4263 = vmatprep.subr.mxu0 %v3946
    %4264 = vmatpush1.msra.mxu0 %v3945
    %4265 = vmatprep.subr.mxu0 0.0
    %4266 = vmatpush1.msra.mxu0 0.0
    %4267 = vmatprep.subr.mxu0 0.0
    %4268 = vmatpush1.msra.mxu0 0.0
    %4269 = vmatprep.subr.mxu0 0.0
    %4270 = vmatpush1.msra.mxu0 0.0
    %4271 = vmatprep.subr.mxu0 0.0
    %4272 = vmatpush1.msra.mxu0 0.0
    %4273 = vmatprep.subr.mxu0 0.0
    %4274 = vmatpush1.msra.mxu0 0.0
    %4275 = vmatprep.subr.mxu0 0.0
    %4276 = vmatpush1.msra.mxu0 0.0
    %4277 = vmatprep.subr.mxu0 0.0
    %4278 = vmatpush1.msra.mxu0 0.0
    %4279 = vmatprep.subr.mxu0 0.0
    %4280 = vmatpush1.msra.mxu0 0.0
    %4281 = vmatprep.subr.mxu0 0.0
    %4282 = vmatpush1.msra.mxu0 0.0
    %4283 = vmatprep.subr.mxu0 0.0
    %4284 = vmatpush1.msra.mxu0 0.0
    %4285 = vmatprep.subr.mxu0 0.0
    %4286 = vmatpush1.msra.mxu0 0.0
    %4287 = vmatprep.subr.mxu0 0.0
    %4288 = vmatpush1.msra.mxu0 0.0
    %4289 = vmatprep.subr.mxu0 0.0
    %4290 = vmatpush1.msra.mxu0 0.0
    %4291 = vmatprep.subr.mxu0 0.0
    %4292 = vmatpush1.msra.mxu0 0.0
    %4293 = vmatprep.subr.mxu0 0.0
    %4294 = vmatpush1.msra.mxu0 0.0
    %4295 = vmatprep.subr.mxu0 0.0
    %4296 = vmatpush1.msra.mxu0 0.0
    %4297 = vmatprep.mubr.f32.mxu0 0.0
    %4298 = vmatmul.mubr.f32.gmra.mrb[0].mxu0 0.0
    %v4299 = vpop.f32.mrb[0].mxu0
    %v4300 = vadd.f32 0.0, %v4299
    %v4301 = vpop.f32.mrb[0].mxu0
    %v4302 = vadd.f32 0.0, %v4301
    %4303 = vdwg.mxu0
    %4304 = vmatprep.subr.mxu0 %v3888
    %4305 = vmatpush1.msra.mxu0 %v3887
    %4306 = vmatprep.subr.mxu0 %v3892
    %4307 = vmatpush1.msra.mxu0 %v3891
    %4308 = vmatprep.subr.mxu0 %v3896
    %4309 = vmatpush1.msra.mxu0 %v3895
    %4310 = vmatprep.subr.mxu0 %v3900
    %4311 = vmatpush1.msra.mxu0 %v3899
    %4312 = vmatprep.subr.mxu0 %v3904
    %4313 = vmatpush1.msra.mxu0 %v3903
    %4314 = vmatprep.subr.mxu0 %v3908
    %4315 = vmatpush1.msra.mxu0 %v3907
    %4316 = vmatprep.subr.mxu0 %v3912
    %4317 = vmatpush1.msra.mxu0 %v3911
    %4318 = vmatprep.subr.mxu0 %v3916
    %4319 = vmatpush1.msra.mxu0 %v3915
    %4320 = vmatprep.subr.mxu0 %v3920
    %4321 = vmatpush1.msra.mxu0 %v3919
    %4322 = vmatprep.subr.mxu0 %v3924
    %4323 = vmatpush1.msra.mxu0 %v3923
    %4324 = vmatprep.subr.mxu0 %v3928
    %4325 = vmatpush1.msra.mxu0 %v3927
    %4326 = vmatprep.subr.mxu0 %v3932
    %4327 = vmatpush1.msra.mxu0 %v3931
    %4328 = vmatprep.subr.mxu0 %v3936
    %4329 = vmatpush1.msra.mxu0 %v3935
    %4330 = vmatprep.subr.mxu0 %v3940
    %4331 = vmatpush1.msra.mxu0 %v3939
    %4332 = vmatprep.subr.mxu0 %v3944
    %4333 = vmatpush1.msra.mxu0 %v3943
    %4334 = vmatprep.subr.mxu0 %v3948
    %4335 = vmatpush1.msra.mxu0 %v3947
    %4336 = vmatprep.subr.mxu0 0.0
    %4337 = vmatpush1.msra.mxu0 0.0
    %4338 = vmatprep.subr.mxu0 0.0
    %4339 = vmatpush1.msra.mxu0 0.0
    %4340 = vmatprep.subr.mxu0 0.0
    %4341 = vmatpush1.msra.mxu0 0.0
    %4342 = vmatprep.subr.mxu0 0.0
    %4343 = vmatpush1.msra.mxu0 0.0
    %4344 = vmatprep.subr.mxu0 0.0
    %4345 = vmatpush1.msra.mxu0 0.0
    %4346 = vmatprep.subr.mxu0 0.0
    %4347 = vmatpush1.msra.mxu0 0.0
    %4348 = vmatprep.subr.mxu0 0.0
    %4349 = vmatpush1.msra.mxu0 0.0
    %4350 = vmatprep.subr.mxu0 0.0
    %4351 = vmatpush1.msra.mxu0 0.0
    %4352 = vmatprep.subr.mxu0 0.0
    %4353 = vmatpush1.msra.mxu0 0.0
    %4354 = vmatprep.subr.mxu0 0.0
    %4355 = vmatpush1.msra.mxu0 0.0
    %4356 = vmatprep.subr.mxu0 0.0
    %4357 = vmatpush1.msra.mxu0 0.0
    %4358 = vmatprep.subr.mxu0 0.0
    %4359 = vmatpush1.msra.mxu0 0.0
    %4360 = vmatprep.subr.mxu0 0.0
    %4361 = vmatpush1.msra.mxu0 0.0
    %4362 = vmatprep.subr.mxu0 0.0
    %4363 = vmatpush1.msra.mxu0 0.0
    %4364 = vmatprep.subr.mxu0 0.0
    %4365 = vmatpush1.msra.mxu0 0.0
    %4366 = vmatprep.subr.mxu0 0.0
    %4367 = vmatpush1.msra.mxu0 0.0
    %4368 = vmatprep.mubr.f32.mxu0 0.0
    %4369 = vmatmul.mubr.f32.gmra.mrb[0].mxu0 0.0
    %v4370 = vpop.f32.mrb[0].mxu0
    %v4371 = vadd.f32 0.0, %v4370
    %v4372 = vpop.f32.mrb[0].mxu0
    %v4373 = vadd.f32 0.0, %v4372
    %4374 = vdwg.mxu0
    %v4375 = vadd.f32 %v4229, %v4300
    %v4376 = vadd.f32 %v4230, %v4302
    %v4377 = vadd.f32 %v4231, %v4371
    %v4378 = vadd.f32 %v4232, %v4373
    %v4379 = vxor.u32 %v4375, 2147483648
    %v4380 = vmul.f32 %v4379, 1.442695
    %v4381 = vpow.pop %v4380
    %v4382 = vadd.f32 %v4381, 1.0
    %v4383 = vrcp.pop %v4382
    %v4384 = vmul.f32 1.0, %v4383
    %v4385 = vxor.u32 %v4376, 2147483648
    %v4386 = vmul.f32 %v4385, 1.442695
    %v4387 = vpow.pop %v4386
    %v4388 = vadd.f32 %v4387, 1.0
    %v4389 = vrcp.pop %v4388
    %v4390 = vmul.f32 1.0, %v4389
    %v4391 = vtanh.pop %v4377
    %v4392 = vxor.u32 %v4378, 2147483648
    %v4393 = vmul.f32 %v4392, 1.442695
    %v4394 = vpow.pop %v4393
    %v4395 = vadd.f32 %v4394, 1.0
    %v4396 = vrcp.pop %v4395
    %v4397 = vmul.f32 1.0, %v4396
    %v4398 = vmul.f32 %v4390, 0.0
    %v4399 = vmul.f32 %v4384, %v4391
    %v4400 = vadd.f32 %v4398, %v4399
    %v4401 = vtanh.pop %v4400
    %v4402 = vmul.f32 %v4397, %v4401
    %v4403 = vld [vmem:[%s691] sm:$0xff]
    %v4404 = vld [vmem:[%s691 + $0x8] sm:$0xff]
    %v4405 = vld [vmem:[%s691 + $0x10] sm:$0xff]
    %v4406 = vld [vmem:[%s691 + $0x18] sm:$0xff]
    %4407 = vmatprep.subr.mxu0 %v3886
    %4408 = vmatpush1.msra.mxu0 %v3885
    %4409 = vmatprep.subr.mxu0 %v3890
    %4410 = vmatpush1.msra.mxu0 %v3889
    %4411 = vmatprep.subr.mxu0 %v3894
    %4412 = vmatpush1.msra.mxu0 %v3893
    %4413 = vmatprep.subr.mxu0 %v3898
    %4414 = vmatpush1.msra.mxu0 %v3897
    %4415 = vmatprep.subr.mxu0 %v3902
    %4416 = vmatpush1.msra.mxu0 %v3901
    %4417 = vmatprep.subr.mxu0 %v3906
    %4418 = vmatpush1.msra.mxu0 %v3905
    %4419 = vmatprep.subr.mxu0 %v3910
    %4420 = vmatpush1.msra.mxu0 %v3909
    %4421 = vmatprep.subr.mxu0 %v3914
    %4422 = vmatpush1.msra.mxu0 %v3913
    %4423 = vmatprep.subr.mxu0 %v3918
    %4424 = vmatpush1.msra.mxu0 %v3917
    %4425 = vmatprep.subr.mxu0 %v3922
    %4426 = vmatpush1.msra.mxu0 %v3921
    %4427 = vmatprep.subr.mxu0 %v3926
    %4428 = vmatpush1.msra.mxu0 %v3925
    %4429 = vmatprep.subr.mxu0 %v3930
    %4430 = vmatpush1.msra.mxu0 %v3929
    %4431 = vmatprep.subr.mxu0 %v3934
    %4432 = vmatpush1.msra.mxu0 %v3933
    %4433 = vmatprep.subr.mxu0 %v3938
    %4434 = vmatpush1.msra.mxu0 %v3937
    %4435 = vmatprep.subr.mxu0 %v3942
    %4436 = vmatpush1.msra.mxu0 %v3941
    %4437 = vmatprep.subr.mxu0 %v3946
    %4438 = vmatpush1.msra.mxu0 %v3945
    %4439 = vmatprep.subr.mxu0 0.0
    %4440 = vmatpush1.msra.mxu0 0.0
    %4441 = vmatprep.subr.mxu0 0.0
    %4442 = vmatpush1.msra.mxu0 0.0
    %4443 = vmatprep.subr.mxu0 0.0
    %4444 = vmatpush1.msra.mxu0 0.0
    %4445 = vmatprep.subr.mxu0 0.0
    %4446 = vmatpush1.msra.mxu0 0.0
    %4447 = vmatprep.subr.mxu0 0.0
    %4448 = vmatpush1.msra.mxu0 0.0
    %4449 = vmatprep.subr.mxu0 0.0
    %4450 = vmatpush1.msra.mxu0 0.0
    %4451 = vmatprep.subr.mxu0 0.0
    %4452 = vmatpush1.msra.mxu0 0.0
    %4453 = vmatprep.subr.mxu0 0.0
    %4454 = vmatpush1.msra.mxu0 0.0
    %4455 = vmatprep.subr.mxu0 0.0
    %4456 = vmatpush1.msra.mxu0 0.0
    %4457 = vmatprep.subr.mxu0 0.0
    %4458 = vmatpush1.msra.mxu0 0.0
    %4459 = vmatprep.subr.mxu0 0.0
    %4460 = vmatpush1.msra.mxu0 0.0
    %4461 = vmatprep.subr.mxu0 0.0
    %4462 = vmatpush1.msra.mxu0 0.0
    %4463 = vmatprep.subr.mxu0 0.0
    %4464 = vmatpush1.msra.mxu0 0.0
    %4465 = vmatprep.subr.mxu0 0.0
    %4466 = vmatpush1.msra.mxu0 0.0
    %4467 = vmatprep.subr.mxu0 0.0
    %4468 = vmatpush1.msra.mxu0 0.0
    %4469 = vmatprep.subr.mxu0 0.0
    %4470 = vmatpush1.msra.mxu0 0.0
    %4471 = vmatprep.mubr.f32.mxu0 0.0
    %4472 = vmatmul.mubr.f32.gmra.mrb[0].mxu0 %v4402
    %v4473 = vpop.f32.mrb[0].mxu0
    %v4474 = vadd.f32 0.0, %v4473
    %v4475 = vpop.f32.mrb[0].mxu0
    %v4476 = vadd.f32 0.0, %v4475
    %4477 = vdwg.mxu0
    %4478 = vmatprep.subr.mxu0 %v3888
    %4479 = vmatpush1.msra.mxu0 %v3887
    %4480 = vmatprep.subr.mxu0 %v3892
    %4481 = vmatpush1.msra.mxu0 %v3891
    %4482 = vmatprep.subr.mxu0 %v3896
    %4483 = vmatpush1.msra.mxu0 %v3895
    %4484 = vmatprep.subr.mxu0 %v3900
    %4485 = vmatpush1.msra.mxu0 %v3899
    %4486 = vmatprep.subr.mxu0 %v3904
    %4487 = vmatpush1.msra.mxu0 %v3903
    %4488 = vmatprep.subr.mxu0 %v3908
    %4489 = vmatpush1.msra.mxu0 %v3907
    %4490 = vmatprep.subr.mxu0 %v3912
    %4491 = vmatpush1.msra.mxu0 %v3911
    %4492 = vmatprep.subr.mxu0 %v3916
    %4493 = vmatpush1.msra.mxu0 %v3915
    %4494 = vmatprep.subr.mxu0 %v3920
    %4495 = vmatpush1.msra.mxu0 %v3919
    %4496 = vmatprep.subr.mxu0 %v3924
    %4497 = vmatpush1.msra.mxu0 %v3923
    %4498 = vmatprep.subr.mxu0 %v3928
    %4499 = vmatpush1.msra.mxu0 %v3927
    %4500 = vmatprep.subr.mxu0 %v3932
    %4501 = vmatpush1.msra.mxu0 %v3931
    %4502 = vmatprep.subr.mxu0 %v3936
    %4503 = vmatpush1.msra.mxu0 %v3935
    %4504 = vmatprep.subr.mxu0 %v3940
    %4505 = vmatpush1.msra.mxu0 %v3939
    %4506 = vmatprep.subr.mxu0 %v3944
    %4507 = vmatpush1.msra.mxu0 %v3943
    %4508 = vmatprep.subr.mxu0 %v3948
    %4509 = vmatpush1.msra.mxu0 %v3947
    %4510 = vmatprep.subr.mxu0 0.0
    %4511 = vmatpush1.msra.mxu0 0.0
    %4512 = vmatprep.subr.mxu0 0.0
    %4513 = vmatpush1.msra.mxu0 0.0
    %4514 = vmatprep.subr.mxu0 0.0
    %4515 = vmatpush1.msra.mxu0 0.0
    %4516 = vmatprep.subr.mxu0 0.0
    %4517 = vmatpush1.msra.mxu0 0.0
    %4518 = vmatprep.subr.mxu0 0.0
    %4519 = vmatpush1.msra.mxu0 0.0
    %4520 = vmatprep.subr.mxu0 0.0
    %4521 = vmatpush1.msra.mxu0 0.0
    %4522 = vmatprep.subr.mxu0 0.0
    %4523 = vmatpush1.msra.mxu0 0.0
    %4524 = vmatprep.subr.mxu0 0.0
    %4525 = vmatpush1.msra.mxu0 0.0
    %4526 = vmatprep.subr.mxu0 0.0
    %4527 = vmatpush1.msra.mxu0 0.0
    %4528 = vmatprep.subr.mxu0 0.0
    %4529 = vmatpush1.msra.mxu0 0.0
    %4530 = vmatprep.subr.mxu0 0.0
    %4531 = vmatpush1.msra.mxu0 0.0
    %4532 = vmatprep.subr.mxu0 0.0
    %4533 = vmatpush1.msra.mxu0 0.0
    %4534 = vmatprep.subr.mxu0 0.0
    %4535 = vmatpush1.msra.mxu0 0.0
    %4536 = vmatprep.subr.mxu0 0.0
    %4537 = vmatpush1.msra.mxu0 0.0
    %4538 = vmatprep.subr.mxu0 0.0
    %4539 = vmatpush1.msra.mxu0 0.0
    %4540 = vmatprep.subr.mxu0 0.0
    %4541 = vmatpush1.msra.mxu0 0.0
    %4542 = vmatprep.mubr.f32.mxu0 0.0
    %4543 = vmatmul.mubr.f32.gmra.mrb[0].mxu0 %v4402
    %v4544 = vpop.f32.mrb[0].mxu0
    %v4545 = vadd.f32 0.0, %v4544
    %v4546 = vpop.f32.mrb[0].mxu0
    %v4547 = vadd.f32 0.0, %v4546
    %4548 = vdwg.mxu0
    %v4549 = vadd.f32 %v4403, %v4474
    %v4550 = vadd.f32 %v4404, %v4476
    %v4551 = vadd.f32 %v4405, %v4545
    %v4552 = vadd.f32 %v4406, %v4547
    %v4553 = vxor.u32 %v4549, 2147483648
    %v4554 = vmul.f32 %v4553, 1.442695
    %v4555 = vpow.pop %v4554
    %v4556 = vadd.f32 %v4555, 1.0
    %v4557 = vrcp.pop %v4556
    %v4558 = vmul.f32 1.0, %v4557
    %v4559 = vxor.u32 %v4550, 2147483648
    %v4560 = vmul.f32 %v4559, 1.442695
    %v4561 = vpow.pop %v4560
    %v4562 = vadd.f32 %v4561, 1.0
    %v4563 = vrcp.pop %v4562
    %v4564 = vmul.f32 1.0, %v4563
    %v4565 = vtanh.pop %v4551
    %v4566 = vxor.u32 %v4552, 2147483648
    %v4567 = vmul.f32 %v4566, 1.442695
    %v4568 = vpow.pop %v4567
    %v4569 = vadd.f32 %v4568, 1.0
    %v4570 = vrcp.pop %v4569
    %v4571 = vmul.f32 1.0, %v4570
    %v4572 = vmul.f32 %v4564, %v4400
    %v4573 = vmul.f32 %v4558, %v4565
    %v4574 = vadd.f32 %v4572, %v4573
    %v4575 = vtanh.pop %v4574
    %v4576 = vmul.f32 %v4571, %v4575
    %v4577 = vld [vmem:[%s868] sm:$0xff]
    %v4578 = vld [vmem:[%s868 + $0x8] sm:$0xff]
    %v4579 = vld [vmem:[%s868 + $0x10] sm:$0xff]
    %v4580 = vld [vmem:[%s868 + $0x18] sm:$0xff]
    %4581 = vmatprep.subr.mxu0 %v3886
    %4582 = vmatpush1.msra.mxu0 %v3885
    %4583 = vmatprep.subr.mxu0 %v3890
    %4584 = vmatpush1.msra.mxu0 %v3889
    %4585 = vmatprep.subr.mxu0 %v3894
    %4586 = vmatpush1.msra.mxu0 %v3893
    %4587 = vmatprep.subr.mxu0 %v3898
    %4588 = vmatpush1.msra.mxu0 %v3897
    %4589 = vmatprep.subr.mxu0 %v3902
    %4590 = vmatpush1.msra.mxu0 %v3901
    %4591 = vmatprep.subr.mxu0 %v3906
    %4592 = vmatpush1.msra.mxu0 %v3905
    %4593 = vmatprep.subr.mxu0 %v3910
    %4594 = vmatpush1.msra.mxu0 %v3909
    %4595 = vmatprep.subr.mxu0 %v3914
    %4596 = vmatpush1.msra.mxu0 %v3913
    %4597 = vmatprep.subr.mxu0 %v3918
    %4598 = vmatpush1.msra.mxu0 %v3917
    %4599 = vmatprep.subr.mxu0 %v3922
    %4600 = vmatpush1.msra.mxu0 %v3921
    %4601 = vmatprep.subr.mxu0 %v3926
    %4602 = vmatpush1.msra.mxu0 %v3925
    %4603 = vmatprep.subr.mxu0 %v3930
    %4604 = vmatpush1.msra.mxu0 %v3929
    %4605 = vmatprep.subr.mxu0 %v3934
    %4606 = vmatpush1.msra.mxu0 %v3933
    %4607 = vmatprep.subr.mxu0 %v3938
    %4608 = vmatpush1.msra.mxu0 %v3937
    %4609 = vmatprep.subr.mxu0 %v3942
    %4610 = vmatpush1.msra.mxu0 %v3941
    %4611 = vmatprep.subr.mxu0 %v3946
    %4612 = vmatpush1.msra.mxu0 %v3945
    %4613 = vmatprep.subr.mxu0 0.0
    %4614 = vmatpush1.msra.mxu0 0.0
    %4615 = vmatprep.subr.mxu0 0.0
    %4616 = vmatpush1.msra.mxu0 0.0
    %4617 = vmatprep.subr.mxu0 0.0
    %4618 = vmatpush1.msra.mxu0 0.0
    %4619 = vmatprep.subr.mxu0 0.0
    %4620 = vmatpush1.msra.mxu0 0.0
    %4621 = vmatprep.subr.mxu0 0.0
    %4622 = vmatpush1.msra.mxu0 0.0
    %4623 = vmatprep.subr.mxu0 0.0
    %4624 = vmatpush1.msra.mxu0 0.0
    %4625 = vmatprep.subr.mxu0 0.0
    %4626 = vmatpush1.msra.mxu0 0.0
    %4627 = vmatprep.subr.mxu0 0.0
    %4628 = vmatpush1.msra.mxu0 0.0
    %4629 = vmatprep.subr.mxu0 0.0
    %4630 = vmatpush1.msra.mxu0 0.0
    %4631 = vmatprep.subr.mxu0 0.0
    %4632 = vmatpush1.msra.mxu0 0.0
    %4633 = vmatprep.subr.mxu0 0.0
    %4634 = vmatpush1.msra.mxu0 0.0
    %4635 = vmatprep.subr.mxu0 0.0
    %4636 = vmatpush1.msra.mxu0 0.0
    %4637 = vmatprep.subr.mxu0 0.0
    %4638 = vmatpush1.msra.mxu0 0.0
    %4639 = vmatprep.subr.mxu0 0.0
    %4640 = vmatpush1.msra.mxu0 0.0
    %4641 = vmatprep.subr.mxu0 0.0
    %4642 = vmatpush1.msra.mxu0 0.0
    %4643 = vmatprep.subr.mxu0 0.0
    %4644 = vmatpush1.msra.mxu0 0.0
    %4645 = vmatprep.mubr.f32.mxu0 0.0
    %4646 = vmatmul.mubr.f32.gmra.mrb[0].mxu0 %v4576
    %v4647 = vpop.f32.mrb[0].mxu0
    %v4648 = vadd.f32 0.0, %v4647
    %v4649 = vpop.f32.mrb[0].mxu0
    %v4650 = vadd.f32 0.0, %v4649
    %4651 = vdwg.mxu0
    %4652 = vmatprep.subr.mxu0 %v3888
    %4653 = vmatpush1.msra.mxu0 %v3887
    %4654 = vmatprep.subr.mxu0 %v3892
    %4655 = vmatpush1.msra.mxu0 %v3891
    %4656 = vmatprep.subr.mxu0 %v3896
    %4657 = vmatpush1.msra.mxu0 %v3895
    %4658 = vmatprep.subr.mxu0 %v3900
    %4659 = vmatpush1.msra.mxu0 %v3899
    %4660 = vmatprep.subr.mxu0 %v3904
    %4661 = vmatpush1.msra.mxu0 %v3903
    %4662 = vmatprep.subr.mxu0 %v3908
    %4663 = vmatpush1.msra.mxu0 %v3907
    %4664 = vmatprep.subr.mxu0 %v3912
    %4665 = vmatpush1.msra.mxu0 %v3911
    %4666 = vmatprep.subr.mxu0 %v3916
    %4667 = vmatpush1.msra.mxu0 %v3915
    %4668 = vmatprep.subr.mxu0 %v3920
    %4669 = vmatpush1.msra.mxu0 %v3919
    %4670 = vmatprep.subr.mxu0 %v3924
    %4671 = vmatpush1.msra.mxu0 %v3923
    %4672 = vmatprep.subr.mxu0 %v3928
    %4673 = vmatpush1.msra.mxu0 %v3927
    %4674 = vmatprep.subr.mxu0 %v3932
    %4675 = vmatpush1.msra.mxu0 %v3931
    %4676 = vmatprep.subr.mxu0 %v3936
    %4677 = vmatpush1.msra.mxu0 %v3935
    %4678 = vmatprep.subr.mxu0 %v3940
    %4679 = vmatpush1.msra.mxu0 %v3939
    %4680 = vmatprep.subr.mxu0 %v3944
    %4681 = vmatpush1.msra.mxu0 %v3943
    %4682 = vmatprep.subr.mxu0 %v3948
    %4683 = vmatpush1.msra.mxu0 %v3947
    %4684 = vmatprep.subr.mxu0 0.0
    %4685 = vmatpush1.msra.mxu0 0.0
    %4686 = vmatprep.subr.mxu0 0.0
    %4687 = vmatpush1.msra.mxu0 0.0
    %4688 = vmatprep.subr.mxu0 0.0
    %4689 = vmatpush1.msra.mxu0 0.0
    %4690 = vmatprep.subr.mxu0 0.0
    %4691 = vmatpush1.msra.mxu0 0.0
    %4692 = vmatprep.subr.mxu0 0.0
    %4693 = vmatpush1.msra.mxu0 0.0
    %4694 = vmatprep.subr.mxu0 0.0
    %4695 = vmatpush1.msra.mxu0 0.0
    %4696 = vmatprep.subr.mxu0 0.0
    %4697 = vmatpush1.msra.mxu0 0.0
    %4698 = vmatprep.subr.mxu0 0.0
    %4699 = vmatpush1.msra.mxu0 0.0
    %4700 = vmatprep.subr.mxu0 0.0
    %4701 = vmatpush1.msra.mxu0 0.0
    %4702 = vmatprep.subr.mxu0 0.0
    %4703 = vmatpush1.msra.mxu0 0.0
    %4704 = vmatprep.subr.mxu0 0.0
    %4705 = vmatpush1.msra.mxu0 0.0
    %4706 = vmatprep.subr.mxu0 0.0
    %4707 = vmatpush1.msra.mxu0 0.0
    %4708 = vmatprep.subr.mxu0 0.0
    %4709 = vmatpush1.msra.mxu0 0.0
    %4710 = vmatprep.subr.mxu0 0.0
    %4711 = vmatpush1.msra.mxu0 0.0
    %4712 = vmatprep.subr.mxu0 0.0
    %4713 = vmatpush1.msra.mxu0 0.0
    %4714 = vmatprep.subr.mxu0 0.0
    %4715 = vmatpush1.msra.mxu0 0.0
    %4716 = vmatprep.mubr.f32.mxu0 0.0
    %4717 = vmatmul.mubr.f32.gmra.mrb[0].mxu0 %v4576
    %v4718 = vpop.f32.mrb[0].mxu0
    %v4719 = vadd.f32 0.0, %v4718
    %v4720 = vpop.f32.mrb[0].mxu0
    %v4721 = vadd.f32 0.0, %v4720
    %4722 = vdwg.mxu0
    %v4723 = vadd.f32 %v4577, %v4648
    %v4724 = vadd.f32 %v4578, %v4650
    %v4725 = vadd.f32 %v4579, %v4719
    %v4726 = vadd.f32 %v4580, %v4721
    %v4727 = vxor.u32 %v4723, 2147483648
    %v4728 = vmul.f32 %v4727, 1.442695
    %v4729 = vpow.pop %v4728
    %v4730 = vadd.f32 %v4729, 1.0
    %v4731 = vrcp.pop %v4730
    %v4732 = vmul.f32 1.0, %v4731
    %v4733 = vxor.u32 %v4724, 2147483648
    %v4734 = vmul.f32 %v4733, 1.442695
    %v4735 = vpow.pop %v4734
    %v4736 = vadd.f32 %v4735, 1.0
    %v4737 = vrcp.pop %v4736
    %v4738 = vmul.f32 1.0, %v4737
    %v4739 = vtanh.pop %v4725
    %v4740 = vxor.u32 %v4726, 2147483648
    %v4741 = vmul.f32 %v4740, 1.442695
    %v4742 = vpow.pop %v4741
    %v4743 = vadd.f32 %v4742, 1.0
    %v4744 = vrcp.pop %v4743
    %v4745 = vmul.f32 1.0, %v4744
    %v4746 = vmul.f32 %v4738, %v4574
    %v4747 = vmul.f32 %v4732, %v4739
    %v4748 = vadd.f32 %v4746, %v4747
    %v4749 = vtanh.pop %v4748
    %v4750 = vmul.f32 %v4745, %v4749
    %v4751 = vld [vmem:[%s1045] sm:$0xff]
    %v4752 = vld [vmem:[%s1045 + $0x8] sm:$0xff]
    %v4753 = vld [vmem:[%s1045 + $0x10] sm:$0xff]
    %v4754 = vld [vmem:[%s1045 + $0x18] sm:$0xff]
    %4755 = vmatprep.subr.mxu0 %v3886
    %4756 = vmatpush1.msra.mxu0 %v3885
    %4757 = vmatprep.subr.mxu0 %v3890
    %4758 = vmatpush1.msra.mxu0 %v3889
    %4759 = vmatprep.subr.mxu0 %v3894
    %4760 = vmatpush1.msra.mxu0 %v3893
    %4761 = vmatprep.subr.mxu0 %v3898
    %4762 = vmatpush1.msra.mxu0 %v3897
    %4763 = vmatprep.subr.mxu0 %v3902
    %4764 = vmatpush1.msra.mxu0 %v3901
    %4765 = vmatprep.subr.mxu0 %v3906
    %4766 = vmatpush1.msra.mxu0 %v3905
    %4767 = vmatprep.subr.mxu0 %v3910
    %4768 = vmatpush1.msra.mxu0 %v3909
    %4769 = vmatprep.subr.mxu0 %v3914
    %4770 = vmatpush1.msra.mxu0 %v3913
    %4771 = vmatprep.subr.mxu0 %v3918
    %4772 = vmatpush1.msra.mxu0 %v3917
    %4773 = vmatprep.subr.mxu0 %v3922
    %4774 = vmatpush1.msra.mxu0 %v3921
    %4775 = vmatprep.subr.mxu0 %v3926
    %4776 = vmatpush1.msra.mxu0 %v3925
    %4777 = vmatprep.subr.mxu0 %v3930
    %4778 = vmatpush1.msra.mxu0 %v3929
    %4779 = vmatprep.subr.mxu0 %v3934
    %4780 = vmatpush1.msra.mxu0 %v3933
    %4781 = vmatprep.subr.mxu0 %v3938
    %4782 = vmatpush1.msra.mxu0 %v3937
    %4783 = vmatprep.subr.mxu0 %v3942
    %4784 = vmatpush1.msra.mxu0 %v3941
    %4785 = vmatprep.subr.mxu0 %v3946
    %4786 = vmatpush1.msra.mxu0 %v3945
    %4787 = vmatprep.subr.mxu0 0.0
    %4788 = vmatpush1.msra.mxu0 0.0
    %4789 = vmatprep.subr.mxu0 0.0
    %4790 = vmatpush1.msra.mxu0 0.0
    %4791 = vmatprep.subr.mxu0 0.0
    %4792 = vmatpush1.msra.mxu0 0.0
    %4793 = vmatprep.subr.mxu0 0.0
    %4794 = vmatpush1.msra.mxu0 0.0
    %4795 = vmatprep.subr.mxu0 0.0
    %4796 = vmatpush1.msra.mxu0 0.0
    %4797 = vmatprep.subr.mxu0 0.0
    %4798 = vmatpush1.msra.mxu0 0.0
    %4799 = vmatprep.subr.mxu0 0.0
    %4800 = vmatpush1.msra.mxu0 0.0
    %4801 = vmatprep.subr.mxu0 0.0
    %4802 = vmatpush1.msra.mxu0 0.0
    %4803 = vmatprep.subr.mxu0 0.0
    %4804 = vmatpush1.msra.mxu0 0.0
    %4805 = vmatprep.subr.mxu0 0.0
    %4806 = vmatpush1.msra.mxu0 0.0
    %4807 = vmatprep.subr.mxu0 0.0
    %4808 = vmatpush1.msra.mxu0 0.0
    %4809 = vmatprep.subr.mxu0 0.0
    %4810 = vmatpush1.msra.mxu0 0.0
    %4811 = vmatprep.subr.mxu0 0.0
    %4812 = vmatpush1.msra.mxu0 0.0
    %4813 = vmatprep.subr.mxu0 0.0
    %4814 = vmatpush1.msra.mxu0 0.0
    %4815 = vmatprep.subr.mxu0 0.0
    %4816 = vmatpush1.msra.mxu0 0.0
    %4817 = vmatprep.subr.mxu0 0.0
    %4818 = vmatpush1.msra.mxu0 0.0
    %4819 = vmatprep.mubr.f32.mxu0 0.0
    %4820 = vmatmul.mubr.f32.gmra.mrb[0].mxu0 %v4750
    %v4821 = vpop.f32.mrb[0].mxu0
    %v4822 = vadd.f32 0.0, %v4821
    %v4823 = vpop.f32.mrb[0].mxu0
    %v4824 = vadd.f32 0.0, %v4823
    %4825 = vdwg.mxu0
    %4826 = vmatprep.subr.mxu0 %v3888
    %4827 = vmatpush1.msra.mxu0 %v3887
    %4828 = vmatprep.subr.mxu0 %v3892
    %4829 = vmatpush1.msra.mxu0 %v3891
    %4830 = vmatprep.subr.mxu0 %v3896
    %4831 = vmatpush1.msra.mxu0 %v3895
    %4832 = vmatprep.subr.mxu0 %v3900
    %4833 = vmatpush1.msra.mxu0 %v3899
    %4834 = vmatprep.subr.mxu0 %v3904
    %4835 = vmatpush1.msra.mxu0 %v3903
    %4836 = vmatprep.subr.mxu0 %v3908
    %4837 = vmatpush1.msra.mxu0 %v3907
    %4838 = vmatprep.subr.mxu0 %v3912
    %4839 = vmatpush1.msra.mxu0 %v3911
    %4840 = vmatprep.subr.mxu0 %v3916
    %4841 = vmatpush1.msra.mxu0 %v3915
    %4842 = vmatprep.subr.mxu0 %v3920
    %4843 = vmatpush1.msra.mxu0 %v3919
    %4844 = vmatprep.subr.mxu0 %v3924
    %4845 = vmatpush1.msra.mxu0 %v3923
    %4846 = vmatprep.subr.mxu0 %v3928
    %4847 = vmatpush1.msra.mxu0 %v3927
    %4848 = vmatprep.subr.mxu0 %v3932
    %4849 = vmatpush1.msra.mxu0 %v3931
    %4850 = vmatprep.subr.mxu0 %v3936
    %4851 = vmatpush1.msra.mxu0 %v3935
    %4852 = vmatprep.subr.mxu0 %v3940
    %4853 = vmatpush1.msra.mxu0 %v3939
    %4854 = vmatprep.subr.mxu0 %v3944
    %4855 = vmatpush1.msra.mxu0 %v3943
    %4856 = vmatprep.subr.mxu0 %v3948
    %4857 = vmatpush1.msra.mxu0 %v3947
    %4858 = vmatprep.subr.mxu0 0.0
    %4859 = vmatpush1.msra.mxu0 0.0
    %4860 = vmatprep.subr.mxu0 0.0
    %4861 = vmatpush1.msra.mxu0 0.0
    %4862 = vmatprep.subr.mxu0 0.0
    %4863 = vmatpush1.msra.mxu0 0.0
    %4864 = vmatprep.subr.mxu0 0.0
    %4865 = vmatpush1.msra.mxu0 0.0
    %4866 = vmatprep.subr.mxu0 0.0
    %4867 = vmatpush1.msra.mxu0 0.0
    %4868 = vmatprep.subr.mxu0 0.0
    %4869 = vmatpush1.msra.mxu0 0.0
    %4870 = vmatprep.subr.mxu0 0.0
    %4871 = vmatpush1.msra.mxu0 0.0
    %4872 = vmatprep.subr.mxu0 0.0
    %4873 = vmatpush1.msra.mxu0 0.0
    %4874 = vmatprep.subr.mxu0 0.0
    %4875 = vmatpush1.msra.mxu0 0.0
    %4876 = vmatprep.subr.mxu0 0.0
    %4877 = vmatpush1.msra.mxu0 0.0
    %4878 = vmatprep.subr.mxu0 0.0
    %4879 = vmatpush1.msra.mxu0 0.0
    %4880 = vmatprep.subr.mxu0 0.0
    %4881 = vmatpush1.msra.mxu0 0.0
    %4882 = vmatprep.subr.mxu0 0.0
    %4883 = vmatpush1.msra.mxu0 0.0
    %4884 = vmatprep.subr.mxu0 0.0
    %4885 = vmatpush1.msra.mxu0 0.0
    %4886 = vmatprep.subr.mxu0 0.0
    %4887 = vmatpush1.msra.mxu0 0.0
    %4888 = vmatprep.subr.mxu0 0.0
    %4889 = vmatpush1.msra.mxu0 0.0
    %4890 = vmatprep.mubr.f32.mxu0 0.0
    %4891 = vmatmul.mubr.f32.gmra.mrb[0].mxu0 %v4750
    %v4892 = vpop.f32.mrb[0].mxu0
    %v4893 = vadd.f32 0.0, %v4892
    %v4894 = vpop.f32.mrb[0].mxu0
    %v4895 = vadd.f32 0.0, %v4894
    %4896 = vdwg.mxu0
    %v4897 = vadd.f32 %v4751, %v4822
    %v4898 = vadd.f32 %v4752, %v4824
    %v4899 = vadd.f32 %v4753, %v4893
    %v4900 = vadd.f32 %v4754, %v4895
    %v4901 = vxor.u32 %v4897, 2147483648
    %v4902 = vmul.f32 %v4901, 1.442695
    %v4903 = vpow.pop %v4902
    %v4904 = vadd.f32 %v4903, 1.0
    %v4905 = vrcp.pop %v4904
    %v4906 = vmul.f32 1.0, %v4905
    %v4907 = vxor.u32 %v4898, 2147483648
    %v4908 = vmul.f32 %v4907, 1.442695
    %v4909 = vpow.pop %v4908
    %v4910 = vadd.f32 %v4909, 1.0
    %v4911 = vrcp.pop %v4910
    %v4912 = vmul.f32 1.0, %v4911
    %v4913 = vtanh.pop %v4899
    %v4914 = vxor.u32 %v4900, 2147483648
    %v4915 = vmul.f32 %v4914, 1.442695
    %v4916 = vpow.pop %v4915
    %v4917 = vadd.f32 %v4916, 1.0
    %v4918 = vrcp.pop %v4917
    %v4919 = vmul.f32 1.0, %v4918
    %v4920 = vmul.f32 %v4912, %v4748
    %v4921 = vmul.f32 %v4906, %v4913
    %v4922 = vadd.f32 %v4920, %v4921
    %v4923 = vtanh.pop %v4922
    %v4924 = vmul.f32 %v4919, %v4923
    %v4925 = vld [vmem:[%s1222] sm:$0xff]
    %v4926 = vld [vmem:[%s1222 + $0x8] sm:$0xff]
    %v4927 = vld [vmem:[%s1222 + $0x10] sm:$0xff]
    %v4928 = vld [vmem:[%s1222 + $0x18] sm:$0xff]
    %4929 = vmatprep.subr.mxu0 %v3886
    %4930 = vmatpush1.msra.mxu0 %v3885
    %4931 = vmatprep.subr.mxu0 %v3890
    %4932 = vmatpush1.msra.mxu0 %v3889
    %4933 = vmatprep.subr.mxu0 %v3894
    %4934 = vmatpush1.msra.mxu0 %v3893
    %4935 = vmatprep.subr.mxu0 %v3898
    %4936 = vmatpush1.msra.mxu0 %v3897
    %4937 = vmatprep.subr.mxu0 %v3902
    %4938 = vmatpush1.msra.mxu0 %v3901
    %4939 = vmatprep.subr.mxu0 %v3906
    %4940 = vmatpush1.msra.mxu0 %v3905
    %4941 = vmatprep.subr.mxu0 %v3910
    %4942 = vmatpush1.msra.mxu0 %v3909
    %4943 = vmatprep.subr.mxu0 %v3914
    %4944 = vmatpush1.msra.mxu0 %v3913
    %4945 = vmatprep.subr.mxu0 %v3918
    %4946 = vmatpush1.msra.mxu0 %v3917
    %4947 = vmatprep.subr.mxu0 %v3922
    %4948 = vmatpush1.msra.mxu0 %v3921
    %4949 = vmatprep.subr.mxu0 %v3926
    %4950 = vmatpush1.msra.mxu0 %v3925
    %4951 = vmatprep.subr.mxu0 %v3930
    %4952 = vmatpush1.msra.mxu0 %v3929
    %4953 = vmatprep.subr.mxu0 %v3934
    %4954 = vmatpush1.msra.mxu0 %v3933
    %4955 = vmatprep.subr.mxu0 %v3938
    %4956 = vmatpush1.msra.mxu0 %v3937
    %4957 = vmatprep.subr.mxu0 %v3942
    %4958 = vmatpush1.msra.mxu0 %v3941
    %4959 = vmatprep.subr.mxu0 %v3946
    %4960 = vmatpush1.msra.mxu0 %v3945
    %4961 = vmatprep.subr.mxu0 0.0
    %4962 = vmatpush1.msra.mxu0 0.0
    %4963 = vmatprep.subr.mxu0 0.0
    %4964 = vmatpush1.msra.mxu0 0.0
    %4965 = vmatprep.subr.mxu0 0.0
    %4966 = vmatpush1.msra.mxu0 0.0
    %4967 = vmatprep.subr.mxu0 0.0
    %4968 = vmatpush1.msra.mxu0 0.0
    %4969 = vmatprep.subr.mxu0 0.0
    %4970 = vmatpush1.msra.mxu0 0.0
    %4971 = vmatprep.subr.mxu0 0.0
    %4972 = vmatpush1.msra.mxu0 0.0
    %4973 = vmatprep.subr.mxu0 0.0
    %4974 = vmatpush1.msra.mxu0 0.0
    %4975 = vmatprep.subr.mxu0 0.0
    %4976 = vmatpush1.msra.mxu0 0.0
    %4977 = vmatprep.subr.mxu0 0.0
    %4978 = vmatpush1.msra.mxu0 0.0
    %4979 = vmatprep.subr.mxu0 0.0
    %4980 = vmatpush1.msra.mxu0 0.0
    %4981 = vmatprep.subr.mxu0 0.0
    %4982 = vmatpush1.msra.mxu0 0.0
    %4983 = vmatprep.subr.mxu0 0.0
    %4984 = vmatpush1.msra.mxu0 0.0
    %4985 = vmatprep.subr.mxu0 0.0
    %4986 = vmatpush1.msra.mxu0 0.0
    %4987 = vmatprep.subr.mxu0 0.0
    %4988 = vmatpush1.msra.mxu0 0.0
    %4989 = vmatprep.subr.mxu0 0.0
    %4990 = vmatpush1.msra.mxu0 0.0
    %4991 = vmatprep.subr.mxu0 0.0
    %4992 = vmatpush1.msra.mxu0 0.0
    %4993 = vmatprep.mubr.f32.mxu0 0.0
    %4994 = vmatmul.mubr.f32.gmra.mrb[0].mxu0 %v4924
    %v4995 = vpop.f32.mrb[0].mxu0
    %v4996 = vadd.f32 0.0, %v4995
    %v4997 = vpop.f32.mrb[0].mxu0
    %v4998 = vadd.f32 0.0, %v4997
    %4999 = vdwg.mxu0
    %5000 = vmatprep.subr.mxu0 %v3888
    %5001 = vmatpush1.msra.mxu0 %v3887
    %5002 = vmatprep.subr.mxu0 %v3892
    %5003 = vmatpush1.msra.mxu0 %v3891
    %5004 = vmatprep.subr.mxu0 %v3896
    %5005 = vmatpush1.msra.mxu0 %v3895
    %5006 = vmatprep.subr.mxu0 %v3900
    %5007 = vmatpush1.msra.mxu0 %v3899
    %5008 = vmatprep.subr.mxu0 %v3904
    %5009 = vmatpush1.msra.mxu0 %v3903
    %5010 = vmatprep.subr.mxu0 %v3908
    %5011 = vmatpush1.msra.mxu0 %v3907
    %5012 = vmatprep.subr.mxu0 %v3912
    %5013 = vmatpush1.msra.mxu0 %v3911
    %5014 = vmatprep.subr.mxu0 %v3916
    %5015 = vmatpush1.msra.mxu0 %v3915
    %5016 = vmatprep.subr.mxu0 %v3920
    %5017 = vmatpush1.msra.mxu0 %v3919
    %5018 = vmatprep.subr.mxu0 %v3924
    %5019 = vmatpush1.msra.mxu0 %v3923
    %5020 = vmatprep.subr.mxu0 %v3928
    %5021 = vmatpush1.msra.mxu0 %v3927
    %5022 = vmatprep.subr.mxu0 %v3932
    %5023 = vmatpush1.msra.mxu0 %v3931
    %5024 = vmatprep.subr.mxu0 %v3936
    %5025 = vmatpush1.msra.mxu0 %v3935
    %5026 = vmatprep.subr.mxu0 %v3940
    %5027 = vmatpush1.msra.mxu0 %v3939
    %5028 = vmatprep.subr.mxu0 %v3944
    %5029 = vmatpush1.msra.mxu0 %v3943
    %5030 = vmatprep.subr.mxu0 %v3948
    %5031 = vmatpush1.msra.mxu0 %v3947
    %5032 = vmatprep.subr.mxu0 0.0
    %5033 = vmatpush1.msra.mxu0 0.0
    %5034 = vmatprep.subr.mxu0 0.0
    %5035 = vmatpush1.msra.mxu0 0.0
    %5036 = vmatprep.subr.mxu0 0.0
    %5037 = vmatpush1.msra.mxu0 0.0
    %5038 = vmatprep.subr.mxu0 0.0
    %5039 = vmatpush1.msra.mxu0 0.0
    %5040 = vmatprep.subr.mxu0 0.0
    %5041 = vmatpush1.msra.mxu0 0.0
    %5042 = vmatprep.subr.mxu0 0.0
    %5043 = vmatpush1.msra.mxu0 0.0
    %5044 = vmatprep.subr.mxu0 0.0
    %5045 = vmatpush1.msra.mxu0 0.0
    %5046 = vmatprep.subr.mxu0 0.0
    %5047 = vmatpush1.msra.mxu0 0.0
    %5048 = vmatprep.subr.mxu0 0.0
    %5049 = vmatpush1.msra.mxu0 0.0
    %5050 = vmatprep.subr.mxu0 0.0
    %5051 = vmatpush1.msra.mxu0 0.0
    %5052 = vmatprep.subr.mxu0 0.0
    %5053 = vmatpush1.msra.mxu0 0.0
    %5054 = vmatprep.subr.mxu0 0.0
    %5055 = vmatpush1.msra.mxu0 0.0
    %5056 = vmatprep.subr.mxu0 0.0
    %5057 = vmatpush1.msra.mxu0 0.0
    %5058 = vmatprep.subr.mxu0 0.0
    %5059 = vmatpush1.msra.mxu0 0.0
    %5060 = vmatprep.subr.mxu0 0.0
    %5061 = vmatpush1.msra.mxu0 0.0
    %5062 = vmatprep.subr.mxu0 0.0
    %5063 = vmatpush1.msra.mxu0 0.0
    %5064 = vmatprep.mubr.f32.mxu0 0.0
    %5065 = vmatmul.mubr.f32.gmra.mrb[0].mxu0 %v4924
    %v5066 = vpop.f32.mrb[0].mxu0
    %v5067 = vadd.f32 0.0, %v5066
    %v5068 = vpop.f32.mrb[0].mxu0
    %v5069 = vadd.f32 0.0, %v5068
    %5070 = vdwg.mxu0
    %v5071 = vadd.f32 %v4925, %v4996
    %v5072 = vadd.f32 %v4926, %v4998
    %v5073 = vadd.f32 %v4927, %v5067
    %v5074 = vadd.f32 %v4928, %v5069
    %v5075 = vxor.u32 %v5071, 2147483648
    %v5076 = vmul.f32 %v5075, 1.442695
    %v5077 = vpow.pop %v5076
    %v5078 = vadd.f32 %v5077, 1.0
    %v5079 = vrcp.pop %v5078
    %v5080 = vmul.f32 1.0, %v5079
    %v5081 = vxor.u32 %v5072, 2147483648
    %v5082 = vmul.f32 %v5081, 1.442695
    %v5083 = vpow.pop %v5082
    %v5084 = vadd.f32 %v5083, 1.0
    %v5085 = vrcp.pop %v5084
    %v5086 = vmul.f32 1.0, %v5085
    %v5087 = vtanh.pop %v5073
    %v5088 = vxor.u32 %v5074, 2147483648
    %v5089 = vmul.f32 %v5088, 1.442695
    %v5090 = vpow.pop %v5089
    %v5091 = vadd.f32 %v5090, 1.0
    %v5092 = vrcp.pop %v5091
    %v5093 = vmul.f32 1.0, %v5092
    %v5094 = vmul.f32 %v5086, %v4922
    %v5095 = vmul.f32 %v5080, %v5087
    %v5096 = vadd.f32 %v5094, %v5095
    %v5097 = vtanh.pop %v5096
    %v5098 = vmul.f32 %v5093, %v5097
    %v5099 = vld [vmem:[%s1399] sm:$0xff]
    %v5100 = vld [vmem:[%s1399 + $0x8] sm:$0xff]
    %v5101 = vld [vmem:[%s1399 + $0x10] sm:$0xff]
    %v5102 = vld [vmem:[%s1399 + $0x18] sm:$0xff]
    %5103 = vmatprep.subr.mxu0 %v3886
    %5104 = vmatpush1.msra.mxu0 %v3885
    %5105 = vmatprep.subr.mxu0 %v3890
    %5106 = vmatpush1.msra.mxu0 %v3889
    %5107 = vmatprep.subr.mxu0 %v3894
    %5108 = vmatpush1.msra.mxu0 %v3893
    %5109 = vmatprep.subr.mxu0 %v3898
    %5110 = vmatpush1.msra.mxu0 %v3897
    %5111 = vmatprep.subr.mxu0 %v3902
    %5112 = vmatpush1.msra.mxu0 %v3901
    %5113 = vmatprep.subr.mxu0 %v3906
    %5114 = vmatpush1.msra.mxu0 %v3905
    %5115 = vmatprep.subr.mxu0 %v3910
    %5116 = vmatpush1.msra.mxu0 %v3909
    %5117 = vmatprep.subr.mxu0 %v3914
    %5118 = vmatpush1.msra.mxu0 %v3913
    %5119 = vmatprep.subr.mxu0 %v3918
    %5120 = vmatpush1.msra.mxu0 %v3917
    %5121 = vmatprep.subr.mxu0 %v3922
    %5122 = vmatpush1.msra.mxu0 %v3921
    %5123 = vmatprep.subr.mxu0 %v3926
    %5124 = vmatpush1.msra.mxu0 %v3925
    %5125 = vmatprep.subr.mxu0 %v3930
    %5126 = vmatpush1.msra.mxu0 %v3929
    %5127 = vmatprep.subr.mxu0 %v3934
    %5128 = vmatpush1.msra.mxu0 %v3933
    %5129 = vmatprep.subr.mxu0 %v3938
    %5130 = vmatpush1.msra.mxu0 %v3937
    %5131 = vmatprep.subr.mxu0 %v3942
    %5132 = vmatpush1.msra.mxu0 %v3941
    %5133 = vmatprep.subr.mxu0 %v3946
    %5134 = vmatpush1.msra.mxu0 %v3945
    %5135 = vmatprep.subr.mxu0 0.0
    %5136 = vmatpush1.msra.mxu0 0.0
    %5137 = vmatprep.subr.mxu0 0.0
    %5138 = vmatpush1.msra.mxu0 0.0
    %5139 = vmatprep.subr.mxu0 0.0
    %5140 = vmatpush1.msra.mxu0 0.0
    %5141 = vmatprep.subr.mxu0 0.0
    %5142 = vmatpush1.msra.mxu0 0.0
    %5143 = vmatprep.subr.mxu0 0.0
    %5144 = vmatpush1.msra.mxu0 0.0
    %5145 = vmatprep.subr.mxu0 0.0
    %5146 = vmatpush1.msra.mxu0 0.0
    %5147 = vmatprep.subr.mxu0 0.0
    %5148 = vmatpush1.msra.mxu0 0.0
    %5149 = vmatprep.subr.mxu0 0.0
    %5150 = vmatpush1.msra.mxu0 0.0
    %5151 = vmatprep.subr.mxu0 0.0
    %5152 = vmatpush1.msra.mxu0 0.0
    %5153 = vmatprep.subr.mxu0 0.0
    %5154 = vmatpush1.msra.mxu0 0.0
    %5155 = vmatprep.subr.mxu0 0.0
    %5156 = vmatpush1.msra.mxu0 0.0
    %5157 = vmatprep.subr.mxu0 0.0
    %5158 = vmatpush1.msra.mxu0 0.0
    %5159 = vmatprep.subr.mxu0 0.0
    %5160 = vmatpush1.msra.mxu0 0.0
    %5161 = vmatprep.subr.mxu0 0.0
    %5162 = vmatpush1.msra.mxu0 0.0
    %5163 = vmatprep.subr.mxu0 0.0
    %5164 = vmatpush1.msra.mxu0 0.0
    %5165 = vmatprep.subr.mxu0 0.0
    %5166 = vmatpush1.msra.mxu0 0.0
    %5167 = vmatprep.mubr.f32.mxu0 0.0
    %5168 = vmatmul.mubr.f32.gmra.mrb[0].mxu0 %v5098
    %v5169 = vpop.f32.mrb[0].mxu0
    %v5170 = vadd.f32 0.0, %v5169
    %v5171 = vpop.f32.mrb[0].mxu0
    %v5172 = vadd.f32 0.0, %v5171
    %5173 = vdwg.mxu0
    %5174 = vmatprep.subr.mxu0 %v3888
    %5175 = vmatpush1.msra.mxu0 %v3887
    %5176 = vmatprep.subr.mxu0 %v3892
    %5177 = vmatpush1.msra.mxu0 %v3891
    %5178 = vmatprep.subr.mxu0 %v3896
    %5179 = vmatpush1.msra.mxu0 %v3895
    %5180 = vmatprep.subr.mxu0 %v3900
    %5181 = vmatpush1.msra.mxu0 %v3899
    %5182 = vmatprep.subr.mxu0 %v3904
    %5183 = vmatpush1.msra.mxu0 %v3903
    %5184 = vmatprep.subr.mxu0 %v3908
    %5185 = vmatpush1.msra.mxu0 %v3907
    %5186 = vmatprep.subr.mxu0 %v3912
    %5187 = vmatpush1.msra.mxu0 %v3911
    %5188 = vmatprep.subr.mxu0 %v3916
    %5189 = vmatpush1.msra.mxu0 %v3915
    %5190 = vmatprep.subr.mxu0 %v3920
    %5191 = vmatpush1.msra.mxu0 %v3919
    %5192 = vmatprep.subr.mxu0 %v3924
    %5193 = vmatpush1.msra.mxu0 %v3923
    %5194 = vmatprep.subr.mxu0 %v3928
    %5195 = vmatpush1.msra.mxu0 %v3927
    %5196 = vmatprep.subr.mxu0 %v3932
    %5197 = vmatpush1.msra.mxu0 %v3931
    %5198 = vmatprep.subr.mxu0 %v3936
    %5199 = vmatpush1.msra.mxu0 %v3935
    %5200 = vmatprep.subr.mxu0 %v3940
    %5201 = vmatpush1.msra.mxu0 %v3939
    %5202 = vmatprep.subr.mxu0 %v3944
    %5203 = vmatpush1.msra.mxu0 %v3943
    %5204 = vmatprep.subr.mxu0 %v3948
    %5205 = vmatpush1.msra.mxu0 %v3947
    %5206 = vmatprep.subr.mxu0 0.0
    %5207 = vmatpush1.msra.mxu0 0.0
    %5208 = vmatprep.subr.mxu0 0.0
    %5209 = vmatpush1.msra.mxu0 0.0
    %5210 = vmatprep.subr.mxu0 0.0
    %5211 = vmatpush1.msra.mxu0 0.0
    %5212 = vmatprep.subr.mxu0 0.0
    %5213 = vmatpush1.msra.mxu0 0.0
    %5214 = vmatprep.subr.mxu0 0.0
    %5215 = vmatpush1.msra.mxu0 0.0
    %5216 = vmatprep.subr.mxu0 0.0
    %5217 = vmatpush1.msra.mxu0 0.0
    %5218 = vmatprep.subr.mxu0 0.0
    %5219 = vmatpush1.msra.mxu0 0.0
    %5220 = vmatprep.subr.mxu0 0.0
    %5221 = vmatpush1.msra.mxu0 0.0
    %5222 = vmatprep.subr.mxu0 0.0
    %5223 = vmatpush1.msra.mxu0 0.0
    %5224 = vmatprep.subr.mxu0 0.0
    %5225 = vmatpush1.msra.mxu0 0.0
    %5226 = vmatprep.subr.mxu0 0.0
    %5227 = vmatpush1.msra.mxu0 0.0
    %5228 = vmatprep.subr.mxu0 0.0
    %5229 = vmatpush1.msra.mxu0 0.0
    %5230 = vmatprep.subr.mxu0 0.0
    %5231 = vmatpush1.msra.mxu0 0.0
    %5232 = vmatprep.subr.mxu0 0.0
    %5233 = vmatpush1.msra.mxu0 0.0
    %5234 = vmatprep.subr.mxu0 0.0
    %5235 = vmatpush1.msra.mxu0 0.0
    %5236 = vmatprep.subr.mxu0 0.0
    %5237 = vmatpush1.msra.mxu0 0.0
    %5238 = vmatprep.mubr.f32.mxu0 0.0
    %5239 = vmatmul.mubr.f32.gmra.mrb[0].mxu0 %v5098
    %v5240 = vpop.f32.mrb[0].mxu0
    %v5241 = vadd.f32 0.0, %v5240
    %v5242 = vpop.f32.mrb[0].mxu0
    %v5243 = vadd.f32 0.0, %v5242
    %5244 = vdwg.mxu0
    %v5245 = vadd.f32 %v5099, %v5170
    %v5246 = vadd.f32 %v5100, %v5172
    %v5247 = vadd.f32 %v5101, %v5241
    %v5248 = vadd.f32 %v5102, %v5243
    %v5249 = vxor.u32 %v5245, 2147483648
    %v5250 = vmul.f32 %v5249, 1.442695
    %v5251 = vpow.pop %v5250
    %v5252 = vadd.f32 %v5251, 1.0
    %v5253 = vrcp.pop %v5252
    %v5254 = vmul.f32 1.0, %v5253
    %v5255 = vxor.u32 %v5246, 2147483648
    %v5256 = vmul.f32 %v5255, 1.442695
    %v5257 = vpow.pop %v5256
    %v5258 = vadd.f32 %v5257, 1.0
    %v5259 = vrcp.pop %v5258
    %v5260 = vmul.f32 1.0, %v5259
    %v5261 = vtanh.pop %v5247
    %v5262 = vxor.u32 %v5248, 2147483648
    %v5263 = vmul.f32 %v5262, 1.442695
    %v5264 = vpow.pop %v5263
    %v5265 = vadd.f32 %v5264, 1.0
    %v5266 = vrcp.pop %v5265
    %v5267 = vmul.f32 1.0, %v5266
    %v5268 = vmul.f32 %v5260, %v5096
    %v5269 = vmul.f32 %v5254, %v5261
    %v5270 = vadd.f32 %v5268, %v5269
    %v5271 = vtanh.pop %v5270
    %v5272 = vmul.f32 %v5267, %v5271
    %v5273 = vld [vmem:[%s1576] sm:$0xff]
    %v5274 = vld [vmem:[%s1576 + $0x8] sm:$0xff]
    %v5275 = vld [vmem:[%s1576 + $0x10] sm:$0xff]
    %v5276 = vld [vmem:[%s1576 + $0x18] sm:$0xff]
    %5277 = vmatprep.subr.mxu0 %v3886
    %5278 = vmatpush1.msra.mxu0 %v3885
    %5279 = vmatprep.subr.mxu0 %v3890
    %5280 = vmatpush1.msra.mxu0 %v3889
    %5281 = vmatprep.subr.mxu0 %v3894
    %5282 = vmatpush1.msra.mxu0 %v3893
    %5283 = vmatprep.subr.mxu0 %v3898
    %5284 = vmatpush1.msra.mxu0 %v3897
    %5285 = vmatprep.subr.mxu0 %v3902
    %5286 = vmatpush1.msra.mxu0 %v3901
    %5287 = vmatprep.subr.mxu0 %v3906
    %5288 = vmatpush1.msra.mxu0 %v3905
    %5289 = vmatprep.subr.mxu0 %v3910
    %5290 = vmatpush1.msra.mxu0 %v3909
    %5291 = vmatprep.subr.mxu0 %v3914
    %5292 = vmatpush1.msra.mxu0 %v3913
    %5293 = vmatprep.subr.mxu0 %v3918
    %5294 = vmatpush1.msra.mxu0 %v3917
    %5295 = vmatprep.subr.mxu0 %v3922
    %5296 = vmatpush1.msra.mxu0 %v3921
    %5297 = vmatprep.subr.mxu0 %v3926
    %5298 = vmatpush1.msra.mxu0 %v3925
    %5299 = vmatprep.subr.mxu0 %v3930
    %5300 = vmatpush1.msra.mxu0 %v3929
    %5301 = vmatprep.subr.mxu0 %v3934
    %5302 = vmatpush1.msra.mxu0 %v3933
    %5303 = vmatprep.subr.mxu0 %v3938
    %5304 = vmatpush1.msra.mxu0 %v3937
    %5305 = vmatprep.subr.mxu0 %v3942
    %5306 = vmatpush1.msra.mxu0 %v3941
    %5307 = vmatprep.subr.mxu0 %v3946
    %5308 = vmatpush1.msra.mxu0 %v3945
    %5309 = vmatprep.subr.mxu0 0.0
    %5310 = vmatpush1.msra.mxu0 0.0
    %5311 = vmatprep.subr.mxu0 0.0
    %5312 = vmatpush1.msra.mxu0 0.0
    %5313 = vmatprep.subr.mxu0 0.0
    %5314 = vmatpush1.msra.mxu0 0.0
    %5315 = vmatprep.subr.mxu0 0.0
    %5316 = vmatpush1.msra.mxu0 0.0
    %5317 = vmatprep.subr.mxu0 0.0
    %5318 = vmatpush1.msra.mxu0 0.0
    %5319 = vmatprep.subr.mxu0 0.0
    %5320 = vmatpush1.msra.mxu0 0.0
    %5321 = vmatprep.subr.mxu0 0.0
    %5322 = vmatpush1.msra.mxu0 0.0
    %5323 = vmatprep.subr.mxu0 0.0
    %5324 = vmatpush1.msra.mxu0 0.0
    %5325 = vmatprep.subr.mxu0 0.0
    %5326 = vmatpush1.msra.mxu0 0.0
    %5327 = vmatprep.subr.mxu0 0.0
    %5328 = vmatpush1.msra.mxu0 0.0
    %5329 = vmatprep.subr.mxu0 0.0
    %5330 = vmatpush1.msra.mxu0 0.0
    %5331 = vmatprep.subr.mxu0 0.0
    %5332 = vmatpush1.msra.mxu0 0.0
    %5333 = vmatprep.subr.mxu0 0.0
    %5334 = vmatpush1.msra.mxu0 0.0
    %5335 = vmatprep.subr.mxu0 0.0
    %5336 = vmatpush1.msra.mxu0 0.0
    %5337 = vmatprep.subr.mxu0 0.0
    %5338 = vmatpush1.msra.mxu0 0.0
    %5339 = vmatprep.subr.mxu0 0.0
    %5340 = vmatpush1.msra.mxu0 0.0
    %5341 = vmatprep.mubr.f32.mxu0 0.0
    %5342 = vmatmul.mubr.f32.gmra.mrb[0].mxu0 %v5272
    %v5343 = vpop.f32.mrb[0].mxu0
    %v5344 = vadd.f32 0.0, %v5343
    %v5345 = vpop.f32.mrb[0].mxu0
    %v5346 = vadd.f32 0.0, %v5345
    %5347 = vdwg.mxu0
    %5348 = vmatprep.subr.mxu0 %v3888
    %5349 = vmatpush1.msra.mxu0 %v3887
    %5350 = vmatprep.subr.mxu0 %v3892
    %5351 = vmatpush1.msra.mxu0 %v3891
    %5352 = vmatprep.subr.mxu0 %v3896
    %5353 = vmatpush1.msra.mxu0 %v3895
    %5354 = vmatprep.subr.mxu0 %v3900
    %5355 = vmatpush1.msra.mxu0 %v3899
    %5356 = vmatprep.subr.mxu0 %v3904
    %5357 = vmatpush1.msra.mxu0 %v3903
    %5358 = vmatprep.subr.mxu0 %v3908
    %5359 = vmatpush1.msra.mxu0 %v3907
    %5360 = vmatprep.subr.mxu0 %v3912
    %5361 = vmatpush1.msra.mxu0 %v3911
    %5362 = vmatprep.subr.mxu0 %v3916
    %5363 = vmatpush1.msra.mxu0 %v3915
    %5364 = vmatprep.subr.mxu0 %v3920
    %5365 = vmatpush1.msra.mxu0 %v3919
    %5366 = vmatprep.subr.mxu0 %v3924
    %5367 = vmatpush1.msra.mxu0 %v3923
    %5368 = vmatprep.subr.mxu0 %v3928
    %5369 = vmatpush1.msra.mxu0 %v3927
    %5370 = vmatprep.subr.mxu0 %v3932
    %5371 = vmatpush1.msra.mxu0 %v3931
    %5372 = vmatprep.subr.mxu0 %v3936
    %5373 = vmatpush1.msra.mxu0 %v3935
    %5374 = vmatprep.subr.mxu0 %v3940
    %5375 = vmatpush1.msra.mxu0 %v3939
    %5376 = vmatprep.subr.mxu0 %v3944
    %5377 = vmatpush1.msra.mxu0 %v3943
    %5378 = vmatprep.subr.mxu0 %v3948
    %5379 = vmatpush1.msra.mxu0 %v3947
    %5380 = vmatprep.subr.mxu0 0.0
    %5381 = vmatpush1.msra.mxu0 0.0
    %5382 = vmatprep.subr.mxu0 0.0
    %5383 = vmatpush1.msra.mxu0 0.0
    %5384 = vmatprep.subr.mxu0 0.0
    %5385 = vmatpush1.msra.mxu0 0.0
    %5386 = vmatprep.subr.mxu0 0.0
    %5387 = vmatpush1.msra.mxu0 0.0
    %5388 = vmatprep.subr.mxu0 0.0
    %5389 = vmatpush1.msra.mxu0 0.0
    %5390 = vmatprep.subr.mxu0 0.0
    %5391 = vmatpush1.msra.mxu0 0.0
    %5392 = vmatprep.subr.mxu0 0.0
    %5393 = vmatpush1.msra.mxu0 0.0
    %5394 = vmatprep.subr.mxu0 0.0
    %5395 = vmatpush1.msra.mxu0 0.0
    %5396 = vmatprep.subr.mxu0 0.0
    %5397 = vmatpush1.msra.mxu0 0.0
    %5398 = vmatprep.subr.mxu0 0.0
    %5399 = vmatpush1.msra.mxu0 0.0
    %5400 = vmatprep.subr.mxu0 0.0
    %5401 = vmatpush1.msra.mxu0 0.0
    %5402 = vmatprep.subr.mxu0 0.0
    %5403 = vmatpush1.msra.mxu0 0.0
    %5404 = vmatprep.subr.mxu0 0.0
    %5405 = vmatpush1.msra.mxu0 0.0
    %5406 = vmatprep.subr.mxu0 0.0
    %5407 = vmatpush1.msra.mxu0 0.0
    %5408 = vmatprep.subr.mxu0 0.0
    %5409 = vmatpush1.msra.mxu0 0.0
    %5410 = vmatprep.subr.mxu0 0.0
    %5411 = vmatpush1.msra.mxu0 0.0
    %5412 = vmatprep.mubr.f32.mxu0 0.0
    %5413 = vmatmul.mubr.f32.gmra.mrb[0].mxu0 %v5272
    %v5414 = vpop.f32.mrb[0].mxu0
    %v5415 = vadd.f32 0.0, %v5414
    %v5416 = vpop.f32.mrb[0].mxu0
    %v5417 = vadd.f32 0.0, %v5416
    %5418 = vdwg.mxu0
    %v5419 = vadd.f32 %v5273, %v5344
    %v5420 = vadd.f32 %v5274, %v5346
    %v5421 = vadd.f32 %v5275, %v5415
    %v5422 = vadd.f32 %v5276, %v5417
    %v5423 = vxor.u32 %v5419, 2147483648
    %v5424 = vmul.f32 %v5423, 1.442695
    %v5425 = vpow.pop %v5424
    %v5426 = vadd.f32 %v5425, 1.0
    %v5427 = vrcp.pop %v5426
    %v5428 = vmul.f32 1.0, %v5427
    %v5429 = vxor.u32 %v5420, 2147483648
    %v5430 = vmul.f32 %v5429, 1.442695
    %v5431 = vpow.pop %v5430
    %v5432 = vadd.f32 %v5431, 1.0
    %v5433 = vrcp.pop %v5432
    %v5434 = vmul.f32 1.0, %v5433
    %v5435 = vtanh.pop %v5421
    %v5436 = vxor.u32 %v5422, 2147483648
    %v5437 = vmul.f32 %v5436, 1.442695
    %v5438 = vpow.pop %v5437
    %v5439 = vadd.f32 %v5438, 1.0
    %v5440 = vrcp.pop %v5439
    %v5441 = vmul.f32 1.0, %v5440
    %v5442 = vmul.f32 %v5434, %v5270
    %v5443 = vmul.f32 %v5428, %v5435
    %v5444 = vadd.f32 %v5442, %v5443
    %v5445 = vtanh.pop %v5444
    %v5446 = vmul.f32 %v5441, %v5445
    %v5447 = vld [vmem:[%s1753] sm:$0xff]
    %v5448 = vld [vmem:[%s1753 + $0x8] sm:$0xff]
    %v5449 = vld [vmem:[%s1753 + $0x10] sm:$0xff]
    %v5450 = vld [vmem:[%s1753 + $0x18] sm:$0xff]
    %5451 = vmatprep.subr.mxu0 %v3886
    %5452 = vmatpush1.msra.mxu0 %v3885
    %5453 = vmatprep.subr.mxu0 %v3890
    %5454 = vmatpush1.msra.mxu0 %v3889
    %5455 = vmatprep.subr.mxu0 %v3894
    %5456 = vmatpush1.msra.mxu0 %v3893
    %5457 = vmatprep.subr.mxu0 %v3898
    %5458 = vmatpush1.msra.mxu0 %v3897
    %5459 = vmatprep.subr.mxu0 %v3902
    %5460 = vmatpush1.msra.mxu0 %v3901
    %5461 = vmatprep.subr.mxu0 %v3906
    %5462 = vmatpush1.msra.mxu0 %v3905
    %5463 = vmatprep.subr.mxu0 %v3910
    %5464 = vmatpush1.msra.mxu0 %v3909
    %5465 = vmatprep.subr.mxu0 %v3914
    %5466 = vmatpush1.msra.mxu0 %v3913
    %5467 = vmatprep.subr.mxu0 %v3918
    %5468 = vmatpush1.msra.mxu0 %v3917
    %5469 = vmatprep.subr.mxu0 %v3922
    %5470 = vmatpush1.msra.mxu0 %v3921
    %5471 = vmatprep.subr.mxu0 %v3926
    %5472 = vmatpush1.msra.mxu0 %v3925
    %5473 = vmatprep.subr.mxu0 %v3930
    %5474 = vmatpush1.msra.mxu0 %v3929
    %5475 = vmatprep.subr.mxu0 %v3934
    %5476 = vmatpush1.msra.mxu0 %v3933
    %5477 = vmatprep.subr.mxu0 %v3938
    %5478 = vmatpush1.msra.mxu0 %v3937
    %5479 = vmatprep.subr.mxu0 %v3942
    %5480 = vmatpush1.msra.mxu0 %v3941
    %5481 = vmatprep.subr.mxu0 %v3946
    %5482 = vmatpush1.msra.mxu0 %v3945
    %5483 = vmatprep.subr.mxu0 0.0
    %5484 = vmatpush1.msra.mxu0 0.0
    %5485 = vmatprep.subr.mxu0 0.0
    %5486 = vmatpush1.msra.mxu0 0.0
    %5487 = vmatprep.subr.mxu0 0.0
    %5488 = vmatpush1.msra.mxu0 0.0
    %5489 = vmatprep.subr.mxu0 0.0
    %5490 = vmatpush1.msra.mxu0 0.0
    %5491 = vmatprep.subr.mxu0 0.0
    %5492 = vmatpush1.msra.mxu0 0.0
    %5493 = vmatprep.subr.mxu0 0.0
    %5494 = vmatpush1.msra.mxu0 0.0
    %5495 = vmatprep.subr.mxu0 0.0
    %5496 = vmatpush1.msra.mxu0 0.0
    %5497 = vmatprep.subr.mxu0 0.0
    %5498 = vmatpush1.msra.mxu0 0.0
    %5499 = vmatprep.subr.mxu0 0.0
    %5500 = vmatpush1.msra.mxu0 0.0
    %5501 = vmatprep.subr.mxu0 0.0
    %5502 = vmatpush1.msra.mxu0 0.0
    %5503 = vmatprep.subr.mxu0 0.0
    %5504 = vmatpush1.msra.mxu0 0.0
    %5505 = vmatprep.subr.mxu0 0.0
    %5506 = vmatpush1.msra.mxu0 0.0
    %5507 = vmatprep.subr.mxu0 0.0
    %5508 = vmatpush1.msra.mxu0 0.0
    %5509 = vmatprep.subr.mxu0 0.0
    %5510 = vmatpush1.msra.mxu0 0.0
    %5511 = vmatprep.subr.mxu0 0.0
    %5512 = vmatpush1.msra.mxu0 0.0
    %5513 = vmatprep.subr.mxu0 0.0
    %5514 = vmatpush1.msra.mxu0 0.0
    %5515 = vmatprep.mubr.f32.mxu0 0.0
    %5516 = vmatmul.mubr.f32.gmra.mrb[0].mxu0 %v5446
    %v5517 = vpop.f32.mrb[0].mxu0
    %v5518 = vadd.f32 0.0, %v5517
    %v5519 = vpop.f32.mrb[0].mxu0
    %v5520 = vadd.f32 0.0, %v5519
    %5521 = vdwg.mxu0
    %5522 = vmatprep.subr.mxu0 %v3888
    %5523 = vmatpush1.msra.mxu0 %v3887
    %5524 = vmatprep.subr.mxu0 %v3892
    %5525 = vmatpush1.msra.mxu0 %v3891
    %5526 = vmatprep.subr.mxu0 %v3896
    %5527 = vmatpush1.msra.mxu0 %v3895
    %5528 = vmatprep.subr.mxu0 %v3900
    %5529 = vmatpush1.msra.mxu0 %v3899
    %5530 = vmatprep.subr.mxu0 %v3904
    %5531 = vmatpush1.msra.mxu0 %v3903
    %5532 = vmatprep.subr.mxu0 %v3908
    %5533 = vmatpush1.msra.mxu0 %v3907
    %5534 = vmatprep.subr.mxu0 %v3912
    %5535 = vmatpush1.msra.mxu0 %v3911
    %5536 = vmatprep.subr.mxu0 %v3916
    %5537 = vmatpush1.msra.mxu0 %v3915
    %5538 = vmatprep.subr.mxu0 %v3920
    %5539 = vmatpush1.msra.mxu0 %v3919
    %5540 = vmatprep.subr.mxu0 %v3924
    %5541 = vmatpush1.msra.mxu0 %v3923
    %5542 = vmatprep.subr.mxu0 %v3928
    %5543 = vmatpush1.msra.mxu0 %v3927
    %5544 = vmatprep.subr.mxu0 %v3932
    %5545 = vmatpush1.msra.mxu0 %v3931
    %5546 = vmatprep.subr.mxu0 %v3936
    %5547 = vmatpush1.msra.mxu0 %v3935
    %5548 = vmatprep.subr.mxu0 %v3940
    %5549 = vmatpush1.msra.mxu0 %v3939
    %5550 = vmatprep.subr.mxu0 %v3944
    %5551 = vmatpush1.msra.mxu0 %v3943
    %5552 = vmatprep.subr.mxu0 %v3948
    %5553 = vmatpush1.msra.mxu0 %v3947
    %5554 = vmatprep.subr.mxu0 0.0
    %5555 = vmatpush1.msra.mxu0 0.0
    %5556 = vmatprep.subr.mxu0 0.0
    %5557 = vmatpush1.msra.mxu0 0.0
    %5558 = vmatprep.subr.mxu0 0.0
    %5559 = vmatpush1.msra.mxu0 0.0
    %5560 = vmatprep.subr.mxu0 0.0
    %5561 = vmatpush1.msra.mxu0 0.0
    %5562 = vmatprep.subr.mxu0 0.0
    %5563 = vmatpush1.msra.mxu0 0.0
    %5564 = vmatprep.subr.mxu0 0.0
    %5565 = vmatpush1.msra.mxu0 0.0
    %5566 = vmatprep.subr.mxu0 0.0
    %5567 = vmatpush1.msra.mxu0 0.0
    %5568 = vmatprep.subr.mxu0 0.0
    %5569 = vmatpush1.msra.mxu0 0.0
    %5570 = vmatprep.subr.mxu0 0.0
    %5571 = vmatpush1.msra.mxu0 0.0
    %5572 = vmatprep.subr.mxu0 0.0
    %5573 = vmatpush1.msra.mxu0 0.0
    %5574 = vmatprep.subr.mxu0 0.0
    %5575 = vmatpush1.msra.mxu0 0.0
    %5576 = vmatprep.subr.mxu0 0.0
    %5577 = vmatpush1.msra.mxu0 0.0
    %5578 = vmatprep.subr.mxu0 0.0
    %5579 = vmatpush1.msra.mxu0 0.0
    %5580 = vmatprep.subr.mxu0 0.0
    %5581 = vmatpush1.msra.mxu0 0.0
    %5582 = vmatprep.subr.mxu0 0.0
    %5583 = vmatpush1.msra.mxu0 0.0
    %5584 = vmatprep.subr.mxu0 0.0
    %5585 = vmatpush1.msra.mxu0 0.0
    %5586 = vmatprep.mubr.f32.mxu0 0.0
    %5587 = vmatmul.mubr.f32.gmra.mrb[0].mxu0 %v5446
    %v5588 = vpop.f32.mrb[0].mxu0
    %v5589 = vadd.f32 0.0, %v5588
    %v5590 = vpop.f32.mrb[0].mxu0
    %v5591 = vadd.f32 0.0, %v5590
    %5592 = vdwg.mxu0
    %v5593 = vadd.f32 %v5447, %v5518
    %v5594 = vadd.f32 %v5448, %v5520
    %v5595 = vadd.f32 %v5449, %v5589
    %v5596 = vadd.f32 %v5450, %v5591
    %v5597 = vxor.u32 %v5593, 2147483648
    %v5598 = vmul.f32 %v5597, 1.442695
    %v5599 = vpow.pop %v5598
    %v5600 = vadd.f32 %v5599, 1.0
    %v5601 = vrcp.pop %v5600
    %v5602 = vmul.f32 1.0, %v5601
    %v5603 = vxor.u32 %v5594, 2147483648
    %v5604 = vmul.f32 %v5603, 1.442695
    %v5605 = vpow.pop %v5604
    %v5606 = vadd.f32 %v5605, 1.0
    %v5607 = vrcp.pop %v5606
    %v5608 = vmul.f32 1.0, %v5607
    %v5609 = vtanh.pop %v5595
    %v5610 = vxor.u32 %v5596, 2147483648
    %v5611 = vmul.f32 %v5610, 1.442695
    %v5612 = vpow.pop %v5611
    %v5613 = vadd.f32 %v5612, 1.0
    %v5614 = vrcp.pop %v5613
    %v5615 = vmul.f32 1.0, %v5614
    %v5616 = vmul.f32 %v5608, %v5444
    %v5617 = vmul.f32 %v5602, %v5609
    %v5618 = vadd.f32 %v5616, %v5617
    %v5619 = vtanh.pop %v5618
    %v5620 = vmul.f32 %v5615, %v5619
    %v5621 = vld [vmem:[%s1928] sm:$0xff]
    %v5622 = vld [vmem:[%s1928 + $0x8] sm:$0xff]
    %s5623 = scalar_lea.vmem [#allocation8], 1024
    %v5624 = vld [vmem:[%s5623] sm:$0xff]
    %v5625 = vld [vmem:[%s5623 + $0x8] sm:$0xff]
    %v5626 = vld [vmem:[%s5623 + $0x10] sm:$0xff]
    %v5627 = vld [vmem:[%s5623 + $0x18] sm:$0xff]
    %v5628 = vld [vmem:[%s5623 + $0x20] sm:$0xff]
    %v5629 = vld [vmem:[%s5623 + $0x28] sm:$0xff]
    %v5630 = vld [vmem:[%s5623 + $0x30] sm:$0xff]
    %v5631 = vld [vmem:[%s5623 + $0x38] sm:$0xff]
    %v5632 = vld [vmem:[%s5623 + $0x40] sm:$0xff]
    %v5633 = vld [vmem:[%s5623 + $0x48] sm:$0xff]
    %v5634 = vld [vmem:[%s5623 + $0x50] sm:$0xff]
    %v5635 = vld [vmem:[%s5623 + $0x58] sm:$0xff]
    %v5636 = vld [vmem:[%s5623 + $0x60] sm:$0xff]
    %v5637 = vld [vmem:[%s5623 + $0x68] sm:$0xff]
    %v5638 = vld [vmem:[%s5623 + $0x70] sm:$0xff]
    %v5639 = vld [vmem:[%s5623 + $0x78] sm:$0xff]
    %v5640 = vld [vmem:[%s5623 + $0x80] sm:$0xff]
    %v5641 = vld [vmem:[%s5623 + $0x88] sm:$0xff]
    %v5642 = vld [vmem:[%s5623 + $0x90] sm:$0xff]
    %v5643 = vld [vmem:[%s5623 + $0x98] sm:$0xff]
    %v5644 = vld [vmem:[%s5623 + $0xa0] sm:$0xff]
    %v5645 = vld [vmem:[%s5623 + $0xa8] sm:$0xff]
    %v5646 = vld [vmem:[%s5623 + $0xb0] sm:$0xff]
    %v5647 = vld [vmem:[%s5623 + $0xb8] sm:$0xff]
    %v5648 = vld [vmem:[%s5623 + $0xc0] sm:$0xff]
    %v5649 = vld [vmem:[%s5623 + $0xc8] sm:$0xff]
    %v5650 = vld [vmem:[%s5623 + $0xd0] sm:$0xff]
    %v5651 = vld [vmem:[%s5623 + $0xd8] sm:$0xff]
    %v5652 = vld [vmem:[%s5623 + $0xe0] sm:$0xff]
    %v5653 = vld [vmem:[%s5623 + $0xe8] sm:$0xff]
    %v5654 = vld [vmem:[%s5623 + $0xf0] sm:$0xff]
    %v5655 = vld [vmem:[%s5623 + $0xf8] sm:$0xff]
    %v5656 = vld [vmem:[%s5623 + $0x100] sm:$0xff]
    %v5657 = vld [vmem:[%s5623 + $0x108] sm:$0xff]
    %v5658 = vld [vmem:[%s5623 + $0x110] sm:$0xff]
    %v5659 = vld [vmem:[%s5623 + $0x118] sm:$0xff]
    %v5660 = vld [vmem:[%s5623 + $0x120] sm:$0xff]
    %v5661 = vld [vmem:[%s5623 + $0x128] sm:$0xff]
    %v5662 = vld [vmem:[%s5623 + $0x130] sm:$0xff]
    %v5663 = vld [vmem:[%s5623 + $0x138] sm:$0xff]
    %v5664 = vld [vmem:[%s5623 + $0x140] sm:$0xff]
    %v5665 = vld [vmem:[%s5623 + $0x148] sm:$0xff]
    %v5666 = vld [vmem:[%s5623 + $0x150] sm:$0xff]
    %v5667 = vld [vmem:[%s5623 + $0x158] sm:$0xff]
    %v5668 = vld [vmem:[%s5623 + $0x160] sm:$0xff]
    %v5669 = vld [vmem:[%s5623 + $0x168] sm:$0xff]
    %v5670 = vld [vmem:[%s5623 + $0x170] sm:$0xff]
    %v5671 = vld [vmem:[%s5623 + $0x178] sm:$0xff]
    %v5672 = vld [vmem:[%s5623 + $0x180] sm:$0xff]
    %v5673 = vld [vmem:[%s5623 + $0x188] sm:$0xff]
    %v5674 = vld [vmem:[%s5623 + $0x190] sm:$0xff]
    %v5675 = vld [vmem:[%s5623 + $0x198] sm:$0xff]
    %v5676 = vld [vmem:[%s5623 + $0x1a0] sm:$0xff]
    %v5677 = vld [vmem:[%s5623 + $0x1a8] sm:$0xff]
    %v5678 = vld [vmem:[%s5623 + $0x1b0] sm:$0xff]
    %v5679 = vld [vmem:[%s5623 + $0x1b8] sm:$0xff]
    %v5680 = vld [vmem:[%s5623 + $0x1c0] sm:$0xff]
    %v5681 = vld [vmem:[%s5623 + $0x1c8] sm:$0xff]
    %v5682 = vld [vmem:[%s5623 + $0x1d0] sm:$0xff]
    %v5683 = vld [vmem:[%s5623 + $0x1d8] sm:$0xff]
    %v5684 = vld [vmem:[%s5623 + $0x1e0] sm:$0xff]
    %v5685 = vld [vmem:[%s5623 + $0x1e8] sm:$0xff]
    %v5686 = vld [vmem:[%s5623 + $0x1f0] sm:$0xff]
    %v5687 = vld [vmem:[%s5623 + $0x1f8] sm:$0xff]
    %v5688 = vld [vmem:[%s5623 + $0x200] sm:$0xff]
    %v5689 = vld [vmem:[%s5623 + $0x208] sm:$0xff]
    %v5690 = vld [vmem:[%s5623 + $0x210] sm:$0xff]
    %v5691 = vld [vmem:[%s5623 + $0x218] sm:$0xff]
    %v5692 = vld [vmem:[%s5623 + $0x220] sm:$0xff]
    %v5693 = vld [vmem:[%s5623 + $0x228] sm:$0xff]
    %v5694 = vld [vmem:[%s5623 + $0x230] sm:$0xff]
    %v5695 = vld [vmem:[%s5623 + $0x238] sm:$0xff]
    %v5696 = vld [vmem:[%s5623 + $0x240] sm:$0xff]
    %v5697 = vld [vmem:[%s5623 + $0x248] sm:$0xff]
    %v5698 = vld [vmem:[%s5623 + $0x250] sm:$0xff]
    %v5699 = vld [vmem:[%s5623 + $0x258] sm:$0xff]
    %v5700 = vld [vmem:[%s5623 + $0x260] sm:$0xff]
    %v5701 = vld [vmem:[%s5623 + $0x268] sm:$0xff]
    %v5702 = vld [vmem:[%s5623 + $0x270] sm:$0xff]
    %v5703 = vld [vmem:[%s5623 + $0x278] sm:$0xff]
    %v5704 = vld [vmem:[%s5623 + $0x280] sm:$0xff]
    %v5705 = vld [vmem:[%s5623 + $0x288] sm:$0xff]
    %v5706 = vld [vmem:[%s5623 + $0x290] sm:$0xff]
    %v5707 = vld [vmem:[%s5623 + $0x298] sm:$0xff]
    %v5708 = vld [vmem:[%s5623 + $0x2a0] sm:$0xff]
    %v5709 = vld [vmem:[%s5623 + $0x2a8] sm:$0xff]
    %v5710 = vld [vmem:[%s5623 + $0x2b0] sm:$0xff]
    %v5711 = vld [vmem:[%s5623 + $0x2b8] sm:$0xff]
    %v5712 = vld [vmem:[%s5623 + $0x2c0] sm:$0xff]
    %v5713 = vld [vmem:[%s5623 + $0x2c8] sm:$0xff]
    %v5714 = vld [vmem:[%s5623 + $0x2d0] sm:$0xff]
    %v5715 = vld [vmem:[%s5623 + $0x2d8] sm:$0xff]
    %v5716 = vld [vmem:[%s5623 + $0x2e0] sm:$0xff]
    %v5717 = vld [vmem:[%s5623 + $0x2e8] sm:$0xff]
    %v5718 = vld [vmem:[%s5623 + $0x2f0] sm:$0xff]
    %v5719 = vld [vmem:[%s5623 + $0x2f8] sm:$0xff]
    %v5720 = vld [vmem:[%s5623 + $0x300] sm:$0xff]
    %v5721 = vld [vmem:[%s5623 + $0x308] sm:$0xff]
    %v5722 = vld [vmem:[%s5623 + $0x310] sm:$0xff]
    %v5723 = vld [vmem:[%s5623 + $0x318] sm:$0xff]
    %v5724 = vld [vmem:[%s5623 + $0x320] sm:$0xff]
    %v5725 = vld [vmem:[%s5623 + $0x328] sm:$0xff]
    %v5726 = vld [vmem:[%s5623 + $0x330] sm:$0xff]
    %v5727 = vld [vmem:[%s5623 + $0x338] sm:$0xff]
    %v5728 = vld [vmem:[%s5623 + $0x340] sm:$0xff]
    %v5729 = vld [vmem:[%s5623 + $0x348] sm:$0xff]
    %v5730 = vld [vmem:[%s5623 + $0x350] sm:$0xff]
    %v5731 = vld [vmem:[%s5623 + $0x358] sm:$0xff]
    %v5732 = vld [vmem:[%s5623 + $0x360] sm:$0xff]
    %v5733 = vld [vmem:[%s5623 + $0x368] sm:$0xff]
    %v5734 = vld [vmem:[%s5623 + $0x370] sm:$0xff]
    %v5735 = vld [vmem:[%s5623 + $0x378] sm:$0xff]
    %v5736 = vld [vmem:[%s5623 + $0x380] sm:$0xff]
    %v5737 = vld [vmem:[%s5623 + $0x388] sm:$0xff]
    %v5738 = vld [vmem:[%s5623 + $0x390] sm:$0xff]
    %v5739 = vld [vmem:[%s5623 + $0x398] sm:$0xff]
    %v5740 = vld [vmem:[%s5623 + $0x3a0] sm:$0xff]
    %v5741 = vld [vmem:[%s5623 + $0x3a8] sm:$0xff]
    %v5742 = vld [vmem:[%s5623 + $0x3b0] sm:$0xff]
    %v5743 = vld [vmem:[%s5623 + $0x3b8] sm:$0xff]
    %v5744 = vld [vmem:[%s5623 + $0x3c0] sm:$0xff]
    %v5745 = vld [vmem:[%s5623 + $0x3c8] sm:$0xff]
    %v5746 = vld [vmem:[%s5623 + $0x3d0] sm:$0xff]
    %v5747 = vld [vmem:[%s5623 + $0x3d8] sm:$0xff]
    %v5748 = vld [vmem:[%s5623 + $0x3e0] sm:$0xff]
    %v5749 = vld [vmem:[%s5623 + $0x3e8] sm:$0xff]
    %v5750 = vld [vmem:[%s5623 + $0x3f0] sm:$0xff]
    %v5751 = vld [vmem:[%s5623 + $0x3f8] sm:$0xff]
    %s5752 = scalar_lea.vmem %s6, 4
    %v5753 = vld [vmem:[%s5752] sm:$0xf]
    %v5755 = vlaneseq
    %v5756 = vshrl.u32 %v5755, 7
    %v5757 = vsub.s32 0, %v5756
    %v5758 = vrot.slane %v5753, %v5757
    %v5759 = vlaneseq
    %v5760 = vshrl.u32 %v5759, 7
    %v5761 = vsub.s32 2, %v5760
    %v5762 = vrot.slane %v5753, %v5761
    %v5763 = vlaneseq
    %v5764 = vshrl.u32 %v5763, 7
    %v5765 = vsub.s32 3, %v5764
    %v5766 = vrot.slane %v5753, %v5765
    %5770 = vmatprep.subr.mxu0 %v5625
    %5771 = vmatpush1.msra.mxu0 %v5624
    %5772 = vmatprep.subr.mxu0 %v5629
    %5773 = vmatpush1.msra.mxu0 %v5628
    %5774 = vmatprep.subr.mxu0 %v5633
    %5775 = vmatpush1.msra.mxu0 %v5632
    %5776 = vmatprep.subr.mxu0 %v5637
    %5777 = vmatpush1.msra.mxu0 %v5636
    %5778 = vmatprep.subr.mxu0 %v5641
    %5779 = vmatpush1.msra.mxu0 %v5640
    %5780 = vmatprep.subr.mxu0 %v5645
    %5781 = vmatpush1.msra.mxu0 %v5644
    %5782 = vmatprep.subr.mxu0 %v5649
    %5783 = vmatpush1.msra.mxu0 %v5648
    %5784 = vmatprep.subr.mxu0 %v5653
    %5785 = vmatpush1.msra.mxu0 %v5652
    %5786 = vmatprep.subr.mxu0 %v5657
    %5787 = vmatpush1.msra.mxu0 %v5656
    %5788 = vmatprep.subr.mxu0 %v5661
    %5789 = vmatpush1.msra.mxu0 %v5660
    %5790 = vmatprep.subr.mxu0 %v5665
    %5791 = vmatpush1.msra.mxu0 %v5664
    %5792 = vmatprep.subr.mxu0 %v5669
    %5793 = vmatpush1.msra.mxu0 %v5668
    %5794 = vmatprep.subr.mxu0 %v5673
    %5795 = vmatpush1.msra.mxu0 %v5672
    %5796 = vmatprep.subr.mxu0 %v5677
    %5797 = vmatpush1.msra.mxu0 %v5676
    %5798 = vmatprep.subr.mxu0 %v5681
    %5799 = vmatpush1.msra.mxu0 %v5680
    %5800 = vmatprep.subr.mxu0 %v5685
    %5801 = vmatpush1.msra.mxu0 %v5684
    %5802 = vmatprep.subr.mxu0 %v5689
    %5803 = vmatpush1.msra.mxu0 %v5688
    %5804 = vmatprep.subr.mxu0 %v5693
    %5805 = vmatpush1.msra.mxu0 %v5692
    %5806 = vmatprep.subr.mxu0 %v5697
    %5807 = vmatpush1.msra.mxu0 %v5696
    %5808 = vmatprep.subr.mxu0 %v5701
    %5809 = vmatpush1.msra.mxu0 %v5700
    %5810 = vmatprep.subr.mxu0 %v5705
    %5811 = vmatpush1.msra.mxu0 %v5704
    %5812 = vmatprep.subr.mxu0 %v5709
    %5813 = vmatpush1.msra.mxu0 %v5708
    %5814 = vmatprep.subr.mxu0 %v5713
    %5815 = vmatpush1.msra.mxu0 %v5712
    %5816 = vmatprep.subr.mxu0 %v5717
    %5817 = vmatpush1.msra.mxu0 %v5716
    %5818 = vmatprep.subr.mxu0 %v5721
    %5819 = vmatpush1.msra.mxu0 %v5720
    %5820 = vmatprep.subr.mxu0 %v5725
    %5821 = vmatpush1.msra.mxu0 %v5724
    %5822 = vmatprep.subr.mxu0 %v5729
    %5823 = vmatpush1.msra.mxu0 %v5728
    %5824 = vmatprep.subr.mxu0 %v5733
    %5825 = vmatpush1.msra.mxu0 %v5732
    %5826 = vmatprep.subr.mxu0 %v5737
    %5827 = vmatpush1.msra.mxu0 %v5736
    %5828 = vmatprep.subr.mxu0 %v5741
    %5829 = vmatpush1.msra.mxu0 %v5740
    %5830 = vmatprep.subr.mxu0 %v5745
    %5831 = vmatpush1.msra.mxu0 %v5744
    %5832 = vmatprep.subr.mxu0 %v5749
    %5833 = vmatpush1.msra.mxu0 %v5748
    %5834 = vmatprep.mubr.f32.mxu0 %v5622
    %5835 = vmatmul.mubr.f32.gmra.mrb[0].mxu0 %v5621
    %v5836 = vpop.f32.mrb[0].mxu0
    %v5837 = vadd.f32 %v5758, %v5836
    %v5838 = vpop.f32.mrb[0].mxu0
    %5839 = vdwg.mxu0
    %5840 = vmatprep.subr.mxu0 %v5627
    %5841 = vmatpush1.msra.mxu0 %v5626
    %5842 = vmatprep.subr.mxu0 %v5631
    %5843 = vmatpush1.msra.mxu0 %v5630
    %5844 = vmatprep.subr.mxu0 %v5635
    %5845 = vmatpush1.msra.mxu0 %v5634
    %5846 = vmatprep.subr.mxu0 %v5639
    %5847 = vmatpush1.msra.mxu0 %v5638
    %5848 = vmatprep.subr.mxu0 %v5643
    %5849 = vmatpush1.msra.mxu0 %v5642
    %5850 = vmatprep.subr.mxu0 %v5647
    %5851 = vmatpush1.msra.mxu0 %v5646
    %5852 = vmatprep.subr.mxu0 %v5651
    %5853 = vmatpush1.msra.mxu0 %v5650
    %5854 = vmatprep.subr.mxu0 %v5655
    %5855 = vmatpush1.msra.mxu0 %v5654
    %5856 = vmatprep.subr.mxu0 %v5659
    %5857 = vmatpush1.msra.mxu0 %v5658
    %5858 = vmatprep.subr.mxu0 %v5663
    %5859 = vmatpush1.msra.mxu0 %v5662
    %5860 = vmatprep.subr.mxu0 %v5667
    %5861 = vmatpush1.msra.mxu0 %v5666
    %5862 = vmatprep.subr.mxu0 %v5671
    %5863 = vmatpush1.msra.mxu0 %v5670
    %5864 = vmatprep.subr.mxu0 %v5675
    %5865 = vmatpush1.msra.mxu0 %v5674
    %5866 = vmatprep.subr.mxu0 %v5679
    %5867 = vmatpush1.msra.mxu0 %v5678
    %5868 = vmatprep.subr.mxu0 %v5683
    %5869 = vmatpush1.msra.mxu0 %v5682
    %5870 = vmatprep.subr.mxu0 %v5687
    %5871 = vmatpush1.msra.mxu0 %v5686
    %5872 = vmatprep.subr.mxu0 %v5691
    %5873 = vmatpush1.msra.mxu0 %v5690
    %5874 = vmatprep.subr.mxu0 %v5695
    %5875 = vmatpush1.msra.mxu0 %v5694
    %5876 = vmatprep.subr.mxu0 %v5699
    %5877 = vmatpush1.msra.mxu0 %v5698
    %5878 = vmatprep.subr.mxu0 %v5703
    %5879 = vmatpush1.msra.mxu0 %v5702
    %5880 = vmatprep.subr.mxu0 %v5707
    %5881 = vmatpush1.msra.mxu0 %v5706
    %5882 = vmatprep.subr.mxu0 %v5711
    %5883 = vmatpush1.msra.mxu0 %v5710
    %5884 = vmatprep.subr.mxu0 %v5715
    %5885 = vmatpush1.msra.mxu0 %v5714
    %5886 = vmatprep.subr.mxu0 %v5719
    %5887 = vmatpush1.msra.mxu0 %v5718
    %5888 = vmatprep.subr.mxu0 %v5723
    %5889 = vmatpush1.msra.mxu0 %v5722
    %5890 = vmatprep.subr.mxu0 %v5727
    %5891 = vmatpush1.msra.mxu0 %v5726
    %5892 = vmatprep.subr.mxu0 %v5731
    %5893 = vmatpush1.msra.mxu0 %v5730
    %5894 = vmatprep.subr.mxu0 %v5735
    %5895 = vmatpush1.msra.mxu0 %v5734
    %5896 = vmatprep.subr.mxu0 %v5739
    %5897 = vmatpush1.msra.mxu0 %v5738
    %5898 = vmatprep.subr.mxu0 %v5743
    %5899 = vmatpush1.msra.mxu0 %v5742
    %5900 = vmatprep.subr.mxu0 %v5747
    %5901 = vmatpush1.msra.mxu0 %v5746
    %5902 = vmatprep.subr.mxu0 %v5751
    %5903 = vmatpush1.msra.mxu0 %v5750
    %5904 = vmatprep.mubr.f32.mxu0 %v5622
    %5905 = vmatmul.mubr.f32.gmra.mrb[0].mxu0 %v5621
    %v5906 = vpop.f32.mrb[0].mxu0
    %v5907 = vadd.f32 %v5762, %v5906
    %v5908 = vpop.f32.mrb[0].mxu0
    %v5909 = vadd.f32 %v5766, %v5908
    %5910 = vdwg.mxu0
    %v5911 = vxor.u32 %v5837, 2147483648
    %v5912 = vmul.f32 %v5911, 1.442695
    %v5913 = vpow.pop %v5912
    %v5914 = vadd.f32 %v5913, 1.0
    %v5915 = vrcp.pop %v5914
    %v5916 = vmul.f32 1.0, %v5915
    %v5917 = vtanh.pop %v5907
    %v5918 = vxor.u32 %v5909, 2147483648
    %v5919 = vmul.f32 %v5918, 1.442695
    %v5920 = vpow.pop %v5919
    %v5921 = vadd.f32 %v5920, 1.0
    %v5922 = vrcp.pop %v5921
    %v5923 = vmul.f32 1.0, %v5922
    %v5924 = vmul.f32 %v5916, %v5917
    %v5925 = vtanh.pop %v5924
    %v5926 = vmul.f32 %v5923, %v5925
    %v5927 = vld [vmem:[#allocation11] sm:$0xff]
    %v5928 = vld [vmem:[#allocation11 + $0x8] sm:$0xff]
    %v5929 = vld [vmem:[#allocation11 + $0x10] sm:$0xff]
    %v5930 = vld [vmem:[#allocation11 + $0x18] sm:$0xff]
    %v5931 = vld [vmem:[#allocation11 + $0x20] sm:$0xff]
    %v5932 = vld [vmem:[#allocation11 + $0x28] sm:$0xff]
    %v5933 = vld [vmem:[#allocation11 + $0x30] sm:$0xff]
    %v5934 = vld [vmem:[#allocation11 + $0x38] sm:$0xff]
    %v5935 = vld [vmem:[#allocation11 + $0x40] sm:$0xff]
    %v5936 = vld [vmem:[#allocation11 + $0x48] sm:$0xff]
    %v5937 = vld [vmem:[#allocation11 + $0x50] sm:$0xff]
    %v5938 = vld [vmem:[#allocation11 + $0x58] sm:$0xff]
    %v5939 = vld [vmem:[#allocation11 + $0x60] sm:$0xff]
    %v5940 = vld [vmem:[#allocation11 + $0x68] sm:$0xff]
    %v5941 = vld [vmem:[#allocation11 + $0x70] sm:$0xff]
    %v5942 = vld [vmem:[#allocation11 + $0x78] sm:$0xff]
    %v5943 = vld [vmem:[#allocation11 + $0x80] sm:$0xff]
    %v5944 = vld [vmem:[#allocation11 + $0x88] sm:$0xff]
    %v5945 = vld [vmem:[#allocation11 + $0x90] sm:$0xff]
    %v5946 = vld [vmem:[#allocation11 + $0x98] sm:$0xff]
    %v5947 = vld [vmem:[#allocation11 + $0xa0] sm:$0xff]
    %v5948 = vld [vmem:[#allocation11 + $0xa8] sm:$0xff]
    %v5949 = vld [vmem:[#allocation11 + $0xb0] sm:$0xff]
    %v5950 = vld [vmem:[#allocation11 + $0xb8] sm:$0xff]
    %v5951 = vld [vmem:[#allocation11 + $0xc0] sm:$0xff]
    %v5952 = vld [vmem:[#allocation11 + $0xc8] sm:$0xff]
    %v5953 = vld [vmem:[#allocation11 + $0xd0] sm:$0xff]
    %v5954 = vld [vmem:[#allocation11 + $0xd8] sm:$0xff]
    %v5955 = vld [vmem:[#allocation11 + $0xe0] sm:$0xff]
    %v5956 = vld [vmem:[#allocation11 + $0xe8] sm:$0xff]
    %v5957 = vld [vmem:[#allocation11 + $0xf0] sm:$0xff]
    %v5958 = vld [vmem:[#allocation11 + $0xf8] sm:$0xff]
    %5959 = vmatprep.subr.mxu0 0.0
    %5960 = vmatpush1.msra.mxu0 %v5943
    %5961 = vmatprep.subr.mxu0 0.0
    %5962 = vmatpush1.msra.mxu0 %v5944
    %5963 = vmatprep.subr.mxu0 0.0
    %5964 = vmatpush1.msra.mxu0 %v5945
    %5965 = vmatprep.subr.mxu0 0.0
    %5966 = vmatpush1.msra.mxu0 %v5946
    %5967 = vmatprep.subr.mxu0 0.0
    %5968 = vmatpush1.msra.mxu0 %v5947
    %5969 = vmatprep.subr.mxu0 0.0
    %5970 = vmatpush1.msra.mxu0 %v5948
    %5971 = vmatprep.subr.mxu0 0.0
    %5972 = vmatpush1.msra.mxu0 %v5949
    %5973 = vmatprep.subr.mxu0 0.0
    %5974 = vmatpush1.msra.mxu0 %v5950
    %5975 = vmatprep.subr.mxu0 0.0
    %5976 = vmatpush1.msra.mxu0 %v5951
    %5977 = vmatprep.subr.mxu0 0.0
    %5978 = vmatpush1.msra.mxu0 %v5952
    %5979 = vmatprep.subr.mxu0 0.0
    %5980 = vmatpush1.msra.mxu0 %v5953
    %5981 = vmatprep.subr.mxu0 0.0
    %5982 = vmatpush1.msra.mxu0 %v5954
    %5983 = vmatprep.subr.mxu0 0.0
    %5984 = vmatpush1.msra.mxu0 %v5955
    %5985 = vmatprep.subr.mxu0 0.0
    %5986 = vmatpush1.msra.mxu0 %v5956
    %5987 = vmatprep.subr.mxu0 0.0
    %5988 = vmatpush1.msra.mxu0 %v5957
    %5989 = vmatprep.subr.mxu0 0.0
    %5990 = vmatpush1.msra.mxu0 %v5958
    %5991 = vmatprep.subr.mxu0 0.0
    %5992 = vmatpush1.msra.mxu0 0.0
    %5993 = vmatprep.subr.mxu0 0.0
    %5994 = vmatpush1.msra.mxu0 0.0
    %5995 = vmatprep.subr.mxu0 0.0
    %5996 = vmatpush1.msra.mxu0 0.0
    %5997 = vmatprep.subr.mxu0 0.0
    %5998 = vmatpush1.msra.mxu0 0.0
    %5999 = vmatprep.subr.mxu0 0.0
    %6000 = vmatpush1.msra.mxu0 0.0
    %6001 = vmatprep.subr.mxu0 0.0
    %6002 = vmatpush1.msra.mxu0 0.0
    %6003 = vmatprep.subr.mxu0 0.0
    %6004 = vmatpush1.msra.mxu0 0.0
    %6005 = vmatprep.subr.mxu0 0.0
    %6006 = vmatpush1.msra.mxu0 0.0
    %6007 = vmatprep.subr.mxu0 0.0
    %6008 = vmatpush1.msra.mxu0 0.0
    %6009 = vmatprep.subr.mxu0 0.0
    %6010 = vmatpush1.msra.mxu0 0.0
    %6011 = vmatprep.subr.mxu0 0.0
    %6012 = vmatpush1.msra.mxu0 0.0
    %6013 = vmatprep.subr.mxu0 0.0
    %6014 = vmatpush1.msra.mxu0 0.0
    %6015 = vmatprep.subr.mxu0 0.0
    %6016 = vmatpush1.msra.mxu0 0.0
    %6017 = vmatprep.subr.mxu0 0.0
    %6018 = vmatpush1.msra.mxu0 0.0
    %6019 = vmatprep.subr.mxu0 0.0
    %6020 = vmatpush1.msra.mxu0 0.0
    %6021 = vmatprep.subr.mxu0 0.0
    %6022 = vmatpush1.msra.mxu0 0.0
    %6023 = vmatprep.mubr.f32.mxu0 0.0
    %6024 = vmatmul.mubr.f32.gmra.mrb[0].mxu0 %v5926
    %v6025 = vpop.f32.mrb[0].mxu0
    %v6026 = vadd.f32 0.0, %v6025
    %v6027 = vpop.f32.mrb[0].mxu0
    %6028 = vdwg.mxu0
    %6029 = vmatprep.subr.mxu0 0.0
    %6030 = vmatpush1.msra.mxu0 %v5927
    %6031 = vmatprep.subr.mxu0 0.0
    %6032 = vmatpush1.msra.mxu0 %v5928
    %6033 = vmatprep.subr.mxu0 0.0
    %6034 = vmatpush1.msra.mxu0 %v5929
    %6035 = vmatprep.subr.mxu0 0.0
    %6036 = vmatpush1.msra.mxu0 %v5930
    %6037 = vmatprep.subr.mxu0 0.0
    %6038 = vmatpush1.msra.mxu0 %v5931
    %6039 = vmatprep.subr.mxu0 0.0
    %6040 = vmatpush1.msra.mxu0 %v5932
    %6041 = vmatprep.subr.mxu0 0.0
    %6042 = vmatpush1.msra.mxu0 %v5933
    %6043 = vmatprep.subr.mxu0 0.0
    %6044 = vmatpush1.msra.mxu0 %v5934
    %6045 = vmatprep.subr.mxu0 0.0
    %6046 = vmatpush1.msra.mxu0 %v5935
    %6047 = vmatprep.subr.mxu0 0.0
    %6048 = vmatpush1.msra.mxu0 %v5936
    %6049 = vmatprep.subr.mxu0 0.0
    %6050 = vmatpush1.msra.mxu0 %v5937
    %6051 = vmatprep.subr.mxu0 0.0
    %6052 = vmatpush1.msra.mxu0 %v5938
    %6053 = vmatprep.subr.mxu0 0.0
    %6054 = vmatpush1.msra.mxu0 %v5939
    %6055 = vmatprep.subr.mxu0 0.0
    %6056 = vmatpush1.msra.mxu0 %v5940
    %6057 = vmatprep.subr.mxu0 0.0
    %6058 = vmatpush1.msra.mxu0 %v5941
    %6059 = vmatprep.subr.mxu0 0.0
    %6060 = vmatpush1.msra.mxu0 %v5942
    %6061 = vmatprep.subr.mxu0 0.0
    %6062 = vmatpush1.msra.mxu0 0.0
    %6063 = vmatprep.subr.mxu0 0.0
    %6064 = vmatpush1.msra.mxu0 0.0
    %6065 = vmatprep.subr.mxu0 0.0
    %6066 = vmatpush1.msra.mxu0 0.0
    %6067 = vmatprep.subr.mxu0 0.0
    %6068 = vmatpush1.msra.mxu0 0.0
    %6069 = vmatprep.subr.mxu0 0.0
    %6070 = vmatpush1.msra.mxu0 0.0
    %6071 = vmatprep.subr.mxu0 0.0
    %6072 = vmatpush1.msra.mxu0 0.0
    %6073 = vmatprep.subr.mxu0 0.0
    %6074 = vmatpush1.msra.mxu0 0.0
    %6075 = vmatprep.subr.mxu0 0.0
    %6076 = vmatpush1.msra.mxu0 0.0
    %6077 = vmatprep.subr.mxu0 0.0
    %6078 = vmatpush1.msra.mxu0 0.0
    %6079 = vmatprep.subr.mxu0 0.0
    %6080 = vmatpush1.msra.mxu0 0.0
    %6081 = vmatprep.subr.mxu0 0.0
    %6082 = vmatpush1.msra.mxu0 0.0
    %6083 = vmatprep.subr.mxu0 0.0
    %6084 = vmatpush1.msra.mxu0 0.0
    %6085 = vmatprep.subr.mxu0 0.0
    %6086 = vmatpush1.msra.mxu0 0.0
    %6087 = vmatprep.subr.mxu0 0.0
    %6088 = vmatpush1.msra.mxu0 0.0
    %6089 = vmatprep.subr.mxu0 0.0
    %6090 = vmatpush1.msra.mxu0 0.0
    %6091 = vmatprep.subr.mxu0 0.0
    %6092 = vmatpush1.msra.mxu0 0.0
    %6093 = vmatprep.mubr.f32.mxu0 0.0
    %6094 = vmatmul.mubr.f32.gmra.mrb[0].mxu0 %v5620
    %v6095 = vpop.f32.mrb[0].mxu0
    %v6096 = vadd.f32 %v6026, %v6095
    %v6097 = vpop.f32.mrb[0].mxu0
    %6098 = vdwg.mxu0
    %v6099 = vld [vmem:[%s8] sm:$0x1]
    %v6101 = vlaneseq
    %v6102 = vshrl.u32 %v6101, 7
    %v6103 = vsub.s32 0, %v6102
    %v6104 = vrot.slane %v6099, %v6103
    %v6106 = vadd.f32 %v6096, %v6104
    %6107 = vst [vmem:[%s9] sm:$0xff] %v6106
    // Predicated region
    $region58: #{bilstm_forward.1} parent=1 // pred_check
      _
    $region59: #{bilstm_forward.1} parent=1 // pred_check_branch
      %6109 = sbr.rel (0) target = $region61
    $region60: #{bilstm_forward.1} parent=1 // pred_region
      _
    $region61: #{bilstm_forward.1} parent=1 // pred_fallthru
      _
    // Predicated region
    $region62: #{bilstm_forward.1} parent=1 // pred_check
      _
    $region63: #{bilstm_forward.1} parent=1 // pred_check_branch
      %6111 = sbr.rel (0) target = $region65
    $region64: #{bilstm_forward.1} parent=1 // pred_region
      _
    $region65: #{bilstm_forward.1} parent=1 // pred_fallthru
      _
    %6112 = vsyncpa [#allocation5], 1
    %6113 = vsyncpa [#allocation7], 1
    %6114 = vsyncpa [#allocation10], 1

</llo_original>
